<compile_context>
chip_gen: v7x
topology: tpu7x:2x2x1
jax: 0.10.0
libtpu: 0.0.40
codegen_flags: <defaults>
</compile_context>

<pallas_src>
import functools

import numpy as np
import jax
import jax.numpy as jnp
from jax import lax
from jax.experimental import pallas as pl
from jax.experimental.pallas import tpu as pltpu

LEAKY_SLOPE = 0.01
BN_EPS = 1e-5
LANE = 128


def _round_up(n, m):
    return ((n + m - 1) // m) * m


def _leaky(x):
    return jnp.where(x >= 0, x, LEAKY_SLOPE * x)


# ----------------------------- Pallas kernel ------------------------------- #

def _down_tile_kernel(xc_ref, xh_ref, w1_ref, b1_ref, w2_ref, b2_ref,
                      w3_ref, b3_ref, o_ref, pad_ref,
                      *, th, wh, cin, co, cip, cop):
    """One (batch, row-tile) grid step: pool + conv1a + conv1b + residual +
    LeakyReLU + conv2, all on-chip.

    Pooled-plane global rows (tile covers [r0, r0+th)):
      conv1a input  p   rows [r0-3, r0+th+3)  -> pad_ref rows [0, th+6)
      conv1a output a1  rows [r0-2, r0+th+2)  -> pad_ref rows [0, th+4)
      conv1b output t   rows [r0-1, r0+th+1)  -> pad_ref rows [0, th+2)
      conv2  output y   rows [r0,   r0+th)
    Reflection at the global top/bottom border is patched per stage under
    pl.when; out-of-image halo rows only need to be finite (never reach a kept
    output).
    """
    t_id = pl.program_id(1)
    is_top = t_id == 0
    is_bot = t_id == pl.num_programs(1) - 1
    bf16 = jnp.bfloat16

    # ---- fused MaxPool2d(2): wrapper pre-reshaped rows to (rows, 2, wh, 2*cin)
    def pool(x4):
        return jnp.maximum(
            jnp.maximum(x4[:, 0, :, 0:cin], x4[:, 0, :, cin:2 * cin]),
            jnp.maximum(x4[:, 1, :, 0:cin], x4[:, 1, :, cin:2 * cin]))

    def lane_pad(v, k):  # zero-pad channels to the lane-padded width
        if v.shape[-1] == k:
            return v
        return jnp.pad(v, ((0, 0), (0, 0), (0, k - v.shape[-1])))

    p_c = lane_pad(pool(xc_ref[0]), cip)                                 # (th, wh, cip)
    p_h = lane_pad(pool(xh_ref[0, 0].reshape(6, 2, wh, 2 * cin)), cip)   # (6,  wh, cip)

    # ---- shared 3x3 conv over the bf16 pad scratch (column reflection inside) ----
    def conv(rows_out, w_ref, b_ref, kdim, n, leaky):
        # ReflectionPad2d(1) width-wise for this stage's rows (after row fills).
        pad_ref[0:rows_out + 2, 0:1, :kdim] = pad_ref[0:rows_out + 2, 2:3, :kdim]
        pad_ref[0:rows_out + 2, wh + 1:wh + 2, :kdim] = \
            pad_ref[0:rows_out + 2, wh - 1:wh, :kdim]
        m = rows_out * wh
        acc = jnp.zeros((m, n), jnp.float32)
        for ky in range(3):
            band = pad_ref[ky:ky + rows_out, :, :kdim]        # (rows_out, wh+2, kdim) bf16
            patch = jnp.concatenate(
                [band[:, 0:wh], band[:, 1:wh + 1], band[:, 2:wh + 2]], axis=-1)
            acc = acc + jnp.dot(patch.reshape(m, 3 * kdim), w_ref[ky],
                                preferred_element_type=jnp.float32)
        y = acc + b_ref[...]
        if leaky:
            y = _leaky(y)
        return y.reshape(rows_out, wh, n)

    # ---- conv1a: reflect-pad(p) -> conv -> BN -> LeakyReLU ----
    pad_ref[0:3, 1:wh + 1, :cip] = p_h[0:3].astype(bf16)
    pad_ref[3:th + 3, 1:wh + 1, :cip] = p_c.astype(bf16)
    pad_ref[th + 3:th + 6, 1:wh + 1, :cip] = p_h[3:6].astype(bf16)

    @pl.when(is_top)
    def _():   # pooled row -1 := row 1
        pad_ref[2:3, 1:wh + 1, :cip] = pad_ref[4:5, 1:wh + 1, :cip]

    @pl.when(is_bot)
    def _():   # pooled row hh := row hh-2
        pad_ref[th + 3:th + 4, 1:wh + 1, :cip] = pad_ref[th + 1:th + 2, 1:wh + 1, :cip]

    a1 = conv(th + 4, w1_ref, b1_ref, cip, cop, leaky=True)

    # ---- conv1b: reflect-pad(a1) -> conv -> BN (no activation) ----
    pad_ref[0:th + 4, 1:wh + 1, :cop] = a1.astype(bf16)

    @pl.when(is_top)
    def _():   # a1 row -1 := row 1
        pad_ref[1:2, 1:wh + 1, :cop] = pad_ref[3:4, 1:wh + 1, :cop]

    @pl.when(is_bot)
    def _():   # a1 row hh := row hh-2
        pad_ref[th + 2:th + 3, 1:wh + 1, :cop] = pad_ref[th:th + 1, 1:wh + 1, :cop]

    t2 = conv(th + 2, w2_ref, b2_ref, cop, cip, leaky=False)

    # ---- residual add + LeakyReLU (head of double_conv.conv2), f32 values ----
    p_mid = jnp.concatenate([p_h[2:3], p_c, p_h[3:4]], axis=0)   # rows r0-1 .. r0+th
    r = _leaky(p_mid + t2)

    # ---- conv2: reflect-pad(r) -> conv -> BN -> LeakyReLU ----
    pad_ref[0:th + 2, 1:wh + 1, :cip] = r.astype(bf16)

    @pl.when(is_top)
    def _():   # r row -1 := row 1
        pad_ref[0:1, 1:wh + 1, :cip] = pad_ref[2:3, 1:wh + 1, :cip]

    @pl.when(is_bot)
    def _():   # r row hh := row hh-2
        pad_ref[th + 1:th + 2, 1:wh + 1, :cip] = pad_ref[th - 1:th, 1:wh + 1, :cip]

    y = conv(th, w3_ref, b3_ref, cip, cop, leaky=True)           # (th, wh, cop)
    o_ref[0] = y[:, :, :co]                                      # store real channels only


# ------------------------------ op wrapper ---------------------------------- #

def _fold_bn_pad(p, k_pad, n_pad):
    """Fold eval-mode BN into conv weight/bias; pad channels; band-major layout."""
    s = p["gamma"] / jnp.sqrt(p["var"] + BN_EPS)
    bias = p["beta"] + s * (p["b"] - p["mean"])
    w = p["w"] * s[None, None, None, :]
    kh, kw, ci, cout = w.shape
    w = jnp.pad(w, ((0, 0), (0, 0), (0, k_pad - ci), (0, n_pad - cout)))
    bias = jnp.pad(bias, (0, n_pad - cout))
    # (ky, kx, k_pad, n_pad) -> (3, 3*k_pad, n_pad): K index = kx*k_pad + channel,
    # matching the in-kernel [shift-0 | shift-1 | shift-2] column concatenation.
    return (w.reshape(kh, kw * k_pad, n_pad).astype(jnp.bfloat16),
            bias.reshape(1, n_pad).astype(jnp.float32))


def _vmem_bytes_estimate(th, wh, cin, co, cip, cop):
    """Rough per-step VMEM footprint (double-buffered blocks + scratch + temps)."""
    cmax = max(cip, cop)
    m = (th + 4) * wh
    b = 2 * th * 2 * wh * 2 * cin * 4          # central input block (f32, 2 buffers)
    b += 2 * 12 * wh * 2 * cin * 4             # halo input block
    b += 2 * th * wh * co * 4                  # output block
    b += 2 * 9 * 2 * 3 * cip * cop             # 3 bf16 weight sets, double-buffered
    b += (th + 6) * (wh + 2) * cmax * 2        # bf16 pad/halo scratch
    b += m * (3 * cmax * 2 + cop * 4)          # im2col band (bf16) + f32 accumulator
    b += (th + 6) * wh * (cop + 2 * cip) * 4   # f32 stage values (a1, p, r)
    return int(b * 1.25)                       # headroom for compiler temporaries


def _pick_tile_rows(hh, wh, cin, co, cip, cop, budget):
    # TODO(synk): support a ragged last tile so prime hh does not force tiny tiles.
    divisors = [d for d in range(1, hh + 1) if hh % d == 0]
    th = divisors[0]
    for d in divisors:                          # largest divisor fitting the budget
        if _vmem_bytes_estimate(d, wh, cin, co, cip, cop) <= budget:
            th = d
    return th


def down_forward(x_nchw, params, tile_rows=None):
    """Forward of `down` (inference semantics) with one fused, row-tiled kernel."""
    B, in_ch, H, W = x_nchw.shape
    assert H % 2 == 0 and W % 2 == 0, "MaxPool2d(2) needs even spatial dims"
    assert H >= 4 and W >= 4, "ReflectionPad2d(1) needs >= 2 pooled rows/cols"
    out_ch = params["c1a"]["w"].shape[-1]
    hh, wh = H // 2, W // 2
    cip = _round_up(in_ch, LANE)      # lane-padded contraction widths
    cop = _round_up(out_ch, LANE)
    cmax = max(cip, cop)

    # VMEM budget from the actual chip (v5e/v6e: 128 MiB, v7x: 64 MiB); use ~75%.
    try:
        vmem_cap = pltpu.get_tpu_info().vmem_capacity_bytes
    except Exception:
        vmem_cap = 64 * 1024 * 1024
    budget = int(vmem_cap) * 3 // 4

    if tile_rows is None:
        th = _pick_tile_rows(hh, wh, in_ch, out_ch, cip, cop, budget)
    else:
        th = int(tile_rows)
        assert hh % th == 0, "tile_rows must divide the pooled height"
    T = hh // th

    # nn.Dropout(drop_rate): identity in eval mode.
    # TODO(synk): training-mode RNG dropout not implemented (inference semantics).
    x = jnp.transpose(x_nchw, (0, 2, 3, 1))                 # NCHW -> NHWC
    x6 = x.reshape(B, hh, 2, wh, 2 * in_ch)                 # free reshape: pool corners = slices

    # 3-row pooled halo (= 6 pre-pool rows) above/below each tile, gathered once in
    # the wrapper; out-of-range rows are clamped (only touched via in-kernel reflection).
    t_idx = np.arange(T)[:, None]
    top = t_idx * th - 3 + np.arange(3)[None, :]
    bot = (t_idx + 1) * th + np.arange(3)[None, :]
    halo_rows = np.clip(np.concatenate([top, bot], axis=1), 0, hh - 1).reshape(-1)
    xh = jnp.take(x6, jnp.asarray(halo_rows, dtype=jnp.int32), axis=1)
    xh = xh.reshape(B, T, 12, wh, 2 * in_ch)

    w1, b1 = _fold_bn_pad(params["c1a"], cip, cop)
    w2, b2 = _fold_bn_pad(params["c1b"], cop, cip)
    w3, b3 = _fold_bn_pad(params["c2"], cip, cop)

    kernel = functools.partial(_down_tile_kernel, th=th, wh=wh, cin=in_ch,
                               co=out_ch, cip=cip, cop=cop)
    # TODO(synk): on v7x, single-buffer the grid-constant weight specs
    # (pipeline_mode=pl.Buffered(1)) once that kwarg is available in this JAX build.
    # TODO(synk): for in_ch <= 16 a lane-dense (wh*2*in_ch)-last input layout would
    # raise input-DMA lane efficiency; layout is already dense for in_ch >= 64.
    out = pl.pallas_call(
        kernel,
        out_shape=jax.ShapeDtypeStruct((B, hh, wh, out_ch), jnp.float32),
        grid=(B, T),
        in_specs=[
            pl.BlockSpec((1, th, 2, wh, 2 * in_ch), lambda b, t: (b, t, 0, 0, 0)),
            pl.BlockSpec((1, 1, 12, wh, 2 * in_ch), lambda b, t: (b, t, 0, 0, 0)),
            pl.BlockSpec((3, 3 * cip, cop), lambda b, t: (0, 0, 0)),
            pl.BlockSpec((1, cop), lambda b, t: (0, 0)),
            pl.BlockSpec((3, 3 * cop, cip), lambda b, t: (0, 0, 0)),
            pl.BlockSpec((1, cip), lambda b, t: (0, 0)),
            pl.BlockSpec((3, 3 * cip, cop), lambda b, t: (0, 0, 0)),
            pl.BlockSpec((1, cop), lambda b, t: (0, 0)),
        ],
        out_specs=pl.BlockSpec((1, th, wh, out_ch), lambda b, t: (b, t, 0, 0)),
        scratch_shapes=[pltpu.VMEM((th + 6, wh + 2, cmax), jnp.bfloat16)],
        compiler_params=pltpu.CompilerParams(
            dimension_semantics=("parallel", "parallel"),
            vmem_limit_bytes=budget),
    )(x6, xh, w1, b1, w2, b2, w3, b3)

    # TODO(synk): if the consumer accepts NHWC (and/or bf16), return `out` directly
    # and skip this layout pass.
    return jnp.transpose(out, (0, 3, 1, 2))                 # NHWC -> NCHW


# ----------------------------- params & model ------------------------------ #

def init_params(key, in_ch, out_ch):
    def conv_bn(k, cin, cout):
        kw, kb, kg, kbe, km, kv = jax.random.split(k, 6)
        return dict(
            w=0.1 * jax.random.normal(kw, (3, 3, cin, cout), jnp.float32),
            b=0.1 * jax.random.normal(kb, (cout,), jnp.float32),
            gamma=1.0 + 0.1 * jax.random.normal(kg, (cout,), jnp.float32),
            beta=0.1 * jax.random.normal(kbe, (cout,), jnp.float32),
            mean=0.1 * jax.random.normal(km, (cout,), jnp.float32),
            var=jax.random.uniform(kv, (cout,), jnp.float32, 0.5, 1.5),
        )

    k1, k2, k3 = jax.random.split(key, 3)
    return dict(
        c1a=conv_bn(k1, in_ch, out_ch),   # conv1: Conv(in->out) + BN(out) [+ leaky]
        c1b=conv_bn(k2, out_ch, in_ch),   # conv1: Conv(out->in) + BN(in)
        c2=conv_bn(k3, in_ch, out_ch),    # conv2: Conv(in->out) + BN(out) [+ leaky]
    )


# --------------------------- pure-JAX reference ----------------------------- #

def _ref_conv_bn(x, p, leaky):
    xp = jnp.pad(x, ((0, 0), (1, 1), (1, 1), (0, 0)), mode="reflect")
    y = lax.conv_general_dilated(
        xp, p["w"], (1, 1), "VALID",
        dimension_numbers=("NHWC", "HWIO", "NHWC")) + p["b"]
    y = (y - p["mean"]) / jnp.sqrt(p["var"] + BN_EPS) * p["gamma"] + p["beta"]
    if leaky:
        y = jnp.where(y >= 0, y, LEAKY_SLOPE * y)
    return y


def down_reference(x_nchw, params):
    x = jnp.transpose(x_nchw, (0, 2, 3, 1))
    B, H, W, C = x.shape
    x = x.reshape(B, H // 2, 2, W // 2, 2, C).max(axis=(2, 4))
    t = _ref_conv_bn(x, params["c1a"], True)
    t = _ref_conv_bn(t, params["c1b"], False)
    y = x + t
    y = jnp.where(y >= 0, y, LEAKY_SLOPE * y)
    y = _ref_conv_bn(y, params["c2"], True)
    return jnp.transpose(y, (0, 3, 1, 2))


# ---------------------------------- main ------------------------------------ #

if __name__ == "__main__":
    B, in_ch, out_ch, H, W = 2, 4, 8, 48, 48
    drop_rate = 0.5  # unused at inference (Dropout is identity in eval mode)

    key = jax.random.PRNGKey(0)
    kx, kp = jax.random.split(key)
    x = jax.random.normal(kx, (B, in_ch, H, W), jnp.float32)   # NCHW, like PyTorch
    params = init_params(kp, in_ch, out_ch)

    fwd = jax.jit(down_forward, static_argnames=("tile_rows",))
    # Forced 3-way row tiling (exercises top / interior / bottom halo paths) ...
    out_tiled = jax.block_until_ready(fwd(x, params, tile_rows=8))
    # ... and the default auto-picked tile size (single tile at this small shape).
    out_auto = jax.block_until_ready(fwd(x, params))
    ref = jax.block_until_ready(down_reference(x, params))

    assert out_tiled.shape == (B, out_ch, H // 2, W // 2), out_tiled.shape
    assert out_auto.shape == (B, out_ch, H // 2, W // 2), out_auto.shape
    # Tolerance reflects bf16 MXU operands (f32 accumulation) across 3 chained convs.
    err_t = float(jnp.max(jnp.abs(out_tiled - ref)))
    err_a = float(jnp.max(jnp.abs(out_auto - ref)))
    assert jnp.allclose(out_tiled, ref, atol=5e-2, rtol=5e-2), err_t
    assert jnp.allclose(out_auto, ref, atol=5e-2, rtol=5e-2), err_a
    print("KERNEL_OK")
</pallas_src>

<mosaic_0001>
module attributes {stable_mosaic.version = 11 : i64} {
  func.func @_down_tile_kernel(%arg0: i32, %arg1: i32, %arg2: memref<1x8x2x24x8xf32, #tpu.memory_space<vmem>>, %arg3: memref<1x1x12x24x8xf32, #tpu.memory_space<vmem>>, %arg4: memref<3x384x128xbf16, #tpu.memory_space<vmem>>, %arg5: memref<1x128xf32, #tpu.memory_space<vmem>>, %arg6: memref<3x384x128xbf16, #tpu.memory_space<vmem>>, %arg7: memref<1x128xf32, #tpu.memory_space<vmem>>, %arg8: memref<3x384x128xbf16, #tpu.memory_space<vmem>>, %arg9: memref<1x128xf32, #tpu.memory_space<vmem>>, %arg10: memref<1x8x24x8xf32, #tpu.memory_space<vmem>>, %arg11: memref<14x26x128xbf16, #tpu.memory_space<vmem>>) attributes {dimension_semantics = [#tpu.dimension_semantics<parallel>, #tpu.dimension_semantics<parallel>], iteration_bounds = array<i64: 2, 3>, scalar_prefetch = 0 : i64, scratch_operands = 1 : i64, tpu.core_type = #tpu.core_type<tc>, window_params = [{transform_indices = @transform_0, window_bounds = array<i64: 1, 8, 2, 24, 8>}, {transform_indices = @transform_1, window_bounds = array<i64: 1, 1, 12, 24, 8>}, {pipeline_mode = #tpu.pipeline_mode<synchronous>, transform_indices = @transform_2, window_bounds = array<i64: 3, 384, 128>}, {pipeline_mode = #tpu.pipeline_mode<synchronous>, transform_indices = @transform_3, window_bounds = array<i64: 1, 128>}, {pipeline_mode = #tpu.pipeline_mode<synchronous>, transform_indices = @transform_4, window_bounds = array<i64: 3, 384, 128>}, {pipeline_mode = #tpu.pipeline_mode<synchronous>, transform_indices = @transform_5, window_bounds = array<i64: 1, 128>}, {pipeline_mode = #tpu.pipeline_mode<synchronous>, transform_indices = @transform_6, window_bounds = array<i64: 3, 384, 128>}, {pipeline_mode = #tpu.pipeline_mode<synchronous>, transform_indices = @transform_7, window_bounds = array<i64: 1, 128>}, {transform_indices = @transform_8, window_bounds = array<i64: 1, 8, 24, 8>}]} {
    %c0_i32 = arith.constant 0 : i32
    %0 = arith.cmpi eq, %arg1, %c0_i32 : i32
    %c2_i32 = arith.constant 2 : i32
    %1 = arith.cmpi eq, %arg1, %c2_i32 : i32
    %c0 = arith.constant 0 : index
    %c0_0 = arith.constant 0 : index
    %c0_1 = arith.constant 0 : index
    %c0_2 = arith.constant 0 : index
    %c0_3 = arith.constant 0 : index
    %2 = vector.load %arg2[%c0, %c0_0, %c0_1, %c0_2, %c0_3] : memref<1x8x2x24x8xf32, #tpu.memory_space<vmem>>, vector<1x8x2x24x8xf32>
    %3 = vector.shape_cast %2 : vector<1x8x2x24x8xf32> to vector<8x2x24x8xf32>
    %4 = vector.extract_strided_slice %3 {offsets = [0, 0, 0, 0], sizes = [8, 1, 24, 4], strides = [1, 1, 1, 1]} : vector<8x2x24x8xf32> to vector<8x1x24x4xf32>
    %5 = vector.shape_cast %4 : vector<8x1x24x4xf32> to vector<8x24x4xf32>
    %6 = vector.extract_strided_slice %3 {offsets = [0, 0, 0, 4], sizes = [8, 1, 24, 4], strides = [1, 1, 1, 1]} : vector<8x2x24x8xf32> to vector<8x1x24x4xf32>
    %7 = vector.shape_cast %6 : vector<8x1x24x4xf32> to vector<8x24x4xf32>
    %8 = arith.maximumf %5, %7 : vector<8x24x4xf32>
    %9 = vector.extract_strided_slice %3 {offsets = [0, 1, 0, 0], sizes = [8, 1, 24, 4], strides = [1, 1, 1, 1]} : vector<8x2x24x8xf32> to vector<8x1x24x4xf32>
    %10 = vector.shape_cast %9 : vector<8x1x24x4xf32> to vector<8x24x4xf32>
    %11 = vector.extract_strided_slice %3 {offsets = [0, 1, 0, 4], sizes = [8, 1, 24, 4], strides = [1, 1, 1, 1]} : vector<8x2x24x8xf32> to vector<8x1x24x4xf32>
    %12 = vector.shape_cast %11 : vector<8x1x24x4xf32> to vector<8x24x4xf32>
    %13 = arith.maximumf %10, %12 : vector<8x24x4xf32>
    %14 = arith.maximumf %8, %13 : vector<8x24x4xf32>
    %c0_i32_4 = arith.constant 0 : i32
    %15 = arith.sitofp %c0_i32_4 : i32 to f32
    %16 = vector.broadcast %15 : f32 to vector<8x24x124xf32>
    %17 = tpu.concatenate %14, %16 in 2 : vector<8x24x4xf32>, vector<8x24x124xf32> -> vector<8x24x128xf32>
    %c0_5 = arith.constant 0 : index
    %c0_6 = arith.constant 0 : index
    %c0_7 = arith.constant 0 : index
    %c0_8 = arith.constant 0 : index
    %c0_9 = arith.constant 0 : index
    %18 = vector.load %arg3[%c0_5, %c0_6, %c0_7, %c0_8, %c0_9] : memref<1x1x12x24x8xf32, #tpu.memory_space<vmem>>, vector<1x1x12x24x8xf32>
    %19 = vector.shape_cast %18 : vector<1x1x12x24x8xf32> to vector<12x24x8xf32>
    %20 = vector.shape_cast %19 : vector<12x24x8xf32> to vector<6x2x24x8xf32>
    %21 = vector.extract_strided_slice %20 {offsets = [0, 0, 0, 0], sizes = [6, 1, 24, 4], strides = [1, 1, 1, 1]} : vector<6x2x24x8xf32> to vector<6x1x24x4xf32>
    %22 = vector.shape_cast %21 : vector<6x1x24x4xf32> to vector<6x24x4xf32>
    %23 = vector.extract_strided_slice %20 {offsets = [0, 0, 0, 4], sizes = [6, 1, 24, 4], strides = [1, 1, 1, 1]} : vector<6x2x24x8xf32> to vector<6x1x24x4xf32>
    %24 = vector.shape_cast %23 : vector<6x1x24x4xf32> to vector<6x24x4xf32>
    %25 = arith.maximumf %22, %24 : vector<6x24x4xf32>
    %26 = vector.extract_strided_slice %20 {offsets = [0, 1, 0, 0], sizes = [6, 1, 24, 4], strides = [1, 1, 1, 1]} : vector<6x2x24x8xf32> to vector<6x1x24x4xf32>
    %27 = vector.shape_cast %26 : vector<6x1x24x4xf32> to vector<6x24x4xf32>
    %28 = vector.extract_strided_slice %20 {offsets = [0, 1, 0, 4], sizes = [6, 1, 24, 4], strides = [1, 1, 1, 1]} : vector<6x2x24x8xf32> to vector<6x1x24x4xf32>
    %29 = vector.shape_cast %28 : vector<6x1x24x4xf32> to vector<6x24x4xf32>
    %30 = arith.maximumf %27, %29 : vector<6x24x4xf32>
    %31 = arith.maximumf %25, %30 : vector<6x24x4xf32>
    %c0_i32_10 = arith.constant 0 : i32
    %32 = arith.sitofp %c0_i32_10 : i32 to f32
    %33 = vector.broadcast %32 : f32 to vector<6x24x124xf32>
    %34 = tpu.concatenate %31, %33 in 2 : vector<6x24x4xf32>, vector<6x24x124xf32> -> vector<6x24x128xf32>
    %35 = vector.extract_strided_slice %34 {offsets = [0, 0, 0], sizes = [3, 24, 128], strides = [1, 1, 1]} : vector<6x24x128xf32> to vector<3x24x128xf32>
    %36 = arith.truncf %35 : vector<3x24x128xf32> to vector<3x24x128xbf16>
    %c0_11 = arith.constant 0 : index
    %c1 = arith.constant 1 : index
    %c0_12 = arith.constant 0 : index
    %37 = vector.load %arg11[%c0_11, %c1, %c0_12] : memref<14x26x128xbf16, #tpu.memory_space<vmem>>, vector<3x24x128xbf16>
    tpu.vector_store %arg11[%c0_11, %c1, %c0_12], %36 {strides = array<i32>} : memref<14x26x128xbf16, #tpu.memory_space<vmem>>, vector<3x24x128xbf16>,
    %38 = arith.truncf %17 : vector<8x24x128xf32> to vector<8x24x128xbf16>
    %c3 = arith.constant 3 : index
    %c1_13 = arith.constant 1 : index
    %c0_14 = arith.constant 0 : index
    %39 = vector.load %arg11[%c3, %c1_13, %c0_14] : memref<14x26x128xbf16, #tpu.memory_space<vmem>>, vector<8x24x128xbf16>
    tpu.vector_store %arg11[%c3, %c1_13, %c0_14], %38 {strides = array<i32>} : memref<14x26x128xbf16, #tpu.memory_space<vmem>>, vector<8x24x128xbf16>,
    %40 = vector.extract_strided_slice %34 {offsets = [3, 0, 0], sizes = [3, 24, 128], strides = [1, 1, 1]} : vector<6x24x128xf32> to vector<3x24x128xf32>
    %41 = arith.truncf %40 : vector<3x24x128xf32> to vector<3x24x128xbf16>
    %c11 = arith.constant 11 : index
    %c1_15 = arith.constant 1 : index
    %c0_16 = arith.constant 0 : index
    %42 = vector.load %arg11[%c11, %c1_15, %c0_16] : memref<14x26x128xbf16, #tpu.memory_space<vmem>>, vector<3x24x128xbf16>
    tpu.vector_store %arg11[%c11, %c1_15, %c0_16], %41 {strides = array<i32>} : memref<14x26x128xbf16, #tpu.memory_space<vmem>>, vector<3x24x128xbf16>,
    %43 = arith.extui %0 : i1 to i32
    %c0_i32_17 = arith.constant 0 : i32
    %44 = arith.cmpi ne, %43, %c0_i32_17 : i32
    scf.if %44 {
      %c4 = arith.constant 4 : index
      %c1_143 = arith.constant 1 : index
      %c0_144 = arith.constant 0 : index
      %199 = vector.load %arg11[%c4, %c1_143, %c0_144] : memref<14x26x128xbf16, #tpu.memory_space<vmem>>, vector<1x24x128xbf16>
      %c2_145 = arith.constant 2 : index
      %c1_146 = arith.constant 1 : index
      %c0_147 = arith.constant 0 : index
      %200 = vector.load %arg11[%c2_145, %c1_146, %c0_147] : memref<14x26x128xbf16, #tpu.memory_space<vmem>>, vector<1x24x128xbf16>
      tpu.vector_store %arg11[%c2_145, %c1_146, %c0_147], %199 {strides = array<i32>} : memref<14x26x128xbf16, #tpu.memory_space<vmem>>, vector<1x24x128xbf16>,
    } else {
    }
    %45 = arith.extui %1 : i1 to i32
    %c0_i32_18 = arith.constant 0 : i32
    %46 = arith.cmpi ne, %45, %c0_i32_18 : i32
    scf.if %46 {
      %c9 = arith.constant 9 : index
      %c1_143 = arith.constant 1 : index
      %c0_144 = arith.constant 0 : index
      %199 = vector.load %arg11[%c9, %c1_143, %c0_144] : memref<14x26x128xbf16, #tpu.memory_space<vmem>>, vector<1x24x128xbf16>
      %c11_145 = arith.constant 11 : index
      %c1_146 = arith.constant 1 : index
      %c0_147 = arith.constant 0 : index
      %200 = vector.load %arg11[%c11_145, %c1_146, %c0_147] : memref<14x26x128xbf16, #tpu.memory_space<vmem>>, vector<1x24x128xbf16>
      tpu.vector_store %arg11[%c11_145, %c1_146, %c0_147], %199 {strides = array<i32>} : memref<14x26x128xbf16, #tpu.memory_space<vmem>>, vector<1x24x128xbf16>,
    } else {
    }
    %c0_19 = arith.constant 0 : index
    %c2 = arith.constant 2 : index
    %c0_20 = arith.constant 0 : index
    %47 = vector.load %arg11[%c0_19, %c2, %c0_20] : memref<14x26x128xbf16, #tpu.memory_space<vmem>>, vector<14x1x128xbf16>
    %c0_21 = arith.constant 0 : index
    %c0_22 = arith.constant 0 : index
    %c0_23 = arith.constant 0 : index
    %48 = vector.load %arg11[%c0_21, %c0_22, %c0_23] : memref<14x26x128xbf16, #tpu.memory_space<vmem>>, vector<14x1x128xbf16>
    tpu.vector_store %arg11[%c0_21, %c0_22, %c0_23], %47 {strides = array<i32>} : memref<14x26x128xbf16, #tpu.memory_space<vmem>>, vector<14x1x128xbf16>,
    %c0_24 = arith.constant 0 : index
    %c23 = arith.constant 23 : index
    %c0_25 = arith.constant 0 : index
    %49 = vector.load %arg11[%c0_24, %c23, %c0_25] : memref<14x26x128xbf16, #tpu.memory_space<vmem>>, vector<14x1x128xbf16>
    %c0_26 = arith.constant 0 : index
    %c25 = arith.constant 25 : index
    %c0_27 = arith.constant 0 : index
    %50 = vector.load %arg11[%c0_26, %c25, %c0_27] : memref<14x26x128xbf16, #tpu.memory_space<vmem>>, vector<14x1x128xbf16>
    tpu.vector_store %arg11[%c0_26, %c25, %c0_27], %49 {strides = array<i32>} : memref<14x26x128xbf16, #tpu.memory_space<vmem>>, vector<14x1x128xbf16>,
    %cst = arith.constant 0.000000e+00 : f32
    %51 = vector.broadcast %cst : f32 to vector<288x128xf32>
    %c0_28 = arith.constant 0 : index
    %c0_29 = arith.constant 0 : index
    %c0_30 = arith.constant 0 : index
    %52 = vector.load %arg11[%c0_28, %c0_29, %c0_30] : memref<14x26x128xbf16, #tpu.memory_space<vmem>>, vector<12x26x128xbf16>
    %53 = vector.extract_strided_slice %52 {offsets = [0, 0, 0], sizes = [12, 24, 128], strides = [1, 1, 1]} : vector<12x26x128xbf16> to vector<12x24x128xbf16>
    %54 = vector.extract_strided_slice %52 {offsets = [0, 1, 0], sizes = [12, 24, 128], strides = [1, 1, 1]} : vector<12x26x128xbf16> to vector<12x24x128xbf16>
    %55 = vector.extract_strided_slice %52 {offsets = [0, 2, 0], sizes = [12, 24, 128], strides = [1, 1, 1]} : vector<12x26x128xbf16> to vector<12x24x128xbf16>
    %56 = tpu.concatenate %53, %54, %55 in 2 : vector<12x24x128xbf16>, vector<12x24x128xbf16>, vector<12x24x128xbf16> -> vector<12x24x384xbf16>
    %57 = vector.shape_cast %56 : vector<12x24x384xbf16> to vector<288x384xbf16>
    %c0_31 = arith.constant 0 : index
    %c0_32 = arith.constant 0 : index
    %c0_33 = arith.constant 0 : index
    %58 = vector.load %arg4[%c0_31, %c0_32, %c0_33] : memref<3x384x128xbf16, #tpu.memory_space<vmem>>, vector<1x384x128xbf16>
    %59 = vector.shape_cast %58 : vector<1x384x128xbf16> to vector<384x128xbf16>
    %cst_34 = arith.constant dense<0.000000e+00> : vector<288x128xf32>
    %60 = tpu.matmul %57, %59, %cst_34 {dimension_numbers = #tpu.dot_dimension_numbers<[1], [0], [0], [1], [0, 0, 1, 1], [], []>} : vector<288x384xbf16>, vector<384x128xbf16>, vector<288x128xf32> -> vector<288x128xf32>
    %61 = arith.addf %51, %60 : vector<288x128xf32>
    %c1_35 = arith.constant 1 : index
    %c0_36 = arith.constant 0 : index
    %c0_37 = arith.constant 0 : index
    %62 = vector.load %arg11[%c1_35, %c0_36, %c0_37] : memref<14x26x128xbf16, #tpu.memory_space<vmem>>, vector<12x26x128xbf16>
    %63 = vector.extract_strided_slice %62 {offsets = [0, 0, 0], sizes = [12, 24, 128], strides = [1, 1, 1]} : vector<12x26x128xbf16> to vector<12x24x128xbf16>
    %64 = vector.extract_strided_slice %62 {offsets = [0, 1, 0], sizes = [12, 24, 128], strides = [1, 1, 1]} : vector<12x26x128xbf16> to vector<12x24x128xbf16>
    %65 = vector.extract_strided_slice %62 {offsets = [0, 2, 0], sizes = [12, 24, 128], strides = [1, 1, 1]} : vector<12x26x128xbf16> to vector<12x24x128xbf16>
    %66 = tpu.concatenate %63, %64, %65 in 2 : vector<12x24x128xbf16>, vector<12x24x128xbf16>, vector<12x24x128xbf16> -> vector<12x24x384xbf16>
    %67 = vector.shape_cast %66 : vector<12x24x384xbf16> to vector<288x384xbf16>
    %c1_38 = arith.constant 1 : index
    %c0_39 = arith.constant 0 : index
    %c0_40 = arith.constant 0 : index
    %68 = vector.load %arg4[%c1_38, %c0_39, %c0_40] : memref<3x384x128xbf16, #tpu.memory_space<vmem>>, vector<1x384x128xbf16>
    %69 = vector.shape_cast %68 : vector<1x384x128xbf16> to vector<384x128xbf16>
    %cst_41 = arith.constant dense<0.000000e+00> : vector<288x128xf32>
    %70 = tpu.matmul %67, %69, %cst_41 {dimension_numbers = #tpu.dot_dimension_numbers<[1], [0], [0], [1], [0, 0, 1, 1], [], []>} : vector<288x384xbf16>, vector<384x128xbf16>, vector<288x128xf32> -> vector<288x128xf32>
    %71 = arith.addf %61, %70 : vector<288x128xf32>
    %c2_42 = arith.constant 2 : index
    %c0_43 = arith.constant 0 : index
    %c0_44 = arith.constant 0 : index
    %72 = vector.load %arg11[%c2_42, %c0_43, %c0_44] : memref<14x26x128xbf16, #tpu.memory_space<vmem>>, vector<12x26x128xbf16>
    %73 = vector.extract_strided_slice %72 {offsets = [0, 0, 0], sizes = [12, 24, 128], strides = [1, 1, 1]} : vector<12x26x128xbf16> to vector<12x24x128xbf16>
    %74 = vector.extract_strided_slice %72 {offsets = [0, 1, 0], sizes = [12, 24, 128], strides = [1, 1, 1]} : vector<12x26x128xbf16> to vector<12x24x128xbf16>
    %75 = vector.extract_strided_slice %72 {offsets = [0, 2, 0], sizes = [12, 24, 128], strides = [1, 1, 1]} : vector<12x26x128xbf16> to vector<12x24x128xbf16>
    %76 = tpu.concatenate %73, %74, %75 in 2 : vector<12x24x128xbf16>, vector<12x24x128xbf16>, vector<12x24x128xbf16> -> vector<12x24x384xbf16>
    %77 = vector.shape_cast %76 : vector<12x24x384xbf16> to vector<288x384xbf16>
    %c2_45 = arith.constant 2 : index
    %c0_46 = arith.constant 0 : index
    %c0_47 = arith.constant 0 : index
    %78 = vector.load %arg4[%c2_45, %c0_46, %c0_47] : memref<3x384x128xbf16, #tpu.memory_space<vmem>>, vector<1x384x128xbf16>
    %79 = vector.shape_cast %78 : vector<1x384x128xbf16> to vector<384x128xbf16>
    %cst_48 = arith.constant dense<0.000000e+00> : vector<288x128xf32>
    %80 = tpu.matmul %77, %79, %cst_48 {dimension_numbers = #tpu.dot_dimension_numbers<[1], [0], [0], [1], [0, 0, 1, 1], [], []>} : vector<288x384xbf16>, vector<384x128xbf16>, vector<288x128xf32> -> vector<288x128xf32>
    %81 = arith.addf %71, %80 : vector<288x128xf32>
    %c0_49 = arith.constant 0 : index
    %c0_50 = arith.constant 0 : index
    %82 = vector.load %arg5[%c0_49, %c0_50] : memref<1x128xf32, #tpu.memory_space<vmem>>, vector<1x128xf32>
    %83 = vector.broadcast %82 : vector<1x128xf32> to vector<288x128xf32>
    %84 = arith.addf %81, %83 : vector<288x128xf32>
    %cst_51 = arith.constant 0.000000e+00 : f32
    %85 = vector.broadcast %cst_51 : f32 to vector<288x128xf32>
    %86 = arith.cmpf oge, %84, %85 : vector<288x128xf32>
    %cst_52 = arith.constant 0.00999999977 : f32
    %87 = vector.broadcast %cst_52 : f32 to vector<288x128xf32>
    %88 = arith.mulf %87, %84 : vector<288x128xf32>
    %89 = arith.select %86, %84, %88 : vector<288x128xi1>, vector<288x128xf32>
    %90 = vector.shape_cast %89 : vector<288x128xf32> to vector<12x24x128xf32>
    %91 = arith.truncf %90 : vector<12x24x128xf32> to vector<12x24x128xbf16>
    %c0_53 = arith.constant 0 : index
    %c1_54 = arith.constant 1 : index
    %c0_55 = arith.constant 0 : index
    %92 = vector.load %arg11[%c0_53, %c1_54, %c0_55] : memref<14x26x128xbf16, #tpu.memory_space<vmem>>, vector<12x24x128xbf16>
    tpu.vector_store %arg11[%c0_53, %c1_54, %c0_55], %91 {strides = array<i32>} : memref<14x26x128xbf16, #tpu.memory_space<vmem>>, vector<12x24x128xbf16>,
    %93 = arith.extui %0 : i1 to i32
    %c0_i32_56 = arith.constant 0 : i32
    %94 = arith.cmpi ne, %93, %c0_i32_56 : i32
    scf.if %94 {
      %c3_143 = arith.constant 3 : index
      %c1_144 = arith.constant 1 : index
      %c0_145 = arith.constant 0 : index
      %199 = vector.load %arg11[%c3_143, %c1_144, %c0_145] : memref<14x26x128xbf16, #tpu.memory_space<vmem>>, vector<1x24x128xbf16>
      %c1_146 = arith.constant 1 : index
      %c1_147 = arith.constant 1 : index
      %c0_148 = arith.constant 0 : index
      %200 = vector.load %arg11[%c1_146, %c1_147, %c0_148] : memref<14x26x128xbf16, #tpu.memory_space<vmem>>, vector<1x24x128xbf16>
      tpu.vector_store %arg11[%c1_146, %c1_147, %c0_148], %199 {strides = array<i32>} : memref<14x26x128xbf16, #tpu.memory_space<vmem>>, vector<1x24x128xbf16>,
    } else {
    }
    %95 = arith.extui %1 : i1 to i32
    %c0_i32_57 = arith.constant 0 : i32
    %96 = arith.cmpi ne, %95, %c0_i32_57 : i32
    scf.if %96 {
      %c8 = arith.constant 8 : index
      %c1_143 = arith.constant 1 : index
      %c0_144 = arith.constant 0 : index
      %199 = vector.load %arg11[%c8, %c1_143, %c0_144] : memref<14x26x128xbf16, #tpu.memory_space<vmem>>, vector<1x24x128xbf16>
      %c10 = arith.constant 10 : index
      %c1_145 = arith.constant 1 : index
      %c0_146 = arith.constant 0 : index
      %200 = vector.load %arg11[%c10, %c1_145, %c0_146] : memref<14x26x128xbf16, #tpu.memory_space<vmem>>, vector<1x24x128xbf16>
      tpu.vector_store %arg11[%c10, %c1_145, %c0_146], %199 {strides = array<i32>} : memref<14x26x128xbf16, #tpu.memory_space<vmem>>, vector<1x24x128xbf16>,
    } else {
    }
    %c0_58 = arith.constant 0 : index
    %c2_59 = arith.constant 2 : index
    %c0_60 = arith.constant 0 : index
    %97 = vector.load %arg11[%c0_58, %c2_59, %c0_60] : memref<14x26x128xbf16, #tpu.memory_space<vmem>>, vector<12x1x128xbf16>
    %c0_61 = arith.constant 0 : index
    %c0_62 = arith.constant 0 : index
    %c0_63 = arith.constant 0 : index
    %98 = vector.load %arg11[%c0_61, %c0_62, %c0_63] : memref<14x26x128xbf16, #tpu.memory_space<vmem>>, vector<12x1x128xbf16>
    tpu.vector_store %arg11[%c0_61, %c0_62, %c0_63], %97 {strides = array<i32>} : memref<14x26x128xbf16, #tpu.memory_space<vmem>>, vector<12x1x128xbf16>,
    %c0_64 = arith.constant 0 : index
    %c23_65 = arith.constant 23 : index
    %c0_66 = arith.constant 0 : index
    %99 = vector.load %arg11[%c0_64, %c23_65, %c0_66] : memref<14x26x128xbf16, #tpu.memory_space<vmem>>, vector<12x1x128xbf16>
    %c0_67 = arith.constant 0 : index
    %c25_68 = arith.constant 25 : index
    %c0_69 = arith.constant 0 : index
    %100 = vector.load %arg11[%c0_67, %c25_68, %c0_69] : memref<14x26x128xbf16, #tpu.memory_space<vmem>>, vector<12x1x128xbf16>
    tpu.vector_store %arg11[%c0_67, %c25_68, %c0_69], %99 {strides = array<i32>} : memref<14x26x128xbf16, #tpu.memory_space<vmem>>, vector<12x1x128xbf16>,
    %cst_70 = arith.constant 0.000000e+00 : f32
    %101 = vector.broadcast %cst_70 : f32 to vector<240x128xf32>
    %c0_71 = arith.constant 0 : index
    %c0_72 = arith.constant 0 : index
    %c0_73 = arith.constant 0 : index
    %102 = vector.load %arg11[%c0_71, %c0_72, %c0_73] : memref<14x26x128xbf16, #tpu.memory_space<vmem>>, vector<10x26x128xbf16>
    %103 = vector.extract_strided_slice %102 {offsets = [0, 0, 0], sizes = [10, 24, 128], strides = [1, 1, 1]} : vector<10x26x128xbf16> to vector<10x24x128xbf16>
    %104 = vector.extract_strided_slice %102 {offsets = [0, 1, 0], sizes = [10, 24, 128], strides = [1, 1, 1]} : vector<10x26x128xbf16> to vector<10x24x128xbf16>
    %105 = vector.extract_strided_slice %102 {offsets = [0, 2, 0], sizes = [10, 24, 128], strides = [1, 1, 1]} : vector<10x26x128xbf16> to vector<10x24x128xbf16>
    %106 = tpu.concatenate %103, %104, %105 in 2 : vector<10x24x128xbf16>, vector<10x24x128xbf16>, vector<10x24x128xbf16> -> vector<10x24x384xbf16>
    %107 = vector.shape_cast %106 : vector<10x24x384xbf16> to vector<240x384xbf16>
    %c0_74 = arith.constant 0 : index
    %c0_75 = arith.constant 0 : index
    %c0_76 = arith.constant 0 : index
    %108 = vector.load %arg6[%c0_74, %c0_75, %c0_76] : memref<3x384x128xbf16, #tpu.memory_space<vmem>>, vector<1x384x128xbf16>
    %109 = vector.shape_cast %108 : vector<1x384x128xbf16> to vector<384x128xbf16>
    %cst_77 = arith.constant dense<0.000000e+00> : vector<240x128xf32>
    %110 = tpu.matmul %107, %109, %cst_77 {dimension_numbers = #tpu.dot_dimension_numbers<[1], [0], [0], [1], [0, 0, 1, 1], [], []>} : vector<240x384xbf16>, vector<384x128xbf16>, vector<240x128xf32> -> vector<240x128xf32>
    %111 = arith.addf %101, %110 : vector<240x128xf32>
    %c1_78 = arith.constant 1 : index
    %c0_79 = arith.constant 0 : index
    %c0_80 = arith.constant 0 : index
    %112 = vector.load %arg11[%c1_78, %c0_79, %c0_80] : memref<14x26x128xbf16, #tpu.memory_space<vmem>>, vector<10x26x128xbf16>
    %113 = vector.extract_strided_slice %112 {offsets = [0, 0, 0], sizes = [10, 24, 128], strides = [1, 1, 1]} : vector<10x26x128xbf16> to vector<10x24x128xbf16>
    %114 = vector.extract_strided_slice %112 {offsets = [0, 1, 0], sizes = [10, 24, 128], strides = [1, 1, 1]} : vector<10x26x128xbf16> to vector<10x24x128xbf16>
    %115 = vector.extract_strided_slice %112 {offsets = [0, 2, 0], sizes = [10, 24, 128], strides = [1, 1, 1]} : vector<10x26x128xbf16> to vector<10x24x128xbf16>
    %116 = tpu.concatenate %113, %114, %115 in 2 : vector<10x24x128xbf16>, vector<10x24x128xbf16>, vector<10x24x128xbf16> -> vector<10x24x384xbf16>
    %117 = vector.shape_cast %116 : vector<10x24x384xbf16> to vector<240x384xbf16>
    %c1_81 = arith.constant 1 : index
    %c0_82 = arith.constant 0 : index
    %c0_83 = arith.constant 0 : index
    %118 = vector.load %arg6[%c1_81, %c0_82, %c0_83] : memref<3x384x128xbf16, #tpu.memory_space<vmem>>, vector<1x384x128xbf16>
    %119 = vector.shape_cast %118 : vector<1x384x128xbf16> to vector<384x128xbf16>
    %cst_84 = arith.constant dense<0.000000e+00> : vector<240x128xf32>
    %120 = tpu.matmul %117, %119, %cst_84 {dimension_numbers = #tpu.dot_dimension_numbers<[1], [0], [0], [1], [0, 0, 1, 1], [], []>} : vector<240x384xbf16>, vector<384x128xbf16>, vector<240x128xf32> -> vector<240x128xf32>
    %121 = arith.addf %111, %120 : vector<240x128xf32>
    %c2_85 = arith.constant 2 : index
    %c0_86 = arith.constant 0 : index
    %c0_87 = arith.constant 0 : index
    %122 = vector.load %arg11[%c2_85, %c0_86, %c0_87] : memref<14x26x128xbf16, #tpu.memory_space<vmem>>, vector<10x26x128xbf16>
    %123 = vector.extract_strided_slice %122 {offsets = [0, 0, 0], sizes = [10, 24, 128], strides = [1, 1, 1]} : vector<10x26x128xbf16> to vector<10x24x128xbf16>
    %124 = vector.extract_strided_slice %122 {offsets = [0, 1, 0], sizes = [10, 24, 128], strides = [1, 1, 1]} : vector<10x26x128xbf16> to vector<10x24x128xbf16>
    %125 = vector.extract_strided_slice %122 {offsets = [0, 2, 0], sizes = [10, 24, 128], strides = [1, 1, 1]} : vector<10x26x128xbf16> to vector<10x24x128xbf16>
    %126 = tpu.concatenate %123, %124, %125 in 2 : vector<10x24x128xbf16>, vector<10x24x128xbf16>, vector<10x24x128xbf16> -> vector<10x24x384xbf16>
    %127 = vector.shape_cast %126 : vector<10x24x384xbf16> to vector<240x384xbf16>
    %c2_88 = arith.constant 2 : index
    %c0_89 = arith.constant 0 : index
    %c0_90 = arith.constant 0 : index
    %128 = vector.load %arg6[%c2_88, %c0_89, %c0_90] : memref<3x384x128xbf16, #tpu.memory_space<vmem>>, vector<1x384x128xbf16>
    %129 = vector.shape_cast %128 : vector<1x384x128xbf16> to vector<384x128xbf16>
    %cst_91 = arith.constant dense<0.000000e+00> : vector<240x128xf32>
    %130 = tpu.matmul %127, %129, %cst_91 {dimension_numbers = #tpu.dot_dimension_numbers<[1], [0], [0], [1], [0, 0, 1, 1], [], []>} : vector<240x384xbf16>, vector<384x128xbf16>, vector<240x128xf32> -> vector<240x128xf32>
    %131 = arith.addf %121, %130 : vector<240x128xf32>
    %c0_92 = arith.constant 0 : index
    %c0_93 = arith.constant 0 : index
    %132 = vector.load %arg7[%c0_92, %c0_93] : memref<1x128xf32, #tpu.memory_space<vmem>>, vector<1x128xf32>
    %133 = vector.broadcast %132 : vector<1x128xf32> to vector<240x128xf32>
    %134 = arith.addf %131, %133 : vector<240x128xf32>
    %135 = vector.shape_cast %134 : vector<240x128xf32> to vector<10x24x128xf32>
    %136 = vector.extract_strided_slice %34 {offsets = [2, 0, 0], sizes = [1, 24, 128], strides = [1, 1, 1]} : vector<6x24x128xf32> to vector<1x24x128xf32>
    %137 = vector.extract_strided_slice %34 {offsets = [3, 0, 0], sizes = [1, 24, 128], strides = [1, 1, 1]} : vector<6x24x128xf32> to vector<1x24x128xf32>
    %138 = tpu.concatenate %136, %17, %137 in 0 : vector<1x24x128xf32>, vector<8x24x128xf32>, vector<1x24x128xf32> -> vector<10x24x128xf32>
    %139 = arith.addf %138, %135 : vector<10x24x128xf32>
    %cst_94 = arith.constant 0.000000e+00 : f32
    %140 = vector.broadcast %cst_94 : f32 to vector<10x24x128xf32>
    %141 = arith.cmpf oge, %139, %140 : vector<10x24x128xf32>
    %cst_95 = arith.constant 0.00999999977 : f32
    %142 = vector.broadcast %cst_95 : f32 to vector<10x24x128xf32>
    %143 = arith.mulf %142, %139 : vector<10x24x128xf32>
    %144 = arith.select %141, %139, %143 : vector<10x24x128xi1>, vector<10x24x128xf32>
    %145 = arith.truncf %144 : vector<10x24x128xf32> to vector<10x24x128xbf16>
    %c0_96 = arith.constant 0 : index
    %c1_97 = arith.constant 1 : index
    %c0_98 = arith.constant 0 : index
    %146 = vector.load %arg11[%c0_96, %c1_97, %c0_98] : memref<14x26x128xbf16, #tpu.memory_space<vmem>>, vector<10x24x128xbf16>
    tpu.vector_store %arg11[%c0_96, %c1_97, %c0_98], %145 {strides = array<i32>} : memref<14x26x128xbf16, #tpu.memory_space<vmem>>, vector<10x24x128xbf16>,
    %147 = arith.extui %0 : i1 to i32
    %c0_i32_99 = arith.constant 0 : i32
    %148 = arith.cmpi ne, %147, %c0_i32_99 : i32
    scf.if %148 {
      %c2_143 = arith.constant 2 : index
      %c1_144 = arith.constant 1 : index
      %c0_145 = arith.constant 0 : index
      %199 = vector.load %arg11[%c2_143, %c1_144, %c0_145] : memref<14x26x128xbf16, #tpu.memory_space<vmem>>, vector<1x24x128xbf16>
      %c0_146 = arith.constant 0 : index
      %c1_147 = arith.constant 1 : index
      %c0_148 = arith.constant 0 : index
      %200 = vector.load %arg11[%c0_146, %c1_147, %c0_148] : memref<14x26x128xbf16, #tpu.memory_space<vmem>>, vector<1x24x128xbf16>
      tpu.vector_store %arg11[%c0_146, %c1_147, %c0_148], %199 {strides = array<i32>} : memref<14x26x128xbf16, #tpu.memory_space<vmem>>, vector<1x24x128xbf16>,
    } else {
    }
    %149 = arith.extui %1 : i1 to i32
    %c0_i32_100 = arith.constant 0 : i32
    %150 = arith.cmpi ne, %149, %c0_i32_100 : i32
    scf.if %150 {
      %c7 = arith.constant 7 : index
      %c1_143 = arith.constant 1 : index
      %c0_144 = arith.constant 0 : index
      %199 = vector.load %arg11[%c7, %c1_143, %c0_144] : memref<14x26x128xbf16, #tpu.memory_space<vmem>>, vector<1x24x128xbf16>
      %c9 = arith.constant 9 : index
      %c1_145 = arith.constant 1 : index
      %c0_146 = arith.constant 0 : index
      %200 = vector.load %arg11[%c9, %c1_145, %c0_146] : memref<14x26x128xbf16, #tpu.memory_space<vmem>>, vector<1x24x128xbf16>
      tpu.vector_store %arg11[%c9, %c1_145, %c0_146], %199 {strides = array<i32>} : memref<14x26x128xbf16, #tpu.memory_space<vmem>>, vector<1x24x128xbf16>,
    } else {
    }
    %c0_101 = arith.constant 0 : index
    %c2_102 = arith.constant 2 : index
    %c0_103 = arith.constant 0 : index
    %151 = vector.load %arg11[%c0_101, %c2_102, %c0_103] : memref<14x26x128xbf16, #tpu.memory_space<vmem>>, vector<10x1x128xbf16>
    %c0_104 = arith.constant 0 : index
    %c0_105 = arith.constant 0 : index
    %c0_106 = arith.constant 0 : index
    %152 = vector.load %arg11[%c0_104, %c0_105, %c0_106] : memref<14x26x128xbf16, #tpu.memory_space<vmem>>, vector<10x1x128xbf16>
    tpu.vector_store %arg11[%c0_104, %c0_105, %c0_106], %151 {strides = array<i32>} : memref<14x26x128xbf16, #tpu.memory_space<vmem>>, vector<10x1x128xbf16>,
    %c0_107 = arith.constant 0 : index
    %c23_108 = arith.constant 23 : index
    %c0_109 = arith.constant 0 : index
    %153 = vector.load %arg11[%c0_107, %c23_108, %c0_109] : memref<14x26x128xbf16, #tpu.memory_space<vmem>>, vector<10x1x128xbf16>
    %c0_110 = arith.constant 0 : index
    %c25_111 = arith.constant 25 : index
    %c0_112 = arith.constant 0 : index
    %154 = vector.load %arg11[%c0_110, %c25_111, %c0_112] : memref<14x26x128xbf16, #tpu.memory_space<vmem>>, vector<10x1x128xbf16>
    tpu.vector_store %arg11[%c0_110, %c25_111, %c0_112], %153 {strides = array<i32>} : memref<14x26x128xbf16, #tpu.memory_space<vmem>>, vector<10x1x128xbf16>,
    %cst_113 = arith.constant 0.000000e+00 : f32
    %155 = vector.broadcast %cst_113 : f32 to vector<192x128xf32>
    %c0_114 = arith.constant 0 : index
    %c0_115 = arith.constant 0 : index
    %c0_116 = arith.constant 0 : index
    %156 = vector.load %arg11[%c0_114, %c0_115, %c0_116] : memref<14x26x128xbf16, #tpu.memory_space<vmem>>, vector<8x26x128xbf16>
    %157 = vector.extract_strided_slice %156 {offsets = [0, 0, 0], sizes = [8, 24, 128], strides = [1, 1, 1]} : vector<8x26x128xbf16> to vector<8x24x128xbf16>
    %158 = vector.extract_strided_slice %156 {offsets = [0, 1, 0], sizes = [8, 24, 128], strides = [1, 1, 1]} : vector<8x26x128xbf16> to vector<8x24x128xbf16>
    %159 = vector.extract_strided_slice %156 {offsets = [0, 2, 0], sizes = [8, 24, 128], strides = [1, 1, 1]} : vector<8x26x128xbf16> to vector<8x24x128xbf16>
    %160 = tpu.concatenate %157, %158, %159 in 2 : vector<8x24x128xbf16>, vector<8x24x128xbf16>, vector<8x24x128xbf16> -> vector<8x24x384xbf16>
    %161 = vector.shape_cast %160 : vector<8x24x384xbf16> to vector<192x384xbf16>
    %c0_117 = arith.constant 0 : index
    %c0_118 = arith.constant 0 : index
    %c0_119 = arith.constant 0 : index
    %162 = vector.load %arg8[%c0_117, %c0_118, %c0_119] : memref<3x384x128xbf16, #tpu.memory_space<vmem>>, vector<1x384x128xbf16>
    %163 = vector.shape_cast %162 : vector<1x384x128xbf16> to vector<384x128xbf16>
    %cst_120 = arith.constant dense<0.000000e+00> : vector<192x128xf32>
    %164 = tpu.matmul %161, %163, %cst_120 {dimension_numbers = #tpu.dot_dimension_numbers<[1], [0], [0], [1], [0, 0, 1, 1], [], []>} : vector<192x384xbf16>, vector<384x128xbf16>, vector<192x128xf32> -> vector<192x128xf32>
    %165 = arith.addf %155, %164 : vector<192x128xf32>
    %c1_121 = arith.constant 1 : index
    %c0_122 = arith.constant 0 : index
    %c0_123 = arith.constant 0 : index
    %166 = vector.load %arg11[%c1_121, %c0_122, %c0_123] : memref<14x26x128xbf16, #tpu.memory_space<vmem>>, vector<8x26x128xbf16>
    %167 = vector.extract_strided_slice %166 {offsets = [0, 0, 0], sizes = [8, 24, 128], strides = [1, 1, 1]} : vector<8x26x128xbf16> to vector<8x24x128xbf16>
    %168 = vector.extract_strided_slice %166 {offsets = [0, 1, 0], sizes = [8, 24, 128], strides = [1, 1, 1]} : vector<8x26x128xbf16> to vector<8x24x128xbf16>
    %169 = vector.extract_strided_slice %166 {offsets = [0, 2, 0], sizes = [8, 24, 128], strides = [1, 1, 1]} : vector<8x26x128xbf16> to vector<8x24x128xbf16>
    %170 = tpu.concatenate %167, %168, %169 in 2 : vector<8x24x128xbf16>, vector<8x24x128xbf16>, vector<8x24x128xbf16> -> vector<8x24x384xbf16>
    %171 = vector.shape_cast %170 : vector<8x24x384xbf16> to vector<192x384xbf16>
    %c1_124 = arith.constant 1 : index
    %c0_125 = arith.constant 0 : index
    %c0_126 = arith.constant 0 : index
    %172 = vector.load %arg8[%c1_124, %c0_125, %c0_126] : memref<3x384x128xbf16, #tpu.memory_space<vmem>>, vector<1x384x128xbf16>
    %173 = vector.shape_cast %172 : vector<1x384x128xbf16> to vector<384x128xbf16>
    %cst_127 = arith.constant dense<0.000000e+00> : vector<192x128xf32>
    %174 = tpu.matmul %171, %173, %cst_127 {dimension_numbers = #tpu.dot_dimension_numbers<[1], [0], [0], [1], [0, 0, 1, 1], [], []>} : vector<192x384xbf16>, vector<384x128xbf16>, vector<192x128xf32> -> vector<192x128xf32>
    %175 = arith.addf %165, %174 : vector<192x128xf32>
    %c2_128 = arith.constant 2 : index
    %c0_129 = arith.constant 0 : index
    %c0_130 = arith.constant 0 : index
    %176 = vector.load %arg11[%c2_128, %c0_129, %c0_130] : memref<14x26x128xbf16, #tpu.memory_space<vmem>>, vector<8x26x128xbf16>
    %177 = vector.extract_strided_slice %176 {offsets = [0, 0, 0], sizes = [8, 24, 128], strides = [1, 1, 1]} : vector<8x26x128xbf16> to vector<8x24x128xbf16>
    %178 = vector.extract_strided_slice %176 {offsets = [0, 1, 0], sizes = [8, 24, 128], strides = [1, 1, 1]} : vector<8x26x128xbf16> to vector<8x24x128xbf16>
    %179 = vector.extract_strided_slice %176 {offsets = [0, 2, 0], sizes = [8, 24, 128], strides = [1, 1, 1]} : vector<8x26x128xbf16> to vector<8x24x128xbf16>
    %180 = tpu.concatenate %177, %178, %179 in 2 : vector<8x24x128xbf16>, vector<8x24x128xbf16>, vector<8x24x128xbf16> -> vector<8x24x384xbf16>
    %181 = vector.shape_cast %180 : vector<8x24x384xbf16> to vector<192x384xbf16>
    %c2_131 = arith.constant 2 : index
    %c0_132 = arith.constant 0 : index
    %c0_133 = arith.constant 0 : index
    %182 = vector.load %arg8[%c2_131, %c0_132, %c0_133] : memref<3x384x128xbf16, #tpu.memory_space<vmem>>, vector<1x384x128xbf16>
    %183 = vector.shape_cast %182 : vector<1x384x128xbf16> to vector<384x128xbf16>
    %cst_134 = arith.constant dense<0.000000e+00> : vector<192x128xf32>
    %184 = tpu.matmul %181, %183, %cst_134 {dimension_numbers = #tpu.dot_dimension_numbers<[1], [0], [0], [1], [0, 0, 1, 1], [], []>} : vector<192x384xbf16>, vector<384x128xbf16>, vector<192x128xf32> -> vector<192x128xf32>
    %185 = arith.addf %175, %184 : vector<192x128xf32>
    %c0_135 = arith.constant 0 : index
    %c0_136 = arith.constant 0 : index
    %186 = vector.load %arg9[%c0_135, %c0_136] : memref<1x128xf32, #tpu.memory_space<vmem>>, vector<1x128xf32>
    %187 = vector.broadcast %186 : vector<1x128xf32> to vector<192x128xf32>
    %188 = arith.addf %185, %187 : vector<192x128xf32>
    %cst_137 = arith.constant 0.000000e+00 : f32
    %189 = vector.broadcast %cst_137 : f32 to vector<192x128xf32>
    %190 = arith.cmpf oge, %188, %189 : vector<192x128xf32>
    %cst_138 = arith.constant 0.00999999977 : f32
    %191 = vector.broadcast %cst_138 : f32 to vector<192x128xf32>
    %192 = arith.mulf %191, %188 : vector<192x128xf32>
    %193 = arith.select %190, %188, %192 : vector<192x128xi1>, vector<192x128xf32>
    %194 = vector.shape_cast %193 : vector<192x128xf32> to vector<8x24x128xf32>
    %195 = vector.extract_strided_slice %194 {offsets = [0, 0, 0], sizes = [8, 24, 8], strides = [1, 1, 1]} : vector<8x24x128xf32> to vector<8x24x8xf32>
    %c0_139 = arith.constant 0 : index
    %c0_140 = arith.constant 0 : index
    %c0_141 = arith.constant 0 : index
    %c0_142 = arith.constant 0 : index
    %196 = vector.load %arg10[%c0_139, %c0_140, %c0_141, %c0_142] : memref<1x8x24x8xf32, #tpu.memory_space<vmem>>, vector<1x8x24x8xf32>
    %197 = vector.shape_cast %196 : vector<1x8x24x8xf32> to vector<8x24x8xf32>
    %198 = vector.shape_cast %195 : vector<8x24x8xf32> to vector<1x8x24x8xf32>
    tpu.vector_store %arg10[%c0_139, %c0_140, %c0_141, %c0_142], %198 {strides = array<i32>} : memref<1x8x24x8xf32, #tpu.memory_space<vmem>>, vector<1x8x24x8xf32>,
    return
  }
  func.func @transform_0(%arg0: i32, %arg1: i32) -> (i32, i32, i32, i32, i32) {
    %c0_i32 = arith.constant 0 : i32
    %c0_i32_0 = arith.constant 0 : i32
    %c0_i32_1 = arith.constant 0 : i32
    %c0_i32_2 = arith.constant 0 : i32
    return %arg0, %arg1, %c0_i32, %c0_i32_0, %c0_i32_1 : i32, i32, i32, i32, i32
  }
  func.func @transform_1(%arg0: i32, %arg1: i32) -> (i32, i32, i32, i32, i32) {
    %c0_i32 = arith.constant 0 : i32
    %c0_i32_0 = arith.constant 0 : i32
    %c0_i32_1 = arith.constant 0 : i32
    %c0_i32_2 = arith.constant 0 : i32
    return %arg0, %arg1, %c0_i32, %c0_i32_0, %c0_i32_1 : i32, i32, i32, i32, i32
  }
  func.func @transform_2(%arg0: i32, %arg1: i32) -> (i32, i32, i32) {
    %c0_i32 = arith.constant 0 : i32
    %c0_i32_0 = arith.constant 0 : i32
    %c0_i32_1 = arith.constant 0 : i32
    %c0_i32_2 = arith.constant 0 : i32
    return %c0_i32, %c0_i32_0, %c0_i32_1 : i32, i32, i32
  }
  func.func @transform_3(%arg0: i32, %arg1: i32) -> (i32, i32) {
    %c0_i32 = arith.constant 0 : i32
    %c0_i32_0 = arith.constant 0 : i32
    %c0_i32_1 = arith.constant 0 : i32
    return %c0_i32, %c0_i32_0 : i32, i32
  }
  func.func @transform_4(%arg0: i32, %arg1: i32) -> (i32, i32, i32) {
    %c0_i32 = arith.constant 0 : i32
    %c0_i32_0 = arith.constant 0 : i32
    %c0_i32_1 = arith.constant 0 : i32
    %c0_i32_2 = arith.constant 0 : i32
    return %c0_i32, %c0_i32_0, %c0_i32_1 : i32, i32, i32
  }
  func.func @transform_5(%arg0: i32, %arg1: i32) -> (i32, i32) {
    %c0_i32 = arith.constant 0 : i32
    %c0_i32_0 = arith.constant 0 : i32
    %c0_i32_1 = arith.constant 0 : i32
    return %c0_i32, %c0_i32_0 : i32, i32
  }
  func.func @transform_6(%arg0: i32, %arg1: i32) -> (i32, i32, i32) {
    %c0_i32 = arith.constant 0 : i32
    %c0_i32_0 = arith.constant 0 : i32
    %c0_i32_1 = arith.constant 0 : i32
    %c0_i32_2 = arith.constant 0 : i32
    return %c0_i32, %c0_i32_0, %c0_i32_1 : i32, i32, i32
  }
  func.func @transform_7(%arg0: i32, %arg1: i32) -> (i32, i32) {
    %c0_i32 = arith.constant 0 : i32
    %c0_i32_0 = arith.constant 0 : i32
    %c0_i32_1 = arith.constant 0 : i32
    return %c0_i32, %c0_i32_0 : i32, i32
  }
  func.func @transform_8(%arg0: i32, %arg1: i32) -> (i32, i32, i32, i32) {
    %c0_i32 = arith.constant 0 : i32
    %c0_i32_0 = arith.constant 0 : i32
    %c0_i32_1 = arith.constant 0 : i32
    return %arg0, %arg1, %c0_i32, %c0_i32_0 : i32, i32, i32, i32
  }
}

</mosaic_0001>

<llo_original>
// kernel: down_forward.1
$region0: #{down_forward.1}
  #allocation0 [shape = 'u32[]', space=smem, size = 0x4, offset = 0x4, fixed_abs, tag = 'smem constant byte address 0x4 - core index']
  #allocation1 [shape = 'u32[144,128]{1,0:T(1,128)}', space=vmem, size = 0x12000, scoped, tag = 'internal scratch']
  #allocation2 [shape = 'bf16[14,26,128]{2,1,0:T(8,128)(2,1)}', space=vmem, size = 0x1c000, scoped, tag = 'scratch operand']
  %s0 = inlined_call_operand.vmem [shape: f32[2,24,2,24,8], index: 0, kind: input, shape index: {}]
  %s1 = inlined_call_operand.vmem [shape: f32[2,3,12,24,8], index: 1, kind: input, shape index: {}]
  %s2 = inlined_call_operand.vmem [shape: bf16[3,384,128], index: 2, kind: input, shape index: {}]
  %s3 = inlined_call_operand.vmem [shape: f32[1,128], index: 3, kind: input, shape index: {}]
  %s4 = inlined_call_operand.vmem [shape: bf16[3,384,128], index: 4, kind: input, shape index: {}]
  %s5 = inlined_call_operand.vmem [shape: f32[1,128], index: 5, kind: input, shape index: {}]
  %s6 = inlined_call_operand.vmem [shape: bf16[3,384,128], index: 6, kind: input, shape index: {}]
  %s7 = inlined_call_operand.vmem [shape: f32[1,128], index: 7, kind: input, shape index: {}]
  %s8 = inlined_call_operand.vmem [shape: f32[2,24,24,8], index: 8, kind: output, shape index: {}]
  %s9 = sld [smem:[#allocation0]]
  $region89: #{down_forward.1} parent=0
    _
  %s11 = ssub.s32 1, %s9
  %s12 = scalar_select 0, %s11, %s9
  loop: start=0, step=1, limit=8
  $region2: #{down_forward.1} parent=0 // loop_pre_header
    _
  $region3: #{down_forward.1} parent=0 // loop_header
    %s14 = sphi 0, %s18
    %p15 = scmp.ge.s32.totalorder %s14, 8
    %s21 = sphi 0, %s33
    %s22 = sphi 0, %s29
    %s23 = sphi 0, %s21
    %s24 = sphi 0, %s22
    %s25 = sphi 0, %s23
    %s26 = sphi 0, %s24
    %s38 = sphi 0, %s40
    %s41 = sphi 0, %s38
    %s42 = sphi 0, %s41
    %s58 = sphi 0, %s42
    %s66 = sphi 0, %s68
    %s69 = sphi 0, %s66
    %s70 = sphi 0, %s69
    %s86 = sphi 0, %s70
    %s90 = sphi 0, %s90
    %s92 = sphi 0, %s90
    %s93 = sphi 0, %s92
    %s107 = sphi 0, %s93
    %s111 = sphi 0, %s111
    %s113 = sphi 0, %s111
    %s114 = sphi 0, %s113
    %s128 = sphi 0, %s114
    %s132 = sphi 0, %s132
    %s134 = sphi 0, %s132
    %s135 = sphi 0, %s134
    %s149 = sphi 0, %s135
    %s153 = sphi 0, %s153
    %s155 = sphi 0, %s153
    %s156 = sphi 0, %s155
    %s170 = sphi 0, %s156
    %s174 = sphi 0, %s174
    %s176 = sphi 0, %s174
    %s177 = sphi 0, %s176
    %s191 = sphi 0, %s177
    %s195 = sphi 0, %s195
    %s197 = sphi 0, %s195
    %s198 = sphi 0, %s197
    %s212 = sphi 0, %s198
    %s220 = sphi 0, %s222
    %s223 = sphi 0, %s220
    %s224 = sphi 0, %s223
    %s240 = sphi 0, %s224
  $region4: #{down_forward.1} parent=0 // loop_header_branch
    %17 = sbr.rel (%p15) target = $region8
  $region5: #{down_forward.1} parent=0 // loop_body
    %s19 = ssub.s32 %s14, 1
    %s20 = ssub.s32 %s14, 2
    %s27 = sadd.s32 1, %s22
    %p28 = scmp.ge.s32.totalorder %s27, 3
    %s29 = scalar_select %p28, 0, %s27
    %s30 = sadd.s32 1, %s21
    %s31 = scalar_select %p28, %s30, %s21
    %p32 = scmp.ge.s32.totalorder %s31, 2
    %s33 = scalar_select %p32, 0, %s31
    %s34 = ssub.s32 %s21, %s33
    %s35 = ssub.s32 %s22, %s29
    %s36 = sor.u32 %s34, %s35
    %p37 = scmp.eq.s32.totalorder %s36, 0
    %s39 = sadd.s32 %s38, 1
    %s40 = scalar_select %p37, %s38, %s39
    %p43 = pneg %p37
    %p44 = scmp.eq.s32.totalorder %s14, 5
    %p45 = por %p43, %p44
    %p46 = scmp.ne.s32.totalorder %s38, %s41
    %p47 = scmp.eq.s32.totalorder %s14, 0
    %p48 = por %p46, %p47
    %p49 = scmp.ne.s32.totalorder %s38, %s41
    %p50 = scmp.eq.s32.totalorder %s19, 5
    %p51 = por %p49, %p50
    %p52 = scmp.ne.s32.totalorder %s41, %s42
    %p53 = scmp.eq.s32.totalorder %s19, 0
    %p54 = por %p52, %p53
    %p55 = scmp.ne.s32.totalorder %s41, %s42
    %p56 = scmp.eq.s32.totalorder %s20, 5
    %p57 = por %p55, %p56
    %p59 = scmp.ne.s32.totalorder %s42, %s58
    %p60 = scmp.eq.s32.totalorder %s20, 0
    %p61 = por %p59, %p60
    %s62 = ssub.s32 %s21, %s33
    %s63 = ssub.s32 %s22, %s29
    %s64 = sor.u32 %s62, %s63
    %p65 = scmp.eq.s32.totalorder %s64, 0
    %s67 = sadd.s32 %s66, 1
    %s68 = scalar_select %p65, %s66, %s67
    %p71 = pneg %p65
    %p72 = scmp.eq.s32.totalorder %s14, 5
    %p73 = por %p71, %p72
    %p74 = scmp.ne.s32.totalorder %s66, %s69
    %p75 = scmp.eq.s32.totalorder %s14, 0
    %p76 = por %p74, %p75
    %p77 = scmp.ne.s32.totalorder %s66, %s69
    %p78 = scmp.eq.s32.totalorder %s19, 5
    %p79 = por %p77, %p78
    %p80 = scmp.ne.s32.totalorder %s69, %s70
    %p81 = scmp.eq.s32.totalorder %s19, 0
    %p82 = por %p80, %p81
    %p83 = scmp.ne.s32.totalorder %s69, %s70
    %p84 = scmp.eq.s32.totalorder %s20, 5
    %p85 = por %p83, %p84
    %p87 = scmp.ne.s32.totalorder %s70, %s86
    %p88 = scmp.eq.s32.totalorder %s20, 0
    %p89 = por %p87, %p88
    %s91 = sadd.s32 %s90, 1
    %p94 = scmp.eq.s32.totalorder %s14, 5
    %p95 = scmp.ne.s32.totalorder %s90, %s92
    %p96 = scmp.eq.s32.totalorder %s14, 0
    %p97 = por %p95, %p96
    %p98 = scmp.ne.s32.totalorder %s90, %s92
    %p99 = scmp.eq.s32.totalorder %s19, 5
    %p100 = por %p98, %p99
    %p101 = scmp.ne.s32.totalorder %s92, %s93
    %p102 = scmp.eq.s32.totalorder %s19, 0
    %p103 = por %p101, %p102
    %p104 = scmp.ne.s32.totalorder %s92, %s93
    %p105 = scmp.eq.s32.totalorder %s20, 5
    %p106 = por %p104, %p105
    %p108 = scmp.ne.s32.totalorder %s93, %s107
    %p109 = scmp.eq.s32.totalorder %s20, 0
    %p110 = por %p108, %p109
    %s112 = sadd.s32 %s111, 1
    %p115 = scmp.eq.s32.totalorder %s14, 5
    %p116 = scmp.ne.s32.totalorder %s111, %s113
    %p117 = scmp.eq.s32.totalorder %s14, 0
    %p118 = por %p116, %p117
    %p119 = scmp.ne.s32.totalorder %s111, %s113
    %p120 = scmp.eq.s32.totalorder %s19, 5
    %p121 = por %p119, %p120
    %p122 = scmp.ne.s32.totalorder %s113, %s114
    %p123 = scmp.eq.s32.totalorder %s19, 0
    %p124 = por %p122, %p123
    %p125 = scmp.ne.s32.totalorder %s113, %s114
    %p126 = scmp.eq.s32.totalorder %s20, 5
    %p127 = por %p125, %p126
    %p129 = scmp.ne.s32.totalorder %s114, %s128
    %p130 = scmp.eq.s32.totalorder %s20, 0
    %p131 = por %p129, %p130
    %s133 = sadd.s32 %s132, 1
    %p136 = scmp.eq.s32.totalorder %s14, 5
    %p137 = scmp.ne.s32.totalorder %s132, %s134
    %p138 = scmp.eq.s32.totalorder %s14, 0
    %p139 = por %p137, %p138
    %p140 = scmp.ne.s32.totalorder %s132, %s134
    %p141 = scmp.eq.s32.totalorder %s19, 5
    %p142 = por %p140, %p141
    %p143 = scmp.ne.s32.totalorder %s134, %s135
    %p144 = scmp.eq.s32.totalorder %s19, 0
    %p145 = por %p143, %p144
    %p146 = scmp.ne.s32.totalorder %s134, %s135
    %p147 = scmp.eq.s32.totalorder %s20, 5
    %p148 = por %p146, %p147
    %p150 = scmp.ne.s32.totalorder %s135, %s149
    %p151 = scmp.eq.s32.totalorder %s20, 0
    %p152 = por %p150, %p151
    %s154 = sadd.s32 %s153, 1
    %p157 = scmp.eq.s32.totalorder %s14, 5
    %p158 = scmp.ne.s32.totalorder %s153, %s155
    %p159 = scmp.eq.s32.totalorder %s14, 0
    %p160 = por %p158, %p159
    %p161 = scmp.ne.s32.totalorder %s153, %s155
    %p162 = scmp.eq.s32.totalorder %s19, 5
    %p163 = por %p161, %p162
    %p164 = scmp.ne.s32.totalorder %s155, %s156
    %p165 = scmp.eq.s32.totalorder %s19, 0
    %p166 = por %p164, %p165
    %p167 = scmp.ne.s32.totalorder %s155, %s156
    %p168 = scmp.eq.s32.totalorder %s20, 5
    %p169 = por %p167, %p168
    %p171 = scmp.ne.s32.totalorder %s156, %s170
    %p172 = scmp.eq.s32.totalorder %s20, 0
    %p173 = por %p171, %p172
    %s175 = sadd.s32 %s174, 1
    %p178 = scmp.eq.s32.totalorder %s14, 5
    %p179 = scmp.ne.s32.totalorder %s174, %s176
    %p180 = scmp.eq.s32.totalorder %s14, 0
    %p181 = por %p179, %p180
    %p182 = scmp.ne.s32.totalorder %s174, %s176
    %p183 = scmp.eq.s32.totalorder %s19, 5
    %p184 = por %p182, %p183
    %p185 = scmp.ne.s32.totalorder %s176, %s177
    %p186 = scmp.eq.s32.totalorder %s19, 0
    %p187 = por %p185, %p186
    %p188 = scmp.ne.s32.totalorder %s176, %s177
    %p189 = scmp.eq.s32.totalorder %s20, 5
    %p190 = por %p188, %p189
    %p192 = scmp.ne.s32.totalorder %s177, %s191
    %p193 = scmp.eq.s32.totalorder %s20, 0
    %p194 = por %p192, %p193
    %s196 = sadd.s32 %s195, 1
    %p199 = scmp.eq.s32.totalorder %s14, 5
    %p200 = scmp.ne.s32.totalorder %s195, %s197
    %p201 = scmp.eq.s32.totalorder %s14, 0
    %p202 = por %p200, %p201
    %p203 = scmp.ne.s32.totalorder %s195, %s197
    %p204 = scmp.eq.s32.totalorder %s19, 5
    %p205 = por %p203, %p204
    %p206 = scmp.ne.s32.totalorder %s197, %s198
    %p207 = scmp.eq.s32.totalorder %s19, 0
    %p208 = por %p206, %p207
    %p209 = scmp.ne.s32.totalorder %s197, %s198
    %p210 = scmp.eq.s32.totalorder %s20, 5
    %p211 = por %p209, %p210
    %p213 = scmp.ne.s32.totalorder %s198, %s212
    %p214 = scmp.eq.s32.totalorder %s20, 0
    %p215 = por %p213, %p214
    %s216 = ssub.s32 %s21, %s33
    %s217 = ssub.s32 %s22, %s29
    %s218 = sor.u32 %s216, %s217
    %p219 = scmp.eq.s32.totalorder %s218, 0
    %s221 = sadd.s32 %s220, 1
    %s222 = scalar_select %p219, %s220, %s221
    %p225 = pneg %p219
    %p226 = scmp.eq.s32.totalorder %s14, 5
    %p227 = por %p225, %p226
    %p228 = scmp.ne.s32.totalorder %s220, %s223
    %p229 = scmp.eq.s32.totalorder %s14, 0
    %p230 = por %p228, %p229
    %p231 = scmp.ne.s32.totalorder %s220, %s223
    %p232 = scmp.eq.s32.totalorder %s19, 5
    %p233 = por %p231, %p232
    %p234 = scmp.ne.s32.totalorder %s223, %s224
    %p235 = scmp.eq.s32.totalorder %s19, 0
    %p236 = por %p234, %p235
    %p237 = scmp.ne.s32.totalorder %s223, %s224
    %p238 = scmp.eq.s32.totalorder %s20, 5
    %p239 = por %p237, %p238
    %p241 = scmp.ne.s32.totalorder %s224, %s240
    %p242 = scmp.eq.s32.totalorder %s20, 0
    %p243 = por %p241, %p242
    %p244 = scmp.le.s32.totalorder 1, %s14
    %p245 = scmp.lt.s32.totalorder %s14, 7
    %p246 = pnand %p244, %p245
    %p247 = pneg %p246
    // Predicated region
    $region9: #{down_forward.1} parent=5 // pred_check
      _
    $region10: #{down_forward.1} parent=5 // pred_check_branch
      %249 = sbr.rel (%p246) target = $region12
    $region11: #{down_forward.1} parent=5 // pred_region
      %s250 = ssub.s32 %s14, 1
      // Predicated region
      $region13: #{down_forward.1} parent=11 // pred_check
        %p251 = pneg %p103
      $region14: #{down_forward.1} parent=11 // pred_check_branch
        %253 = sbr.rel (%p251) target = $region16
      $region15: #{down_forward.1} parent=11 // pred_region
        _
      $region16: #{down_forward.1} parent=11 // pred_fallthru
        _
      // Predicated region
      $region17: #{down_forward.1} parent=11 // pred_check
        %p254 = pneg %p124
      $region18: #{down_forward.1} parent=11 // pred_check_branch
        %256 = sbr.rel (%p254) target = $region20
      $region19: #{down_forward.1} parent=11 // pred_region
        _
      $region20: #{down_forward.1} parent=11 // pred_fallthru
        _
      // Predicated region
      $region21: #{down_forward.1} parent=11 // pred_check
        %p257 = pneg %p145
      $region22: #{down_forward.1} parent=11 // pred_check_branch
        %259 = sbr.rel (%p257) target = $region24
      $region23: #{down_forward.1} parent=11 // pred_region
        _
      $region24: #{down_forward.1} parent=11 // pred_fallthru
        _
      // Predicated region
      $region25: #{down_forward.1} parent=11 // pred_check
        %p260 = pneg %p166
      $region26: #{down_forward.1} parent=11 // pred_check_branch
        %262 = sbr.rel (%p260) target = $region28
      $region27: #{down_forward.1} parent=11 // pred_region
        _
      $region28: #{down_forward.1} parent=11 // pred_fallthru
        _
      // Predicated region
      $region29: #{down_forward.1} parent=11 // pred_check
        %p263 = pneg %p187
      $region30: #{down_forward.1} parent=11 // pred_check_branch
        %265 = sbr.rel (%p263) target = $region32
      $region31: #{down_forward.1} parent=11 // pred_region
        _
      $region32: #{down_forward.1} parent=11 // pred_fallthru
        _
      // Predicated region
      $region33: #{down_forward.1} parent=11 // pred_check
        %p266 = pneg %p208
      $region34: #{down_forward.1} parent=11 // pred_check_branch
        %268 = sbr.rel (%p266) target = $region36
      $region35: #{down_forward.1} parent=11 // pred_region
        _
      $region36: #{down_forward.1} parent=11 // pred_fallthru
        _
    $region12: #{down_forward.1} parent=5 // pred_fallthru
      _
    %p269 = scmp.lt.s32.totalorder %s14, 6
    // Predicated region
    $region37: #{down_forward.1} parent=5 // pred_check
      %p270 = pneg %p269
    $region38: #{down_forward.1} parent=5 // pred_check_branch
      %272 = sbr.rel (%p270) target = $region40
    $region39: #{down_forward.1} parent=5 // pred_region
      // Predicated region
      $region41: #{down_forward.1} parent=39 // pred_check
        %p273 = pneg %p48
      $region42: #{down_forward.1} parent=39 // pred_check_branch
        %275 = sbr.rel (%p273) target = $region44
      $region43: #{down_forward.1} parent=39 // pred_region
        %s276 = smul.u32 8, %s22
        %p277 = scmp.lt.s32.totalorder %s21, 1
        %s278 = scalar_select %p277, %s21, 1
        %p279 = scmp.lt.s32.totalorder %s276, 23
        %s280 = scalar_select %p279, %s276, 23
        %s281 = smul.addr %s280, 6
        %s282 = smul.addr %s278, 144
        %s283 = sadd.s32 %s281, %s282
        %s284 = smul.addr %s283, 8
        %s285 = scalar_lea.vmem %s0, %s284
        %s286 = smul.u32 8, %s22
      $region44: #{down_forward.1} parent=39 // pred_fallthru
        _
      // Predicated region
      $region45: #{down_forward.1} parent=39 // pred_check
        %p287 = pneg %p76
      $region46: #{down_forward.1} parent=39 // pred_check_branch
        %289 = sbr.rel (%p287) target = $region48
      $region47: #{down_forward.1} parent=39 // pred_region
        %p290 = scmp.lt.s32.totalorder %s21, 1
        %s291 = scalar_select %p290, %s21, 1
        %p292 = scmp.lt.s32.totalorder %s22, 2
        %s293 = scalar_select %p292, %s22, 2
        %s294 = smul.addr %s293, 36
        %s295 = smul.addr %s291, 108
        %s296 = sadd.s32 %s294, %s295
        %s297 = smul.addr %s296, 8
        %s298 = scalar_lea.vmem %s1, %s297
      $region48: #{down_forward.1} parent=39 // pred_fallthru
        _
    $region40: #{down_forward.1} parent=5 // pred_fallthru
      _
    %p299 = scmp.le.s32.totalorder 1, %s14
    %p300 = scmp.lt.s32.totalorder %s14, 7
    %p301 = pnand %p299, %p300
    %p302 = pneg %p301
    // Predicated region
    $region49: #{down_forward.1} parent=5 // pred_check
      _
    $region50: #{down_forward.1} parent=5 // pred_check_branch
      %304 = sbr.rel (%p301) target = $region52
    $region51: #{down_forward.1} parent=5 // pred_region
      %s305 = ssub.s32 %s14, 1
      %s306 = smul.u32 8, %s24
      %p307 = scmp.lt.s32.totalorder %s23, 1
      %s308 = scalar_select %p307, %s23, 1
      %p309 = scmp.lt.s32.totalorder %s306, 23
      %s310 = scalar_select %p309, %s306, 23
      %s311 = smul.addr %s310, 6
      %s312 = smul.addr %s308, 144
      %s313 = sadd.s32 %s311, %s312
      %s314 = smul.addr %s313, 8
      %s315 = scalar_lea.vmem %s0, %s314
      %p316 = pneg %p54
      %p317 = pneg %p51
      %p318 = scmp.lt.s32.totalorder %s23, 1
      %s319 = scalar_select %p318, %s23, 1
      %p320 = scmp.lt.s32.totalorder %s24, 2
      %s321 = scalar_select %p320, %s24, 2
      %s322 = smul.addr %s321, 36
      %s323 = smul.addr %s319, 108
      %s324 = sadd.s32 %s322, %s323
      %s325 = smul.addr %s324, 8
      %s326 = scalar_lea.vmem %s1, %s325
      %p327 = pneg %p82
      %p328 = pneg %p79
      %p329 = pneg %p103
      %p330 = pneg %p100
      %p331 = pneg %p124
      %p332 = pneg %p121
      %p333 = pneg %p145
      %p334 = pneg %p142
      %p335 = pneg %p166
      %p336 = pneg %p163
      %p337 = pneg %p187
      %p338 = pneg %p184
      %p339 = pneg %p208
      %p340 = pneg %p205
      %p341 = pneg %p236
      %p342 = pneg %p233
      %s343 = smul.u32 8, %s24
      %p344 = scmp.lt.s32.totalorder %s23, 1
      %s345 = scalar_select %p344, %s23, 1
      %p346 = scmp.lt.s32.totalorder %s343, 23
      %s347 = scalar_select %p346, %s343, 23
      %s348 = smul.addr %s347, 3
      %s349 = smul.addr %s345, 72
      %s350 = sadd.s32 %s348, %s349
      %s351 = smul.addr %s350, 8
      %s352 = scalar_lea.vmem %s8, %s351
      %s353 = smul.u32 8, %s24
      %p354 = scmp.lt.s32.totalorder %s23, 1
      %s355 = scalar_select %p354, %s23, 1
      %p356 = scmp.lt.s32.totalorder %s353, 23
      %s357 = scalar_select %p356, %s353, 23
      %s358 = smul.addr %s357, 6
      %s359 = smul.addr %s355, 144
      %s360 = sadd.s32 %s358, %s359
      %s361 = smul.addr %s360, 8
      %s362 = scalar_lea.vmem %s0, %s361
      %s363 = smul.u32 8, %s24
      %p364 = scmp.lt.s32.totalorder %s23, 1
      %s365 = scalar_select %p364, %s23, 1
      %p366 = scmp.lt.s32.totalorder %s24, 2
      %s367 = scalar_select %p366, %s24, 2
      %s368 = smul.addr %s367, 36
      %s369 = smul.addr %s365, 108
      %s370 = sadd.s32 %s368, %s369
      %s371 = smul.addr %s370, 8
      %s372 = scalar_lea.vmem %s1, %s371
      %s373 = smul.u32 8, %s24
      %p374 = scmp.lt.s32.totalorder %s23, 1
      %s375 = scalar_select %p374, %s23, 1
      %p376 = scmp.lt.s32.totalorder %s373, 23
      %s377 = scalar_select %p376, %s373, 23
      %s378 = smul.addr %s377, 3
      %s379 = smul.addr %s375, 72
      %s380 = sadd.s32 %s378, %s379
      %s381 = smul.addr %s380, 8
      %s382 = scalar_lea.vmem %s8, %s381
      %s383 = smul.u32 8, %s24
      %p385 = scmp.eq.s32.totalorder %s24, 0
      %p386 = scmp.eq.s32.totalorder %s24, 2
      %v387 = vld [vmem:[%s362] sm:$0xff]
      %v388 = vld [vmem:[%s362 + $0x8] sm:$0xff]
      %v389 = vld [vmem:[%s362 + $0x10] sm:$0xff]
      %v390 = vld [vmem:[%s362 + $0x18] sm:$0xff]
      %v391 = vld [vmem:[%s362 + $0x20] sm:$0xff]
      %v392 = vld [vmem:[%s362 + $0x28] sm:$0xff]
      %v393 = vld [vmem:[%s362 + $0x30] sm:$0xff]
      %v394 = vld [vmem:[%s362 + $0x38] sm:$0xff]
      %v395 = vld [vmem:[%s362 + $0x40] sm:$0xff]
      %v396 = vld [vmem:[%s362 + $0x48] sm:$0xff]
      %v397 = vld [vmem:[%s362 + $0x50] sm:$0xff]
      %v398 = vld [vmem:[%s362 + $0x58] sm:$0xff]
      %v399 = vld [vmem:[%s362 + $0x60] sm:$0xff]
      %v400 = vld [vmem:[%s362 + $0x68] sm:$0xff]
      %v401 = vld [vmem:[%s362 + $0x70] sm:$0xff]
      %v402 = vld [vmem:[%s362 + $0x78] sm:$0xff]
      %v403 = vld [vmem:[%s362 + $0x80] sm:$0xff]
      %v404 = vld [vmem:[%s362 + $0x88] sm:$0xff]
      %v405 = vld [vmem:[%s362 + $0x90] sm:$0xff]
      %v406 = vld [vmem:[%s362 + $0x98] sm:$0xff]
      %v407 = vld [vmem:[%s362 + $0xa0] sm:$0xff]
      %v408 = vld [vmem:[%s362 + $0xa8] sm:$0xff]
      %v409 = vld [vmem:[%s362 + $0xb0] sm:$0xff]
      %v410 = vld [vmem:[%s362 + $0xb8] sm:$0xff]
      %v411 = vld [vmem:[%s362 + $0xc0] sm:$0xff]
      %v412 = vld [vmem:[%s362 + $0xc8] sm:$0xff]
      %v413 = vld [vmem:[%s362 + $0xd0] sm:$0xff]
      %v414 = vld [vmem:[%s362 + $0xd8] sm:$0xff]
      %v415 = vld [vmem:[%s362 + $0xe0] sm:$0xff]
      %v416 = vld [vmem:[%s362 + $0xe8] sm:$0xff]
      %v417 = vld [vmem:[%s362 + $0xf0] sm:$0xff]
      %v418 = vld [vmem:[%s362 + $0xf8] sm:$0xff]
      %v419 = vld [vmem:[%s362 + $0x100] sm:$0xff]
      %v420 = vld [vmem:[%s362 + $0x108] sm:$0xff]
      %v421 = vld [vmem:[%s362 + $0x110] sm:$0xff]
      %v422 = vld [vmem:[%s362 + $0x118] sm:$0xff]
      %v423 = vld [vmem:[%s362 + $0x120] sm:$0xff]
      %v424 = vld [vmem:[%s362 + $0x128] sm:$0xff]
      %v425 = vld [vmem:[%s362 + $0x130] sm:$0xff]
      %v426 = vld [vmem:[%s362 + $0x138] sm:$0xff]
      %v427 = vld [vmem:[%s362 + $0x140] sm:$0xff]
      %v428 = vld [vmem:[%s362 + $0x148] sm:$0xff]
      %v429 = vld [vmem:[%s362 + $0x150] sm:$0xff]
      %v430 = vld [vmem:[%s362 + $0x158] sm:$0xff]
      %v431 = vld [vmem:[%s362 + $0x160] sm:$0xff]
      %v432 = vld [vmem:[%s362 + $0x168] sm:$0xff]
      %v433 = vld [vmem:[%s362 + $0x170] sm:$0xff]
      %v434 = vld [vmem:[%s362 + $0x178] sm:$0xff]
      %459 = vrot.lane.b32.xlu0 %v387, 124
      %v460 = vpop.permute.xlu0 %459
      %461 = vrot.lane.b32.xlu0 %v388, 124
      %v462 = vpop.permute.xlu0 %461
      %463 = vrot.lane.b32.xlu0 %v389, 124
      %v464 = vpop.permute.xlu0 %463
      %465 = vrot.lane.b32.xlu0 %v393, 124
      %v466 = vpop.permute.xlu0 %465
      %467 = vrot.lane.b32.xlu0 %v394, 124
      %v468 = vpop.permute.xlu0 %467
      %469 = vrot.lane.b32.xlu0 %v395, 124
      %v470 = vpop.permute.xlu0 %469
      %471 = vrot.lane.b32.xlu0 %v399, 124
      %v472 = vpop.permute.xlu0 %471
      %473 = vrot.lane.b32.xlu0 %v400, 124
      %v474 = vpop.permute.xlu0 %473
      %475 = vrot.lane.b32.xlu0 %v401, 124
      %v476 = vpop.permute.xlu0 %475
      %477 = vrot.lane.b32.xlu0 %v405, 124
      %v478 = vpop.permute.xlu0 %477
      %479 = vrot.lane.b32.xlu0 %v406, 124
      %v480 = vpop.permute.xlu0 %479
      %481 = vrot.lane.b32.xlu0 %v407, 124
      %v482 = vpop.permute.xlu0 %481
      %483 = vrot.lane.b32.xlu0 %v411, 124
      %v484 = vpop.permute.xlu0 %483
      %485 = vrot.lane.b32.xlu0 %v412, 124
      %v486 = vpop.permute.xlu0 %485
      %487 = vrot.lane.b32.xlu0 %v413, 124
      %v488 = vpop.permute.xlu0 %487
      %489 = vrot.lane.b32.xlu0 %v417, 124
      %v490 = vpop.permute.xlu0 %489
      %491 = vrot.lane.b32.xlu0 %v418, 124
      %v492 = vpop.permute.xlu0 %491
      %493 = vrot.lane.b32.xlu0 %v419, 124
      %v494 = vpop.permute.xlu0 %493
      %495 = vrot.lane.b32.xlu0 %v423, 124
      %v496 = vpop.permute.xlu0 %495
      %497 = vrot.lane.b32.xlu0 %v424, 124
      %v498 = vpop.permute.xlu0 %497
      %499 = vrot.lane.b32.xlu0 %v425, 124
      %v500 = vpop.permute.xlu0 %499
      %501 = vrot.lane.b32.xlu0 %v429, 124
      %v502 = vpop.permute.xlu0 %501
      %503 = vrot.lane.b32.xlu0 %v430, 124
      %v504 = vpop.permute.xlu0 %503
      %505 = vrot.lane.b32.xlu0 %v431, 124
      %v506 = vpop.permute.xlu0 %505
      %v531 = vmax.f32 %v387, %v460
      %v532 = vmax.f32 %v388, %v462
      %v533 = vmax.f32 %v389, %v464
      %v534 = vmax.f32 %v393, %v466
      %v535 = vmax.f32 %v394, %v468
      %v536 = vmax.f32 %v395, %v470
      %v537 = vmax.f32 %v399, %v472
      %v538 = vmax.f32 %v400, %v474
      %v539 = vmax.f32 %v401, %v476
      %v540 = vmax.f32 %v405, %v478
      %v541 = vmax.f32 %v406, %v480
      %v542 = vmax.f32 %v407, %v482
      %v543 = vmax.f32 %v411, %v484
      %v544 = vmax.f32 %v412, %v486
      %v545 = vmax.f32 %v413, %v488
      %v546 = vmax.f32 %v417, %v490
      %v547 = vmax.f32 %v418, %v492
      %v548 = vmax.f32 %v419, %v494
      %v549 = vmax.f32 %v423, %v496
      %v550 = vmax.f32 %v424, %v498
      %v551 = vmax.f32 %v425, %v500
      %v552 = vmax.f32 %v429, %v502
      %v553 = vmax.f32 %v430, %v504
      %v554 = vmax.f32 %v431, %v506
      %579 = vrot.lane.b32.xlu0 %v390, 124
      %v580 = vpop.permute.xlu0 %579
      %581 = vrot.lane.b32.xlu0 %v391, 124
      %v582 = vpop.permute.xlu0 %581
      %583 = vrot.lane.b32.xlu0 %v392, 124
      %v584 = vpop.permute.xlu0 %583
      %585 = vrot.lane.b32.xlu0 %v396, 124
      %v586 = vpop.permute.xlu0 %585
      %587 = vrot.lane.b32.xlu0 %v397, 124
      %v588 = vpop.permute.xlu0 %587
      %589 = vrot.lane.b32.xlu0 %v398, 124
      %v590 = vpop.permute.xlu0 %589
      %591 = vrot.lane.b32.xlu0 %v402, 124
      %v592 = vpop.permute.xlu0 %591
      %593 = vrot.lane.b32.xlu0 %v403, 124
      %v594 = vpop.permute.xlu0 %593
      %595 = vrot.lane.b32.xlu0 %v404, 124
      %v596 = vpop.permute.xlu0 %595
      %597 = vrot.lane.b32.xlu0 %v408, 124
      %v598 = vpop.permute.xlu0 %597
      %599 = vrot.lane.b32.xlu0 %v409, 124
      %v600 = vpop.permute.xlu0 %599
      %601 = vrot.lane.b32.xlu0 %v410, 124
      %v602 = vpop.permute.xlu0 %601
      %603 = vrot.lane.b32.xlu0 %v414, 124
      %v604 = vpop.permute.xlu0 %603
      %605 = vrot.lane.b32.xlu0 %v415, 124
      %v606 = vpop.permute.xlu0 %605
      %607 = vrot.lane.b32.xlu0 %v416, 124
      %v608 = vpop.permute.xlu0 %607
      %609 = vrot.lane.b32.xlu0 %v420, 124
      %v610 = vpop.permute.xlu0 %609
      %611 = vrot.lane.b32.xlu0 %v421, 124
      %v612 = vpop.permute.xlu0 %611
      %613 = vrot.lane.b32.xlu0 %v422, 124
      %v614 = vpop.permute.xlu0 %613
      %615 = vrot.lane.b32.xlu0 %v426, 124
      %v616 = vpop.permute.xlu0 %615
      %617 = vrot.lane.b32.xlu0 %v427, 124
      %v618 = vpop.permute.xlu0 %617
      %619 = vrot.lane.b32.xlu0 %v428, 124
      %v620 = vpop.permute.xlu0 %619
      %621 = vrot.lane.b32.xlu0 %v432, 124
      %v622 = vpop.permute.xlu0 %621
      %623 = vrot.lane.b32.xlu0 %v433, 124
      %v624 = vpop.permute.xlu0 %623
      %625 = vrot.lane.b32.xlu0 %v434, 124
      %v626 = vpop.permute.xlu0 %625
      %v651 = vmax.f32 %v390, %v580
      %v652 = vmax.f32 %v391, %v582
      %v653 = vmax.f32 %v392, %v584
      %v654 = vmax.f32 %v396, %v586
      %v655 = vmax.f32 %v397, %v588
      %v656 = vmax.f32 %v398, %v590
      %v657 = vmax.f32 %v402, %v592
      %v658 = vmax.f32 %v403, %v594
      %v659 = vmax.f32 %v404, %v596
      %v660 = vmax.f32 %v408, %v598
      %v661 = vmax.f32 %v409, %v600
      %v662 = vmax.f32 %v410, %v602
      %v663 = vmax.f32 %v414, %v604
      %v664 = vmax.f32 %v415, %v606
      %v665 = vmax.f32 %v416, %v608
      %v666 = vmax.f32 %v420, %v610
      %v667 = vmax.f32 %v421, %v612
      %v668 = vmax.f32 %v422, %v614
      %v669 = vmax.f32 %v426, %v616
      %v670 = vmax.f32 %v427, %v618
      %v671 = vmax.f32 %v428, %v620
      %v672 = vmax.f32 %v432, %v622
      %v673 = vmax.f32 %v433, %v624
      %v674 = vmax.f32 %v434, %v626
      %v675 = vmax.f32 %v531, %v651
      %v676 = vmax.f32 %v532, %v652
      %v677 = vmax.f32 %v533, %v653
      %v678 = vmax.f32 %v534, %v654
      %v679 = vmax.f32 %v535, %v655
      %v680 = vmax.f32 %v536, %v656
      %v681 = vmax.f32 %v537, %v657
      %v682 = vmax.f32 %v538, %v658
      %v683 = vmax.f32 %v539, %v659
      %v684 = vmax.f32 %v540, %v660
      %v685 = vmax.f32 %v541, %v661
      %v686 = vmax.f32 %v542, %v662
      %v687 = vmax.f32 %v543, %v663
      %v688 = vmax.f32 %v544, %v664
      %v689 = vmax.f32 %v545, %v665
      %v690 = vmax.f32 %v546, %v666
      %v691 = vmax.f32 %v547, %v667
      %v692 = vmax.f32 %v548, %v668
      %v693 = vmax.f32 %v549, %v669
      %v694 = vmax.f32 %v550, %v670
      %v695 = vmax.f32 %v551, %v671
      %v696 = vmax.f32 %v552, %v672
      %v697 = vmax.f32 %v553, %v673
      %v698 = vmax.f32 %v554, %v674
      %vm699 = vcmask 31744
      %v700 = vsel %vm699, %v675, 0.0
      %v701 = vsel %vm699, %v676, 0.0
      %v702 = vsel %vm699, %v677, 0.0
      %v703 = vsel %vm699, %v678, 0.0
      %v704 = vsel %vm699, %v679, 0.0
      %v705 = vsel %vm699, %v680, 0.0
      %v706 = vsel %vm699, %v681, 0.0
      %v707 = vsel %vm699, %v682, 0.0
      %v708 = vsel %vm699, %v683, 0.0
      %v709 = vsel %vm699, %v684, 0.0
      %v710 = vsel %vm699, %v685, 0.0
      %v711 = vsel %vm699, %v686, 0.0
      %v712 = vsel %vm699, %v687, 0.0
      %v713 = vsel %vm699, %v688, 0.0
      %v714 = vsel %vm699, %v689, 0.0
      %v715 = vsel %vm699, %v690, 0.0
      %v716 = vsel %vm699, %v691, 0.0
      %v717 = vsel %vm699, %v692, 0.0
      %v718 = vsel %vm699, %v693, 0.0
      %v719 = vsel %vm699, %v694, 0.0
      %v720 = vsel %vm699, %v695, 0.0
      %v721 = vsel %vm699, %v696, 0.0
      %v722 = vsel %vm699, %v697, 0.0
      %v723 = vsel %vm699, %v698, 0.0
      %v724 = vld [vmem:[%s372] sm:$0xff]
      %v725 = vld [vmem:[%s372 + $0x8] sm:$0xff]
      %v726 = vld [vmem:[%s372 + $0x10] sm:$0xff]
      %v727 = vld [vmem:[%s372 + $0x18] sm:$0xff]
      %v728 = vld [vmem:[%s372 + $0x20] sm:$0xff]
      %v729 = vld [vmem:[%s372 + $0x28] sm:$0xff]
      %v730 = vld [vmem:[%s372 + $0x30] sm:$0xff]
      %v731 = vld [vmem:[%s372 + $0x38] sm:$0xff]
      %v732 = vld [vmem:[%s372 + $0x40] sm:$0xff]
      %v733 = vld [vmem:[%s372 + $0x48] sm:$0xff]
      %v734 = vld [vmem:[%s372 + $0x50] sm:$0xff]
      %v735 = vld [vmem:[%s372 + $0x58] sm:$0xff]
      %v736 = vld [vmem:[%s372 + $0x60] sm:$0xff]
      %v737 = vld [vmem:[%s372 + $0x68] sm:$0xff]
      %v738 = vld [vmem:[%s372 + $0x70] sm:$0xff]
      %v739 = vld [vmem:[%s372 + $0x78] sm:$0xff]
      %v740 = vld [vmem:[%s372 + $0x80] sm:$0xff]
      %v741 = vld [vmem:[%s372 + $0x88] sm:$0xff]
      %v742 = vld [vmem:[%s372 + $0x90] sm:$0xff]
      %v743 = vld [vmem:[%s372 + $0x98] sm:$0xff]
      %v744 = vld [vmem:[%s372 + $0xa0] sm:$0xff]
      %v745 = vld [vmem:[%s372 + $0xa8] sm:$0xff]
      %v746 = vld [vmem:[%s372 + $0xb0] sm:$0xff]
      %v747 = vld [vmem:[%s372 + $0xb8] sm:$0xff]
      %v748 = vld [vmem:[%s372 + $0xc0] sm:$0xff]
      %v749 = vld [vmem:[%s372 + $0xc8] sm:$0xff]
      %v750 = vld [vmem:[%s372 + $0xd0] sm:$0xff]
      %v751 = vld [vmem:[%s372 + $0xd8] sm:$0xff]
      %v752 = vld [vmem:[%s372 + $0xe0] sm:$0xff]
      %v753 = vld [vmem:[%s372 + $0xe8] sm:$0xff]
      %v754 = vld [vmem:[%s372 + $0xf0] sm:$0xff]
      %v755 = vld [vmem:[%s372 + $0xf8] sm:$0xff]
      %v756 = vld [vmem:[%s372 + $0x100] sm:$0xff]
      %v757 = vld [vmem:[%s372 + $0x108] sm:$0xff]
      %v758 = vld [vmem:[%s372 + $0x110] sm:$0xff]
      %v759 = vld [vmem:[%s372 + $0x118] sm:$0xff]
      %778 = vrot.lane.b32.xlu0 %v724, 124
      %v779 = vpop.permute.xlu0 %778
      %780 = vrot.lane.b32.xlu0 %v725, 124
      %v781 = vpop.permute.xlu0 %780
      %782 = vrot.lane.b32.xlu0 %v726, 124
      %v783 = vpop.permute.xlu0 %782
      %784 = vrot.lane.b32.xlu0 %v730, 124
      %v785 = vpop.permute.xlu0 %784
      %786 = vrot.lane.b32.xlu0 %v731, 124
      %v787 = vpop.permute.xlu0 %786
      %788 = vrot.lane.b32.xlu0 %v732, 124
      %v789 = vpop.permute.xlu0 %788
      %790 = vrot.lane.b32.xlu0 %v736, 124
      %v791 = vpop.permute.xlu0 %790
      %792 = vrot.lane.b32.xlu0 %v737, 124
      %v793 = vpop.permute.xlu0 %792
      %794 = vrot.lane.b32.xlu0 %v738, 124
      %v795 = vpop.permute.xlu0 %794
      %796 = vrot.lane.b32.xlu0 %v742, 124
      %v797 = vpop.permute.xlu0 %796
      %798 = vrot.lane.b32.xlu0 %v743, 124
      %v799 = vpop.permute.xlu0 %798
      %800 = vrot.lane.b32.xlu0 %v744, 124
      %v801 = vpop.permute.xlu0 %800
      %802 = vrot.lane.b32.xlu0 %v748, 124
      %v803 = vpop.permute.xlu0 %802
      %804 = vrot.lane.b32.xlu0 %v749, 124
      %v805 = vpop.permute.xlu0 %804
      %806 = vrot.lane.b32.xlu0 %v750, 124
      %v807 = vpop.permute.xlu0 %806
      %808 = vrot.lane.b32.xlu0 %v754, 124
      %v809 = vpop.permute.xlu0 %808
      %810 = vrot.lane.b32.xlu0 %v755, 124
      %v811 = vpop.permute.xlu0 %810
      %812 = vrot.lane.b32.xlu0 %v756, 124
      %v813 = vpop.permute.xlu0 %812
      %v832 = vmax.f32 %v724, %v779
      %v833 = vmax.f32 %v725, %v781
      %v834 = vmax.f32 %v726, %v783
      %v835 = vmax.f32 %v730, %v785
      %v836 = vmax.f32 %v731, %v787
      %v837 = vmax.f32 %v732, %v789
      %v838 = vmax.f32 %v736, %v791
      %v839 = vmax.f32 %v737, %v793
      %v840 = vmax.f32 %v738, %v795
      %v841 = vmax.f32 %v742, %v797
      %v842 = vmax.f32 %v743, %v799
      %v843 = vmax.f32 %v744, %v801
      %v844 = vmax.f32 %v748, %v803
      %v845 = vmax.f32 %v749, %v805
      %v846 = vmax.f32 %v750, %v807
      %v847 = vmax.f32 %v754, %v809
      %v848 = vmax.f32 %v755, %v811
      %v849 = vmax.f32 %v756, %v813
      %868 = vrot.lane.b32.xlu0 %v727, 124
      %v869 = vpop.permute.xlu0 %868
      %870 = vrot.lane.b32.xlu0 %v728, 124
      %v871 = vpop.permute.xlu0 %870
      %872 = vrot.lane.b32.xlu0 %v729, 124
      %v873 = vpop.permute.xlu0 %872
      %874 = vrot.lane.b32.xlu0 %v733, 124
      %v875 = vpop.permute.xlu0 %874
      %876 = vrot.lane.b32.xlu0 %v734, 124
      %v877 = vpop.permute.xlu0 %876
      %878 = vrot.lane.b32.xlu0 %v735, 124
      %v879 = vpop.permute.xlu0 %878
      %880 = vrot.lane.b32.xlu0 %v739, 124
      %v881 = vpop.permute.xlu0 %880
      %882 = vrot.lane.b32.xlu0 %v740, 124
      %v883 = vpop.permute.xlu0 %882
      %884 = vrot.lane.b32.xlu0 %v741, 124
      %v885 = vpop.permute.xlu0 %884
      %886 = vrot.lane.b32.xlu0 %v745, 124
      %v887 = vpop.permute.xlu0 %886
      %888 = vrot.lane.b32.xlu0 %v746, 124
      %v889 = vpop.permute.xlu0 %888
      %890 = vrot.lane.b32.xlu0 %v747, 124
      %v891 = vpop.permute.xlu0 %890
      %892 = vrot.lane.b32.xlu0 %v751, 124
      %v893 = vpop.permute.xlu0 %892
      %894 = vrot.lane.b32.xlu0 %v752, 124
      %v895 = vpop.permute.xlu0 %894
      %896 = vrot.lane.b32.xlu0 %v753, 124
      %v897 = vpop.permute.xlu0 %896
      %898 = vrot.lane.b32.xlu0 %v757, 124
      %v899 = vpop.permute.xlu0 %898
      %900 = vrot.lane.b32.xlu0 %v758, 124
      %v901 = vpop.permute.xlu0 %900
      %902 = vrot.lane.b32.xlu0 %v759, 124
      %v903 = vpop.permute.xlu0 %902
      %v922 = vmax.f32 %v727, %v869
      %v923 = vmax.f32 %v728, %v871
      %v924 = vmax.f32 %v729, %v873
      %v925 = vmax.f32 %v733, %v875
      %v926 = vmax.f32 %v734, %v877
      %v927 = vmax.f32 %v735, %v879
      %v928 = vmax.f32 %v739, %v881
      %v929 = vmax.f32 %v740, %v883
      %v930 = vmax.f32 %v741, %v885
      %v931 = vmax.f32 %v745, %v887
      %v932 = vmax.f32 %v746, %v889
      %v933 = vmax.f32 %v747, %v891
      %v934 = vmax.f32 %v751, %v893
      %v935 = vmax.f32 %v752, %v895
      %v936 = vmax.f32 %v753, %v897
      %v937 = vmax.f32 %v757, %v899
      %v938 = vmax.f32 %v758, %v901
      %v939 = vmax.f32 %v759, %v903
      %v940 = vmax.f32 %v832, %v922
      %v941 = vmax.f32 %v833, %v923
      %v942 = vmax.f32 %v834, %v924
      %v943 = vmax.f32 %v835, %v925
      %v944 = vmax.f32 %v836, %v926
      %v945 = vmax.f32 %v837, %v927
      %v946 = vmax.f32 %v838, %v928
      %v947 = vmax.f32 %v839, %v929
      %v948 = vmax.f32 %v840, %v930
      %v949 = vmax.f32 %v841, %v931
      %v950 = vmax.f32 %v842, %v932
      %v951 = vmax.f32 %v843, %v933
      %v952 = vmax.f32 %v844, %v934
      %v953 = vmax.f32 %v845, %v935
      %v954 = vmax.f32 %v846, %v936
      %v955 = vmax.f32 %v847, %v937
      %v956 = vmax.f32 %v848, %v938
      %v957 = vmax.f32 %v849, %v939
      %v958 = vsel %vm699, %v940, 0.0
      %v959 = vsel %vm699, %v941, 0.0
      %v960 = vsel %vm699, %v942, 0.0
      %v961 = vsel %vm699, %v943, 0.0
      %v962 = vsel %vm699, %v944, 0.0
      %v963 = vsel %vm699, %v945, 0.0
      %v964 = vsel %vm699, %v946, 0.0
      %v965 = vsel %vm699, %v947, 0.0
      %v966 = vsel %vm699, %v948, 0.0
      %v967 = vsel %vm699, %v949, 0.0
      %v968 = vsel %vm699, %v950, 0.0
      %v969 = vsel %vm699, %v951, 0.0
      %v970 = vsel %vm699, %v952, 0.0
      %v971 = vsel %vm699, %v953, 0.0
      %v972 = vsel %vm699, %v954, 0.0
      %v973 = vsel %vm699, %v955, 0.0
      %v974 = vsel %vm699, %v956, 0.0
      %v975 = vsel %vm699, %v957, 0.0
      %v976 = vpack.c.bf16 %v959, %v958
      %v977 = vpack.c.bf16 %v960, %v960
      %v978 = vpack.c.bf16 %v962, %v961
      %v979 = vpack.c.bf16 %v963, %v963
      %v980 = vpack.c.bf16 %v965, %v964
      %v981 = vpack.c.bf16 %v966, %v966
      %v988 = vunpack.c.l.b16 %v976
      %v989 = vunpack.c.h.b16 %v976
      %v990 = vunpack.c.l.b16 %v977
      %v991 = vunpack.c.l.b16 %v978
      %v992 = vunpack.c.h.b16 %v978
      %v993 = vunpack.c.l.b16 %v979
      %v994 = vunpack.c.l.b16 %v980
      %v995 = vunpack.c.h.b16 %v980
      %v996 = vunpack.c.l.b16 %v981
      %v997 = vpack.c.b16 %v988, %v988
      %v998 = vpack.c.b16 %v989, %v989
      %v999 = vpack.c.b16 %v990, %v990
      %v1000 = vpack.c.b16 %v991, %v991
      %v1001 = vpack.c.b16 %v992, %v992
      %v1002 = vpack.c.b16 %v993, %v993
      %v1003 = vpack.c.b16 %v994, %v994
      %v1004 = vpack.c.b16 %v995, %v995
      %v1005 = vpack.c.b16 %v996, %v996
      %vm1006 = vsmask.f32 256
      %vm1007 = vsmask.f32 4368
      %vm1008 = vmor %vm1006, %vm1007
      %v1010 = vshrl.u32 %v997, 16
      %v1012 = vrot.slane %v1010, 7
      %v1013 = vshll.u32 %v997, 16
      %v1015 = vor.u32 %v1012, %v1013
      %v1016 = vrot.slane %v1012, 4
      %v1018 = vshrl.u32 %v998, 16
      %v1020 = vrot.slane %v1018, 7
      %v1021 = vshll.u32 %v998, 16
      %v1023 = vor.u32 %v1020, %v1021
      %v1024 = vsel %vm1008, %v1016, %v1023
      %v1025 = vrot.slane %v1020, 4
      %v1027 = vshrl.u32 %v999, 16
      %v1029 = vrot.slane %v1027, 7
      %v1030 = vshll.u32 %v999, 16
      %v1032 = vor.u32 %v1029, %v1030
      %v1033 = vsel %vm1008, %v1025, %v1032
      %v1034 = vrot.slane %v1029, 4
      %v1036 = vshrl.u32 %v1000, 16
      %v1038 = vrot.slane %v1036, 7
      %v1039 = vshll.u32 %v1000, 16
      %v1041 = vor.u32 %v1038, %v1039
      %v1042 = vrot.slane %v1038, 4
      %v1044 = vshrl.u32 %v1001, 16
      %v1046 = vrot.slane %v1044, 7
      %v1047 = vshll.u32 %v1001, 16
      %v1049 = vor.u32 %v1046, %v1047
      %v1050 = vsel %vm1008, %v1042, %v1049
      %v1051 = vrot.slane %v1046, 4
      %v1053 = vshrl.u32 %v1002, 16
      %v1055 = vrot.slane %v1053, 7
      %v1056 = vshll.u32 %v1002, 16
      %v1058 = vor.u32 %v1055, %v1056
      %v1059 = vsel %vm1008, %v1051, %v1058
      %v1060 = vrot.slane %v1055, 4
      %v1062 = vshrl.u32 %v1003, 16
      %v1064 = vrot.slane %v1062, 7
      %v1065 = vshll.u32 %v1003, 16
      %v1067 = vor.u32 %v1064, %v1065
      %v1068 = vrot.slane %v1064, 4
      %v1070 = vshrl.u32 %v1004, 16
      %v1072 = vrot.slane %v1070, 7
      %v1073 = vshll.u32 %v1004, 16
      %v1075 = vor.u32 %v1072, %v1073
      %v1076 = vsel %vm1008, %v1068, %v1075
      %v1077 = vrot.slane %v1072, 4
      %v1079 = vshrl.u32 %v1005, 16
      %v1081 = vrot.slane %v1079, 7
      %v1082 = vshll.u32 %v1005, 16
      %v1084 = vor.u32 %v1081, %v1082
      %v1085 = vsel %vm1008, %v1077, %v1084
      %v1086 = vrot.slane %v1081, 4
      %vm1099 = vcmask 1043456
      %vm1100 = vsmask.f32 7938
      %vm1101 = vmand %vm1099, %vm1100
      %v1102 = vld [vmem:[#allocation2] sm:$0xf]
      %v1103 = vsel %vm1101, %v1015, %v1102
      %1104 = vst [vmem:[#allocation2] sm:$0xf] %v1103
      %1105 = vst [vmem:[#allocation2 + $0x4] sm:$0xf] %v1024
      %1106 = vst [vmem:[#allocation2 + $0x8] sm:$0xf] %v1033
      %vm1107 = vcmask 1040384
      %vm1108 = vmand %vm1107, %vm1006
      %v1109 = vld [vmem:[#allocation2 + $0xc] sm:$0x1]
      %v1110 = vsel %vm1108, %v1034, %v1109
      %1111 = vst [vmem:[#allocation2 + $0xc] sm:$0x1] %v1110
      %v1112 = vld [vmem:[#allocation2 + $0x10] sm:$0xf]
      %v1113 = vsel %vm1101, %v1041, %v1112
      %1114 = vst [vmem:[#allocation2 + $0x10] sm:$0xf] %v1113
      %1115 = vst [vmem:[#allocation2 + $0x14] sm:$0xf] %v1050
      %1116 = vst [vmem:[#allocation2 + $0x18] sm:$0xf] %v1059
      %v1117 = vld [vmem:[#allocation2 + $0x1c] sm:$0x1]
      %v1118 = vsel %vm1108, %v1060, %v1117
      %1119 = vst [vmem:[#allocation2 + $0x1c] sm:$0x1] %v1118
      %v1120 = vld [vmem:[#allocation2 + $0x20] sm:$0xf]
      %v1121 = vsel %vm1101, %v1067, %v1120
      %1122 = vst [vmem:[#allocation2 + $0x20] sm:$0xf] %v1121
      %1123 = vst [vmem:[#allocation2 + $0x24] sm:$0xf] %v1076
      %1124 = vst [vmem:[#allocation2 + $0x28] sm:$0xf] %v1085
      %v1125 = vld [vmem:[#allocation2 + $0x2c] sm:$0x1]
      %v1126 = vsel %vm1108, %v1086, %v1125
      %1127 = vst [vmem:[#allocation2 + $0x2c] sm:$0x1] %v1126
      %v1128 = vpack.c.bf16 %v701, %v700
      %v1129 = vpack.c.bf16 %v702, %v702
      %v1130 = vpack.c.bf16 %v704, %v703
      %v1131 = vpack.c.bf16 %v705, %v705
      %v1132 = vpack.c.bf16 %v707, %v706
      %v1133 = vpack.c.bf16 %v708, %v708
      %v1134 = vpack.c.bf16 %v710, %v709
      %v1135 = vpack.c.bf16 %v711, %v711
      %v1136 = vpack.c.bf16 %v713, %v712
      %v1137 = vpack.c.bf16 %v714, %v714
      %v1138 = vpack.c.bf16 %v716, %v715
      %v1139 = vpack.c.bf16 %v717, %v717
      %v1140 = vpack.c.bf16 %v719, %v718
      %v1141 = vpack.c.bf16 %v720, %v720
      %v1142 = vpack.c.bf16 %v722, %v721
      %v1143 = vpack.c.bf16 %v723, %v723
      %v1160 = vunpack.c.l.b16 %v1128
      %v1161 = vunpack.c.h.b16 %v1128
      %v1162 = vunpack.c.l.b16 %v1129
      %v1163 = vunpack.c.l.b16 %v1130
      %v1164 = vunpack.c.h.b16 %v1130
      %v1165 = vunpack.c.l.b16 %v1131
      %v1166 = vunpack.c.l.b16 %v1132
      %v1167 = vunpack.c.h.b16 %v1132
      %v1168 = vunpack.c.l.b16 %v1133
      %v1169 = vunpack.c.l.b16 %v1134
      %v1170 = vunpack.c.h.b16 %v1134
      %v1171 = vunpack.c.l.b16 %v1135
      %v1172 = vunpack.c.l.b16 %v1136
      %v1173 = vunpack.c.h.b16 %v1136
      %v1174 = vunpack.c.l.b16 %v1137
      %v1175 = vunpack.c.l.b16 %v1138
      %v1176 = vunpack.c.h.b16 %v1138
      %v1177 = vunpack.c.l.b16 %v1139
      %v1178 = vunpack.c.l.b16 %v1140
      %v1179 = vunpack.c.h.b16 %v1140
      %v1180 = vunpack.c.l.b16 %v1141
      %v1181 = vunpack.c.l.b16 %v1142
      %v1182 = vunpack.c.h.b16 %v1142
      %v1183 = vunpack.c.l.b16 %v1143
      %v1184 = vpack.c.b16 %v1160, %v1160
      %v1185 = vpack.c.b16 %v1161, %v1161
      %v1186 = vpack.c.b16 %v1162, %v1162
      %v1187 = vpack.c.b16 %v1163, %v1163
      %v1188 = vpack.c.b16 %v1164, %v1164
      %v1189 = vpack.c.b16 %v1165, %v1165
      %v1190 = vpack.c.b16 %v1166, %v1166
      %v1191 = vpack.c.b16 %v1167, %v1167
      %v1192 = vpack.c.b16 %v1168, %v1168
      %v1193 = vpack.c.b16 %v1169, %v1169
      %v1194 = vpack.c.b16 %v1170, %v1170
      %v1195 = vpack.c.b16 %v1171, %v1171
      %v1196 = vpack.c.b16 %v1172, %v1172
      %v1197 = vpack.c.b16 %v1173, %v1173
      %v1198 = vpack.c.b16 %v1174, %v1174
      %v1199 = vpack.c.b16 %v1175, %v1175
      %v1200 = vpack.c.b16 %v1176, %v1176
      %v1201 = vpack.c.b16 %v1177, %v1177
      %v1202 = vpack.c.b16 %v1178, %v1178
      %v1203 = vpack.c.b16 %v1179, %v1179
      %v1204 = vpack.c.b16 %v1180, %v1180
      %v1205 = vpack.c.b16 %v1181, %v1181
      %v1206 = vpack.c.b16 %v1182, %v1182
      %v1207 = vpack.c.b16 %v1183, %v1183
      %v1209 = vshrl.u32 %v1184, 16
      %v1211 = vrot.slane %v1209, 7
      %v1212 = vshll.u32 %v1184, 16
      %v1214 = vor.u32 %v1211, %v1212
      %v1215 = vrot.slane %v1211, 4
      %v1217 = vshrl.u32 %v1185, 16
      %v1219 = vrot.slane %v1217, 7
      %v1220 = vshll.u32 %v1185, 16
      %v1222 = vor.u32 %v1219, %v1220
      %v1223 = vsel %vm1008, %v1215, %v1222
      %v1224 = vrot.slane %v1219, 4
      %v1226 = vshrl.u32 %v1186, 16
      %v1228 = vrot.slane %v1226, 7
      %v1229 = vshll.u32 %v1186, 16
      %v1231 = vor.u32 %v1228, %v1229
      %v1232 = vsel %vm1008, %v1224, %v1231
      %v1233 = vrot.slane %v1228, 4
      %v1235 = vshrl.u32 %v1187, 16
      %v1237 = vrot.slane %v1235, 7
      %v1238 = vshll.u32 %v1187, 16
      %v1240 = vor.u32 %v1237, %v1238
      %v1241 = vrot.slane %v1237, 4
      %v1243 = vshrl.u32 %v1188, 16
      %v1245 = vrot.slane %v1243, 7
      %v1246 = vshll.u32 %v1188, 16
      %v1248 = vor.u32 %v1245, %v1246
      %v1249 = vsel %vm1008, %v1241, %v1248
      %v1250 = vrot.slane %v1245, 4
      %v1252 = vshrl.u32 %v1189, 16
      %v1254 = vrot.slane %v1252, 7
      %v1255 = vshll.u32 %v1189, 16
      %v1257 = vor.u32 %v1254, %v1255
      %v1258 = vsel %vm1008, %v1250, %v1257
      %v1259 = vrot.slane %v1254, 4
      %v1261 = vshrl.u32 %v1190, 16
      %v1263 = vrot.slane %v1261, 7
      %v1264 = vshll.u32 %v1190, 16
      %v1266 = vor.u32 %v1263, %v1264
      %v1267 = vrot.slane %v1263, 4
      %v1269 = vshrl.u32 %v1191, 16
      %v1271 = vrot.slane %v1269, 7
      %v1272 = vshll.u32 %v1191, 16
      %v1274 = vor.u32 %v1271, %v1272
      %v1275 = vsel %vm1008, %v1267, %v1274
      %v1276 = vrot.slane %v1271, 4
      %v1278 = vshrl.u32 %v1192, 16
      %v1280 = vrot.slane %v1278, 7
      %v1281 = vshll.u32 %v1192, 16
      %v1283 = vor.u32 %v1280, %v1281
      %v1284 = vsel %vm1008, %v1276, %v1283
      %v1285 = vrot.slane %v1280, 4
      %v1287 = vshrl.u32 %v1193, 16
      %v1289 = vrot.slane %v1287, 7
      %v1290 = vshll.u32 %v1193, 16
      %v1292 = vor.u32 %v1289, %v1290
      %v1293 = vrot.slane %v1289, 4
      %v1295 = vshrl.u32 %v1194, 16
      %v1297 = vrot.slane %v1295, 7
      %v1298 = vshll.u32 %v1194, 16
      %v1300 = vor.u32 %v1297, %v1298
      %v1301 = vsel %vm1008, %v1293, %v1300
      %v1302 = vrot.slane %v1297, 4
      %v1304 = vshrl.u32 %v1195, 16
      %v1306 = vrot.slane %v1304, 7
      %v1307 = vshll.u32 %v1195, 16
      %v1309 = vor.u32 %v1306, %v1307
      %v1310 = vsel %vm1008, %v1302, %v1309
      %v1311 = vrot.slane %v1306, 4
      %v1313 = vshrl.u32 %v1196, 16
      %v1315 = vrot.slane %v1313, 7
      %v1316 = vshll.u32 %v1196, 16
      %v1318 = vor.u32 %v1315, %v1316
      %v1319 = vrot.slane %v1315, 4
      %v1321 = vshrl.u32 %v1197, 16
      %v1323 = vrot.slane %v1321, 7
      %v1324 = vshll.u32 %v1197, 16
      %v1326 = vor.u32 %v1323, %v1324
      %v1327 = vsel %vm1008, %v1319, %v1326
      %v1328 = vrot.slane %v1323, 4
      %v1330 = vshrl.u32 %v1198, 16
      %v1332 = vrot.slane %v1330, 7
      %v1333 = vshll.u32 %v1198, 16
      %v1335 = vor.u32 %v1332, %v1333
      %v1336 = vsel %vm1008, %v1328, %v1335
      %v1337 = vrot.slane %v1332, 4
      %v1339 = vshrl.u32 %v1199, 16
      %v1341 = vrot.slane %v1339, 7
      %v1342 = vshll.u32 %v1199, 16
      %v1344 = vor.u32 %v1341, %v1342
      %v1345 = vrot.slane %v1341, 4
      %v1347 = vshrl.u32 %v1200, 16
      %v1349 = vrot.slane %v1347, 7
      %v1350 = vshll.u32 %v1200, 16
      %v1352 = vor.u32 %v1349, %v1350
      %v1353 = vsel %vm1008, %v1345, %v1352
      %v1354 = vrot.slane %v1349, 4
      %v1356 = vshrl.u32 %v1201, 16
      %v1358 = vrot.slane %v1356, 7
      %v1359 = vshll.u32 %v1201, 16
      %v1361 = vor.u32 %v1358, %v1359
      %v1362 = vsel %vm1008, %v1354, %v1361
      %v1363 = vrot.slane %v1358, 4
      %v1365 = vshrl.u32 %v1202, 16
      %v1367 = vrot.slane %v1365, 7
      %v1368 = vshll.u32 %v1202, 16
      %v1370 = vor.u32 %v1367, %v1368
      %v1371 = vrot.slane %v1367, 4
      %v1373 = vshrl.u32 %v1203, 16
      %v1375 = vrot.slane %v1373, 7
      %v1376 = vshll.u32 %v1203, 16
      %v1378 = vor.u32 %v1375, %v1376
      %v1379 = vsel %vm1008, %v1371, %v1378
      %v1380 = vrot.slane %v1375, 4
      %v1382 = vshrl.u32 %v1204, 16
      %v1384 = vrot.slane %v1382, 7
      %v1385 = vshll.u32 %v1204, 16
      %v1387 = vor.u32 %v1384, %v1385
      %v1388 = vsel %vm1008, %v1380, %v1387
      %v1389 = vrot.slane %v1384, 4
      %v1391 = vshrl.u32 %v1205, 16
      %v1393 = vrot.slane %v1391, 7
      %v1394 = vshll.u32 %v1205, 16
      %v1396 = vor.u32 %v1393, %v1394
      %v1397 = vrot.slane %v1393, 4
      %v1399 = vshrl.u32 %v1206, 16
      %v1401 = vrot.slane %v1399, 7
      %v1402 = vshll.u32 %v1206, 16
      %v1404 = vor.u32 %v1401, %v1402
      %v1405 = vsel %vm1008, %v1397, %v1404
      %v1406 = vrot.slane %v1401, 4
      %v1408 = vshrl.u32 %v1207, 16
      %v1410 = vrot.slane %v1408, 7
      %v1411 = vshll.u32 %v1207, 16
      %v1413 = vor.u32 %v1410, %v1411
      %v1414 = vsel %vm1008, %v1406, %v1413
      %v1415 = vrot.slane %v1410, 4
      %s1448 = scalar_lea.vmem [#allocation2], 48
      %v1449 = vld [vmem:[%s1448] sm:$0xf]
      %v1450 = vsel %vm1101, %v1214, %v1449
      %1451 = vst [vmem:[%s1448] sm:$0xf] %v1450
      %1452 = vst [vmem:[%s1448 + $0x4] sm:$0xf] %v1223
      %1453 = vst [vmem:[%s1448 + $0x8] sm:$0xf] %v1232
      %v1454 = vld [vmem:[%s1448 + $0xc] sm:$0x1]
      %v1455 = vsel %vm1108, %v1233, %v1454
      %1456 = vst [vmem:[%s1448 + $0xc] sm:$0x1] %v1455
      %v1457 = vld [vmem:[%s1448 + $0x10] sm:$0xf]
      %v1458 = vsel %vm1101, %v1240, %v1457
      %1459 = vst [vmem:[%s1448 + $0x10] sm:$0xf] %v1458
      %1460 = vst [vmem:[%s1448 + $0x14] sm:$0xf] %v1249
      %1461 = vst [vmem:[%s1448 + $0x18] sm:$0xf] %v1258
      %v1462 = vld [vmem:[%s1448 + $0x1c] sm:$0x1]
      %v1463 = vsel %vm1108, %v1259, %v1462
      %1464 = vst [vmem:[%s1448 + $0x1c] sm:$0x1] %v1463
      %v1465 = vld [vmem:[%s1448 + $0x20] sm:$0xf]
      %v1466 = vsel %vm1101, %v1266, %v1465
      %1467 = vst [vmem:[%s1448 + $0x20] sm:$0xf] %v1466
      %1468 = vst [vmem:[%s1448 + $0x24] sm:$0xf] %v1275
      %1469 = vst [vmem:[%s1448 + $0x28] sm:$0xf] %v1284
      %v1470 = vld [vmem:[%s1448 + $0x2c] sm:$0x1]
      %v1471 = vsel %vm1108, %v1285, %v1470
      %1472 = vst [vmem:[%s1448 + $0x2c] sm:$0x1] %v1471
      %v1473 = vld [vmem:[%s1448 + $0x30] sm:$0xf]
      %v1474 = vsel %vm1101, %v1292, %v1473
      %1475 = vst [vmem:[%s1448 + $0x30] sm:$0xf] %v1474
      %1476 = vst [vmem:[%s1448 + $0x34] sm:$0xf] %v1301
      %1477 = vst [vmem:[%s1448 + $0x38] sm:$0xf] %v1310
      %v1478 = vld [vmem:[%s1448 + $0x3c] sm:$0x1]
      %v1479 = vsel %vm1108, %v1311, %v1478
      %1480 = vst [vmem:[%s1448 + $0x3c] sm:$0x1] %v1479
      %v1481 = vld [vmem:[%s1448 + $0x40] sm:$0xf]
      %v1482 = vsel %vm1101, %v1318, %v1481
      %1483 = vst [vmem:[%s1448 + $0x40] sm:$0xf] %v1482
      %1484 = vst [vmem:[%s1448 + $0x44] sm:$0xf] %v1327
      %1485 = vst [vmem:[%s1448 + $0x48] sm:$0xf] %v1336
      %v1486 = vld [vmem:[%s1448 + $0x4c] sm:$0x1]
      %v1487 = vsel %vm1108, %v1337, %v1486
      %1488 = vst [vmem:[%s1448 + $0x4c] sm:$0x1] %v1487
      %v1489 = vld [vmem:[%s1448 + $0x50] sm:$0xf]
      %v1490 = vsel %vm1101, %v1344, %v1489
      %1491 = vst [vmem:[%s1448 + $0x50] sm:$0xf] %v1490
      %1492 = vst [vmem:[%s1448 + $0x54] sm:$0xf] %v1353
      %1493 = vst [vmem:[%s1448 + $0x58] sm:$0xf] %v1362
      %v1494 = vld [vmem:[%s1448 + $0x5c] sm:$0x1]
      %v1495 = vsel %vm1108, %v1363, %v1494
      %1496 = vst [vmem:[%s1448 + $0x5c] sm:$0x1] %v1495
      %v1497 = vld [vmem:[%s1448 + $0x60] sm:$0xf]
      %v1498 = vsel %vm1101, %v1370, %v1497
      %1499 = vst [vmem:[%s1448 + $0x60] sm:$0xf] %v1498
      %1500 = vst [vmem:[%s1448 + $0x64] sm:$0xf] %v1379
      %1501 = vst [vmem:[%s1448 + $0x68] sm:$0xf] %v1388
      %v1502 = vld [vmem:[%s1448 + $0x6c] sm:$0x1]
      %v1503 = vsel %vm1108, %v1389, %v1502
      %1504 = vst [vmem:[%s1448 + $0x6c] sm:$0x1] %v1503
      %v1505 = vld [vmem:[%s1448 + $0x70] sm:$0xf]
      %v1506 = vsel %vm1101, %v1396, %v1505
      %1507 = vst [vmem:[%s1448 + $0x70] sm:$0xf] %v1506
      %1508 = vst [vmem:[%s1448 + $0x74] sm:$0xf] %v1405
      %1509 = vst [vmem:[%s1448 + $0x78] sm:$0xf] %v1414
      %v1510 = vld [vmem:[%s1448 + $0x7c] sm:$0x1]
      %v1511 = vsel %vm1108, %v1415, %v1510
      %1512 = vst [vmem:[%s1448 + $0x7c] sm:$0x1] %v1511
      %v1513 = vpack.c.bf16 %v968, %v967
      %v1514 = vpack.c.bf16 %v969, %v969
      %v1515 = vpack.c.bf16 %v971, %v970
      %v1516 = vpack.c.bf16 %v972, %v972
      %v1517 = vpack.c.bf16 %v974, %v973
      %v1518 = vpack.c.bf16 %v975, %v975
      %v1525 = vunpack.c.l.b16 %v1513
      %v1526 = vunpack.c.h.b16 %v1513
      %v1527 = vunpack.c.l.b16 %v1514
      %v1528 = vunpack.c.l.b16 %v1515
      %v1529 = vunpack.c.h.b16 %v1515
      %v1530 = vunpack.c.l.b16 %v1516
      %v1531 = vunpack.c.l.b16 %v1517
      %v1532 = vunpack.c.h.b16 %v1517
      %v1533 = vunpack.c.l.b16 %v1518
      %v1534 = vpack.c.b16 %v1525, %v1525
      %v1535 = vpack.c.b16 %v1526, %v1526
      %v1536 = vpack.c.b16 %v1527, %v1527
      %v1537 = vpack.c.b16 %v1528, %v1528
      %v1538 = vpack.c.b16 %v1529, %v1529
      %v1539 = vpack.c.b16 %v1530, %v1530
      %v1540 = vpack.c.b16 %v1531, %v1531
      %v1541 = vpack.c.b16 %v1532, %v1532
      %v1542 = vpack.c.b16 %v1533, %v1533
      %v1544 = vshrl.u32 %v1534, 16
      %v1546 = vrot.slane %v1544, 7
      %v1547 = vshll.u32 %v1534, 16
      %v1549 = vor.u32 %v1546, %v1547
      %v1550 = vrot.slane %v1546, 4
      %v1552 = vshrl.u32 %v1535, 16
      %v1554 = vrot.slane %v1552, 7
      %v1555 = vshll.u32 %v1535, 16
      %v1557 = vor.u32 %v1554, %v1555
      %v1558 = vsel %vm1008, %v1550, %v1557
      %v1559 = vrot.slane %v1554, 4
      %v1561 = vshrl.u32 %v1536, 16
      %v1563 = vrot.slane %v1561, 7
      %v1564 = vshll.u32 %v1536, 16
      %v1566 = vor.u32 %v1563, %v1564
      %v1567 = vsel %vm1008, %v1559, %v1566
      %v1568 = vrot.slane %v1563, 4
      %v1570 = vshrl.u32 %v1537, 16
      %v1572 = vrot.slane %v1570, 7
      %v1573 = vshll.u32 %v1537, 16
      %v1575 = vor.u32 %v1572, %v1573
      %v1576 = vrot.slane %v1572, 4
      %v1578 = vshrl.u32 %v1538, 16
      %v1580 = vrot.slane %v1578, 7
      %v1581 = vshll.u32 %v1538, 16
      %v1583 = vor.u32 %v1580, %v1581
      %v1584 = vsel %vm1008, %v1576, %v1583
      %v1585 = vrot.slane %v1580, 4
      %v1587 = vshrl.u32 %v1539, 16
      %v1589 = vrot.slane %v1587, 7
      %v1590 = vshll.u32 %v1539, 16
      %v1592 = vor.u32 %v1589, %v1590
      %v1593 = vsel %vm1008, %v1585, %v1592
      %v1594 = vrot.slane %v1589, 4
      %v1596 = vshrl.u32 %v1540, 16
      %v1598 = vrot.slane %v1596, 7
      %v1599 = vshll.u32 %v1540, 16
      %v1601 = vor.u32 %v1598, %v1599
      %v1602 = vrot.slane %v1598, 4
      %v1604 = vshrl.u32 %v1541, 16
      %v1606 = vrot.slane %v1604, 7
      %v1607 = vshll.u32 %v1541, 16
      %v1609 = vor.u32 %v1606, %v1607
      %v1610 = vsel %vm1008, %v1602, %v1609
      %v1611 = vrot.slane %v1606, 4
      %v1613 = vshrl.u32 %v1542, 16
      %v1615 = vrot.slane %v1613, 7
      %v1616 = vshll.u32 %v1542, 16
      %v1618 = vor.u32 %v1615, %v1616
      %v1619 = vsel %vm1008, %v1611, %v1618
      %v1620 = vrot.slane %v1615, 4
      %s1633 = scalar_lea.vmem [#allocation2], 176
      %v1634 = vld [vmem:[%s1633] sm:$0xf]
      %v1635 = vsel %vm1101, %v1549, %v1634
      %1636 = vst [vmem:[%s1633] sm:$0xf] %v1635
      %1637 = vst [vmem:[%s1633 + $0x4] sm:$0xf] %v1558
      %1638 = vst [vmem:[%s1633 + $0x8] sm:$0xf] %v1567
      %v1639 = vld [vmem:[%s1633 + $0xc] sm:$0x1]
      %v1640 = vsel %vm1108, %v1568, %v1639
      %1641 = vst [vmem:[%s1633 + $0xc] sm:$0x1] %v1640
      %v1642 = vld [vmem:[%s1633 + $0x10] sm:$0xf]
      %v1643 = vsel %vm1101, %v1575, %v1642
      %1644 = vst [vmem:[%s1633 + $0x10] sm:$0xf] %v1643
      %1645 = vst [vmem:[%s1633 + $0x14] sm:$0xf] %v1584
      %1646 = vst [vmem:[%s1633 + $0x18] sm:$0xf] %v1593
      %v1647 = vld [vmem:[%s1633 + $0x1c] sm:$0x1]
      %v1648 = vsel %vm1108, %v1594, %v1647
      %1649 = vst [vmem:[%s1633 + $0x1c] sm:$0x1] %v1648
      %v1650 = vld [vmem:[%s1633 + $0x20] sm:$0xf]
      %v1651 = vsel %vm1101, %v1601, %v1650
      %1652 = vst [vmem:[%s1633 + $0x20] sm:$0xf] %v1651
      %1653 = vst [vmem:[%s1633 + $0x24] sm:$0xf] %v1610
      %1654 = vst [vmem:[%s1633 + $0x28] sm:$0xf] %v1619
      %v1655 = vld [vmem:[%s1633 + $0x2c] sm:$0x1]
      %v1656 = vsel %vm1108, %v1620, %v1655
      %1657 = vst [vmem:[%s1633 + $0x2c] sm:$0x1] %v1656
      // Predicated region
      $region53: #{down_forward.1} parent=51 // pred_check
        %p1658 = pneg %p385
      $region54: #{down_forward.1} parent=51 // pred_check_branch
        %1660 = sbr.rel (%p1658) target = $region56
      $region55: #{down_forward.1} parent=51 // pred_region
        %s1661 = scalar_lea.vmem [#allocation2], 64
        %v1662 = vld [vmem:[%s1661] sm:$0xf]
        %v1663 = vld [vmem:[%s1661 + $0x4] sm:$0xf]
        %v1664 = vld [vmem:[%s1661 + $0x8] sm:$0xf]
        %v1665 = vld [vmem:[%s1661 + $0xc] sm:$0x1]
        %s1666 = scalar_lea.vmem [#allocation2], 32
        %v1667 = vld [vmem:[%s1666] sm:$0xf]
        %v1668 = vsel %vm1101, %v1662, %v1667
        %1669 = vst [vmem:[%s1666] sm:$0xf] %v1668
        %1670 = vst [vmem:[%s1666 + $0x4] sm:$0xf] %v1663
        %1671 = vst [vmem:[%s1666 + $0x8] sm:$0xf] %v1664
        %v1672 = vld [vmem:[%s1666 + $0xc] sm:$0x1]
        %v1673 = vsel %vm1108, %v1665, %v1672
        %1674 = vst [vmem:[%s1666 + $0xc] sm:$0x1] %v1673
      $region56: #{down_forward.1} parent=51 // pred_fallthru
        _
      // Predicated region
      $region57: #{down_forward.1} parent=51 // pred_check
        %p1675 = pneg %p386
      $region58: #{down_forward.1} parent=51 // pred_check_branch
        %1677 = sbr.rel (%p1675) target = $region60
      $region59: #{down_forward.1} parent=51 // pred_region
        %s1678 = scalar_lea.vmem [#allocation2], 144
        %v1679 = vld [vmem:[%s1678] sm:$0xf]
        %v1680 = vld [vmem:[%s1678 + $0x4] sm:$0xf]
        %v1681 = vld [vmem:[%s1678 + $0x8] sm:$0xf]
        %v1682 = vld [vmem:[%s1678 + $0xc] sm:$0x1]
        %v1683 = vld [vmem:[%s1633] sm:$0xf]
        %v1684 = vsel %vm1101, %v1679, %v1683
        %1685 = vst [vmem:[%s1633] sm:$0xf] %v1684
        %1686 = vst [vmem:[%s1633 + $0x4] sm:$0xf] %v1680
        %1687 = vst [vmem:[%s1633 + $0x8] sm:$0xf] %v1681
        %v1688 = vld [vmem:[%s1633 + $0xc] sm:$0x1]
        %v1689 = vsel %vm1108, %v1682, %v1688
        %1690 = vst [vmem:[%s1633 + $0xc] sm:$0x1] %v1689
      $region60: #{down_forward.1} parent=51 // pred_fallthru
        _
      %v1691 = vld [vmem:[#allocation2] sm:$0x2]
      %v1692 = vld [vmem:[#allocation2 + $0x10] sm:$0x2]
      %v1693 = vld [vmem:[#allocation2 + $0x20] sm:$0x2]
      %v1694 = vld [vmem:[#allocation2 + $0x30] sm:$0x2]
      %v1695 = vld [vmem:[#allocation2 + $0x40] sm:$0x2]
      %v1696 = vld [vmem:[#allocation2 + $0x50] sm:$0x2]
      %v1697 = vld [vmem:[#allocation2 + $0x60] sm:$0x2]
      %v1698 = vld [vmem:[#allocation2 + $0x70] sm:$0x2]
      %v1699 = vld [vmem:[#allocation2 + $0x80] sm:$0x2]
      %v1700 = vld [vmem:[#allocation2 + $0x90] sm:$0x2]
      %v1701 = vld [vmem:[#allocation2 + $0xa0] sm:$0x2]
      %v1702 = vld [vmem:[#allocation2 + $0xb0] sm:$0x2]
      %v1703 = vld [vmem:[#allocation2 + $0xc0] sm:$0x2]
      %v1704 = vld [vmem:[#allocation2 + $0xd0] sm:$0x2]
      %v1719 = vrot.slane %v1691, 5
      %v1720 = vrot.slane %v1719, 4
      %v1721 = vrot.slane %v1692, 5
      %v1722 = vrot.slane %v1721, 4
      %v1723 = vrot.slane %v1693, 5
      %v1724 = vrot.slane %v1723, 4
      %v1725 = vrot.slane %v1694, 5
      %v1726 = vrot.slane %v1725, 4
      %v1727 = vrot.slane %v1695, 5
      %v1728 = vrot.slane %v1727, 4
      %v1729 = vrot.slane %v1696, 5
      %v1730 = vrot.slane %v1729, 4
      %v1731 = vrot.slane %v1697, 5
      %v1732 = vrot.slane %v1731, 4
      %v1733 = vrot.slane %v1698, 5
      %v1734 = vrot.slane %v1733, 4
      %v1735 = vrot.slane %v1699, 5
      %v1736 = vrot.slane %v1735, 4
      %v1737 = vrot.slane %v1700, 5
      %v1738 = vrot.slane %v1737, 4
      %v1739 = vrot.slane %v1701, 5
      %v1740 = vrot.slane %v1739, 4
      %v1741 = vrot.slane %v1702, 5
      %v1742 = vrot.slane %v1741, 4
      %v1743 = vrot.slane %v1703, 5
      %v1744 = vrot.slane %v1743, 4
      %v1745 = vrot.slane %v1704, 5
      %v1746 = vrot.slane %v1745, 4
      %v1761 = vld [vmem:[#allocation2] sm:$0x1]
      %v1762 = vsel %vm1108, %v1720, %v1761
      %1763 = vst [vmem:[#allocation2] sm:$0x1] %v1762
      %v1764 = vld [vmem:[#allocation2 + $0x10] sm:$0x1]
      %v1765 = vsel %vm1108, %v1722, %v1764
      %1766 = vst [vmem:[#allocation2 + $0x10] sm:$0x1] %v1765
      %v1767 = vld [vmem:[#allocation2 + $0x20] sm:$0x1]
      %v1768 = vsel %vm1108, %v1724, %v1767
      %1769 = vst [vmem:[#allocation2 + $0x20] sm:$0x1] %v1768
      %v1770 = vld [vmem:[#allocation2 + $0x30] sm:$0x1]
      %v1771 = vsel %vm1108, %v1726, %v1770
      %1772 = vst [vmem:[#allocation2 + $0x30] sm:$0x1] %v1771
      %v1773 = vld [vmem:[#allocation2 + $0x40] sm:$0x1]
      %v1774 = vsel %vm1108, %v1728, %v1773
      %1775 = vst [vmem:[#allocation2 + $0x40] sm:$0x1] %v1774
      %v1776 = vld [vmem:[#allocation2 + $0x50] sm:$0x1]
      %v1777 = vsel %vm1108, %v1730, %v1776
      %1778 = vst [vmem:[#allocation2 + $0x50] sm:$0x1] %v1777
      %v1779 = vld [vmem:[#allocation2 + $0x60] sm:$0x1]
      %v1780 = vsel %vm1108, %v1732, %v1779
      %1781 = vst [vmem:[#allocation2 + $0x60] sm:$0x1] %v1780
      %v1782 = vld [vmem:[#allocation2 + $0x70] sm:$0x1]
      %v1783 = vsel %vm1108, %v1734, %v1782
      %1784 = vst [vmem:[#allocation2 + $0x70] sm:$0x1] %v1783
      %v1785 = vld [vmem:[#allocation2 + $0x80] sm:$0x1]
      %v1786 = vsel %vm1108, %v1736, %v1785
      %1787 = vst [vmem:[#allocation2 + $0x80] sm:$0x1] %v1786
      %v1788 = vld [vmem:[#allocation2 + $0x90] sm:$0x1]
      %v1789 = vsel %vm1108, %v1738, %v1788
      %1790 = vst [vmem:[#allocation2 + $0x90] sm:$0x1] %v1789
      %v1791 = vld [vmem:[#allocation2 + $0xa0] sm:$0x1]
      %v1792 = vsel %vm1108, %v1740, %v1791
      %1793 = vst [vmem:[#allocation2 + $0xa0] sm:$0x1] %v1792
      %v1794 = vld [vmem:[#allocation2 + $0xb0] sm:$0x1]
      %v1795 = vsel %vm1108, %v1742, %v1794
      %1796 = vst [vmem:[#allocation2 + $0xb0] sm:$0x1] %v1795
      %v1797 = vld [vmem:[#allocation2 + $0xc0] sm:$0x1]
      %v1798 = vsel %vm1108, %v1744, %v1797
      %1799 = vst [vmem:[#allocation2 + $0xc0] sm:$0x1] %v1798
      %v1800 = vld [vmem:[#allocation2 + $0xd0] sm:$0x1]
      %v1801 = vsel %vm1108, %v1746, %v1800
      %1802 = vst [vmem:[#allocation2 + $0xd0] sm:$0x1] %v1801
      %v1803 = vld [vmem:[#allocation2 + $0x8] sm:$0x8]
      %v1804 = vld [vmem:[#allocation2 + $0x18] sm:$0x8]
      %v1805 = vld [vmem:[#allocation2 + $0x28] sm:$0x8]
      %v1806 = vld [vmem:[#allocation2 + $0x38] sm:$0x8]
      %v1807 = vld [vmem:[#allocation2 + $0x48] sm:$0x8]
      %v1808 = vld [vmem:[#allocation2 + $0x58] sm:$0x8]
      %v1809 = vld [vmem:[#allocation2 + $0x68] sm:$0x8]
      %v1810 = vld [vmem:[#allocation2 + $0x78] sm:$0x8]
      %v1811 = vld [vmem:[#allocation2 + $0x88] sm:$0x8]
      %v1812 = vld [vmem:[#allocation2 + $0x98] sm:$0x8]
      %v1813 = vld [vmem:[#allocation2 + $0xa8] sm:$0x8]
      %v1814 = vld [vmem:[#allocation2 + $0xb8] sm:$0x8]
      %v1815 = vld [vmem:[#allocation2 + $0xc8] sm:$0x8]
      %v1816 = vld [vmem:[#allocation2 + $0xd8] sm:$0x8]
      %v1831 = vrot.slane %v1803, 7
      %v1832 = vrot.slane %v1831, 4
      %v1833 = vrot.slane %v1804, 7
      %v1834 = vrot.slane %v1833, 4
      %v1835 = vrot.slane %v1805, 7
      %v1836 = vrot.slane %v1835, 4
      %v1837 = vrot.slane %v1806, 7
      %v1838 = vrot.slane %v1837, 4
      %v1839 = vrot.slane %v1807, 7
      %v1840 = vrot.slane %v1839, 4
      %v1841 = vrot.slane %v1808, 7
      %v1842 = vrot.slane %v1841, 4
      %v1843 = vrot.slane %v1809, 7
      %v1844 = vrot.slane %v1843, 4
      %v1845 = vrot.slane %v1810, 7
      %v1846 = vrot.slane %v1845, 4
      %v1847 = vrot.slane %v1811, 7
      %v1848 = vrot.slane %v1847, 4
      %v1849 = vrot.slane %v1812, 7
      %v1850 = vrot.slane %v1849, 4
      %v1851 = vrot.slane %v1813, 7
      %v1852 = vrot.slane %v1851, 4
      %v1853 = vrot.slane %v1814, 7
      %v1854 = vrot.slane %v1853, 4
      %v1855 = vrot.slane %v1815, 7
      %v1856 = vrot.slane %v1855, 4
      %v1857 = vrot.slane %v1816, 7
      %v1858 = vrot.slane %v1857, 4
      %vm1873 = vmand %vm1107, %vm1100
      %v1874 = vld [vmem:[#allocation2 + $0xc] sm:$0x1]
      %v1875 = vsel %vm1873, %v1832, %v1874
      %1876 = vst [vmem:[#allocation2 + $0xc] sm:$0x1] %v1875
      %v1877 = vld [vmem:[#allocation2 + $0x1c] sm:$0x1]
      %v1878 = vsel %vm1873, %v1834, %v1877
      %1879 = vst [vmem:[#allocation2 + $0x1c] sm:$0x1] %v1878
      %v1880 = vld [vmem:[#allocation2 + $0x2c] sm:$0x1]
      %v1881 = vsel %vm1873, %v1836, %v1880
      %1882 = vst [vmem:[#allocation2 + $0x2c] sm:$0x1] %v1881
      %v1883 = vld [vmem:[#allocation2 + $0x3c] sm:$0x1]
      %v1884 = vsel %vm1873, %v1838, %v1883
      %1885 = vst [vmem:[#allocation2 + $0x3c] sm:$0x1] %v1884
      %v1886 = vld [vmem:[#allocation2 + $0x4c] sm:$0x1]
      %v1887 = vsel %vm1873, %v1840, %v1886
      %1888 = vst [vmem:[#allocation2 + $0x4c] sm:$0x1] %v1887
      %v1889 = vld [vmem:[#allocation2 + $0x5c] sm:$0x1]
      %v1890 = vsel %vm1873, %v1842, %v1889
      %1891 = vst [vmem:[#allocation2 + $0x5c] sm:$0x1] %v1890
      %v1892 = vld [vmem:[#allocation2 + $0x6c] sm:$0x1]
      %v1893 = vsel %vm1873, %v1844, %v1892
      %1894 = vst [vmem:[#allocation2 + $0x6c] sm:$0x1] %v1893
      %v1895 = vld [vmem:[#allocation2 + $0x7c] sm:$0x1]
      %v1896 = vsel %vm1873, %v1846, %v1895
      %1897 = vst [vmem:[#allocation2 + $0x7c] sm:$0x1] %v1896
      %v1898 = vld [vmem:[#allocation2 + $0x8c] sm:$0x1]
      %v1899 = vsel %vm1873, %v1848, %v1898
      %1900 = vst [vmem:[#allocation2 + $0x8c] sm:$0x1] %v1899
      %v1901 = vld [vmem:[#allocation2 + $0x9c] sm:$0x1]
      %v1902 = vsel %vm1873, %v1850, %v1901
      %1903 = vst [vmem:[#allocation2 + $0x9c] sm:$0x1] %v1902
      %v1904 = vld [vmem:[#allocation2 + $0xac] sm:$0x1]
      %v1905 = vsel %vm1873, %v1852, %v1904
      %1906 = vst [vmem:[#allocation2 + $0xac] sm:$0x1] %v1905
      %v1907 = vld [vmem:[#allocation2 + $0xbc] sm:$0x1]
      %v1908 = vsel %vm1873, %v1854, %v1907
      %1909 = vst [vmem:[#allocation2 + $0xbc] sm:$0x1] %v1908
      %v1910 = vld [vmem:[#allocation2 + $0xcc] sm:$0x1]
      %v1911 = vsel %vm1873, %v1856, %v1910
      %1912 = vst [vmem:[#allocation2 + $0xcc] sm:$0x1] %v1911
      %v1913 = vld [vmem:[#allocation2 + $0xdc] sm:$0x1]
      %v1914 = vsel %vm1873, %v1858, %v1913
      %1915 = vst [vmem:[#allocation2 + $0xdc] sm:$0x1] %v1914
      %v1916 = vld [vmem:[#allocation2] sm:$0xf]
      %v1917 = vld [vmem:[#allocation2 + $0x4] sm:$0xf]
      %v1918 = vld [vmem:[#allocation2 + $0x8] sm:$0xf]
      %v1919 = vld [vmem:[#allocation2 + $0xc] sm:$0x1]
      %v1920 = vld [vmem:[#allocation2 + $0x10] sm:$0xf]
      %v1921 = vld [vmem:[#allocation2 + $0x14] sm:$0xf]
      %v1922 = vld [vmem:[#allocation2 + $0x18] sm:$0xf]
      %v1923 = vld [vmem:[#allocation2 + $0x1c] sm:$0x1]
      %v1924 = vld [vmem:[#allocation2 + $0x20] sm:$0xf]
      %v1925 = vld [vmem:[#allocation2 + $0x24] sm:$0xf]
      %v1926 = vld [vmem:[#allocation2 + $0x28] sm:$0xf]
      %v1927 = vld [vmem:[#allocation2 + $0x2c] sm:$0x1]
      %v1928 = vld [vmem:[#allocation2 + $0x30] sm:$0xf]
      %v1929 = vld [vmem:[#allocation2 + $0x34] sm:$0xf]
      %v1930 = vld [vmem:[#allocation2 + $0x38] sm:$0xf]
      %v1931 = vld [vmem:[#allocation2 + $0x3c] sm:$0x1]
      %v1932 = vld [vmem:[#allocation2 + $0x40] sm:$0xf]
      %v1933 = vld [vmem:[#allocation2 + $0x44] sm:$0xf]
      %v1934 = vld [vmem:[#allocation2 + $0x48] sm:$0xf]
      %v1935 = vld [vmem:[#allocation2 + $0x4c] sm:$0x1]
      %v1936 = vld [vmem:[#allocation2 + $0x50] sm:$0xf]
      %v1937 = vld [vmem:[#allocation2 + $0x54] sm:$0xf]
      %v1938 = vld [vmem:[#allocation2 + $0x58] sm:$0xf]
      %v1939 = vld [vmem:[#allocation2 + $0x5c] sm:$0x1]
      %v1940 = vld [vmem:[#allocation2 + $0x60] sm:$0xf]
      %v1941 = vld [vmem:[#allocation2 + $0x64] sm:$0xf]
      %v1942 = vld [vmem:[#allocation2 + $0x68] sm:$0xf]
      %v1943 = vld [vmem:[#allocation2 + $0x6c] sm:$0x1]
      %v1944 = vld [vmem:[#allocation2 + $0x70] sm:$0xf]
      %v1945 = vld [vmem:[#allocation2 + $0x74] sm:$0xf]
      %v1946 = vld [vmem:[#allocation2 + $0x78] sm:$0xf]
      %v1947 = vld [vmem:[#allocation2 + $0x7c] sm:$0x1]
      %v1948 = vld [vmem:[#allocation2 + $0x80] sm:$0xf]
      %v1949 = vld [vmem:[#allocation2 + $0x84] sm:$0xf]
      %v1950 = vld [vmem:[#allocation2 + $0x88] sm:$0xf]
      %v1951 = vld [vmem:[#allocation2 + $0x8c] sm:$0x1]
      %v1952 = vld [vmem:[#allocation2 + $0x90] sm:$0xf]
      %v1953 = vld [vmem:[#allocation2 + $0x94] sm:$0xf]
      %v1954 = vld [vmem:[#allocation2 + $0x98] sm:$0xf]
      %v1955 = vld [vmem:[#allocation2 + $0x9c] sm:$0x1]
      %v1956 = vld [vmem:[#allocation2 + $0xa0] sm:$0xf]
      %v1957 = vld [vmem:[#allocation2 + $0xa4] sm:$0xf]
      %v1958 = vld [vmem:[#allocation2 + $0xa8] sm:$0xf]
      %v1959 = vld [vmem:[#allocation2 + $0xac] sm:$0x1]
      %v1960 = vld [vmem:[#allocation2 + $0xb0] sm:$0xf]
      %v1961 = vld [vmem:[#allocation2 + $0xb4] sm:$0xf]
      %v1962 = vld [vmem:[#allocation2 + $0xb8] sm:$0xf]
      %v1963 = vld [vmem:[#allocation2 + $0xbc] sm:$0x1]
      %v2000 = vunpack.c.l.b16 %v1916
      %v2001 = vunpack.c.l.b16 %v1917
      %v2002 = vunpack.c.l.b16 %v1918
      %v2003 = vunpack.c.l.b16 %v1920
      %v2004 = vunpack.c.l.b16 %v1921
      %v2005 = vunpack.c.l.b16 %v1922
      %v2006 = vunpack.c.l.b16 %v1924
      %v2007 = vunpack.c.l.b16 %v1925
      %v2008 = vunpack.c.l.b16 %v1926
      %v2009 = vunpack.c.l.b16 %v1928
      %v2010 = vunpack.c.l.b16 %v1929
      %v2011 = vunpack.c.l.b16 %v1930
      %v2012 = vunpack.c.l.b16 %v1932
      %v2013 = vunpack.c.l.b16 %v1933
      %v2014 = vunpack.c.l.b16 %v1934
      %v2015 = vunpack.c.l.b16 %v1936
      %v2016 = vunpack.c.l.b16 %v1937
      %v2017 = vunpack.c.l.b16 %v1938
      %v2018 = vunpack.c.l.b16 %v1940
      %v2019 = vunpack.c.l.b16 %v1941
      %v2020 = vunpack.c.l.b16 %v1942
      %v2021 = vunpack.c.l.b16 %v1944
      %v2022 = vunpack.c.l.b16 %v1945
      %v2023 = vunpack.c.l.b16 %v1946
      %v2024 = vunpack.c.l.b16 %v1948
      %v2025 = vunpack.c.l.b16 %v1949
      %v2026 = vunpack.c.l.b16 %v1950
      %v2027 = vunpack.c.l.b16 %v1952
      %v2028 = vunpack.c.l.b16 %v1953
      %v2029 = vunpack.c.l.b16 %v1954
      %v2030 = vunpack.c.l.b16 %v1956
      %v2031 = vunpack.c.l.b16 %v1957
      %v2032 = vunpack.c.l.b16 %v1958
      %v2033 = vunpack.c.l.b16 %v1960
      %v2034 = vunpack.c.l.b16 %v1961
      %v2035 = vunpack.c.l.b16 %v1962
      %v2048 = vunpack.c.l.b16 %v1919
      %v2049 = vunpack.c.l.b16 %v1923
      %v2050 = vunpack.c.l.b16 %v1927
      %v2051 = vunpack.c.l.b16 %v1931
      %v2052 = vunpack.c.l.b16 %v1935
      %v2053 = vunpack.c.l.b16 %v1939
      %v2054 = vunpack.c.l.b16 %v1943
      %v2055 = vunpack.c.l.b16 %v1947
      %v2056 = vunpack.c.l.b16 %v1951
      %v2057 = vunpack.c.l.b16 %v1955
      %v2058 = vunpack.c.l.b16 %v1959
      %v2059 = vunpack.c.l.b16 %v1963
      %v2060 = vpack.c.b16 %v2001, %v2000
      %v2061 = vpack.c.b16 %v2048, %v2002
      %v2062 = vpack.c.b16 %v2004, %v2003
      %v2063 = vpack.c.b16 %v2049, %v2005
      %v2064 = vpack.c.b16 %v2007, %v2006
      %v2065 = vpack.c.b16 %v2050, %v2008
      %v2066 = vpack.c.b16 %v2010, %v2009
      %v2067 = vpack.c.b16 %v2051, %v2011
      %v2068 = vpack.c.b16 %v2013, %v2012
      %v2069 = vpack.c.b16 %v2052, %v2014
      %v2070 = vpack.c.b16 %v2016, %v2015
      %v2071 = vpack.c.b16 %v2053, %v2017
      %v2072 = vpack.c.b16 %v2019, %v2018
      %v2073 = vpack.c.b16 %v2054, %v2020
      %v2074 = vpack.c.b16 %v2022, %v2021
      %v2075 = vpack.c.b16 %v2055, %v2023
      %v2076 = vpack.c.b16 %v2025, %v2024
      %v2077 = vpack.c.b16 %v2056, %v2026
      %v2078 = vpack.c.b16 %v2028, %v2027
      %v2079 = vpack.c.b16 %v2057, %v2029
      %v2080 = vpack.c.b16 %v2031, %v2030
      %v2081 = vpack.c.b16 %v2058, %v2032
      %v2082 = vpack.c.b16 %v2034, %v2033
      %v2083 = vpack.c.b16 %v2059, %v2035
      %vm2084 = vsmask.f32 7424
      %v2086 = vshrl.u32 %v2060, 16
      %v2088 = vshll.u32 %v2060, 16
      %v2090 = vrot.slane %v2088, 1
      %v2091 = vor.u32 %v2086, %v2090
      %v2093 = vshll.u32 %v2061, 16
      %v2095 = vrot.slane %v2093, 1
      %v2096 = vsel %vm2084, %v2091, %v2095
      %v2097 = vshrl.u32 %v2061, 16
      %v2099 = vor.u32 %v2097, %v2095
      %v2101 = vshrl.u32 %v2062, 16
      %v2103 = vshll.u32 %v2062, 16
      %v2105 = vrot.slane %v2103, 1
      %v2106 = vor.u32 %v2101, %v2105
      %v2108 = vshll.u32 %v2063, 16
      %v2110 = vrot.slane %v2108, 1
      %v2111 = vsel %vm2084, %v2106, %v2110
      %v2112 = vshrl.u32 %v2063, 16
      %v2114 = vor.u32 %v2112, %v2110
      %v2116 = vshrl.u32 %v2064, 16
      %v2118 = vshll.u32 %v2064, 16
      %v2120 = vrot.slane %v2118, 1
      %v2121 = vor.u32 %v2116, %v2120
      %v2123 = vshll.u32 %v2065, 16
      %v2125 = vrot.slane %v2123, 1
      %v2126 = vsel %vm2084, %v2121, %v2125
      %v2127 = vshrl.u32 %v2065, 16
      %v2129 = vor.u32 %v2127, %v2125
      %v2131 = vshrl.u32 %v2066, 16
      %v2133 = vshll.u32 %v2066, 16
      %v2135 = vrot.slane %v2133, 1
      %v2136 = vor.u32 %v2131, %v2135
      %v2138 = vshll.u32 %v2067, 16
      %v2140 = vrot.slane %v2138, 1
      %v2141 = vsel %vm2084, %v2136, %v2140
      %v2142 = vshrl.u32 %v2067, 16
      %v2144 = vor.u32 %v2142, %v2140
      %v2146 = vshrl.u32 %v2068, 16
      %v2148 = vshll.u32 %v2068, 16
      %v2150 = vrot.slane %v2148, 1
      %v2151 = vor.u32 %v2146, %v2150
      %v2153 = vshll.u32 %v2069, 16
      %v2155 = vrot.slane %v2153, 1
      %v2156 = vsel %vm2084, %v2151, %v2155
      %v2157 = vshrl.u32 %v2069, 16
      %v2159 = vor.u32 %v2157, %v2155
      %v2161 = vshrl.u32 %v2070, 16
      %v2163 = vshll.u32 %v2070, 16
      %v2165 = vrot.slane %v2163, 1
      %v2166 = vor.u32 %v2161, %v2165
      %v2168 = vshll.u32 %v2071, 16
      %v2170 = vrot.slane %v2168, 1
      %v2171 = vsel %vm2084, %v2166, %v2170
      %v2172 = vshrl.u32 %v2071, 16
      %v2174 = vor.u32 %v2172, %v2170
      %v2176 = vshrl.u32 %v2072, 16
      %v2178 = vshll.u32 %v2072, 16
      %v2180 = vrot.slane %v2178, 1
      %v2181 = vor.u32 %v2176, %v2180
      %v2183 = vshll.u32 %v2073, 16
      %v2185 = vrot.slane %v2183, 1
      %v2186 = vsel %vm2084, %v2181, %v2185
      %v2187 = vshrl.u32 %v2073, 16
      %v2189 = vor.u32 %v2187, %v2185
      %v2191 = vshrl.u32 %v2074, 16
      %v2193 = vshll.u32 %v2074, 16
      %v2195 = vrot.slane %v2193, 1
      %v2196 = vor.u32 %v2191, %v2195
      %v2198 = vshll.u32 %v2075, 16
      %v2200 = vrot.slane %v2198, 1
      %v2201 = vsel %vm2084, %v2196, %v2200
      %v2202 = vshrl.u32 %v2075, 16
      %v2204 = vor.u32 %v2202, %v2200
      %v2206 = vshrl.u32 %v2076, 16
      %v2208 = vshll.u32 %v2076, 16
      %v2210 = vrot.slane %v2208, 1
      %v2211 = vor.u32 %v2206, %v2210
      %v2213 = vshll.u32 %v2077, 16
      %v2215 = vrot.slane %v2213, 1
      %v2216 = vsel %vm2084, %v2211, %v2215
      %v2217 = vshrl.u32 %v2077, 16
      %v2219 = vor.u32 %v2217, %v2215
      %v2221 = vshrl.u32 %v2078, 16
      %v2223 = vshll.u32 %v2078, 16
      %v2225 = vrot.slane %v2223, 1
      %v2226 = vor.u32 %v2221, %v2225
      %v2228 = vshll.u32 %v2079, 16
      %v2230 = vrot.slane %v2228, 1
      %v2231 = vsel %vm2084, %v2226, %v2230
      %v2232 = vshrl.u32 %v2079, 16
      %v2234 = vor.u32 %v2232, %v2230
      %v2236 = vshrl.u32 %v2080, 16
      %v2238 = vshll.u32 %v2080, 16
      %v2240 = vrot.slane %v2238, 1
      %v2241 = vor.u32 %v2236, %v2240
      %v2243 = vshll.u32 %v2081, 16
      %v2245 = vrot.slane %v2243, 1
      %v2246 = vsel %vm2084, %v2241, %v2245
      %v2247 = vshrl.u32 %v2081, 16
      %v2249 = vor.u32 %v2247, %v2245
      %v2251 = vshrl.u32 %v2082, 16
      %v2253 = vshll.u32 %v2082, 16
      %v2255 = vrot.slane %v2253, 1
      %v2256 = vor.u32 %v2251, %v2255
      %v2258 = vshll.u32 %v2083, 16
      %v2260 = vrot.slane %v2258, 1
      %v2261 = vsel %vm2084, %v2256, %v2260
      %v2262 = vshrl.u32 %v2083, 16
      %v2264 = vor.u32 %v2262, %v2260
      %vm2265 = vcmask 1046528
      %v2266 = vrot.slane %v2060, 1
      %v2267 = vrot.slane %v2061, 1
      %v2268 = vsel %vm2265, %v2266, %v2267
      %v2269 = vrot.slane %v2062, 1
      %v2270 = vrot.slane %v2063, 1
      %v2271 = vsel %vm2265, %v2269, %v2270
      %v2272 = vrot.slane %v2064, 1
      %v2273 = vrot.slane %v2065, 1
      %v2274 = vsel %vm2265, %v2272, %v2273
      %v2275 = vrot.slane %v2066, 1
      %v2276 = vrot.slane %v2067, 1
      %v2277 = vsel %vm2265, %v2275, %v2276
      %v2278 = vrot.slane %v2068, 1
      %v2279 = vrot.slane %v2069, 1
      %v2280 = vsel %vm2265, %v2278, %v2279
      %v2281 = vrot.slane %v2070, 1
      %v2282 = vrot.slane %v2071, 1
      %v2283 = vsel %vm2265, %v2281, %v2282
      %v2284 = vrot.slane %v2072, 1
      %v2285 = vrot.slane %v2073, 1
      %v2286 = vsel %vm2265, %v2284, %v2285
      %v2287 = vrot.slane %v2074, 1
      %v2288 = vrot.slane %v2075, 1
      %v2289 = vsel %vm2265, %v2287, %v2288
      %v2290 = vrot.slane %v2076, 1
      %v2291 = vrot.slane %v2077, 1
      %v2292 = vsel %vm2265, %v2290, %v2291
      %v2293 = vrot.slane %v2078, 1
      %v2294 = vrot.slane %v2079, 1
      %v2295 = vsel %vm2265, %v2293, %v2294
      %v2296 = vrot.slane %v2080, 1
      %v2297 = vrot.slane %v2081, 1
      %v2298 = vsel %vm2265, %v2296, %v2297
      %v2299 = vrot.slane %v2082, 1
      %v2300 = vrot.slane %v2083, 1
      %v2301 = vsel %vm2265, %v2299, %v2300
      %v2302 = vunpack.c.l.b16 %v2096
      %v2303 = vunpack.c.l.b16 %v2268
      %v2304 = vunpack.c.h.b16 %v2096
      %v2305 = vunpack.c.h.b16 %v2268
      %v2306 = vunpack.c.l.b16 %v2099
      %v2307 = vunpack.c.l.b16 %v2267
      %v2308 = vunpack.c.l.b16 %v2111
      %v2309 = vunpack.c.l.b16 %v2271
      %v2310 = vunpack.c.h.b16 %v2111
      %v2311 = vunpack.c.h.b16 %v2271
      %v2312 = vunpack.c.l.b16 %v2114
      %v2313 = vunpack.c.l.b16 %v2270
      %v2314 = vunpack.c.l.b16 %v2126
      %v2315 = vunpack.c.l.b16 %v2274
      %v2316 = vunpack.c.h.b16 %v2126
      %v2317 = vunpack.c.h.b16 %v2274
      %v2318 = vunpack.c.l.b16 %v2129
      %v2319 = vunpack.c.l.b16 %v2273
      %v2320 = vunpack.c.l.b16 %v2141
      %v2321 = vunpack.c.l.b16 %v2277
      %v2322 = vunpack.c.h.b16 %v2141
      %v2323 = vunpack.c.h.b16 %v2277
      %v2324 = vunpack.c.l.b16 %v2144
      %v2325 = vunpack.c.l.b16 %v2276
      %v2326 = vunpack.c.l.b16 %v2156
      %v2327 = vunpack.c.l.b16 %v2280
      %v2328 = vunpack.c.h.b16 %v2156
      %v2329 = vunpack.c.h.b16 %v2280
      %v2330 = vunpack.c.l.b16 %v2159
      %v2331 = vunpack.c.l.b16 %v2279
      %v2332 = vunpack.c.l.b16 %v2171
      %v2333 = vunpack.c.l.b16 %v2283
      %v2334 = vunpack.c.h.b16 %v2171
      %v2335 = vunpack.c.h.b16 %v2283
      %v2336 = vunpack.c.l.b16 %v2174
      %v2337 = vunpack.c.l.b16 %v2282
      %v2338 = vunpack.c.l.b16 %v2186
      %v2339 = vunpack.c.l.b16 %v2286
      %v2340 = vunpack.c.h.b16 %v2186
      %v2341 = vunpack.c.h.b16 %v2286
      %v2342 = vunpack.c.l.b16 %v2189
      %v2343 = vunpack.c.l.b16 %v2285
      %v2344 = vunpack.c.l.b16 %v2201
      %v2345 = vunpack.c.l.b16 %v2289
      %v2346 = vunpack.c.h.b16 %v2201
      %v2347 = vunpack.c.h.b16 %v2289
      %v2348 = vunpack.c.l.b16 %v2204
      %v2349 = vunpack.c.l.b16 %v2288
      %v2350 = vunpack.c.l.b16 %v2216
      %v2351 = vunpack.c.l.b16 %v2292
      %v2352 = vunpack.c.h.b16 %v2216
      %v2353 = vunpack.c.h.b16 %v2292
      %v2354 = vunpack.c.l.b16 %v2219
      %v2355 = vunpack.c.l.b16 %v2291
      %v2356 = vunpack.c.l.b16 %v2231
      %v2357 = vunpack.c.l.b16 %v2295
      %v2358 = vunpack.c.h.b16 %v2231
      %v2359 = vunpack.c.h.b16 %v2295
      %v2360 = vunpack.c.l.b16 %v2234
      %v2361 = vunpack.c.l.b16 %v2294
      %v2362 = vunpack.c.l.b16 %v2246
      %v2363 = vunpack.c.l.b16 %v2298
      %v2364 = vunpack.c.h.b16 %v2246
      %v2365 = vunpack.c.h.b16 %v2298
      %v2366 = vunpack.c.l.b16 %v2249
      %v2367 = vunpack.c.l.b16 %v2297
      %v2368 = vunpack.c.l.b16 %v2261
      %v2369 = vunpack.c.l.b16 %v2301
      %v2370 = vunpack.c.h.b16 %v2261
      %v2371 = vunpack.c.h.b16 %v2301
      %v2372 = vunpack.c.l.b16 %v2264
      %v2373 = vunpack.c.l.b16 %v2300
      %v2374 = vld [vmem:[%s2] sm:$0xf]
      %v2375 = vld [vmem:[%s2 + $0x4] sm:$0xf]
      %v2376 = vld [vmem:[%s2 + $0x8] sm:$0xf]
      %v2377 = vld [vmem:[%s2 + $0xc] sm:$0xf]
      %v2378 = vld [vmem:[%s2 + $0x10] sm:$0xf]
      %v2379 = vld [vmem:[%s2 + $0x14] sm:$0xf]
      %v2380 = vld [vmem:[%s2 + $0x18] sm:$0xf]
      %v2381 = vld [vmem:[%s2 + $0x1c] sm:$0xf]
      %v2382 = vld [vmem:[%s2 + $0x20] sm:$0xf]
      %v2383 = vld [vmem:[%s2 + $0x24] sm:$0xf]
      %v2384 = vld [vmem:[%s2 + $0x28] sm:$0xf]
      %v2385 = vld [vmem:[%s2 + $0x2c] sm:$0xf]
      %v2386 = vld [vmem:[%s2 + $0x30] sm:$0xf]
      %v2387 = vld [vmem:[%s2 + $0x34] sm:$0xf]
      %v2388 = vld [vmem:[%s2 + $0x38] sm:$0xf]
      %v2389 = vld [vmem:[%s2 + $0x3c] sm:$0xf]
      %v2390 = vld [vmem:[%s2 + $0x40] sm:$0xf]
      %v2391 = vld [vmem:[%s2 + $0x44] sm:$0xf]
      %v2392 = vld [vmem:[%s2 + $0x48] sm:$0xf]
      %v2393 = vld [vmem:[%s2 + $0x4c] sm:$0xf]
      %v2394 = vld [vmem:[%s2 + $0x50] sm:$0xf]
      %v2395 = vld [vmem:[%s2 + $0x54] sm:$0xf]
      %v2396 = vld [vmem:[%s2 + $0x58] sm:$0xf]
      %v2397 = vld [vmem:[%s2 + $0x5c] sm:$0xf]
      %v2398 = vld [vmem:[%s2 + $0x60] sm:$0xf]
      %v2399 = vld [vmem:[%s2 + $0x64] sm:$0xf]
      %v2400 = vld [vmem:[%s2 + $0x68] sm:$0xf]
      %v2401 = vld [vmem:[%s2 + $0x6c] sm:$0xf]
      %v2402 = vld [vmem:[%s2 + $0x70] sm:$0xf]
      %v2403 = vld [vmem:[%s2 + $0x74] sm:$0xf]
      %v2404 = vld [vmem:[%s2 + $0x78] sm:$0xf]
      %v2405 = vld [vmem:[%s2 + $0x7c] sm:$0xf]
      %v2406 = vld [vmem:[%s2 + $0x80] sm:$0xf]
      %v2407 = vld [vmem:[%s2 + $0x84] sm:$0xf]
      %v2408 = vld [vmem:[%s2 + $0x88] sm:$0xf]
      %v2409 = vld [vmem:[%s2 + $0x8c] sm:$0xf]
      %v2410 = vld [vmem:[%s2 + $0x90] sm:$0xf]
      %v2411 = vld [vmem:[%s2 + $0x94] sm:$0xf]
      %v2412 = vld [vmem:[%s2 + $0x98] sm:$0xf]
      %v2413 = vld [vmem:[%s2 + $0x9c] sm:$0xf]
      %v2414 = vld [vmem:[%s2 + $0xa0] sm:$0xf]
      %v2415 = vld [vmem:[%s2 + $0xa4] sm:$0xf]
      %v2416 = vld [vmem:[%s2 + $0xa8] sm:$0xf]
      %v2417 = vld [vmem:[%s2 + $0xac] sm:$0xf]
      %v2418 = vld [vmem:[%s2 + $0xb0] sm:$0xf]
      %v2419 = vld [vmem:[%s2 + $0xb4] sm:$0xf]
      %v2420 = vld [vmem:[%s2 + $0xb8] sm:$0xf]
      %v2421 = vld [vmem:[%s2 + $0xbc] sm:$0xf]
      %s2422 = scalar_lea.vmem [#allocation2], 16
      %v2423 = vld [vmem:[%s2422] sm:$0xf]
      %v2424 = vld [vmem:[%s2422 + $0x4] sm:$0xf]
      %v2425 = vld [vmem:[%s2422 + $0x8] sm:$0xf]
      %v2426 = vld [vmem:[%s2422 + $0xc] sm:$0x1]
      %v2427 = vld [vmem:[%s2422 + $0x10] sm:$0xf]
      %v2428 = vld [vmem:[%s2422 + $0x14] sm:$0xf]
      %v2429 = vld [vmem:[%s2422 + $0x18] sm:$0xf]
      %v2430 = vld [vmem:[%s2422 + $0x1c] sm:$0x1]
      %v2431 = vld [vmem:[%s2422 + $0x20] sm:$0xf]
      %v2432 = vld [vmem:[%s2422 + $0x24] sm:$0xf]
      %v2433 = vld [vmem:[%s2422 + $0x28] sm:$0xf]
      %v2434 = vld [vmem:[%s2422 + $0x2c] sm:$0x1]
      %v2435 = vld [vmem:[%s2422 + $0x30] sm:$0xf]
      %v2436 = vld [vmem:[%s2422 + $0x34] sm:$0xf]
      %v2437 = vld [vmem:[%s2422 + $0x38] sm:$0xf]
      %v2438 = vld [vmem:[%s2422 + $0x3c] sm:$0x1]
      %v2439 = vld [vmem:[%s2422 + $0x40] sm:$0xf]
      %v2440 = vld [vmem:[%s2422 + $0x44] sm:$0xf]
      %v2441 = vld [vmem:[%s2422 + $0x48] sm:$0xf]
      %v2442 = vld [vmem:[%s2422 + $0x4c] sm:$0x1]
      %v2443 = vld [vmem:[%s2422 + $0x50] sm:$0xf]
      %v2444 = vld [vmem:[%s2422 + $0x54] sm:$0xf]
      %v2445 = vld [vmem:[%s2422 + $0x58] sm:$0xf]
      %v2446 = vld [vmem:[%s2422 + $0x5c] sm:$0x1]
      %v2447 = vld [vmem:[%s2422 + $0x60] sm:$0xf]
      %v2448 = vld [vmem:[%s2422 + $0x64] sm:$0xf]
      %v2449 = vld [vmem:[%s2422 + $0x68] sm:$0xf]
      %v2450 = vld [vmem:[%s2422 + $0x6c] sm:$0x1]
      %v2451 = vld [vmem:[%s2422 + $0x70] sm:$0xf]
      %v2452 = vld [vmem:[%s2422 + $0x74] sm:$0xf]
      %v2453 = vld [vmem:[%s2422 + $0x78] sm:$0xf]
      %v2454 = vld [vmem:[%s2422 + $0x7c] sm:$0x1]
      %v2455 = vld [vmem:[%s2422 + $0x80] sm:$0xf]
      %v2456 = vld [vmem:[%s2422 + $0x84] sm:$0xf]
      %v2457 = vld [vmem:[%s2422 + $0x88] sm:$0xf]
      %v2458 = vld [vmem:[%s2422 + $0x8c] sm:$0x1]
      %v2459 = vld [vmem:[%s2422 + $0x90] sm:$0xf]
      %v2460 = vld [vmem:[%s2422 + $0x94] sm:$0xf]
      %v2461 = vld [vmem:[%s2422 + $0x98] sm:$0xf]
      %v2462 = vld [vmem:[%s2422 + $0x9c] sm:$0x1]
      %v2463 = vld [vmem:[%s2422 + $0xa0] sm:$0xf]
      %v2464 = vld [vmem:[%s2422 + $0xa4] sm:$0xf]
      %v2465 = vld [vmem:[%s2422 + $0xa8] sm:$0xf]
      %v2466 = vld [vmem:[%s2422 + $0xac] sm:$0x1]
      %v2467 = vld [vmem:[%s2422 + $0xb0] sm:$0xf]
      %v2468 = vld [vmem:[%s2422 + $0xb4] sm:$0xf]
      %v2469 = vld [vmem:[%s2422 + $0xb8] sm:$0xf]
      %v2470 = vld [vmem:[%s2422 + $0xbc] sm:$0x1]
      %v2507 = vunpack.c.l.b16 %v2423
      %v2508 = vunpack.c.l.b16 %v2424
      %v2509 = vunpack.c.l.b16 %v2425
      %v2510 = vunpack.c.l.b16 %v2427
      %v2511 = vunpack.c.l.b16 %v2428
      %v2512 = vunpack.c.l.b16 %v2429
      %v2513 = vunpack.c.l.b16 %v2431
      %v2514 = vunpack.c.l.b16 %v2432
      %v2515 = vunpack.c.l.b16 %v2433
      %v2516 = vunpack.c.l.b16 %v2435
      %v2517 = vunpack.c.l.b16 %v2436
      %v2518 = vunpack.c.l.b16 %v2437
      %v2519 = vunpack.c.l.b16 %v2439
      %v2520 = vunpack.c.l.b16 %v2440
      %v2521 = vunpack.c.l.b16 %v2441
      %v2522 = vunpack.c.l.b16 %v2443
      %v2523 = vunpack.c.l.b16 %v2444
      %v2524 = vunpack.c.l.b16 %v2445
      %v2525 = vunpack.c.l.b16 %v2447
      %v2526 = vunpack.c.l.b16 %v2448
      %v2527 = vunpack.c.l.b16 %v2449
      %v2528 = vunpack.c.l.b16 %v2451
      %v2529 = vunpack.c.l.b16 %v2452
      %v2530 = vunpack.c.l.b16 %v2453
      %v2531 = vunpack.c.l.b16 %v2455
      %v2532 = vunpack.c.l.b16 %v2456
      %v2533 = vunpack.c.l.b16 %v2457
      %v2534 = vunpack.c.l.b16 %v2459
      %v2535 = vunpack.c.l.b16 %v2460
      %v2536 = vunpack.c.l.b16 %v2461
      %v2537 = vunpack.c.l.b16 %v2463
      %v2538 = vunpack.c.l.b16 %v2464
      %v2539 = vunpack.c.l.b16 %v2465
      %v2540 = vunpack.c.l.b16 %v2467
      %v2541 = vunpack.c.l.b16 %v2468
      %v2542 = vunpack.c.l.b16 %v2469
      %v2555 = vunpack.c.l.b16 %v2426
      %v2556 = vunpack.c.l.b16 %v2430
      %v2557 = vunpack.c.l.b16 %v2434
      %v2558 = vunpack.c.l.b16 %v2438
      %v2559 = vunpack.c.l.b16 %v2442
      %v2560 = vunpack.c.l.b16 %v2446
      %v2561 = vunpack.c.l.b16 %v2450
      %v2562 = vunpack.c.l.b16 %v2454
      %v2563 = vunpack.c.l.b16 %v2458
      %v2564 = vunpack.c.l.b16 %v2462
      %v2565 = vunpack.c.l.b16 %v2466
      %v2566 = vunpack.c.l.b16 %v2470
      %v2567 = vpack.c.b16 %v2508, %v2507
      %v2568 = vpack.c.b16 %v2555, %v2509
      %v2569 = vpack.c.b16 %v2511, %v2510
      %v2570 = vpack.c.b16 %v2556, %v2512
      %v2571 = vpack.c.b16 %v2514, %v2513
      %v2572 = vpack.c.b16 %v2557, %v2515
      %v2573 = vpack.c.b16 %v2517, %v2516
      %v2574 = vpack.c.b16 %v2558, %v2518
      %v2575 = vpack.c.b16 %v2520, %v2519
      %v2576 = vpack.c.b16 %v2559, %v2521
      %v2577 = vpack.c.b16 %v2523, %v2522
      %v2578 = vpack.c.b16 %v2560, %v2524
      %v2579 = vpack.c.b16 %v2526, %v2525
      %v2580 = vpack.c.b16 %v2561, %v2527
      %v2581 = vpack.c.b16 %v2529, %v2528
      %v2582 = vpack.c.b16 %v2562, %v2530
      %v2583 = vpack.c.b16 %v2532, %v2531
      %v2584 = vpack.c.b16 %v2563, %v2533
      %v2585 = vpack.c.b16 %v2535, %v2534
      %v2586 = vpack.c.b16 %v2564, %v2536
      %v2587 = vpack.c.b16 %v2538, %v2537
      %v2588 = vpack.c.b16 %v2565, %v2539
      %v2589 = vpack.c.b16 %v2541, %v2540
      %v2590 = vpack.c.b16 %v2566, %v2542
      %v2592 = vshrl.u32 %v2567, 16
      %v2594 = vshll.u32 %v2567, 16
      %v2596 = vrot.slane %v2594, 1
      %v2597 = vor.u32 %v2592, %v2596
      %v2599 = vshll.u32 %v2568, 16
      %v2601 = vrot.slane %v2599, 1
      %v2602 = vsel %vm2084, %v2597, %v2601
      %v2603 = vshrl.u32 %v2568, 16
      %v2605 = vor.u32 %v2603, %v2601
      %v2607 = vshrl.u32 %v2569, 16
      %v2609 = vshll.u32 %v2569, 16
      %v2611 = vrot.slane %v2609, 1
      %v2612 = vor.u32 %v2607, %v2611
      %v2614 = vshll.u32 %v2570, 16
      %v2616 = vrot.slane %v2614, 1
      %v2617 = vsel %vm2084, %v2612, %v2616
      %v2618 = vshrl.u32 %v2570, 16
      %v2620 = vor.u32 %v2618, %v2616
      %v2622 = vshrl.u32 %v2571, 16
      %v2624 = vshll.u32 %v2571, 16
      %v2626 = vrot.slane %v2624, 1
      %v2627 = vor.u32 %v2622, %v2626
      %v2629 = vshll.u32 %v2572, 16
      %v2631 = vrot.slane %v2629, 1
      %v2632 = vsel %vm2084, %v2627, %v2631
      %v2633 = vshrl.u32 %v2572, 16
      %v2635 = vor.u32 %v2633, %v2631
      %v2637 = vshrl.u32 %v2573, 16
      %v2639 = vshll.u32 %v2573, 16
      %v2641 = vrot.slane %v2639, 1
      %v2642 = vor.u32 %v2637, %v2641
      %v2644 = vshll.u32 %v2574, 16
      %v2646 = vrot.slane %v2644, 1
      %v2647 = vsel %vm2084, %v2642, %v2646
      %v2648 = vshrl.u32 %v2574, 16
      %v2650 = vor.u32 %v2648, %v2646
      %v2652 = vshrl.u32 %v2575, 16
      %v2654 = vshll.u32 %v2575, 16
      %v2656 = vrot.slane %v2654, 1
      %v2657 = vor.u32 %v2652, %v2656
      %v2659 = vshll.u32 %v2576, 16
      %v2661 = vrot.slane %v2659, 1
      %v2662 = vsel %vm2084, %v2657, %v2661
      %v2663 = vshrl.u32 %v2576, 16
      %v2665 = vor.u32 %v2663, %v2661
      %v2667 = vshrl.u32 %v2577, 16
      %v2669 = vshll.u32 %v2577, 16
      %v2671 = vrot.slane %v2669, 1
      %v2672 = vor.u32 %v2667, %v2671
      %v2674 = vshll.u32 %v2578, 16
      %v2676 = vrot.slane %v2674, 1
      %v2677 = vsel %vm2084, %v2672, %v2676
      %v2678 = vshrl.u32 %v2578, 16
      %v2680 = vor.u32 %v2678, %v2676
      %v2682 = vshrl.u32 %v2579, 16
      %v2684 = vshll.u32 %v2579, 16
      %v2686 = vrot.slane %v2684, 1
      %v2687 = vor.u32 %v2682, %v2686
      %v2689 = vshll.u32 %v2580, 16
      %v2691 = vrot.slane %v2689, 1
      %v2692 = vsel %vm2084, %v2687, %v2691
      %v2693 = vshrl.u32 %v2580, 16
      %v2695 = vor.u32 %v2693, %v2691
      %v2697 = vshrl.u32 %v2581, 16
      %v2699 = vshll.u32 %v2581, 16
      %v2701 = vrot.slane %v2699, 1
      %v2702 = vor.u32 %v2697, %v2701
      %v2704 = vshll.u32 %v2582, 16
      %v2706 = vrot.slane %v2704, 1
      %v2707 = vsel %vm2084, %v2702, %v2706
      %v2708 = vshrl.u32 %v2582, 16
      %v2710 = vor.u32 %v2708, %v2706
      %v2712 = vshrl.u32 %v2583, 16
      %v2714 = vshll.u32 %v2583, 16
      %v2716 = vrot.slane %v2714, 1
      %v2717 = vor.u32 %v2712, %v2716
      %v2719 = vshll.u32 %v2584, 16
      %v2721 = vrot.slane %v2719, 1
      %v2722 = vsel %vm2084, %v2717, %v2721
      %v2723 = vshrl.u32 %v2584, 16
      %v2725 = vor.u32 %v2723, %v2721
      %v2727 = vshrl.u32 %v2585, 16
      %v2729 = vshll.u32 %v2585, 16
      %v2731 = vrot.slane %v2729, 1
      %v2732 = vor.u32 %v2727, %v2731
      %v2734 = vshll.u32 %v2586, 16
      %v2736 = vrot.slane %v2734, 1
      %v2737 = vsel %vm2084, %v2732, %v2736
      %v2738 = vshrl.u32 %v2586, 16
      %v2740 = vor.u32 %v2738, %v2736
      %v2742 = vshrl.u32 %v2587, 16
      %v2744 = vshll.u32 %v2587, 16
      %v2746 = vrot.slane %v2744, 1
      %v2747 = vor.u32 %v2742, %v2746
      %v2749 = vshll.u32 %v2588, 16
      %v2751 = vrot.slane %v2749, 1
      %v2752 = vsel %vm2084, %v2747, %v2751
      %v2753 = vshrl.u32 %v2588, 16
      %v2755 = vor.u32 %v2753, %v2751
      %v2757 = vshrl.u32 %v2589, 16
      %v2759 = vshll.u32 %v2589, 16
      %v2761 = vrot.slane %v2759, 1
      %v2762 = vor.u32 %v2757, %v2761
      %v2764 = vshll.u32 %v2590, 16
      %v2766 = vrot.slane %v2764, 1
      %v2767 = vsel %vm2084, %v2762, %v2766
      %v2768 = vshrl.u32 %v2590, 16
      %v2770 = vor.u32 %v2768, %v2766
      %v2771 = vrot.slane %v2567, 1
      %v2772 = vrot.slane %v2568, 1
      %v2773 = vsel %vm2265, %v2771, %v2772
      %v2774 = vrot.slane %v2569, 1
      %v2775 = vrot.slane %v2570, 1
      %v2776 = vsel %vm2265, %v2774, %v2775
      %v2777 = vrot.slane %v2571, 1
      %v2778 = vrot.slane %v2572, 1
      %v2779 = vsel %vm2265, %v2777, %v2778
      %v2780 = vrot.slane %v2573, 1
      %v2781 = vrot.slane %v2574, 1
      %v2782 = vsel %vm2265, %v2780, %v2781
      %v2783 = vrot.slane %v2575, 1
      %v2784 = vrot.slane %v2576, 1
      %v2785 = vsel %vm2265, %v2783, %v2784
      %v2786 = vrot.slane %v2577, 1
      %v2787 = vrot.slane %v2578, 1
      %v2788 = vsel %vm2265, %v2786, %v2787
      %v2789 = vrot.slane %v2579, 1
      %v2790 = vrot.slane %v2580, 1
      %v2791 = vsel %vm2265, %v2789, %v2790
      %v2792 = vrot.slane %v2581, 1
      %v2793 = vrot.slane %v2582, 1
      %v2794 = vsel %vm2265, %v2792, %v2793
      %v2795 = vrot.slane %v2583, 1
      %v2796 = vrot.slane %v2584, 1
      %v2797 = vsel %vm2265, %v2795, %v2796
      %v2798 = vrot.slane %v2585, 1
      %v2799 = vrot.slane %v2586, 1
      %v2800 = vsel %vm2265, %v2798, %v2799
      %v2801 = vrot.slane %v2587, 1
      %v2802 = vrot.slane %v2588, 1
      %v2803 = vsel %vm2265, %v2801, %v2802
      %v2804 = vrot.slane %v2589, 1
      %v2805 = vrot.slane %v2590, 1
      %v2806 = vsel %vm2265, %v2804, %v2805
      %v2807 = vunpack.c.l.b16 %v2602
      %v2808 = vunpack.c.l.b16 %v2773
      %v2809 = vunpack.c.h.b16 %v2602
      %v2810 = vunpack.c.h.b16 %v2773
      %v2811 = vunpack.c.l.b16 %v2605
      %v2812 = vunpack.c.l.b16 %v2772
      %v2813 = vunpack.c.l.b16 %v2617
      %v2814 = vunpack.c.l.b16 %v2776
      %v2815 = vunpack.c.h.b16 %v2617
      %v2816 = vunpack.c.h.b16 %v2776
      %v2817 = vunpack.c.l.b16 %v2620
      %v2818 = vunpack.c.l.b16 %v2775
      %v2819 = vunpack.c.l.b16 %v2632
      %v2820 = vunpack.c.l.b16 %v2779
      %v2821 = vunpack.c.h.b16 %v2632
      %v2822 = vunpack.c.h.b16 %v2779
      %v2823 = vunpack.c.l.b16 %v2635
      %v2824 = vunpack.c.l.b16 %v2778
      %v2825 = vunpack.c.l.b16 %v2647
      %v2826 = vunpack.c.l.b16 %v2782
      %v2827 = vunpack.c.h.b16 %v2647
      %v2828 = vunpack.c.h.b16 %v2782
      %v2829 = vunpack.c.l.b16 %v2650
      %v2830 = vunpack.c.l.b16 %v2781
      %v2831 = vunpack.c.l.b16 %v2662
      %v2832 = vunpack.c.l.b16 %v2785
      %v2833 = vunpack.c.h.b16 %v2662
      %v2834 = vunpack.c.h.b16 %v2785
      %v2835 = vunpack.c.l.b16 %v2665
      %v2836 = vunpack.c.l.b16 %v2784
      %v2837 = vunpack.c.l.b16 %v2677
      %v2838 = vunpack.c.l.b16 %v2788
      %v2839 = vunpack.c.h.b16 %v2677
      %v2840 = vunpack.c.h.b16 %v2788
      %v2841 = vunpack.c.l.b16 %v2680
      %v2842 = vunpack.c.l.b16 %v2787
      %v2843 = vunpack.c.l.b16 %v2692
      %v2844 = vunpack.c.l.b16 %v2791
      %v2845 = vunpack.c.h.b16 %v2692
      %v2846 = vunpack.c.h.b16 %v2791
      %v2847 = vunpack.c.l.b16 %v2695
      %v2848 = vunpack.c.l.b16 %v2790
      %v2849 = vunpack.c.l.b16 %v2707
      %v2850 = vunpack.c.l.b16 %v2794
      %v2851 = vunpack.c.h.b16 %v2707
      %v2852 = vunpack.c.h.b16 %v2794
      %v2853 = vunpack.c.l.b16 %v2710
      %v2854 = vunpack.c.l.b16 %v2793
      %v2855 = vunpack.c.l.b16 %v2722
      %v2856 = vunpack.c.l.b16 %v2797
      %v2857 = vunpack.c.h.b16 %v2722
      %v2858 = vunpack.c.h.b16 %v2797
      %v2859 = vunpack.c.l.b16 %v2725
      %v2860 = vunpack.c.l.b16 %v2796
      %v2861 = vunpack.c.l.b16 %v2737
      %v2862 = vunpack.c.l.b16 %v2800
      %v2863 = vunpack.c.h.b16 %v2737
      %v2864 = vunpack.c.h.b16 %v2800
      %v2865 = vunpack.c.l.b16 %v2740
      %v2866 = vunpack.c.l.b16 %v2799
      %v2867 = vunpack.c.l.b16 %v2752
      %v2868 = vunpack.c.l.b16 %v2803
      %v2869 = vunpack.c.h.b16 %v2752
      %v2870 = vunpack.c.h.b16 %v2803
      %v2871 = vunpack.c.l.b16 %v2755
      %v2872 = vunpack.c.l.b16 %v2802
      %v2873 = vunpack.c.l.b16 %v2767
      %v2874 = vunpack.c.l.b16 %v2806
      %v2875 = vunpack.c.h.b16 %v2767
      %v2876 = vunpack.c.h.b16 %v2806
      %v2877 = vunpack.c.l.b16 %v2770
      %v2878 = vunpack.c.l.b16 %v2805
      %s2879 = scalar_lea.vmem %s2, 192
      %v2880 = vld [vmem:[%s2879] sm:$0xf]
      %v2881 = vld [vmem:[%s2879 + $0x4] sm:$0xf]
      %v2882 = vld [vmem:[%s2879 + $0x8] sm:$0xf]
      %v2883 = vld [vmem:[%s2879 + $0xc] sm:$0xf]
      %v2884 = vld [vmem:[%s2879 + $0x10] sm:$0xf]
      %v2885 = vld [vmem:[%s2879 + $0x14] sm:$0xf]
      %v2886 = vld [vmem:[%s2879 + $0x18] sm:$0xf]
      %v2887 = vld [vmem:[%s2879 + $0x1c] sm:$0xf]
      %v2888 = vld [vmem:[%s2879 + $0x20] sm:$0xf]
      %v2889 = vld [vmem:[%s2879 + $0x24] sm:$0xf]
      %v2890 = vld [vmem:[%s2879 + $0x28] sm:$0xf]
      %v2891 = vld [vmem:[%s2879 + $0x2c] sm:$0xf]
      %v2892 = vld [vmem:[%s2879 + $0x30] sm:$0xf]
      %v2893 = vld [vmem:[%s2879 + $0x34] sm:$0xf]
      %v2894 = vld [vmem:[%s2879 + $0x38] sm:$0xf]
      %v2895 = vld [vmem:[%s2879 + $0x3c] sm:$0xf]
      %v2896 = vld [vmem:[%s2879 + $0x40] sm:$0xf]
      %v2897 = vld [vmem:[%s2879 + $0x44] sm:$0xf]
      %v2898 = vld [vmem:[%s2879 + $0x48] sm:$0xf]
      %v2899 = vld [vmem:[%s2879 + $0x4c] sm:$0xf]
      %v2900 = vld [vmem:[%s2879 + $0x50] sm:$0xf]
      %v2901 = vld [vmem:[%s2879 + $0x54] sm:$0xf]
      %v2902 = vld [vmem:[%s2879 + $0x58] sm:$0xf]
      %v2903 = vld [vmem:[%s2879 + $0x5c] sm:$0xf]
      %v2904 = vld [vmem:[%s2879 + $0x60] sm:$0xf]
      %v2905 = vld [vmem:[%s2879 + $0x64] sm:$0xf]
      %v2906 = vld [vmem:[%s2879 + $0x68] sm:$0xf]
      %v2907 = vld [vmem:[%s2879 + $0x6c] sm:$0xf]
      %v2908 = vld [vmem:[%s2879 + $0x70] sm:$0xf]
      %v2909 = vld [vmem:[%s2879 + $0x74] sm:$0xf]
      %v2910 = vld [vmem:[%s2879 + $0x78] sm:$0xf]
      %v2911 = vld [vmem:[%s2879 + $0x7c] sm:$0xf]
      %v2912 = vld [vmem:[%s2879 + $0x80] sm:$0xf]
      %v2913 = vld [vmem:[%s2879 + $0x84] sm:$0xf]
      %v2914 = vld [vmem:[%s2879 + $0x88] sm:$0xf]
      %v2915 = vld [vmem:[%s2879 + $0x8c] sm:$0xf]
      %v2916 = vld [vmem:[%s2879 + $0x90] sm:$0xf]
      %v2917 = vld [vmem:[%s2879 + $0x94] sm:$0xf]
      %v2918 = vld [vmem:[%s2879 + $0x98] sm:$0xf]
      %v2919 = vld [vmem:[%s2879 + $0x9c] sm:$0xf]
      %v2920 = vld [vmem:[%s2879 + $0xa0] sm:$0xf]
      %v2921 = vld [vmem:[%s2879 + $0xa4] sm:$0xf]
      %v2922 = vld [vmem:[%s2879 + $0xa8] sm:$0xf]
      %v2923 = vld [vmem:[%s2879 + $0xac] sm:$0xf]
      %v2924 = vld [vmem:[%s2879 + $0xb0] sm:$0xf]
      %v2925 = vld [vmem:[%s2879 + $0xb4] sm:$0xf]
      %v2926 = vld [vmem:[%s2879 + $0xb8] sm:$0xf]
      %v2927 = vld [vmem:[%s2879 + $0xbc] sm:$0xf]
      %v2928 = vpack.c.b16 %v2809, %v2807
      %v2929 = vpack.c.b16 %v2810, %v2808
      %v2930 = vpack.c.b16 %v2510, %v2509
      %v2931 = vpack.c.b16 %v2813, %v2811
      %v2932 = vpack.c.b16 %v2814, %v2812
      %v2933 = vpack.c.b16 %v2512, %v2511
      %v2934 = vpack.c.b16 %v2817, %v2815
      %v2935 = vpack.c.b16 %v2818, %v2816
      %v2936 = vpack.c.b16 %v2821, %v2819
      %v2937 = vpack.c.b16 %v2822, %v2820
      %v2938 = vpack.c.b16 %v2516, %v2515
      %v2939 = vpack.c.b16 %v2825, %v2823
      %v2940 = vpack.c.b16 %v2826, %v2824
      %v2941 = vpack.c.b16 %v2518, %v2517
      %v2942 = vpack.c.b16 %v2829, %v2827
      %v2943 = vpack.c.b16 %v2830, %v2828
      %v2944 = vpack.c.b16 %v2833, %v2831
      %v2945 = vpack.c.b16 %v2834, %v2832
      %v2946 = vpack.c.b16 %v2522, %v2521
      %v2947 = vpack.c.b16 %v2837, %v2835
      %v2948 = vpack.c.b16 %v2838, %v2836
      %v2949 = vpack.c.b16 %v2524, %v2523
      %v2950 = vpack.c.b16 %v2841, %v2839
      %v2951 = vpack.c.b16 %v2842, %v2840
      %v2952 = vpack.c.b16 %v2845, %v2843
      %v2953 = vpack.c.b16 %v2846, %v2844
      %v2954 = vpack.c.b16 %v2528, %v2527
      %v2955 = vpack.c.b16 %v2849, %v2847
      %v2956 = vpack.c.b16 %v2850, %v2848
      %v2957 = vpack.c.b16 %v2530, %v2529
      %v2958 = vpack.c.b16 %v2853, %v2851
      %v2959 = vpack.c.b16 %v2854, %v2852
      %v2960 = vpack.c.b16 %v2857, %v2855
      %v2961 = vpack.c.b16 %v2858, %v2856
      %v2962 = vpack.c.b16 %v2534, %v2533
      %v2963 = vpack.c.b16 %v2861, %v2859
      %v2964 = vpack.c.b16 %v2862, %v2860
      %v2965 = vpack.c.b16 %v2536, %v2535
      %v2966 = vpack.c.b16 %v2865, %v2863
      %v2967 = vpack.c.b16 %v2866, %v2864
      %v2968 = vpack.c.b16 %v2869, %v2867
      %v2969 = vpack.c.b16 %v2870, %v2868
      %v2970 = vpack.c.b16 %v2540, %v2539
      %v2971 = vpack.c.b16 %v2873, %v2871
      %v2972 = vpack.c.b16 %v2874, %v2872
      %v2973 = vpack.c.b16 %v2542, %v2541
      %v2974 = vpack.c.b16 %v2877, %v2875
      %v2975 = vpack.c.b16 %v2878, %v2876
      %v3078 = vunpack.c.l.b16 %v2880
      %v3079 = vunpack.c.l.b16 %v2881
      %v3080 = vunpack.c.l.b16 %v2882
      %v3081 = vunpack.c.l.b16 %v2883
      %v3082 = vunpack.c.l.b16 %v2884
      %v3083 = vunpack.c.l.b16 %v2885
      %v3084 = vunpack.c.l.b16 %v2886
      %v3085 = vunpack.c.l.b16 %v2887
      %v3086 = vunpack.c.l.b16 %v2888
      %v3087 = vunpack.c.l.b16 %v2889
      %v3088 = vunpack.c.l.b16 %v2890
      %v3089 = vunpack.c.l.b16 %v2891
      %v3090 = vunpack.c.l.b16 %v2892
      %v3091 = vunpack.c.l.b16 %v2893
      %v3092 = vunpack.c.l.b16 %v2894
      %v3093 = vunpack.c.l.b16 %v2895
      %v3094 = vunpack.c.l.b16 %v2896
      %v3095 = vunpack.c.l.b16 %v2897
      %v3096 = vunpack.c.l.b16 %v2898
      %v3097 = vunpack.c.l.b16 %v2899
      %v3098 = vunpack.c.l.b16 %v2900
      %v3099 = vunpack.c.l.b16 %v2901
      %v3100 = vunpack.c.l.b16 %v2902
      %v3101 = vunpack.c.l.b16 %v2903
      %v3102 = vunpack.c.l.b16 %v2904
      %v3103 = vunpack.c.l.b16 %v2905
      %v3104 = vunpack.c.l.b16 %v2906
      %v3105 = vunpack.c.l.b16 %v2907
      %v3106 = vunpack.c.l.b16 %v2908
      %v3107 = vunpack.c.l.b16 %v2909
      %v3108 = vunpack.c.l.b16 %v2910
      %v3109 = vunpack.c.l.b16 %v2911
      %v3110 = vunpack.c.l.b16 %v2912
      %v3111 = vunpack.c.l.b16 %v2913
      %v3112 = vunpack.c.l.b16 %v2914
      %v3113 = vunpack.c.l.b16 %v2915
      %v3114 = vunpack.c.l.b16 %v2916
      %v3115 = vunpack.c.l.b16 %v2917
      %v3116 = vunpack.c.l.b16 %v2918
      %v3117 = vunpack.c.l.b16 %v2919
      %v3118 = vunpack.c.l.b16 %v2920
      %v3119 = vunpack.c.l.b16 %v2921
      %v3120 = vunpack.c.l.b16 %v2922
      %v3121 = vunpack.c.l.b16 %v2923
      %v3122 = vunpack.c.l.b16 %v2924
      %v3123 = vunpack.c.l.b16 %v2925
      %v3124 = vunpack.c.l.b16 %v2926
      %v3125 = vunpack.c.l.b16 %v2927
      %v3126 = vpack.c.b16 %v3079, %v3078
      %v3127 = vpack.c.b16 %v3081, %v3080
      %v3128 = vpack.c.b16 %v3083, %v3082
      %v3129 = vpack.c.b16 %v3085, %v3084
      %v3130 = vpack.c.b16 %v3087, %v3086
      %v3131 = vpack.c.b16 %v3089, %v3088
      %v3132 = vpack.c.b16 %v3091, %v3090
      %v3133 = vpack.c.b16 %v3093, %v3092
      %v3134 = vpack.c.b16 %v3095, %v3094
      %v3135 = vpack.c.b16 %v3097, %v3096
      %v3136 = vpack.c.b16 %v3099, %v3098
      %v3137 = vpack.c.b16 %v3101, %v3100
      %v3138 = vpack.c.b16 %v3103, %v3102
      %v3139 = vpack.c.b16 %v3105, %v3104
      %v3140 = vpack.c.b16 %v3107, %v3106
      %v3141 = vpack.c.b16 %v3109, %v3108
      %v3142 = vpack.c.b16 %v3111, %v3110
      %v3143 = vpack.c.b16 %v3113, %v3112
      %v3144 = vpack.c.b16 %v3115, %v3114
      %v3145 = vpack.c.b16 %v3117, %v3116
      %v3146 = vpack.c.b16 %v3119, %v3118
      %v3147 = vpack.c.b16 %v3121, %v3120
      %v3148 = vpack.c.b16 %v3123, %v3122
      %v3149 = vpack.c.b16 %v3125, %v3124
      %3174 = vmatprep.subr.bf16.mxu0 0
      %3175 = vmatpush1.bf16.msra.mxu0 %v3126
      %3176 = vmatprep.subr.bf16.mxu0 0
      %3177 = vmatpush1.bf16.msra.mxu0 %v3127
      %3178 = vmatprep.subr.bf16.mxu0 0
      %3179 = vmatpush1.bf16.msra.mxu0 %v3128
      %3180 = vmatprep.subr.bf16.mxu0 0
      %3181 = vmatpush1.bf16.msra.mxu0 %v3129
      %3182 = vmatprep.subr.bf16.mxu0 0
      %3183 = vmatpush1.bf16.msra.mxu0 %v3130
      %3184 = vmatprep.subr.bf16.mxu0 0
      %3185 = vmatpush1.bf16.msra.mxu0 %v3131
      %3186 = vmatprep.subr.bf16.mxu0 0
      %3187 = vmatpush1.bf16.msra.mxu0 %v3132
      %3188 = vmatprep.subr.bf16.mxu0 0
      %3189 = vmatpush1.bf16.msra.mxu0 %v3133
      %3190 = vmatprep.subr.bf16.mxu0 0
      %3191 = vmatpush1.bf16.msra.mxu0 %v3134
      %3192 = vmatprep.subr.bf16.mxu0 0
      %3193 = vmatpush1.bf16.msra.mxu0 %v3135
      %3194 = vmatprep.subr.bf16.mxu0 0
      %3195 = vmatpush1.bf16.msra.mxu0 %v3136
      %3196 = vmatprep.subr.bf16.mxu0 0
      %3197 = vmatpush1.bf16.msra.mxu0 %v3137
      %3198 = vmatprep.subr.bf16.mxu0 0
      %3199 = vmatpush1.bf16.msra.mxu0 %v3138
      %3200 = vmatprep.subr.bf16.mxu0 0
      %3201 = vmatpush1.bf16.msra.mxu0 %v3139
      %3202 = vmatprep.subr.bf16.mxu0 0
      %3203 = vmatpush1.bf16.msra.mxu0 %v3140
      %3204 = vmatprep.subr.bf16.mxu0 0
      %3205 = vmatpush1.bf16.msra.mxu0 %v3141
      %3206 = vmatprep.mubr.bf16.mxu0 %v2928
      %3207 = vmatmul.mubr.bf16.gmra.mrb[0].mxu0 %v2567
      %v3208 = vpop.f32.mrb[0].mxu0
      %v3209 = vadd.f32 0.0, %v3208
      %v3210 = vpop.f32.mrb[0].mxu0
      %v3211 = vpop.f32.mrb[0].mxu0
      %v3212 = vadd.f32 0.0, %v3211
      %v3213 = vpop.f32.mrb[0].mxu0
      %3214 = vmatprep.mubr.bf16.mxu0 %v2931
      %3215 = vmatmul.mubr.bf16.gmra.mrb[0].mxu0 %v2930
      %v3216 = vpop.f32.mrb[0].mxu0
      %v3217 = vadd.f32 0.0, %v3216
      %v3218 = vpop.f32.mrb[0].mxu0
      %v3219 = vpop.f32.mrb[0].mxu0
      %v3220 = vadd.f32 0.0, %v3219
      %v3221 = vpop.f32.mrb[0].mxu0
      %3222 = vmatprep.mubr.bf16.mxu0 %v2934
      %3223 = vmatmul.mubr.bf16.gmra.mrb[0].mxu0 %v2933
      %v3224 = vpop.f32.mrb[0].mxu0
      %v3225 = vadd.f32 0.0, %v3224
      %v3226 = vpop.f32.mrb[0].mxu0
      %v3227 = vpop.f32.mrb[0].mxu0
      %v3228 = vadd.f32 0.0, %v3227
      %v3229 = vpop.f32.mrb[0].mxu0
      %3230 = vmatprep.mubr.bf16.mxu0 %v2936
      %3231 = vmatmul.mubr.bf16.gmra.mrb[0].mxu0 %v2571
      %v3232 = vpop.f32.mrb[0].mxu0
      %v3233 = vadd.f32 0.0, %v3232
      %v3234 = vpop.f32.mrb[0].mxu0
      %v3235 = vpop.f32.mrb[0].mxu0
      %v3236 = vadd.f32 0.0, %v3235
      %v3237 = vpop.f32.mrb[0].mxu0
      %3238 = vmatprep.mubr.bf16.mxu0 %v2939
      %3239 = vmatmul.mubr.bf16.gmra.mrb[0].mxu0 %v2938
      %v3240 = vpop.f32.mrb[0].mxu0
      %v3241 = vadd.f32 0.0, %v3240
      %v3242 = vpop.f32.mrb[0].mxu0
      %v3243 = vpop.f32.mrb[0].mxu0
      %v3244 = vadd.f32 0.0, %v3243
      %v3245 = vpop.f32.mrb[0].mxu0
      %3246 = vmatprep.mubr.bf16.mxu0 %v2942
      %3247 = vmatmul.mubr.bf16.gmra.mrb[0].mxu0 %v2941
      %v3248 = vpop.f32.mrb[0].mxu0
      %v3249 = vadd.f32 0.0, %v3248
      %v3250 = vpop.f32.mrb[0].mxu0
      %v3251 = vpop.f32.mrb[0].mxu0
      %v3252 = vadd.f32 0.0, %v3251
      %v3253 = vpop.f32.mrb[0].mxu0
      %3254 = vmatprep.mubr.bf16.mxu0 %v2944
      %3255 = vmatmul.mubr.bf16.gmra.mrb[0].mxu0 %v2575
      %v3256 = vpop.f32.mrb[0].mxu0
      %v3257 = vadd.f32 0.0, %v3256
      %v3258 = vpop.f32.mrb[0].mxu0
      %v3259 = vpop.f32.mrb[0].mxu0
      %v3260 = vadd.f32 0.0, %v3259
      %v3261 = vpop.f32.mrb[0].mxu0
      %3262 = vmatprep.mubr.bf16.mxu0 %v2947
      %3263 = vmatmul.mubr.bf16.gmra.mrb[0].mxu0 %v2946
      %v3264 = vpop.f32.mrb[0].mxu0
      %v3265 = vadd.f32 0.0, %v3264
      %v3266 = vpop.f32.mrb[0].mxu0
      %v3267 = vpop.f32.mrb[0].mxu0
      %v3268 = vadd.f32 0.0, %v3267
      %v3269 = vpop.f32.mrb[0].mxu0
      %3270 = vmatprep.mubr.bf16.mxu0 %v2950
      %3271 = vmatmul.mubr.bf16.gmra.mrb[0].mxu0 %v2949
      %v3272 = vpop.f32.mrb[0].mxu0
      %v3273 = vadd.f32 0.0, %v3272
      %v3274 = vpop.f32.mrb[0].mxu0
      %v3275 = vpop.f32.mrb[0].mxu0
      %v3276 = vadd.f32 0.0, %v3275
      %v3277 = vpop.f32.mrb[0].mxu0
      %3278 = vmatprep.mubr.bf16.mxu0 %v2952
      %3279 = vmatmul.mubr.bf16.gmra.mrb[0].mxu0 %v2579
      %v3280 = vpop.f32.mrb[0].mxu0
      %v3281 = vadd.f32 0.0, %v3280
      %v3282 = vpop.f32.mrb[0].mxu0
      %v3283 = vpop.f32.mrb[0].mxu0
      %v3284 = vadd.f32 0.0, %v3283
      %v3285 = vpop.f32.mrb[0].mxu0
      %3286 = vmatprep.mubr.bf16.mxu0 %v2955
      %3287 = vmatmul.mubr.bf16.gmra.mrb[0].mxu0 %v2954
      %v3288 = vpop.f32.mrb[0].mxu0
      %v3289 = vadd.f32 0.0, %v3288
      %v3290 = vpop.f32.mrb[0].mxu0
      %v3291 = vpop.f32.mrb[0].mxu0
      %v3292 = vadd.f32 0.0, %v3291
      %v3293 = vpop.f32.mrb[0].mxu0
      %3294 = vmatprep.mubr.bf16.mxu0 %v2958
      %3295 = vmatmul.mubr.bf16.gmra.mrb[0].mxu0 %v2957
      %v3296 = vpop.f32.mrb[0].mxu0
      %v3297 = vadd.f32 0.0, %v3296
      %v3298 = vpop.f32.mrb[0].mxu0
      %v3299 = vpop.f32.mrb[0].mxu0
      %v3300 = vadd.f32 0.0, %v3299
      %v3301 = vpop.f32.mrb[0].mxu0
      %3302 = vmatprep.mubr.bf16.mxu0 %v2960
      %3303 = vmatmul.mubr.bf16.gmra.mrb[0].mxu0 %v2583
      %v3304 = vpop.f32.mrb[0].mxu0
      %v3305 = vadd.f32 0.0, %v3304
      %v3306 = vpop.f32.mrb[0].mxu0
      %v3307 = vpop.f32.mrb[0].mxu0
      %v3308 = vadd.f32 0.0, %v3307
      %v3309 = vpop.f32.mrb[0].mxu0
      %3310 = vmatprep.mubr.bf16.mxu0 %v2963
      %3311 = vmatmul.mubr.bf16.gmra.mrb[0].mxu0 %v2962
      %v3312 = vpop.f32.mrb[0].mxu0
      %v3313 = vadd.f32 0.0, %v3312
      %v3314 = vpop.f32.mrb[0].mxu0
      %v3315 = vpop.f32.mrb[0].mxu0
      %v3316 = vadd.f32 0.0, %v3315
      %v3317 = vpop.f32.mrb[0].mxu0
      %3318 = vmatprep.mubr.bf16.mxu0 %v2966
      %3319 = vmatmul.mubr.bf16.gmra.mrb[0].mxu0 %v2965
      %v3320 = vpop.f32.mrb[0].mxu0
      %v3321 = vadd.f32 0.0, %v3320
      %v3322 = vpop.f32.mrb[0].mxu0
      %v3323 = vpop.f32.mrb[0].mxu0
      %v3324 = vadd.f32 0.0, %v3323
      %v3325 = vpop.f32.mrb[0].mxu0
      %3326 = vmatprep.mubr.bf16.mxu0 %v2968
      %3327 = vmatmul.mubr.bf16.gmra.mrb[0].mxu0 %v2587
      %v3328 = vpop.f32.mrb[0].mxu0
      %v3329 = vadd.f32 0.0, %v3328
      %v3330 = vpop.f32.mrb[0].mxu0
      %v3331 = vpop.f32.mrb[0].mxu0
      %v3332 = vadd.f32 0.0, %v3331
      %v3333 = vpop.f32.mrb[0].mxu0
      %3334 = vmatprep.mubr.bf16.mxu0 %v2971
      %3335 = vmatmul.mubr.bf16.gmra.mrb[0].mxu0 %v2970
      %v3336 = vpop.f32.mrb[0].mxu0
      %v3337 = vadd.f32 0.0, %v3336
      %v3338 = vpop.f32.mrb[0].mxu0
      %v3339 = vpop.f32.mrb[0].mxu0
      %v3340 = vadd.f32 0.0, %v3339
      %v3341 = vpop.f32.mrb[0].mxu0
      %3342 = vmatprep.mubr.bf16.mxu0 %v2974
      %3343 = vmatmul.mubr.bf16.gmra.mrb[0].mxu0 %v2973
      %v3344 = vpop.f32.mrb[0].mxu0
      %v3345 = vadd.f32 0.0, %v3344
      %v3346 = vpop.f32.mrb[0].mxu0
      %v3347 = vpop.f32.mrb[0].mxu0
      %v3348 = vadd.f32 0.0, %v3347
      %v3349 = vpop.f32.mrb[0].mxu0
      %3350 = vdwg.mxu0
      %3351 = vmatprep.subr.bf16.mxu0 0
      %3352 = vmatpush1.bf16.msra.mxu0 %v3142
      %3353 = vmatprep.subr.bf16.mxu0 0
      %3354 = vmatpush1.bf16.msra.mxu0 %v3143
      %3355 = vmatprep.subr.bf16.mxu0 0
      %3356 = vmatpush1.bf16.msra.mxu0 %v3144
      %3357 = vmatprep.subr.bf16.mxu0 0
      %3358 = vmatpush1.bf16.msra.mxu0 %v3145
      %3359 = vmatprep.subr.bf16.mxu0 0
      %3360 = vmatpush1.bf16.msra.mxu0 %v3146
      %3361 = vmatprep.subr.bf16.mxu0 0
      %3362 = vmatpush1.bf16.msra.mxu0 %v3147
      %3363 = vmatprep.subr.bf16.mxu0 0
      %3364 = vmatpush1.bf16.msra.mxu0 %v3148
      %3365 = vmatprep.subr.bf16.mxu0 0
      %3366 = vmatpush1.bf16.msra.mxu0 %v3149
      %3367 = vmatprep.subr.bf16.mxu0 0
      %3368 = vmatpush1.bf16.msra.mxu0 0
      %3369 = vmatprep.subr.bf16.mxu0 0
      %3370 = vmatpush1.bf16.msra.mxu0 0
      %3371 = vmatprep.subr.bf16.mxu0 0
      %3372 = vmatpush1.bf16.msra.mxu0 0
      %3373 = vmatprep.subr.bf16.mxu0 0
      %3374 = vmatpush1.bf16.msra.mxu0 0
      %3375 = vmatprep.subr.bf16.mxu0 0
      %3376 = vmatpush1.bf16.msra.mxu0 0
      %3377 = vmatprep.subr.bf16.mxu0 0
      %3378 = vmatpush1.bf16.msra.mxu0 0
      %3379 = vmatprep.subr.bf16.mxu0 0
      %3380 = vmatpush1.bf16.msra.mxu0 0
      %3381 = vmatprep.subr.bf16.mxu0 0
      %3382 = vmatpush1.bf16.msra.mxu0 0
      %3383 = vmatprep.mubr.bf16.mxu0 0
      %3384 = vmatmul.mubr.bf16.gmra.mrb[0].mxu0 %v2929
      %v3385 = vpop.f32.mrb[0].mxu0
      %v3386 = vadd.f32 %v3209, %v3385
      %v3387 = vpop.f32.mrb[0].mxu0
      %v3388 = vpop.f32.mrb[0].mxu0
      %v3389 = vadd.f32 %v3212, %v3388
      %v3390 = vpop.f32.mrb[0].mxu0
      %3391 = vmatprep.mubr.bf16.mxu0 0
      %3392 = vmatmul.mubr.bf16.gmra.mrb[0].mxu0 %v2932
      %v3393 = vpop.f32.mrb[0].mxu0
      %v3394 = vadd.f32 %v3217, %v3393
      %v3395 = vpop.f32.mrb[0].mxu0
      %v3396 = vpop.f32.mrb[0].mxu0
      %v3397 = vadd.f32 %v3220, %v3396
      %v3398 = vpop.f32.mrb[0].mxu0
      %3399 = vmatprep.mubr.bf16.mxu0 0
      %3400 = vmatmul.mubr.bf16.gmra.mrb[0].mxu0 %v2935
      %v3401 = vpop.f32.mrb[0].mxu0
      %v3402 = vadd.f32 %v3225, %v3401
      %v3403 = vpop.f32.mrb[0].mxu0
      %v3404 = vpop.f32.mrb[0].mxu0
      %v3405 = vadd.f32 %v3228, %v3404
      %v3406 = vpop.f32.mrb[0].mxu0
      %3407 = vmatprep.mubr.bf16.mxu0 0
      %3408 = vmatmul.mubr.bf16.gmra.mrb[0].mxu0 %v2937
      %v3409 = vpop.f32.mrb[0].mxu0
      %v3410 = vadd.f32 %v3233, %v3409
      %v3411 = vpop.f32.mrb[0].mxu0
      %v3412 = vpop.f32.mrb[0].mxu0
      %v3413 = vadd.f32 %v3236, %v3412
      %v3414 = vpop.f32.mrb[0].mxu0
      %3415 = vmatprep.mubr.bf16.mxu0 0
      %3416 = vmatmul.mubr.bf16.gmra.mrb[0].mxu0 %v2940
      %v3417 = vpop.f32.mrb[0].mxu0
      %v3418 = vadd.f32 %v3241, %v3417
      %v3419 = vpop.f32.mrb[0].mxu0
      %v3420 = vpop.f32.mrb[0].mxu0
      %v3421 = vadd.f32 %v3244, %v3420
      %v3422 = vpop.f32.mrb[0].mxu0
      %3423 = vmatprep.mubr.bf16.mxu0 0
      %3424 = vmatmul.mubr.bf16.gmra.mrb[0].mxu0 %v2943
      %v3425 = vpop.f32.mrb[0].mxu0
      %v3426 = vadd.f32 %v3249, %v3425
      %v3427 = vpop.f32.mrb[0].mxu0
      %v3428 = vpop.f32.mrb[0].mxu0
      %v3429 = vadd.f32 %v3252, %v3428
      %v3430 = vpop.f32.mrb[0].mxu0
      %3431 = vmatprep.mubr.bf16.mxu0 0
      %3432 = vmatmul.mubr.bf16.gmra.mrb[0].mxu0 %v2945
      %v3433 = vpop.f32.mrb[0].mxu0
      %v3434 = vadd.f32 %v3257, %v3433
      %v3435 = vpop.f32.mrb[0].mxu0
      %v3436 = vpop.f32.mrb[0].mxu0
      %v3437 = vadd.f32 %v3260, %v3436
      %v3438 = vpop.f32.mrb[0].mxu0
      %3439 = vmatprep.mubr.bf16.mxu0 0
      %3440 = vmatmul.mubr.bf16.gmra.mrb[0].mxu0 %v2948
      %v3441 = vpop.f32.mrb[0].mxu0
      %v3442 = vadd.f32 %v3265, %v3441
      %v3443 = vpop.f32.mrb[0].mxu0
      %v3444 = vpop.f32.mrb[0].mxu0
      %v3445 = vadd.f32 %v3268, %v3444
      %v3446 = vpop.f32.mrb[0].mxu0
      %3447 = vmatprep.mubr.bf16.mxu0 0
      %3448 = vmatmul.mubr.bf16.gmra.mrb[0].mxu0 %v2951
      %v3449 = vpop.f32.mrb[0].mxu0
      %v3450 = vadd.f32 %v3273, %v3449
      %v3451 = vpop.f32.mrb[0].mxu0
      %v3452 = vpop.f32.mrb[0].mxu0
      %v3453 = vadd.f32 %v3276, %v3452
      %v3454 = vpop.f32.mrb[0].mxu0
      %3455 = vmatprep.mubr.bf16.mxu0 0
      %3456 = vmatmul.mubr.bf16.gmra.mrb[0].mxu0 %v2953
      %v3457 = vpop.f32.mrb[0].mxu0
      %v3458 = vadd.f32 %v3281, %v3457
      %v3459 = vpop.f32.mrb[0].mxu0
      %v3460 = vpop.f32.mrb[0].mxu0
      %v3461 = vadd.f32 %v3284, %v3460
      %v3462 = vpop.f32.mrb[0].mxu0
      %3463 = vmatprep.mubr.bf16.mxu0 0
      %3464 = vmatmul.mubr.bf16.gmra.mrb[0].mxu0 %v2956
      %v3465 = vpop.f32.mrb[0].mxu0
      %v3466 = vadd.f32 %v3289, %v3465
      %v3467 = vpop.f32.mrb[0].mxu0
      %v3468 = vpop.f32.mrb[0].mxu0
      %v3469 = vadd.f32 %v3292, %v3468
      %v3470 = vpop.f32.mrb[0].mxu0
      %3471 = vmatprep.mubr.bf16.mxu0 0
      %3472 = vmatmul.mubr.bf16.gmra.mrb[0].mxu0 %v2959
      %v3473 = vpop.f32.mrb[0].mxu0
      %v3474 = vadd.f32 %v3297, %v3473
      %v3475 = vpop.f32.mrb[0].mxu0
      %v3476 = vpop.f32.mrb[0].mxu0
      %v3477 = vadd.f32 %v3300, %v3476
      %v3478 = vpop.f32.mrb[0].mxu0
      %3479 = vmatprep.mubr.bf16.mxu0 0
      %3480 = vmatmul.mubr.bf16.gmra.mrb[0].mxu0 %v2961
      %v3481 = vpop.f32.mrb[0].mxu0
      %v3482 = vadd.f32 %v3305, %v3481
      %v3483 = vpop.f32.mrb[0].mxu0
      %v3484 = vpop.f32.mrb[0].mxu0
      %v3485 = vadd.f32 %v3308, %v3484
      %v3486 = vpop.f32.mrb[0].mxu0
      %3487 = vmatprep.mubr.bf16.mxu0 0
      %3488 = vmatmul.mubr.bf16.gmra.mrb[0].mxu0 %v2964
      %v3489 = vpop.f32.mrb[0].mxu0
      %v3490 = vadd.f32 %v3313, %v3489
      %v3491 = vpop.f32.mrb[0].mxu0
      %v3492 = vpop.f32.mrb[0].mxu0
      %v3493 = vadd.f32 %v3316, %v3492
      %v3494 = vpop.f32.mrb[0].mxu0
      %3495 = vmatprep.mubr.bf16.mxu0 0
      %3496 = vmatmul.mubr.bf16.gmra.mrb[0].mxu0 %v2967
      %v3497 = vpop.f32.mrb[0].mxu0
      %v3498 = vadd.f32 %v3321, %v3497
      %v3499 = vpop.f32.mrb[0].mxu0
      %v3500 = vpop.f32.mrb[0].mxu0
      %v3501 = vadd.f32 %v3324, %v3500
      %v3502 = vpop.f32.mrb[0].mxu0
      %3503 = vmatprep.mubr.bf16.mxu0 0
      %3504 = vmatmul.mubr.bf16.gmra.mrb[0].mxu0 %v2969
      %v3505 = vpop.f32.mrb[0].mxu0
      %v3506 = vadd.f32 %v3329, %v3505
      %v3507 = vpop.f32.mrb[0].mxu0
      %v3508 = vpop.f32.mrb[0].mxu0
      %v3509 = vadd.f32 %v3332, %v3508
      %v3510 = vpop.f32.mrb[0].mxu0
      %3511 = vmatprep.mubr.bf16.mxu0 0
      %3512 = vmatmul.mubr.bf16.gmra.mrb[0].mxu0 %v2972
      %v3513 = vpop.f32.mrb[0].mxu0
      %v3514 = vadd.f32 %v3337, %v3513
      %v3515 = vpop.f32.mrb[0].mxu0
      %v3516 = vpop.f32.mrb[0].mxu0
      %v3517 = vadd.f32 %v3340, %v3516
      %v3518 = vpop.f32.mrb[0].mxu0
      %3519 = vmatprep.mubr.bf16.mxu0 0
      %3520 = vmatmul.mubr.bf16.gmra.mrb[0].mxu0 %v2975
      %v3521 = vpop.f32.mrb[0].mxu0
      %v3522 = vadd.f32 %v3345, %v3521
      %v3523 = vpop.f32.mrb[0].mxu0
      %v3524 = vpop.f32.mrb[0].mxu0
      %v3525 = vadd.f32 %v3348, %v3524
      %v3526 = vpop.f32.mrb[0].mxu0
      %3527 = vdwg.mxu0
      %v3528 = vpack.c.b16 %v2304, %v2302
      %v3529 = vpack.c.b16 %v2305, %v2303
      %v3530 = vpack.c.b16 %v2003, %v2002
      %v3531 = vpack.c.b16 %v2308, %v2306
      %v3532 = vpack.c.b16 %v2309, %v2307
      %v3533 = vpack.c.b16 %v2005, %v2004
      %v3534 = vpack.c.b16 %v2312, %v2310
      %v3535 = vpack.c.b16 %v2313, %v2311
      %v3536 = vpack.c.b16 %v2316, %v2314
      %v3537 = vpack.c.b16 %v2317, %v2315
      %v3538 = vpack.c.b16 %v2009, %v2008
      %v3539 = vpack.c.b16 %v2320, %v2318
      %v3540 = vpack.c.b16 %v2321, %v2319
      %v3541 = vpack.c.b16 %v2011, %v2010
      %v3542 = vpack.c.b16 %v2324, %v2322
      %v3543 = vpack.c.b16 %v2325, %v2323
      %v3544 = vpack.c.b16 %v2328, %v2326
      %v3545 = vpack.c.b16 %v2329, %v2327
      %v3546 = vpack.c.b16 %v2015, %v2014
      %v3547 = vpack.c.b16 %v2332, %v2330
      %v3548 = vpack.c.b16 %v2333, %v2331
      %v3549 = vpack.c.b16 %v2017, %v2016
      %v3550 = vpack.c.b16 %v2336, %v2334
      %v3551 = vpack.c.b16 %v2337, %v2335
      %v3552 = vpack.c.b16 %v2340, %v2338
      %v3553 = vpack.c.b16 %v2341, %v2339
      %v3554 = vpack.c.b16 %v2021, %v2020
      %v3555 = vpack.c.b16 %v2344, %v2342
      %v3556 = vpack.c.b16 %v2345, %v2343
      %v3557 = vpack.c.b16 %v2023, %v2022
      %v3558 = vpack.c.b16 %v2348, %v2346
      %v3559 = vpack.c.b16 %v2349, %v2347
      %v3560 = vpack.c.b16 %v2352, %v2350
      %v3561 = vpack.c.b16 %v2353, %v2351
      %v3562 = vpack.c.b16 %v2027, %v2026
      %v3563 = vpack.c.b16 %v2356, %v2354
      %v3564 = vpack.c.b16 %v2357, %v2355
      %v3565 = vpack.c.b16 %v2029, %v2028
      %v3566 = vpack.c.b16 %v2360, %v2358
      %v3567 = vpack.c.b16 %v2361, %v2359
      %v3568 = vpack.c.b16 %v2364, %v2362
      %v3569 = vpack.c.b16 %v2365, %v2363
      %v3570 = vpack.c.b16 %v2033, %v2032
      %v3571 = vpack.c.b16 %v2368, %v2366
      %v3572 = vpack.c.b16 %v2369, %v2367
      %v3573 = vpack.c.b16 %v2035, %v2034
      %v3574 = vpack.c.b16 %v2372, %v2370
      %v3575 = vpack.c.b16 %v2373, %v2371
      %v3678 = vunpack.c.l.b16 %v2374
      %v3679 = vunpack.c.l.b16 %v2375
      %v3680 = vunpack.c.l.b16 %v2376
      %v3681 = vunpack.c.l.b16 %v2377
      %v3682 = vunpack.c.l.b16 %v2378
      %v3683 = vunpack.c.l.b16 %v2379
      %v3684 = vunpack.c.l.b16 %v2380
      %v3685 = vunpack.c.l.b16 %v2381
      %v3686 = vunpack.c.l.b16 %v2382
      %v3687 = vunpack.c.l.b16 %v2383
      %v3688 = vunpack.c.l.b16 %v2384
      %v3689 = vunpack.c.l.b16 %v2385
      %v3690 = vunpack.c.l.b16 %v2386
      %v3691 = vunpack.c.l.b16 %v2387
      %v3692 = vunpack.c.l.b16 %v2388
      %v3693 = vunpack.c.l.b16 %v2389
      %v3694 = vunpack.c.l.b16 %v2390
      %v3695 = vunpack.c.l.b16 %v2391
      %v3696 = vunpack.c.l.b16 %v2392
      %v3697 = vunpack.c.l.b16 %v2393
      %v3698 = vunpack.c.l.b16 %v2394
      %v3699 = vunpack.c.l.b16 %v2395
      %v3700 = vunpack.c.l.b16 %v2396
      %v3701 = vunpack.c.l.b16 %v2397
      %v3702 = vunpack.c.l.b16 %v2398
      %v3703 = vunpack.c.l.b16 %v2399
      %v3704 = vunpack.c.l.b16 %v2400
      %v3705 = vunpack.c.l.b16 %v2401
      %v3706 = vunpack.c.l.b16 %v2402
      %v3707 = vunpack.c.l.b16 %v2403
      %v3708 = vunpack.c.l.b16 %v2404
      %v3709 = vunpack.c.l.b16 %v2405
      %v3710 = vunpack.c.l.b16 %v2406
      %v3711 = vunpack.c.l.b16 %v2407
      %v3712 = vunpack.c.l.b16 %v2408
      %v3713 = vunpack.c.l.b16 %v2409
      %v3714 = vunpack.c.l.b16 %v2410
      %v3715 = vunpack.c.l.b16 %v2411
      %v3716 = vunpack.c.l.b16 %v2412
      %v3717 = vunpack.c.l.b16 %v2413
      %v3718 = vunpack.c.l.b16 %v2414
      %v3719 = vunpack.c.l.b16 %v2415
      %v3720 = vunpack.c.l.b16 %v2416
      %v3721 = vunpack.c.l.b16 %v2417
      %v3722 = vunpack.c.l.b16 %v2418
      %v3723 = vunpack.c.l.b16 %v2419
      %v3724 = vunpack.c.l.b16 %v2420
      %v3725 = vunpack.c.l.b16 %v2421
      %v3726 = vpack.c.b16 %v3679, %v3678
      %v3727 = vpack.c.b16 %v3681, %v3680
      %v3728 = vpack.c.b16 %v3683, %v3682
      %v3729 = vpack.c.b16 %v3685, %v3684
      %v3730 = vpack.c.b16 %v3687, %v3686
      %v3731 = vpack.c.b16 %v3689, %v3688
      %v3732 = vpack.c.b16 %v3691, %v3690
      %v3733 = vpack.c.b16 %v3693, %v3692
      %v3734 = vpack.c.b16 %v3695, %v3694
      %v3735 = vpack.c.b16 %v3697, %v3696
      %v3736 = vpack.c.b16 %v3699, %v3698
      %v3737 = vpack.c.b16 %v3701, %v3700
      %v3738 = vpack.c.b16 %v3703, %v3702
      %v3739 = vpack.c.b16 %v3705, %v3704
      %v3740 = vpack.c.b16 %v3707, %v3706
      %v3741 = vpack.c.b16 %v3709, %v3708
      %v3742 = vpack.c.b16 %v3711, %v3710
      %v3743 = vpack.c.b16 %v3713, %v3712
      %v3744 = vpack.c.b16 %v3715, %v3714
      %v3745 = vpack.c.b16 %v3717, %v3716
      %v3746 = vpack.c.b16 %v3719, %v3718
      %v3747 = vpack.c.b16 %v3721, %v3720
      %v3748 = vpack.c.b16 %v3723, %v3722
      %v3749 = vpack.c.b16 %v3725, %v3724
      %3774 = vmatprep.subr.bf16.mxu0 0
      %3775 = vmatpush1.bf16.msra.mxu0 %v3726
      %3776 = vmatprep.subr.bf16.mxu0 0
      %3777 = vmatpush1.bf16.msra.mxu0 %v3727
      %3778 = vmatprep.subr.bf16.mxu0 0
      %3779 = vmatpush1.bf16.msra.mxu0 %v3728
      %3780 = vmatprep.subr.bf16.mxu0 0
      %3781 = vmatpush1.bf16.msra.mxu0 %v3729
      %3782 = vmatprep.subr.bf16.mxu0 0
      %3783 = vmatpush1.bf16.msra.mxu0 %v3730
      %3784 = vmatprep.subr.bf16.mxu0 0
      %3785 = vmatpush1.bf16.msra.mxu0 %v3731
      %3786 = vmatprep.subr.bf16.mxu0 0
      %3787 = vmatpush1.bf16.msra.mxu0 %v3732
      %3788 = vmatprep.subr.bf16.mxu0 0
      %3789 = vmatpush1.bf16.msra.mxu0 %v3733
      %3790 = vmatprep.subr.bf16.mxu0 0
      %3791 = vmatpush1.bf16.msra.mxu0 %v3734
      %3792 = vmatprep.subr.bf16.mxu0 0
      %3793 = vmatpush1.bf16.msra.mxu0 %v3735
      %3794 = vmatprep.subr.bf16.mxu0 0
      %3795 = vmatpush1.bf16.msra.mxu0 %v3736
      %3796 = vmatprep.subr.bf16.mxu0 0
      %3797 = vmatpush1.bf16.msra.mxu0 %v3737
      %3798 = vmatprep.subr.bf16.mxu0 0
      %3799 = vmatpush1.bf16.msra.mxu0 %v3738
      %3800 = vmatprep.subr.bf16.mxu0 0
      %3801 = vmatpush1.bf16.msra.mxu0 %v3739
      %3802 = vmatprep.subr.bf16.mxu0 0
      %3803 = vmatpush1.bf16.msra.mxu0 %v3740
      %3804 = vmatprep.subr.bf16.mxu0 0
      %3805 = vmatpush1.bf16.msra.mxu0 %v3741
      %3806 = vmatprep.mubr.bf16.mxu0 %v3528
      %3807 = vmatmul.mubr.bf16.gmra.mrb[0].mxu0 %v2060
      %v3808 = vpop.f32.mrb[0].mxu0
      %v3809 = vadd.f32 %v3386, %v3808
      %v3810 = vpop.f32.mrb[0].mxu0
      %v3811 = vpop.f32.mrb[0].mxu0
      %v3812 = vadd.f32 %v3389, %v3811
      %v3813 = vpop.f32.mrb[0].mxu0
      %3814 = vmatprep.mubr.bf16.mxu0 %v3531
      %3815 = vmatmul.mubr.bf16.gmra.mrb[0].mxu0 %v3530
      %v3816 = vpop.f32.mrb[0].mxu0
      %v3817 = vadd.f32 %v3394, %v3816
      %v3818 = vpop.f32.mrb[0].mxu0
      %v3819 = vpop.f32.mrb[0].mxu0
      %v3820 = vadd.f32 %v3397, %v3819
      %v3821 = vpop.f32.mrb[0].mxu0
      %3822 = vmatprep.mubr.bf16.mxu0 %v3534
      %3823 = vmatmul.mubr.bf16.gmra.mrb[0].mxu0 %v3533
      %v3824 = vpop.f32.mrb[0].mxu0
      %v3825 = vadd.f32 %v3402, %v3824
      %v3826 = vpop.f32.mrb[0].mxu0
      %v3827 = vpop.f32.mrb[0].mxu0
      %v3828 = vadd.f32 %v3405, %v3827
      %v3829 = vpop.f32.mrb[0].mxu0
      %3830 = vmatprep.mubr.bf16.mxu0 %v3536
      %3831 = vmatmul.mubr.bf16.gmra.mrb[0].mxu0 %v2064
      %v3832 = vpop.f32.mrb[0].mxu0
      %v3833 = vadd.f32 %v3410, %v3832
      %v3834 = vpop.f32.mrb[0].mxu0
      %v3835 = vpop.f32.mrb[0].mxu0
      %v3836 = vadd.f32 %v3413, %v3835
      %v3837 = vpop.f32.mrb[0].mxu0
      %3838 = vmatprep.mubr.bf16.mxu0 %v3539
      %3839 = vmatmul.mubr.bf16.gmra.mrb[0].mxu0 %v3538
      %v3840 = vpop.f32.mrb[0].mxu0
      %v3841 = vadd.f32 %v3418, %v3840
      %v3842 = vpop.f32.mrb[0].mxu0
      %v3843 = vpop.f32.mrb[0].mxu0
      %v3844 = vadd.f32 %v3421, %v3843
      %v3845 = vpop.f32.mrb[0].mxu0
      %3846 = vmatprep.mubr.bf16.mxu0 %v3542
      %3847 = vmatmul.mubr.bf16.gmra.mrb[0].mxu0 %v3541
      %v3848 = vpop.f32.mrb[0].mxu0
      %v3849 = vadd.f32 %v3426, %v3848
      %v3850 = vpop.f32.mrb[0].mxu0
      %v3851 = vpop.f32.mrb[0].mxu0
      %v3852 = vadd.f32 %v3429, %v3851
      %v3853 = vpop.f32.mrb[0].mxu0
      %3854 = vmatprep.mubr.bf16.mxu0 %v3544
      %3855 = vmatmul.mubr.bf16.gmra.mrb[0].mxu0 %v2068
      %v3856 = vpop.f32.mrb[0].mxu0
      %v3857 = vadd.f32 %v3434, %v3856
      %v3858 = vpop.f32.mrb[0].mxu0
      %v3859 = vpop.f32.mrb[0].mxu0
      %v3860 = vadd.f32 %v3437, %v3859
      %v3861 = vpop.f32.mrb[0].mxu0
      %3862 = vmatprep.mubr.bf16.mxu0 %v3547
      %3863 = vmatmul.mubr.bf16.gmra.mrb[0].mxu0 %v3546
      %v3864 = vpop.f32.mrb[0].mxu0
      %v3865 = vadd.f32 %v3442, %v3864
      %v3866 = vpop.f32.mrb[0].mxu0
      %v3867 = vpop.f32.mrb[0].mxu0
      %v3868 = vadd.f32 %v3445, %v3867
      %v3869 = vpop.f32.mrb[0].mxu0
      %3870 = vmatprep.mubr.bf16.mxu0 %v3550
      %3871 = vmatmul.mubr.bf16.gmra.mrb[0].mxu0 %v3549
      %v3872 = vpop.f32.mrb[0].mxu0
      %v3873 = vadd.f32 %v3450, %v3872
      %v3874 = vpop.f32.mrb[0].mxu0
      %v3875 = vpop.f32.mrb[0].mxu0
      %v3876 = vadd.f32 %v3453, %v3875
      %v3877 = vpop.f32.mrb[0].mxu0
      %3878 = vmatprep.mubr.bf16.mxu0 %v3552
      %3879 = vmatmul.mubr.bf16.gmra.mrb[0].mxu0 %v2072
      %v3880 = vpop.f32.mrb[0].mxu0
      %v3881 = vadd.f32 %v3458, %v3880
      %v3882 = vpop.f32.mrb[0].mxu0
      %v3883 = vpop.f32.mrb[0].mxu0
      %v3884 = vadd.f32 %v3461, %v3883
      %v3885 = vpop.f32.mrb[0].mxu0
      %3886 = vmatprep.mubr.bf16.mxu0 %v3555
      %3887 = vmatmul.mubr.bf16.gmra.mrb[0].mxu0 %v3554
      %v3888 = vpop.f32.mrb[0].mxu0
      %v3889 = vadd.f32 %v3466, %v3888
      %v3890 = vpop.f32.mrb[0].mxu0
      %v3891 = vpop.f32.mrb[0].mxu0
      %v3892 = vadd.f32 %v3469, %v3891
      %v3893 = vpop.f32.mrb[0].mxu0
      %3894 = vmatprep.mubr.bf16.mxu0 %v3558
      %3895 = vmatmul.mubr.bf16.gmra.mrb[0].mxu0 %v3557
      %v3896 = vpop.f32.mrb[0].mxu0
      %v3897 = vadd.f32 %v3474, %v3896
      %v3898 = vpop.f32.mrb[0].mxu0
      %v3899 = vpop.f32.mrb[0].mxu0
      %v3900 = vadd.f32 %v3477, %v3899
      %v3901 = vpop.f32.mrb[0].mxu0
      %3902 = vmatprep.mubr.bf16.mxu0 %v3560
      %3903 = vmatmul.mubr.bf16.gmra.mrb[0].mxu0 %v2076
      %v3904 = vpop.f32.mrb[0].mxu0
      %v3905 = vadd.f32 %v3482, %v3904
      %v3906 = vpop.f32.mrb[0].mxu0
      %v3907 = vpop.f32.mrb[0].mxu0
      %v3908 = vadd.f32 %v3485, %v3907
      %v3909 = vpop.f32.mrb[0].mxu0
      %3910 = vmatprep.mubr.bf16.mxu0 %v3563
      %3911 = vmatmul.mubr.bf16.gmra.mrb[0].mxu0 %v3562
      %v3912 = vpop.f32.mrb[0].mxu0
      %v3913 = vadd.f32 %v3490, %v3912
      %v3914 = vpop.f32.mrb[0].mxu0
      %v3915 = vpop.f32.mrb[0].mxu0
      %v3916 = vadd.f32 %v3493, %v3915
      %v3917 = vpop.f32.mrb[0].mxu0
      %3918 = vmatprep.mubr.bf16.mxu0 %v3566
      %3919 = vmatmul.mubr.bf16.gmra.mrb[0].mxu0 %v3565
      %v3920 = vpop.f32.mrb[0].mxu0
      %v3921 = vadd.f32 %v3498, %v3920
      %v3922 = vpop.f32.mrb[0].mxu0
      %v3923 = vpop.f32.mrb[0].mxu0
      %v3924 = vadd.f32 %v3501, %v3923
      %v3925 = vpop.f32.mrb[0].mxu0
      %3926 = vmatprep.mubr.bf16.mxu0 %v3568
      %3927 = vmatmul.mubr.bf16.gmra.mrb[0].mxu0 %v2080
      %v3928 = vpop.f32.mrb[0].mxu0
      %v3929 = vadd.f32 %v3506, %v3928
      %v3930 = vpop.f32.mrb[0].mxu0
      %v3931 = vpop.f32.mrb[0].mxu0
      %v3932 = vadd.f32 %v3509, %v3931
      %v3933 = vpop.f32.mrb[0].mxu0
      %3934 = vmatprep.mubr.bf16.mxu0 %v3571
      %3935 = vmatmul.mubr.bf16.gmra.mrb[0].mxu0 %v3570
      %v3936 = vpop.f32.mrb[0].mxu0
      %v3937 = vadd.f32 %v3514, %v3936
      %v3938 = vpop.f32.mrb[0].mxu0
      %v3939 = vpop.f32.mrb[0].mxu0
      %v3940 = vadd.f32 %v3517, %v3939
      %v3941 = vpop.f32.mrb[0].mxu0
      %3942 = vmatprep.mubr.bf16.mxu0 %v3574
      %3943 = vmatmul.mubr.bf16.gmra.mrb[0].mxu0 %v3573
      %v3944 = vpop.f32.mrb[0].mxu0
      %v3945 = vadd.f32 %v3522, %v3944
      %v3946 = vpop.f32.mrb[0].mxu0
      %v3947 = vpop.f32.mrb[0].mxu0
      %v3948 = vadd.f32 %v3525, %v3947
      %v3949 = vpop.f32.mrb[0].mxu0
      %3950 = vdwg.mxu0
      %3951 = vmatprep.subr.bf16.mxu0 0
      %3952 = vmatpush1.bf16.msra.mxu0 %v3742
      %3953 = vmatprep.subr.bf16.mxu0 0
      %3954 = vmatpush1.bf16.msra.mxu0 %v3743
      %3955 = vmatprep.subr.bf16.mxu0 0
      %3956 = vmatpush1.bf16.msra.mxu0 %v3744
      %3957 = vmatprep.subr.bf16.mxu0 0
      %3958 = vmatpush1.bf16.msra.mxu0 %v3745
      %3959 = vmatprep.subr.bf16.mxu0 0
      %3960 = vmatpush1.bf16.msra.mxu0 %v3746
      %3961 = vmatprep.subr.bf16.mxu0 0
      %3962 = vmatpush1.bf16.msra.mxu0 %v3747
      %3963 = vmatprep.subr.bf16.mxu0 0
      %3964 = vmatpush1.bf16.msra.mxu0 %v3748
      %3965 = vmatprep.subr.bf16.mxu0 0
      %3966 = vmatpush1.bf16.msra.mxu0 %v3749
      %3967 = vmatprep.subr.bf16.mxu0 0
      %3968 = vmatpush1.bf16.msra.mxu0 0
      %3969 = vmatprep.subr.bf16.mxu0 0
      %3970 = vmatpush1.bf16.msra.mxu0 0
      %3971 = vmatprep.subr.bf16.mxu0 0
      %3972 = vmatpush1.bf16.msra.mxu0 0
      %3973 = vmatprep.subr.bf16.mxu0 0
      %3974 = vmatpush1.bf16.msra.mxu0 0
      %3975 = vmatprep.subr.bf16.mxu0 0
      %3976 = vmatpush1.bf16.msra.mxu0 0
      %3977 = vmatprep.subr.bf16.mxu0 0
      %3978 = vmatpush1.bf16.msra.mxu0 0
      %3979 = vmatprep.subr.bf16.mxu0 0
      %3980 = vmatpush1.bf16.msra.mxu0 0
      %3981 = vmatprep.subr.bf16.mxu0 0
      %3982 = vmatpush1.bf16.msra.mxu0 0
      %3983 = vmatprep.mubr.bf16.mxu0 0
      %3984 = vmatmul.mubr.bf16.gmra.mrb[0].mxu0 %v3529
      %v3985 = vpop.f32.mrb[0].mxu0
      %v3986 = vadd.f32 %v3809, %v3985
      %v3987 = vpop.f32.mrb[0].mxu0
      %v3988 = vpop.f32.mrb[0].mxu0
      %v3989 = vadd.f32 %v3812, %v3988
      %v3990 = vpop.f32.mrb[0].mxu0
      %3991 = vmatprep.mubr.bf16.mxu0 0
      %3992 = vmatmul.mubr.bf16.gmra.mrb[0].mxu0 %v3532
      %v3993 = vpop.f32.mrb[0].mxu0
      %v3994 = vadd.f32 %v3817, %v3993
      %v3995 = vpop.f32.mrb[0].mxu0
      %v3996 = vpop.f32.mrb[0].mxu0
      %v3997 = vadd.f32 %v3820, %v3996
      %v3998 = vpop.f32.mrb[0].mxu0
      %3999 = vmatprep.mubr.bf16.mxu0 0
      %4000 = vmatmul.mubr.bf16.gmra.mrb[0].mxu0 %v3535
      %v4001 = vpop.f32.mrb[0].mxu0
      %v4002 = vadd.f32 %v3825, %v4001
      %v4003 = vpop.f32.mrb[0].mxu0
      %v4004 = vpop.f32.mrb[0].mxu0
      %v4005 = vadd.f32 %v3828, %v4004
      %v4006 = vpop.f32.mrb[0].mxu0
      %4007 = vmatprep.mubr.bf16.mxu0 0
      %4008 = vmatmul.mubr.bf16.gmra.mrb[0].mxu0 %v3537
      %v4009 = vpop.f32.mrb[0].mxu0
      %v4010 = vadd.f32 %v3833, %v4009
      %v4011 = vpop.f32.mrb[0].mxu0
      %v4012 = vpop.f32.mrb[0].mxu0
      %v4013 = vadd.f32 %v3836, %v4012
      %v4014 = vpop.f32.mrb[0].mxu0
      %4015 = vmatprep.mubr.bf16.mxu0 0
      %4016 = vmatmul.mubr.bf16.gmra.mrb[0].mxu0 %v3540
      %v4017 = vpop.f32.mrb[0].mxu0
      %v4018 = vadd.f32 %v3841, %v4017
      %v4019 = vpop.f32.mrb[0].mxu0
      %v4020 = vpop.f32.mrb[0].mxu0
      %v4021 = vadd.f32 %v3844, %v4020
      %v4022 = vpop.f32.mrb[0].mxu0
      %4023 = vmatprep.mubr.bf16.mxu0 0
      %4024 = vmatmul.mubr.bf16.gmra.mrb[0].mxu0 %v3543
      %v4025 = vpop.f32.mrb[0].mxu0
      %v4026 = vadd.f32 %v3849, %v4025
      %v4027 = vpop.f32.mrb[0].mxu0
      %v4028 = vpop.f32.mrb[0].mxu0
      %v4029 = vadd.f32 %v3852, %v4028
      %v4030 = vpop.f32.mrb[0].mxu0
      %4031 = vmatprep.mubr.bf16.mxu0 0
      %4032 = vmatmul.mubr.bf16.gmra.mrb[0].mxu0 %v3545
      %v4033 = vpop.f32.mrb[0].mxu0
      %v4034 = vadd.f32 %v3857, %v4033
      %v4035 = vpop.f32.mrb[0].mxu0
      %v4036 = vpop.f32.mrb[0].mxu0
      %v4037 = vadd.f32 %v3860, %v4036
      %v4038 = vpop.f32.mrb[0].mxu0
      %4039 = vmatprep.mubr.bf16.mxu0 0
      %4040 = vmatmul.mubr.bf16.gmra.mrb[0].mxu0 %v3548
      %v4041 = vpop.f32.mrb[0].mxu0
      %v4042 = vadd.f32 %v3865, %v4041
      %v4043 = vpop.f32.mrb[0].mxu0
      %v4044 = vpop.f32.mrb[0].mxu0
      %v4045 = vadd.f32 %v3868, %v4044
      %v4046 = vpop.f32.mrb[0].mxu0
      %4047 = vmatprep.mubr.bf16.mxu0 0
      %4048 = vmatmul.mubr.bf16.gmra.mrb[0].mxu0 %v3551
      %v4049 = vpop.f32.mrb[0].mxu0
      %v4050 = vadd.f32 %v3873, %v4049
      %v4051 = vpop.f32.mrb[0].mxu0
      %v4052 = vpop.f32.mrb[0].mxu0
      %v4053 = vadd.f32 %v3876, %v4052
      %v4054 = vpop.f32.mrb[0].mxu0
      %4055 = vmatprep.mubr.bf16.mxu0 0
      %4056 = vmatmul.mubr.bf16.gmra.mrb[0].mxu0 %v3553
      %v4057 = vpop.f32.mrb[0].mxu0
      %v4058 = vadd.f32 %v3881, %v4057
      %v4059 = vpop.f32.mrb[0].mxu0
      %v4060 = vpop.f32.mrb[0].mxu0
      %v4061 = vadd.f32 %v3884, %v4060
      %v4062 = vpop.f32.mrb[0].mxu0
      %4063 = vmatprep.mubr.bf16.mxu0 0
      %4064 = vmatmul.mubr.bf16.gmra.mrb[0].mxu0 %v3556
      %v4065 = vpop.f32.mrb[0].mxu0
      %v4066 = vadd.f32 %v3889, %v4065
      %v4067 = vpop.f32.mrb[0].mxu0
      %v4068 = vpop.f32.mrb[0].mxu0
      %v4069 = vadd.f32 %v3892, %v4068
      %v4070 = vpop.f32.mrb[0].mxu0
      %4071 = vmatprep.mubr.bf16.mxu0 0
      %4072 = vmatmul.mubr.bf16.gmra.mrb[0].mxu0 %v3559
      %v4073 = vpop.f32.mrb[0].mxu0
      %v4074 = vadd.f32 %v3897, %v4073
      %v4075 = vpop.f32.mrb[0].mxu0
      %v4076 = vpop.f32.mrb[0].mxu0
      %v4077 = vadd.f32 %v3900, %v4076
      %v4078 = vpop.f32.mrb[0].mxu0
      %4079 = vmatprep.mubr.bf16.mxu0 0
      %4080 = vmatmul.mubr.bf16.gmra.mrb[0].mxu0 %v3561
      %v4081 = vpop.f32.mrb[0].mxu0
      %v4082 = vadd.f32 %v3905, %v4081
      %v4083 = vpop.f32.mrb[0].mxu0
      %v4084 = vpop.f32.mrb[0].mxu0
      %v4085 = vadd.f32 %v3908, %v4084
      %v4086 = vpop.f32.mrb[0].mxu0
      %4087 = vmatprep.mubr.bf16.mxu0 0
      %4088 = vmatmul.mubr.bf16.gmra.mrb[0].mxu0 %v3564
      %v4089 = vpop.f32.mrb[0].mxu0
      %v4090 = vadd.f32 %v3913, %v4089
      %v4091 = vpop.f32.mrb[0].mxu0
      %v4092 = vpop.f32.mrb[0].mxu0
      %v4093 = vadd.f32 %v3916, %v4092
      %v4094 = vpop.f32.mrb[0].mxu0
      %4095 = vmatprep.mubr.bf16.mxu0 0
      %4096 = vmatmul.mubr.bf16.gmra.mrb[0].mxu0 %v3567
      %v4097 = vpop.f32.mrb[0].mxu0
      %v4098 = vadd.f32 %v3921, %v4097
      %v4099 = vpop.f32.mrb[0].mxu0
      %v4100 = vpop.f32.mrb[0].mxu0
      %v4101 = vadd.f32 %v3924, %v4100
      %v4102 = vpop.f32.mrb[0].mxu0
      %4103 = vmatprep.mubr.bf16.mxu0 0
      %4104 = vmatmul.mubr.bf16.gmra.mrb[0].mxu0 %v3569
      %v4105 = vpop.f32.mrb[0].mxu0
      %v4106 = vadd.f32 %v3929, %v4105
      %v4107 = vpop.f32.mrb[0].mxu0
      %v4108 = vpop.f32.mrb[0].mxu0
      %v4109 = vadd.f32 %v3932, %v4108
      %v4110 = vpop.f32.mrb[0].mxu0
      %4111 = vmatprep.mubr.bf16.mxu0 0
      %4112 = vmatmul.mubr.bf16.gmra.mrb[0].mxu0 %v3572
      %v4113 = vpop.f32.mrb[0].mxu0
      %v4114 = vadd.f32 %v3937, %v4113
      %v4115 = vpop.f32.mrb[0].mxu0
      %v4116 = vpop.f32.mrb[0].mxu0
      %v4117 = vadd.f32 %v3940, %v4116
      %v4118 = vpop.f32.mrb[0].mxu0
      %4119 = vmatprep.mubr.bf16.mxu0 0
      %4120 = vmatmul.mubr.bf16.gmra.mrb[0].mxu0 %v3575
      %v4121 = vpop.f32.mrb[0].mxu0
      %v4122 = vadd.f32 %v3945, %v4121
      %v4123 = vpop.f32.mrb[0].mxu0
      %v4124 = vpop.f32.mrb[0].mxu0
      %v4125 = vadd.f32 %v3948, %v4124
      %v4126 = vpop.f32.mrb[0].mxu0
      %4127 = vdwg.mxu0
      %s4128 = scalar_lea.vmem [#allocation2], 32
      %v4129 = vld [vmem:[%s4128] sm:$0xf]
      %v4130 = vld [vmem:[%s4128 + $0x4] sm:$0xf]
      %v4131 = vld [vmem:[%s4128 + $0x8] sm:$0xf]
      %v4132 = vld [vmem:[%s4128 + $0xc] sm:$0x1]
      %v4133 = vld [vmem:[%s4128 + $0x10] sm:$0xf]
      %v4134 = vld [vmem:[%s4128 + $0x14] sm:$0xf]
      %v4135 = vld [vmem:[%s4128 + $0x18] sm:$0xf]
      %v4136 = vld [vmem:[%s4128 + $0x1c] sm:$0x1]
      %v4137 = vld [vmem:[%s4128 + $0x20] sm:$0xf]
      %v4138 = vld [vmem:[%s4128 + $0x24] sm:$0xf]
      %v4139 = vld [vmem:[%s4128 + $0x28] sm:$0xf]
      %v4140 = vld [vmem:[%s4128 + $0x2c] sm:$0x1]
      %v4141 = vld [vmem:[%s4128 + $0x30] sm:$0xf]
      %v4142 = vld [vmem:[%s4128 + $0x34] sm:$0xf]
      %v4143 = vld [vmem:[%s4128 + $0x38] sm:$0xf]
      %v4144 = vld [vmem:[%s4128 + $0x3c] sm:$0x1]
      %v4145 = vld [vmem:[%s4128 + $0x40] sm:$0xf]
      %v4146 = vld [vmem:[%s4128 + $0x44] sm:$0xf]
      %v4147 = vld [vmem:[%s4128 + $0x48] sm:$0xf]
      %v4148 = vld [vmem:[%s4128 + $0x4c] sm:$0x1]
      %v4149 = vld [vmem:[%s4128 + $0x50] sm:$0xf]
      %v4150 = vld [vmem:[%s4128 + $0x54] sm:$0xf]
      %v4151 = vld [vmem:[%s4128 + $0x58] sm:$0xf]
      %v4152 = vld [vmem:[%s4128 + $0x5c] sm:$0x1]
      %v4153 = vld [vmem:[%s4128 + $0x60] sm:$0xf]
      %v4154 = vld [vmem:[%s4128 + $0x64] sm:$0xf]
      %v4155 = vld [vmem:[%s4128 + $0x68] sm:$0xf]
      %v4156 = vld [vmem:[%s4128 + $0x6c] sm:$0x1]
      %v4157 = vld [vmem:[%s4128 + $0x70] sm:$0xf]
      %v4158 = vld [vmem:[%s4128 + $0x74] sm:$0xf]
      %v4159 = vld [vmem:[%s4128 + $0x78] sm:$0xf]
      %v4160 = vld [vmem:[%s4128 + $0x7c] sm:$0x1]
      %v4161 = vld [vmem:[%s4128 + $0x80] sm:$0xf]
      %v4162 = vld [vmem:[%s4128 + $0x84] sm:$0xf]
      %v4163 = vld [vmem:[%s4128 + $0x88] sm:$0xf]
      %v4164 = vld [vmem:[%s4128 + $0x8c] sm:$0x1]
      %v4165 = vld [vmem:[%s4128 + $0x90] sm:$0xf]
      %v4166 = vld [vmem:[%s4128 + $0x94] sm:$0xf]
      %v4167 = vld [vmem:[%s4128 + $0x98] sm:$0xf]
      %v4168 = vld [vmem:[%s4128 + $0x9c] sm:$0x1]
      %v4169 = vld [vmem:[%s4128 + $0xa0] sm:$0xf]
      %v4170 = vld [vmem:[%s4128 + $0xa4] sm:$0xf]
      %v4171 = vld [vmem:[%s4128 + $0xa8] sm:$0xf]
      %v4172 = vld [vmem:[%s4128 + $0xac] sm:$0x1]
      %v4173 = vld [vmem:[%s4128 + $0xb0] sm:$0xf]
      %v4174 = vld [vmem:[%s4128 + $0xb4] sm:$0xf]
      %v4175 = vld [vmem:[%s4128 + $0xb8] sm:$0xf]
      %v4176 = vld [vmem:[%s4128 + $0xbc] sm:$0x1]
      %v4213 = vunpack.c.l.b16 %v4129
      %v4214 = vunpack.c.l.b16 %v4130
      %v4215 = vunpack.c.l.b16 %v4131
      %v4216 = vunpack.c.l.b16 %v4133
      %v4217 = vunpack.c.l.b16 %v4134
      %v4218 = vunpack.c.l.b16 %v4135
      %v4219 = vunpack.c.l.b16 %v4137
      %v4220 = vunpack.c.l.b16 %v4138
      %v4221 = vunpack.c.l.b16 %v4139
      %v4222 = vunpack.c.l.b16 %v4141
      %v4223 = vunpack.c.l.b16 %v4142
      %v4224 = vunpack.c.l.b16 %v4143
      %v4225 = vunpack.c.l.b16 %v4145
      %v4226 = vunpack.c.l.b16 %v4146
      %v4227 = vunpack.c.l.b16 %v4147
      %v4228 = vunpack.c.l.b16 %v4149
      %v4229 = vunpack.c.l.b16 %v4150
      %v4230 = vunpack.c.l.b16 %v4151
      %v4231 = vunpack.c.l.b16 %v4153
      %v4232 = vunpack.c.l.b16 %v4154
      %v4233 = vunpack.c.l.b16 %v4155
      %v4234 = vunpack.c.l.b16 %v4157
      %v4235 = vunpack.c.l.b16 %v4158
      %v4236 = vunpack.c.l.b16 %v4159
      %v4237 = vunpack.c.l.b16 %v4161
      %v4238 = vunpack.c.l.b16 %v4162
      %v4239 = vunpack.c.l.b16 %v4163
      %v4240 = vunpack.c.l.b16 %v4165
      %v4241 = vunpack.c.l.b16 %v4166
      %v4242 = vunpack.c.l.b16 %v4167
      %v4243 = vunpack.c.l.b16 %v4169
      %v4244 = vunpack.c.l.b16 %v4170
      %v4245 = vunpack.c.l.b16 %v4171
      %v4246 = vunpack.c.l.b16 %v4173
      %v4247 = vunpack.c.l.b16 %v4174
      %v4248 = vunpack.c.l.b16 %v4175
      %v4261 = vunpack.c.l.b16 %v4132
      %v4262 = vunpack.c.l.b16 %v4136
      %v4263 = vunpack.c.l.b16 %v4140
      %v4264 = vunpack.c.l.b16 %v4144
      %v4265 = vunpack.c.l.b16 %v4148
      %v4266 = vunpack.c.l.b16 %v4152
      %v4267 = vunpack.c.l.b16 %v4156
      %v4268 = vunpack.c.l.b16 %v4160
      %v4269 = vunpack.c.l.b16 %v4164
      %v4270 = vunpack.c.l.b16 %v4168
      %v4271 = vunpack.c.l.b16 %v4172
      %v4272 = vunpack.c.l.b16 %v4176
      %v4273 = vpack.c.b16 %v4214, %v4213
      %v4274 = vpack.c.b16 %v4261, %v4215
      %v4275 = vpack.c.b16 %v4217, %v4216
      %v4276 = vpack.c.b16 %v4262, %v4218
      %v4277 = vpack.c.b16 %v4220, %v4219
      %v4278 = vpack.c.b16 %v4263, %v4221
      %v4279 = vpack.c.b16 %v4223, %v4222
      %v4280 = vpack.c.b16 %v4264, %v4224
      %v4281 = vpack.c.b16 %v4226, %v4225
      %v4282 = vpack.c.b16 %v4265, %v4227
      %v4283 = vpack.c.b16 %v4229, %v4228
      %v4284 = vpack.c.b16 %v4266, %v4230
      %v4285 = vpack.c.b16 %v4232, %v4231
      %v4286 = vpack.c.b16 %v4267, %v4233
      %v4287 = vpack.c.b16 %v4235, %v4234
      %v4288 = vpack.c.b16 %v4268, %v4236
      %v4289 = vpack.c.b16 %v4238, %v4237
      %v4290 = vpack.c.b16 %v4269, %v4239
      %v4291 = vpack.c.b16 %v4241, %v4240
      %v4292 = vpack.c.b16 %v4270, %v4242
      %v4293 = vpack.c.b16 %v4244, %v4243
      %v4294 = vpack.c.b16 %v4271, %v4245
      %v4295 = vpack.c.b16 %v4247, %v4246
      %v4296 = vpack.c.b16 %v4272, %v4248
      %v4298 = vshrl.u32 %v4273, 16
      %v4300 = vshll.u32 %v4273, 16
      %v4302 = vrot.slane %v4300, 1
      %v4303 = vor.u32 %v4298, %v4302
      %v4305 = vshll.u32 %v4274, 16
      %v4307 = vrot.slane %v4305, 1
      %v4308 = vsel %vm2084, %v4303, %v4307
      %v4309 = vshrl.u32 %v4274, 16
      %v4311 = vor.u32 %v4309, %v4307
      %v4313 = vshrl.u32 %v4275, 16
      %v4315 = vshll.u32 %v4275, 16
      %v4317 = vrot.slane %v4315, 1
      %v4318 = vor.u32 %v4313, %v4317
      %v4320 = vshll.u32 %v4276, 16
      %v4322 = vrot.slane %v4320, 1
      %v4323 = vsel %vm2084, %v4318, %v4322
      %v4324 = vshrl.u32 %v4276, 16
      %v4326 = vor.u32 %v4324, %v4322
      %v4328 = vshrl.u32 %v4277, 16
      %v4330 = vshll.u32 %v4277, 16
      %v4332 = vrot.slane %v4330, 1
      %v4333 = vor.u32 %v4328, %v4332
      %v4335 = vshll.u32 %v4278, 16
      %v4337 = vrot.slane %v4335, 1
      %v4338 = vsel %vm2084, %v4333, %v4337
      %v4339 = vshrl.u32 %v4278, 16
      %v4341 = vor.u32 %v4339, %v4337
      %v4343 = vshrl.u32 %v4279, 16
      %v4345 = vshll.u32 %v4279, 16
      %v4347 = vrot.slane %v4345, 1
      %v4348 = vor.u32 %v4343, %v4347
      %v4350 = vshll.u32 %v4280, 16
      %v4352 = vrot.slane %v4350, 1
      %v4353 = vsel %vm2084, %v4348, %v4352
      %v4354 = vshrl.u32 %v4280, 16
      %v4356 = vor.u32 %v4354, %v4352
      %v4358 = vshrl.u32 %v4281, 16
      %v4360 = vshll.u32 %v4281, 16
      %v4362 = vrot.slane %v4360, 1
      %v4363 = vor.u32 %v4358, %v4362
      %v4365 = vshll.u32 %v4282, 16
      %v4367 = vrot.slane %v4365, 1
      %v4368 = vsel %vm2084, %v4363, %v4367
      %v4369 = vshrl.u32 %v4282, 16
      %v4371 = vor.u32 %v4369, %v4367
      %v4373 = vshrl.u32 %v4283, 16
      %v4375 = vshll.u32 %v4283, 16
      %v4377 = vrot.slane %v4375, 1
      %v4378 = vor.u32 %v4373, %v4377
      %v4380 = vshll.u32 %v4284, 16
      %v4382 = vrot.slane %v4380, 1
      %v4383 = vsel %vm2084, %v4378, %v4382
      %v4384 = vshrl.u32 %v4284, 16
      %v4386 = vor.u32 %v4384, %v4382
      %v4388 = vshrl.u32 %v4285, 16
      %v4390 = vshll.u32 %v4285, 16
      %v4392 = vrot.slane %v4390, 1
      %v4393 = vor.u32 %v4388, %v4392
      %v4395 = vshll.u32 %v4286, 16
      %v4397 = vrot.slane %v4395, 1
      %v4398 = vsel %vm2084, %v4393, %v4397
      %v4399 = vshrl.u32 %v4286, 16
      %v4401 = vor.u32 %v4399, %v4397
      %v4403 = vshrl.u32 %v4287, 16
      %v4405 = vshll.u32 %v4287, 16
      %v4407 = vrot.slane %v4405, 1
      %v4408 = vor.u32 %v4403, %v4407
      %v4410 = vshll.u32 %v4288, 16
      %v4412 = vrot.slane %v4410, 1
      %v4413 = vsel %vm2084, %v4408, %v4412
      %v4414 = vshrl.u32 %v4288, 16
      %v4416 = vor.u32 %v4414, %v4412
      %v4418 = vshrl.u32 %v4289, 16
      %v4420 = vshll.u32 %v4289, 16
      %v4422 = vrot.slane %v4420, 1
      %v4423 = vor.u32 %v4418, %v4422
      %v4425 = vshll.u32 %v4290, 16
      %v4427 = vrot.slane %v4425, 1
      %v4428 = vsel %vm2084, %v4423, %v4427
      %v4429 = vshrl.u32 %v4290, 16
      %v4431 = vor.u32 %v4429, %v4427
      %v4433 = vshrl.u32 %v4291, 16
      %v4435 = vshll.u32 %v4291, 16
      %v4437 = vrot.slane %v4435, 1
      %v4438 = vor.u32 %v4433, %v4437
      %v4440 = vshll.u32 %v4292, 16
      %v4442 = vrot.slane %v4440, 1
      %v4443 = vsel %vm2084, %v4438, %v4442
      %v4444 = vshrl.u32 %v4292, 16
      %v4446 = vor.u32 %v4444, %v4442
      %v4448 = vshrl.u32 %v4293, 16
      %v4450 = vshll.u32 %v4293, 16
      %v4452 = vrot.slane %v4450, 1
      %v4453 = vor.u32 %v4448, %v4452
      %v4455 = vshll.u32 %v4294, 16
      %v4457 = vrot.slane %v4455, 1
      %v4458 = vsel %vm2084, %v4453, %v4457
      %v4459 = vshrl.u32 %v4294, 16
      %v4461 = vor.u32 %v4459, %v4457
      %v4463 = vshrl.u32 %v4295, 16
      %v4465 = vshll.u32 %v4295, 16
      %v4467 = vrot.slane %v4465, 1
      %v4468 = vor.u32 %v4463, %v4467
      %v4470 = vshll.u32 %v4296, 16
      %v4472 = vrot.slane %v4470, 1
      %v4473 = vsel %vm2084, %v4468, %v4472
      %v4474 = vshrl.u32 %v4296, 16
      %v4476 = vor.u32 %v4474, %v4472
      %v4477 = vrot.slane %v4273, 1
      %v4478 = vrot.slane %v4274, 1
      %v4479 = vsel %vm2265, %v4477, %v4478
      %v4480 = vrot.slane %v4275, 1
      %v4481 = vrot.slane %v4276, 1
      %v4482 = vsel %vm2265, %v4480, %v4481
      %v4483 = vrot.slane %v4277, 1
      %v4484 = vrot.slane %v4278, 1
      %v4485 = vsel %vm2265, %v4483, %v4484
      %v4486 = vrot.slane %v4279, 1
      %v4487 = vrot.slane %v4280, 1
      %v4488 = vsel %vm2265, %v4486, %v4487
      %v4489 = vrot.slane %v4281, 1
      %v4490 = vrot.slane %v4282, 1
      %v4491 = vsel %vm2265, %v4489, %v4490
      %v4492 = vrot.slane %v4283, 1
      %v4493 = vrot.slane %v4284, 1
      %v4494 = vsel %vm2265, %v4492, %v4493
      %v4495 = vrot.slane %v4285, 1
      %v4496 = vrot.slane %v4286, 1
      %v4497 = vsel %vm2265, %v4495, %v4496
      %v4498 = vrot.slane %v4287, 1
      %v4499 = vrot.slane %v4288, 1
      %v4500 = vsel %vm2265, %v4498, %v4499
      %v4501 = vrot.slane %v4289, 1
      %v4502 = vrot.slane %v4290, 1
      %v4503 = vsel %vm2265, %v4501, %v4502
      %v4504 = vrot.slane %v4291, 1
      %v4505 = vrot.slane %v4292, 1
      %v4506 = vsel %vm2265, %v4504, %v4505
      %v4507 = vrot.slane %v4293, 1
      %v4508 = vrot.slane %v4294, 1
      %v4509 = vsel %vm2265, %v4507, %v4508
      %v4510 = vrot.slane %v4295, 1
      %v4511 = vrot.slane %v4296, 1
      %v4512 = vsel %vm2265, %v4510, %v4511
      %v4513 = vunpack.c.l.b16 %v4308
      %v4514 = vunpack.c.l.b16 %v4479
      %v4515 = vunpack.c.h.b16 %v4308
      %v4516 = vunpack.c.h.b16 %v4479
      %v4517 = vunpack.c.l.b16 %v4311
      %v4518 = vunpack.c.l.b16 %v4478
      %v4519 = vunpack.c.l.b16 %v4323
      %v4520 = vunpack.c.l.b16 %v4482
      %v4521 = vunpack.c.h.b16 %v4323
      %v4522 = vunpack.c.h.b16 %v4482
      %v4523 = vunpack.c.l.b16 %v4326
      %v4524 = vunpack.c.l.b16 %v4481
      %v4525 = vunpack.c.l.b16 %v4338
      %v4526 = vunpack.c.l.b16 %v4485
      %v4527 = vunpack.c.h.b16 %v4338
      %v4528 = vunpack.c.h.b16 %v4485
      %v4529 = vunpack.c.l.b16 %v4341
      %v4530 = vunpack.c.l.b16 %v4484
      %v4531 = vunpack.c.l.b16 %v4353
      %v4532 = vunpack.c.l.b16 %v4488
      %v4533 = vunpack.c.h.b16 %v4353
      %v4534 = vunpack.c.h.b16 %v4488
      %v4535 = vunpack.c.l.b16 %v4356
      %v4536 = vunpack.c.l.b16 %v4487
      %v4537 = vunpack.c.l.b16 %v4368
      %v4538 = vunpack.c.l.b16 %v4491
      %v4539 = vunpack.c.h.b16 %v4368
      %v4540 = vunpack.c.h.b16 %v4491
      %v4541 = vunpack.c.l.b16 %v4371
      %v4542 = vunpack.c.l.b16 %v4490
      %v4543 = vunpack.c.l.b16 %v4383
      %v4544 = vunpack.c.l.b16 %v4494
      %v4545 = vunpack.c.h.b16 %v4383
      %v4546 = vunpack.c.h.b16 %v4494
      %v4547 = vunpack.c.l.b16 %v4386
      %v4548 = vunpack.c.l.b16 %v4493
      %v4549 = vunpack.c.l.b16 %v4398
      %v4550 = vunpack.c.l.b16 %v4497
      %v4551 = vunpack.c.h.b16 %v4398
      %v4552 = vunpack.c.h.b16 %v4497
      %v4553 = vunpack.c.l.b16 %v4401
      %v4554 = vunpack.c.l.b16 %v4496
      %v4555 = vunpack.c.l.b16 %v4413
      %v4556 = vunpack.c.l.b16 %v4500
      %v4557 = vunpack.c.h.b16 %v4413
      %v4558 = vunpack.c.h.b16 %v4500
      %v4559 = vunpack.c.l.b16 %v4416
      %v4560 = vunpack.c.l.b16 %v4499
      %v4561 = vunpack.c.l.b16 %v4428
      %v4562 = vunpack.c.l.b16 %v4503
      %v4563 = vunpack.c.h.b16 %v4428
      %v4564 = vunpack.c.h.b16 %v4503
      %v4565 = vunpack.c.l.b16 %v4431
      %v4566 = vunpack.c.l.b16 %v4502
      %v4567 = vunpack.c.l.b16 %v4443
      %v4568 = vunpack.c.l.b16 %v4506
      %v4569 = vunpack.c.h.b16 %v4443
      %v4570 = vunpack.c.h.b16 %v4506
      %v4571 = vunpack.c.l.b16 %v4446
      %v4572 = vunpack.c.l.b16 %v4505
      %v4573 = vunpack.c.l.b16 %v4458
      %v4574 = vunpack.c.l.b16 %v4509
      %v4575 = vunpack.c.h.b16 %v4458
      %v4576 = vunpack.c.h.b16 %v4509
      %v4577 = vunpack.c.l.b16 %v4461
      %v4578 = vunpack.c.l.b16 %v4508
      %v4579 = vunpack.c.l.b16 %v4473
      %v4580 = vunpack.c.l.b16 %v4512
      %v4581 = vunpack.c.h.b16 %v4473
      %v4582 = vunpack.c.h.b16 %v4512
      %v4583 = vunpack.c.l.b16 %v4476
      %v4584 = vunpack.c.l.b16 %v4511
      %s4585 = scalar_lea.vmem %s2, 384
      %v4586 = vld [vmem:[%s4585] sm:$0xf]
      %v4587 = vld [vmem:[%s4585 + $0x4] sm:$0xf]
      %v4588 = vld [vmem:[%s4585 + $0x8] sm:$0xf]
      %v4589 = vld [vmem:[%s4585 + $0xc] sm:$0xf]
      %v4590 = vld [vmem:[%s4585 + $0x10] sm:$0xf]
      %v4591 = vld [vmem:[%s4585 + $0x14] sm:$0xf]
      %v4592 = vld [vmem:[%s4585 + $0x18] sm:$0xf]
      %v4593 = vld [vmem:[%s4585 + $0x1c] sm:$0xf]
      %v4594 = vld [vmem:[%s4585 + $0x20] sm:$0xf]
      %v4595 = vld [vmem:[%s4585 + $0x24] sm:$0xf]
      %v4596 = vld [vmem:[%s4585 + $0x28] sm:$0xf]
      %v4597 = vld [vmem:[%s4585 + $0x2c] sm:$0xf]
      %v4598 = vld [vmem:[%s4585 + $0x30] sm:$0xf]
      %v4599 = vld [vmem:[%s4585 + $0x34] sm:$0xf]
      %v4600 = vld [vmem:[%s4585 + $0x38] sm:$0xf]
      %v4601 = vld [vmem:[%s4585 + $0x3c] sm:$0xf]
      %v4602 = vld [vmem:[%s4585 + $0x40] sm:$0xf]
      %v4603 = vld [vmem:[%s4585 + $0x44] sm:$0xf]
      %v4604 = vld [vmem:[%s4585 + $0x48] sm:$0xf]
      %v4605 = vld [vmem:[%s4585 + $0x4c] sm:$0xf]
      %v4606 = vld [vmem:[%s4585 + $0x50] sm:$0xf]
      %v4607 = vld [vmem:[%s4585 + $0x54] sm:$0xf]
      %v4608 = vld [vmem:[%s4585 + $0x58] sm:$0xf]
      %v4609 = vld [vmem:[%s4585 + $0x5c] sm:$0xf]
      %v4610 = vld [vmem:[%s4585 + $0x60] sm:$0xf]
      %v4611 = vld [vmem:[%s4585 + $0x64] sm:$0xf]
      %v4612 = vld [vmem:[%s4585 + $0x68] sm:$0xf]
      %v4613 = vld [vmem:[%s4585 + $0x6c] sm:$0xf]
      %v4614 = vld [vmem:[%s4585 + $0x70] sm:$0xf]
      %v4615 = vld [vmem:[%s4585 + $0x74] sm:$0xf]
      %v4616 = vld [vmem:[%s4585 + $0x78] sm:$0xf]
      %v4617 = vld [vmem:[%s4585 + $0x7c] sm:$0xf]
      %v4618 = vld [vmem:[%s4585 + $0x80] sm:$0xf]
      %v4619 = vld [vmem:[%s4585 + $0x84] sm:$0xf]
      %v4620 = vld [vmem:[%s4585 + $0x88] sm:$0xf]
      %v4621 = vld [vmem:[%s4585 + $0x8c] sm:$0xf]
      %v4622 = vld [vmem:[%s4585 + $0x90] sm:$0xf]
      %v4623 = vld [vmem:[%s4585 + $0x94] sm:$0xf]
      %v4624 = vld [vmem:[%s4585 + $0x98] sm:$0xf]
      %v4625 = vld [vmem:[%s4585 + $0x9c] sm:$0xf]
      %v4626 = vld [vmem:[%s4585 + $0xa0] sm:$0xf]
      %v4627 = vld [vmem:[%s4585 + $0xa4] sm:$0xf]
      %v4628 = vld [vmem:[%s4585 + $0xa8] sm:$0xf]
      %v4629 = vld [vmem:[%s4585 + $0xac] sm:$0xf]
      %v4630 = vld [vmem:[%s4585 + $0xb0] sm:$0xf]
      %v4631 = vld [vmem:[%s4585 + $0xb4] sm:$0xf]
      %v4632 = vld [vmem:[%s4585 + $0xb8] sm:$0xf]
      %v4633 = vld [vmem:[%s4585 + $0xbc] sm:$0xf]
      %v4634 = vpack.c.b16 %v4515, %v4513
      %v4635 = vpack.c.b16 %v4516, %v4514
      %v4636 = vpack.c.b16 %v4216, %v4215
      %v4637 = vpack.c.b16 %v4519, %v4517
      %v4638 = vpack.c.b16 %v4520, %v4518
      %v4639 = vpack.c.b16 %v4218, %v4217
      %v4640 = vpack.c.b16 %v4523, %v4521
      %v4641 = vpack.c.b16 %v4524, %v4522
      %v4642 = vpack.c.b16 %v4527, %v4525
      %v4643 = vpack.c.b16 %v4528, %v4526
      %v4644 = vpack.c.b16 %v4222, %v4221
      %v4645 = vpack.c.b16 %v4531, %v4529
      %v4646 = vpack.c.b16 %v4532, %v4530
      %v4647 = vpack.c.b16 %v4224, %v4223
      %v4648 = vpack.c.b16 %v4535, %v4533
      %v4649 = vpack.c.b16 %v4536, %v4534
      %v4650 = vpack.c.b16 %v4539, %v4537
      %v4651 = vpack.c.b16 %v4540, %v4538
      %v4652 = vpack.c.b16 %v4228, %v4227
      %v4653 = vpack.c.b16 %v4543, %v4541
      %v4654 = vpack.c.b16 %v4544, %v4542
      %v4655 = vpack.c.b16 %v4230, %v4229
      %v4656 = vpack.c.b16 %v4547, %v4545
      %v4657 = vpack.c.b16 %v4548, %v4546
      %v4658 = vpack.c.b16 %v4551, %v4549
      %v4659 = vpack.c.b16 %v4552, %v4550
      %v4660 = vpack.c.b16 %v4234, %v4233
      %v4661 = vpack.c.b16 %v4555, %v4553
      %v4662 = vpack.c.b16 %v4556, %v4554
      %v4663 = vpack.c.b16 %v4236, %v4235
      %v4664 = vpack.c.b16 %v4559, %v4557
      %v4665 = vpack.c.b16 %v4560, %v4558
      %v4666 = vpack.c.b16 %v4563, %v4561
      %v4667 = vpack.c.b16 %v4564, %v4562
      %v4668 = vpack.c.b16 %v4240, %v4239
      %v4669 = vpack.c.b16 %v4567, %v4565
      %v4670 = vpack.c.b16 %v4568, %v4566
      %v4671 = vpack.c.b16 %v4242, %v4241
      %v4672 = vpack.c.b16 %v4571, %v4569
      %v4673 = vpack.c.b16 %v4572, %v4570
      %v4674 = vpack.c.b16 %v4575, %v4573
      %v4675 = vpack.c.b16 %v4576, %v4574
      %v4676 = vpack.c.b16 %v4246, %v4245
      %v4677 = vpack.c.b16 %v4579, %v4577
      %v4678 = vpack.c.b16 %v4580, %v4578
      %v4679 = vpack.c.b16 %v4248, %v4247
      %v4680 = vpack.c.b16 %v4583, %v4581
      %v4681 = vpack.c.b16 %v4584, %v4582
      %v4784 = vunpack.c.l.b16 %v4586
      %v4785 = vunpack.c.l.b16 %v4587
      %v4786 = vunpack.c.l.b16 %v4588
      %v4787 = vunpack.c.l.b16 %v4589
      %v4788 = vunpack.c.l.b16 %v4590
      %v4789 = vunpack.c.l.b16 %v4591
      %v4790 = vunpack.c.l.b16 %v4592
      %v4791 = vunpack.c.l.b16 %v4593
      %v4792 = vunpack.c.l.b16 %v4594
      %v4793 = vunpack.c.l.b16 %v4595
      %v4794 = vunpack.c.l.b16 %v4596
      %v4795 = vunpack.c.l.b16 %v4597
      %v4796 = vunpack.c.l.b16 %v4598
      %v4797 = vunpack.c.l.b16 %v4599
      %v4798 = vunpack.c.l.b16 %v4600
      %v4799 = vunpack.c.l.b16 %v4601
      %v4800 = vunpack.c.l.b16 %v4602
      %v4801 = vunpack.c.l.b16 %v4603
      %v4802 = vunpack.c.l.b16 %v4604
      %v4803 = vunpack.c.l.b16 %v4605
      %v4804 = vunpack.c.l.b16 %v4606
      %v4805 = vunpack.c.l.b16 %v4607
      %v4806 = vunpack.c.l.b16 %v4608
      %v4807 = vunpack.c.l.b16 %v4609
      %v4808 = vunpack.c.l.b16 %v4610
      %v4809 = vunpack.c.l.b16 %v4611
      %v4810 = vunpack.c.l.b16 %v4612
      %v4811 = vunpack.c.l.b16 %v4613
      %v4812 = vunpack.c.l.b16 %v4614
      %v4813 = vunpack.c.l.b16 %v4615
      %v4814 = vunpack.c.l.b16 %v4616
      %v4815 = vunpack.c.l.b16 %v4617
      %v4816 = vunpack.c.l.b16 %v4618
      %v4817 = vunpack.c.l.b16 %v4619
      %v4818 = vunpack.c.l.b16 %v4620
      %v4819 = vunpack.c.l.b16 %v4621
      %v4820 = vunpack.c.l.b16 %v4622
      %v4821 = vunpack.c.l.b16 %v4623
      %v4822 = vunpack.c.l.b16 %v4624
      %v4823 = vunpack.c.l.b16 %v4625
      %v4824 = vunpack.c.l.b16 %v4626
      %v4825 = vunpack.c.l.b16 %v4627
      %v4826 = vunpack.c.l.b16 %v4628
      %v4827 = vunpack.c.l.b16 %v4629
      %v4828 = vunpack.c.l.b16 %v4630
      %v4829 = vunpack.c.l.b16 %v4631
      %v4830 = vunpack.c.l.b16 %v4632
      %v4831 = vunpack.c.l.b16 %v4633
      %v4832 = vpack.c.b16 %v4785, %v4784
      %v4833 = vpack.c.b16 %v4787, %v4786
      %v4834 = vpack.c.b16 %v4789, %v4788
      %v4835 = vpack.c.b16 %v4791, %v4790
      %v4836 = vpack.c.b16 %v4793, %v4792
      %v4837 = vpack.c.b16 %v4795, %v4794
      %v4838 = vpack.c.b16 %v4797, %v4796
      %v4839 = vpack.c.b16 %v4799, %v4798
      %v4840 = vpack.c.b16 %v4801, %v4800
      %v4841 = vpack.c.b16 %v4803, %v4802
      %v4842 = vpack.c.b16 %v4805, %v4804
      %v4843 = vpack.c.b16 %v4807, %v4806
      %v4844 = vpack.c.b16 %v4809, %v4808
      %v4845 = vpack.c.b16 %v4811, %v4810
      %v4846 = vpack.c.b16 %v4813, %v4812
      %v4847 = vpack.c.b16 %v4815, %v4814
      %v4848 = vpack.c.b16 %v4817, %v4816
      %v4849 = vpack.c.b16 %v4819, %v4818
      %v4850 = vpack.c.b16 %v4821, %v4820
      %v4851 = vpack.c.b16 %v4823, %v4822
      %v4852 = vpack.c.b16 %v4825, %v4824
      %v4853 = vpack.c.b16 %v4827, %v4826
      %v4854 = vpack.c.b16 %v4829, %v4828
      %v4855 = vpack.c.b16 %v4831, %v4830
      %4880 = vmatprep.subr.bf16.mxu0 0
      %4881 = vmatpush1.bf16.msra.mxu0 %v4832
      %4882 = vmatprep.subr.bf16.mxu0 0
      %4883 = vmatpush1.bf16.msra.mxu0 %v4833
      %4884 = vmatprep.subr.bf16.mxu0 0
      %4885 = vmatpush1.bf16.msra.mxu0 %v4834
      %4886 = vmatprep.subr.bf16.mxu0 0
      %4887 = vmatpush1.bf16.msra.mxu0 %v4835
      %4888 = vmatprep.subr.bf16.mxu0 0
      %4889 = vmatpush1.bf16.msra.mxu0 %v4836
      %4890 = vmatprep.subr.bf16.mxu0 0
      %4891 = vmatpush1.bf16.msra.mxu0 %v4837
      %4892 = vmatprep.subr.bf16.mxu0 0
      %4893 = vmatpush1.bf16.msra.mxu0 %v4838
      %4894 = vmatprep.subr.bf16.mxu0 0
      %4895 = vmatpush1.bf16.msra.mxu0 %v4839
      %4896 = vmatprep.subr.bf16.mxu0 0
      %4897 = vmatpush1.bf16.msra.mxu0 %v4840
      %4898 = vmatprep.subr.bf16.mxu0 0
      %4899 = vmatpush1.bf16.msra.mxu0 %v4841
      %4900 = vmatprep.subr.bf16.mxu0 0
      %4901 = vmatpush1.bf16.msra.mxu0 %v4842
      %4902 = vmatprep.subr.bf16.mxu0 0
      %4903 = vmatpush1.bf16.msra.mxu0 %v4843
      %4904 = vmatprep.subr.bf16.mxu0 0
      %4905 = vmatpush1.bf16.msra.mxu0 %v4844
      %4906 = vmatprep.subr.bf16.mxu0 0
      %4907 = vmatpush1.bf16.msra.mxu0 %v4845
      %4908 = vmatprep.subr.bf16.mxu0 0
      %4909 = vmatpush1.bf16.msra.mxu0 %v4846
      %4910 = vmatprep.subr.bf16.mxu0 0
      %4911 = vmatpush1.bf16.msra.mxu0 %v4847
      %4912 = vmatprep.mubr.bf16.mxu0 %v4634
      %4913 = vmatmul.mubr.bf16.gmra.mrb[0].mxu0 %v4273
      %v4914 = vpop.f32.mrb[0].mxu0
      %v4915 = vadd.f32 0.0, %v4914
      %v4916 = vpop.f32.mrb[0].mxu0
      %v4917 = vpop.f32.mrb[0].mxu0
      %v4918 = vadd.f32 0.0, %v4917
      %v4919 = vpop.f32.mrb[0].mxu0
      %4920 = vmatprep.mubr.bf16.mxu0 %v4637
      %4921 = vmatmul.mubr.bf16.gmra.mrb[0].mxu0 %v4636
      %v4922 = vpop.f32.mrb[0].mxu0
      %v4923 = vadd.f32 0.0, %v4922
      %v4924 = vpop.f32.mrb[0].mxu0
      %v4925 = vpop.f32.mrb[0].mxu0
      %v4926 = vadd.f32 0.0, %v4925
      %v4927 = vpop.f32.mrb[0].mxu0
      %4928 = vmatprep.mubr.bf16.mxu0 %v4640
      %4929 = vmatmul.mubr.bf16.gmra.mrb[0].mxu0 %v4639
      %v4930 = vpop.f32.mrb[0].mxu0
      %v4931 = vadd.f32 0.0, %v4930
      %v4932 = vpop.f32.mrb[0].mxu0
      %v4933 = vpop.f32.mrb[0].mxu0
      %v4934 = vadd.f32 0.0, %v4933
      %v4935 = vpop.f32.mrb[0].mxu0
      %4936 = vmatprep.mubr.bf16.mxu0 %v4642
      %4937 = vmatmul.mubr.bf16.gmra.mrb[0].mxu0 %v4277
      %v4938 = vpop.f32.mrb[0].mxu0
      %v4939 = vadd.f32 0.0, %v4938
      %v4940 = vpop.f32.mrb[0].mxu0
      %v4941 = vpop.f32.mrb[0].mxu0
      %v4942 = vadd.f32 0.0, %v4941
      %v4943 = vpop.f32.mrb[0].mxu0
      %4944 = vmatprep.mubr.bf16.mxu0 %v4645
      %4945 = vmatmul.mubr.bf16.gmra.mrb[0].mxu0 %v4644
      %v4946 = vpop.f32.mrb[0].mxu0
      %v4947 = vadd.f32 0.0, %v4946
      %v4948 = vpop.f32.mrb[0].mxu0
      %v4949 = vpop.f32.mrb[0].mxu0
      %v4950 = vadd.f32 0.0, %v4949
      %v4951 = vpop.f32.mrb[0].mxu0
      %4952 = vmatprep.mubr.bf16.mxu0 %v4648
      %4953 = vmatmul.mubr.bf16.gmra.mrb[0].mxu0 %v4647
      %v4954 = vpop.f32.mrb[0].mxu0
      %v4955 = vadd.f32 0.0, %v4954
      %v4956 = vpop.f32.mrb[0].mxu0
      %v4957 = vpop.f32.mrb[0].mxu0
      %v4958 = vadd.f32 0.0, %v4957
      %v4959 = vpop.f32.mrb[0].mxu0
      %4960 = vmatprep.mubr.bf16.mxu0 %v4650
      %4961 = vmatmul.mubr.bf16.gmra.mrb[0].mxu0 %v4281
      %v4962 = vpop.f32.mrb[0].mxu0
      %v4963 = vadd.f32 0.0, %v4962
      %v4964 = vpop.f32.mrb[0].mxu0
      %v4965 = vpop.f32.mrb[0].mxu0
      %v4966 = vadd.f32 0.0, %v4965
      %v4967 = vpop.f32.mrb[0].mxu0
      %4968 = vmatprep.mubr.bf16.mxu0 %v4653
      %4969 = vmatmul.mubr.bf16.gmra.mrb[0].mxu0 %v4652
      %v4970 = vpop.f32.mrb[0].mxu0
      %v4971 = vadd.f32 0.0, %v4970
      %v4972 = vpop.f32.mrb[0].mxu0
      %v4973 = vpop.f32.mrb[0].mxu0
      %v4974 = vadd.f32 0.0, %v4973
      %v4975 = vpop.f32.mrb[0].mxu0
      %4976 = vmatprep.mubr.bf16.mxu0 %v4656
      %4977 = vmatmul.mubr.bf16.gmra.mrb[0].mxu0 %v4655
      %v4978 = vpop.f32.mrb[0].mxu0
      %v4979 = vadd.f32 0.0, %v4978
      %v4980 = vpop.f32.mrb[0].mxu0
      %v4981 = vpop.f32.mrb[0].mxu0
      %v4982 = vadd.f32 0.0, %v4981
      %v4983 = vpop.f32.mrb[0].mxu0
      %4984 = vmatprep.mubr.bf16.mxu0 %v4658
      %4985 = vmatmul.mubr.bf16.gmra.mrb[0].mxu0 %v4285
      %v4986 = vpop.f32.mrb[0].mxu0
      %v4987 = vadd.f32 0.0, %v4986
      %v4988 = vpop.f32.mrb[0].mxu0
      %v4989 = vpop.f32.mrb[0].mxu0
      %v4990 = vadd.f32 0.0, %v4989
      %v4991 = vpop.f32.mrb[0].mxu0
      %4992 = vmatprep.mubr.bf16.mxu0 %v4661
      %4993 = vmatmul.mubr.bf16.gmra.mrb[0].mxu0 %v4660
      %v4994 = vpop.f32.mrb[0].mxu0
      %v4995 = vadd.f32 0.0, %v4994
      %v4996 = vpop.f32.mrb[0].mxu0
      %v4997 = vpop.f32.mrb[0].mxu0
      %v4998 = vadd.f32 0.0, %v4997
      %v4999 = vpop.f32.mrb[0].mxu0
      %5000 = vmatprep.mubr.bf16.mxu0 %v4664
      %5001 = vmatmul.mubr.bf16.gmra.mrb[0].mxu0 %v4663
      %v5002 = vpop.f32.mrb[0].mxu0
      %v5003 = vadd.f32 0.0, %v5002
      %v5004 = vpop.f32.mrb[0].mxu0
      %v5005 = vpop.f32.mrb[0].mxu0
      %v5006 = vadd.f32 0.0, %v5005
      %v5007 = vpop.f32.mrb[0].mxu0
      %5008 = vmatprep.mubr.bf16.mxu0 %v4666
      %5009 = vmatmul.mubr.bf16.gmra.mrb[0].mxu0 %v4289
      %v5010 = vpop.f32.mrb[0].mxu0
      %v5011 = vadd.f32 0.0, %v5010
      %v5012 = vpop.f32.mrb[0].mxu0
      %v5013 = vpop.f32.mrb[0].mxu0
      %v5014 = vadd.f32 0.0, %v5013
      %v5015 = vpop.f32.mrb[0].mxu0
      %5016 = vmatprep.mubr.bf16.mxu0 %v4669
      %5017 = vmatmul.mubr.bf16.gmra.mrb[0].mxu0 %v4668
      %v5018 = vpop.f32.mrb[0].mxu0
      %v5019 = vadd.f32 0.0, %v5018
      %v5020 = vpop.f32.mrb[0].mxu0
      %v5021 = vpop.f32.mrb[0].mxu0
      %v5022 = vadd.f32 0.0, %v5021
      %v5023 = vpop.f32.mrb[0].mxu0
      %5024 = vmatprep.mubr.bf16.mxu0 %v4672
      %5025 = vmatmul.mubr.bf16.gmra.mrb[0].mxu0 %v4671
      %v5026 = vpop.f32.mrb[0].mxu0
      %v5027 = vadd.f32 0.0, %v5026
      %v5028 = vpop.f32.mrb[0].mxu0
      %v5029 = vpop.f32.mrb[0].mxu0
      %v5030 = vadd.f32 0.0, %v5029
      %v5031 = vpop.f32.mrb[0].mxu0
      %5032 = vmatprep.mubr.bf16.mxu0 %v4674
      %5033 = vmatmul.mubr.bf16.gmra.mrb[0].mxu0 %v4293
      %v5034 = vpop.f32.mrb[0].mxu0
      %v5035 = vadd.f32 0.0, %v5034
      %v5036 = vpop.f32.mrb[0].mxu0
      %v5037 = vpop.f32.mrb[0].mxu0
      %v5038 = vadd.f32 0.0, %v5037
      %v5039 = vpop.f32.mrb[0].mxu0
      %5040 = vmatprep.mubr.bf16.mxu0 %v4677
      %5041 = vmatmul.mubr.bf16.gmra.mrb[0].mxu0 %v4676
      %v5042 = vpop.f32.mrb[0].mxu0
      %v5043 = vadd.f32 0.0, %v5042
      %v5044 = vpop.f32.mrb[0].mxu0
      %v5045 = vpop.f32.mrb[0].mxu0
      %v5046 = vadd.f32 0.0, %v5045
      %v5047 = vpop.f32.mrb[0].mxu0
      %5048 = vmatprep.mubr.bf16.mxu0 %v4680
      %5049 = vmatmul.mubr.bf16.gmra.mrb[0].mxu0 %v4679
      %v5050 = vpop.f32.mrb[0].mxu0
      %v5051 = vadd.f32 0.0, %v5050
      %v5052 = vpop.f32.mrb[0].mxu0
      %v5053 = vpop.f32.mrb[0].mxu0
      %v5054 = vadd.f32 0.0, %v5053
      %v5055 = vpop.f32.mrb[0].mxu0
      %5056 = vdwg.mxu0
      %5057 = vmatprep.subr.bf16.mxu0 0
      %5058 = vmatpush1.bf16.msra.mxu0 %v4848
      %5059 = vmatprep.subr.bf16.mxu0 0
      %5060 = vmatpush1.bf16.msra.mxu0 %v4849
      %5061 = vmatprep.subr.bf16.mxu0 0
      %5062 = vmatpush1.bf16.msra.mxu0 %v4850
      %5063 = vmatprep.subr.bf16.mxu0 0
      %5064 = vmatpush1.bf16.msra.mxu0 %v4851
      %5065 = vmatprep.subr.bf16.mxu0 0
      %5066 = vmatpush1.bf16.msra.mxu0 %v4852
      %5067 = vmatprep.subr.bf16.mxu0 0
      %5068 = vmatpush1.bf16.msra.mxu0 %v4853
      %5069 = vmatprep.subr.bf16.mxu0 0
      %5070 = vmatpush1.bf16.msra.mxu0 %v4854
      %5071 = vmatprep.subr.bf16.mxu0 0
      %5072 = vmatpush1.bf16.msra.mxu0 %v4855
      %5073 = vmatprep.subr.bf16.mxu0 0
      %5074 = vmatpush1.bf16.msra.mxu0 0
      %5075 = vmatprep.subr.bf16.mxu0 0
      %5076 = vmatpush1.bf16.msra.mxu0 0
      %5077 = vmatprep.subr.bf16.mxu0 0
      %5078 = vmatpush1.bf16.msra.mxu0 0
      %5079 = vmatprep.subr.bf16.mxu0 0
      %5080 = vmatpush1.bf16.msra.mxu0 0
      %5081 = vmatprep.subr.bf16.mxu0 0
      %5082 = vmatpush1.bf16.msra.mxu0 0
      %5083 = vmatprep.subr.bf16.mxu0 0
      %5084 = vmatpush1.bf16.msra.mxu0 0
      %5085 = vmatprep.subr.bf16.mxu0 0
      %5086 = vmatpush1.bf16.msra.mxu0 0
      %5087 = vmatprep.subr.bf16.mxu0 0
      %5088 = vmatpush1.bf16.msra.mxu0 0
      %5089 = vmatprep.mubr.bf16.mxu0 0
      %5090 = vmatmul.mubr.bf16.gmra.mrb[0].mxu0 %v4635
      %v5091 = vpop.f32.mrb[0].mxu0
      %v5092 = vadd.f32 %v4915, %v5091
      %v5093 = vpop.f32.mrb[0].mxu0
      %v5094 = vpop.f32.mrb[0].mxu0
      %v5095 = vadd.f32 %v4918, %v5094
      %v5096 = vpop.f32.mrb[0].mxu0
      %5097 = vmatprep.mubr.bf16.mxu0 0
      %5098 = vmatmul.mubr.bf16.gmra.mrb[0].mxu0 %v4638
      %v5099 = vpop.f32.mrb[0].mxu0
      %v5100 = vadd.f32 %v4923, %v5099
      %v5101 = vpop.f32.mrb[0].mxu0
      %v5102 = vpop.f32.mrb[0].mxu0
      %v5103 = vadd.f32 %v4926, %v5102
      %v5104 = vpop.f32.mrb[0].mxu0
      %5105 = vmatprep.mubr.bf16.mxu0 0
      %5106 = vmatmul.mubr.bf16.gmra.mrb[0].mxu0 %v4641
      %v5107 = vpop.f32.mrb[0].mxu0
      %v5108 = vadd.f32 %v4931, %v5107
      %v5109 = vpop.f32.mrb[0].mxu0
      %v5110 = vpop.f32.mrb[0].mxu0
      %v5111 = vadd.f32 %v4934, %v5110
      %v5112 = vpop.f32.mrb[0].mxu0
      %5113 = vmatprep.mubr.bf16.mxu0 0
      %5114 = vmatmul.mubr.bf16.gmra.mrb[0].mxu0 %v4643
      %v5115 = vpop.f32.mrb[0].mxu0
      %v5116 = vadd.f32 %v4939, %v5115
      %v5117 = vpop.f32.mrb[0].mxu0
      %v5118 = vpop.f32.mrb[0].mxu0
      %v5119 = vadd.f32 %v4942, %v5118
      %v5120 = vpop.f32.mrb[0].mxu0
      %5121 = vmatprep.mubr.bf16.mxu0 0
      %5122 = vmatmul.mubr.bf16.gmra.mrb[0].mxu0 %v4646
      %v5123 = vpop.f32.mrb[0].mxu0
      %v5124 = vadd.f32 %v4947, %v5123
      %v5125 = vpop.f32.mrb[0].mxu0
      %v5126 = vpop.f32.mrb[0].mxu0
      %v5127 = vadd.f32 %v4950, %v5126
      %v5128 = vpop.f32.mrb[0].mxu0
      %5129 = vmatprep.mubr.bf16.mxu0 0
      %5130 = vmatmul.mubr.bf16.gmra.mrb[0].mxu0 %v4649
      %v5131 = vpop.f32.mrb[0].mxu0
      %v5132 = vadd.f32 %v4955, %v5131
      %v5133 = vpop.f32.mrb[0].mxu0
      %v5134 = vpop.f32.mrb[0].mxu0
      %v5135 = vadd.f32 %v4958, %v5134
      %v5136 = vpop.f32.mrb[0].mxu0
      %5137 = vmatprep.mubr.bf16.mxu0 0
      %5138 = vmatmul.mubr.bf16.gmra.mrb[0].mxu0 %v4651
      %v5139 = vpop.f32.mrb[0].mxu0
      %v5140 = vadd.f32 %v4963, %v5139
      %v5141 = vpop.f32.mrb[0].mxu0
      %v5142 = vpop.f32.mrb[0].mxu0
      %v5143 = vadd.f32 %v4966, %v5142
      %v5144 = vpop.f32.mrb[0].mxu0
      %5145 = vmatprep.mubr.bf16.mxu0 0
      %5146 = vmatmul.mubr.bf16.gmra.mrb[0].mxu0 %v4654
      %v5147 = vpop.f32.mrb[0].mxu0
      %v5148 = vadd.f32 %v4971, %v5147
      %v5149 = vpop.f32.mrb[0].mxu0
      %v5150 = vpop.f32.mrb[0].mxu0
      %v5151 = vadd.f32 %v4974, %v5150
      %v5152 = vpop.f32.mrb[0].mxu0
      %5153 = vmatprep.mubr.bf16.mxu0 0
      %5154 = vmatmul.mubr.bf16.gmra.mrb[0].mxu0 %v4657
      %v5155 = vpop.f32.mrb[0].mxu0
      %v5156 = vadd.f32 %v4979, %v5155
      %v5157 = vpop.f32.mrb[0].mxu0
      %v5158 = vpop.f32.mrb[0].mxu0
      %v5159 = vadd.f32 %v4982, %v5158
      %v5160 = vpop.f32.mrb[0].mxu0
      %5161 = vmatprep.mubr.bf16.mxu0 0
      %5162 = vmatmul.mubr.bf16.gmra.mrb[0].mxu0 %v4659
      %v5163 = vpop.f32.mrb[0].mxu0
      %v5164 = vadd.f32 %v4987, %v5163
      %v5165 = vpop.f32.mrb[0].mxu0
      %v5166 = vpop.f32.mrb[0].mxu0
      %v5167 = vadd.f32 %v4990, %v5166
      %v5168 = vpop.f32.mrb[0].mxu0
      %5169 = vmatprep.mubr.bf16.mxu0 0
      %5170 = vmatmul.mubr.bf16.gmra.mrb[0].mxu0 %v4662
      %v5171 = vpop.f32.mrb[0].mxu0
      %v5172 = vadd.f32 %v4995, %v5171
      %v5173 = vpop.f32.mrb[0].mxu0
      %v5174 = vpop.f32.mrb[0].mxu0
      %v5175 = vadd.f32 %v4998, %v5174
      %v5176 = vpop.f32.mrb[0].mxu0
      %5177 = vmatprep.mubr.bf16.mxu0 0
      %5178 = vmatmul.mubr.bf16.gmra.mrb[0].mxu0 %v4665
      %v5179 = vpop.f32.mrb[0].mxu0
      %v5180 = vadd.f32 %v5003, %v5179
      %v5181 = vpop.f32.mrb[0].mxu0
      %v5182 = vpop.f32.mrb[0].mxu0
      %v5183 = vadd.f32 %v5006, %v5182
      %v5184 = vpop.f32.mrb[0].mxu0
      %5185 = vmatprep.mubr.bf16.mxu0 0
      %5186 = vmatmul.mubr.bf16.gmra.mrb[0].mxu0 %v4667
      %v5187 = vpop.f32.mrb[0].mxu0
      %v5188 = vadd.f32 %v5011, %v5187
      %v5189 = vpop.f32.mrb[0].mxu0
      %v5190 = vpop.f32.mrb[0].mxu0
      %v5191 = vadd.f32 %v5014, %v5190
      %v5192 = vpop.f32.mrb[0].mxu0
      %5193 = vmatprep.mubr.bf16.mxu0 0
      %5194 = vmatmul.mubr.bf16.gmra.mrb[0].mxu0 %v4670
      %v5195 = vpop.f32.mrb[0].mxu0
      %v5196 = vadd.f32 %v5019, %v5195
      %v5197 = vpop.f32.mrb[0].mxu0
      %v5198 = vpop.f32.mrb[0].mxu0
      %v5199 = vadd.f32 %v5022, %v5198
      %v5200 = vpop.f32.mrb[0].mxu0
      %5201 = vmatprep.mubr.bf16.mxu0 0
      %5202 = vmatmul.mubr.bf16.gmra.mrb[0].mxu0 %v4673
      %v5203 = vpop.f32.mrb[0].mxu0
      %v5204 = vadd.f32 %v5027, %v5203
      %v5205 = vpop.f32.mrb[0].mxu0
      %v5206 = vpop.f32.mrb[0].mxu0
      %v5207 = vadd.f32 %v5030, %v5206
      %v5208 = vpop.f32.mrb[0].mxu0
      %5209 = vmatprep.mubr.bf16.mxu0 0
      %5210 = vmatmul.mubr.bf16.gmra.mrb[0].mxu0 %v4675
      %v5211 = vpop.f32.mrb[0].mxu0
      %v5212 = vadd.f32 %v5035, %v5211
      %v5213 = vpop.f32.mrb[0].mxu0
      %v5214 = vpop.f32.mrb[0].mxu0
      %v5215 = vadd.f32 %v5038, %v5214
      %v5216 = vpop.f32.mrb[0].mxu0
      %5217 = vmatprep.mubr.bf16.mxu0 0
      %5218 = vmatmul.mubr.bf16.gmra.mrb[0].mxu0 %v4678
      %v5219 = vpop.f32.mrb[0].mxu0
      %v5220 = vadd.f32 %v5043, %v5219
      %v5221 = vpop.f32.mrb[0].mxu0
      %v5222 = vpop.f32.mrb[0].mxu0
      %v5223 = vadd.f32 %v5046, %v5222
      %v5224 = vpop.f32.mrb[0].mxu0
      %5225 = vmatprep.mubr.bf16.mxu0 0
      %5226 = vmatmul.mubr.bf16.gmra.mrb[0].mxu0 %v4681
      %v5227 = vpop.f32.mrb[0].mxu0
      %v5228 = vadd.f32 %v5051, %v5227
      %v5229 = vpop.f32.mrb[0].mxu0
      %v5230 = vpop.f32.mrb[0].mxu0
      %v5231 = vadd.f32 %v5054, %v5230
      %v5232 = vpop.f32.mrb[0].mxu0
      %5233 = vdwg.mxu0
      %v5234 = vadd.f32 %v3986, %v5092
      %v5235 = vadd.f32 %v3989, %v5095
      %v5236 = vadd.f32 %v3994, %v5100
      %v5237 = vadd.f32 %v3997, %v5103
      %v5238 = vadd.f32 %v4002, %v5108
      %v5239 = vadd.f32 %v4005, %v5111
      %v5240 = vadd.f32 %v4010, %v5116
      %v5241 = vadd.f32 %v4013, %v5119
      %v5242 = vadd.f32 %v4018, %v5124
      %v5243 = vadd.f32 %v4021, %v5127
      %v5244 = vadd.f32 %v4026, %v5132
      %v5245 = vadd.f32 %v4029, %v5135
      %v5246 = vadd.f32 %v4034, %v5140
      %v5247 = vadd.f32 %v4037, %v5143
      %v5248 = vadd.f32 %v4042, %v5148
      %v5249 = vadd.f32 %v4045, %v5151
      %v5250 = vadd.f32 %v4050, %v5156
      %v5251 = vadd.f32 %v4053, %v5159
      %v5252 = vadd.f32 %v4058, %v5164
      %v5253 = vadd.f32 %v4061, %v5167
      %v5254 = vadd.f32 %v4066, %v5172
      %v5255 = vadd.f32 %v4069, %v5175
      %v5256 = vadd.f32 %v4074, %v5180
      %v5257 = vadd.f32 %v4077, %v5183
      %v5258 = vadd.f32 %v4082, %v5188
      %v5259 = vadd.f32 %v4085, %v5191
      %v5260 = vadd.f32 %v4090, %v5196
      %v5261 = vadd.f32 %v4093, %v5199
      %v5262 = vadd.f32 %v4098, %v5204
      %v5263 = vadd.f32 %v4101, %v5207
      %v5264 = vadd.f32 %v4106, %v5212
      %v5265 = vadd.f32 %v4109, %v5215
      %v5266 = vadd.f32 %v4114, %v5220
      %v5267 = vadd.f32 %v4117, %v5223
      %v5268 = vadd.f32 %v4122, %v5228
      %v5269 = vadd.f32 %v4125, %v5231
      %v5270 = vld [vmem:[%s3] sm:$0x1]
      %v5272 = vlaneseq
      %v5273 = vshrl.u32 %v5272, 7
      %v5274 = vsub.s32 0, %v5273
      %v5275 = vrot.slane %v5270, %v5274
      %v5277 = vadd.f32 %v5234, %v5275
      %v5278 = vadd.f32 %v5235, %v5275
      %v5279 = vadd.f32 %v5236, %v5275
      %v5280 = vadd.f32 %v5237, %v5275
      %v5281 = vadd.f32 %v5238, %v5275
      %v5282 = vadd.f32 %v5239, %v5275
      %v5283 = vadd.f32 %v5240, %v5275
      %v5284 = vadd.f32 %v5241, %v5275
      %v5285 = vadd.f32 %v5242, %v5275
      %v5286 = vadd.f32 %v5243, %v5275
      %v5287 = vadd.f32 %v5244, %v5275
      %v5288 = vadd.f32 %v5245, %v5275
      %v5289 = vadd.f32 %v5246, %v5275
      %v5290 = vadd.f32 %v5247, %v5275
      %v5291 = vadd.f32 %v5248, %v5275
      %v5292 = vadd.f32 %v5249, %v5275
      %v5293 = vadd.f32 %v5250, %v5275
      %v5294 = vadd.f32 %v5251, %v5275
      %v5295 = vadd.f32 %v5252, %v5275
      %v5296 = vadd.f32 %v5253, %v5275
      %v5297 = vadd.f32 %v5254, %v5275
      %v5298 = vadd.f32 %v5255, %v5275
      %v5299 = vadd.f32 %v5256, %v5275
      %v5300 = vadd.f32 %v5257, %v5275
      %v5301 = vadd.f32 %v5258, %v5275
      %v5302 = vadd.f32 %v5259, %v5275
      %v5303 = vadd.f32 %v5260, %v5275
      %v5304 = vadd.f32 %v5261, %v5275
      %v5305 = vadd.f32 %v5262, %v5275
      %v5306 = vadd.f32 %v5263, %v5275
      %v5307 = vadd.f32 %v5264, %v5275
      %v5308 = vadd.f32 %v5265, %v5275
      %v5309 = vadd.f32 %v5266, %v5275
      %v5310 = vadd.f32 %v5267, %v5275
      %v5311 = vadd.f32 %v5268, %v5275
      %v5312 = vadd.f32 %v5269, %v5275
      %vm5313 = vcmp.ge.f32.partialorder %v5277, 0.0
      %vm5314 = vcmp.ge.f32.partialorder %v5278, 0.0
      %vm5315 = vcmp.ge.f32.partialorder %v5279, 0.0
      %vm5316 = vcmp.ge.f32.partialorder %v5280, 0.0
      %vm5317 = vcmp.ge.f32.partialorder %v5281, 0.0
      %vm5318 = vcmp.ge.f32.partialorder %v5282, 0.0
      %vm5319 = vcmp.ge.f32.partialorder %v5283, 0.0
      %vm5320 = vcmp.ge.f32.partialorder %v5284, 0.0
      %vm5321 = vcmp.ge.f32.partialorder %v5285, 0.0
      %vm5322 = vcmp.ge.f32.partialorder %v5286, 0.0
      %vm5323 = vcmp.ge.f32.partialorder %v5287, 0.0
      %vm5324 = vcmp.ge.f32.partialorder %v5288, 0.0
      %vm5325 = vcmp.ge.f32.partialorder %v5289, 0.0
      %vm5326 = vcmp.ge.f32.partialorder %v5290, 0.0
      %vm5327 = vcmp.ge.f32.partialorder %v5291, 0.0
      %vm5328 = vcmp.ge.f32.partialorder %v5292, 0.0
      %vm5329 = vcmp.ge.f32.partialorder %v5293, 0.0
      %vm5330 = vcmp.ge.f32.partialorder %v5294, 0.0
      %vm5331 = vcmp.ge.f32.partialorder %v5295, 0.0
      %vm5332 = vcmp.ge.f32.partialorder %v5296, 0.0
      %vm5333 = vcmp.ge.f32.partialorder %v5297, 0.0
      %vm5334 = vcmp.ge.f32.partialorder %v5298, 0.0
      %vm5335 = vcmp.ge.f32.partialorder %v5299, 0.0
      %vm5336 = vcmp.ge.f32.partialorder %v5300, 0.0
      %vm5337 = vcmp.ge.f32.partialorder %v5301, 0.0
      %vm5338 = vcmp.ge.f32.partialorder %v5302, 0.0
      %vm5339 = vcmp.ge.f32.partialorder %v5303, 0.0
      %vm5340 = vcmp.ge.f32.partialorder %v5304, 0.0
      %vm5341 = vcmp.ge.f32.partialorder %v5305, 0.0
      %vm5342 = vcmp.ge.f32.partialorder %v5306, 0.0
      %vm5343 = vcmp.ge.f32.partialorder %v5307, 0.0
      %vm5344 = vcmp.ge.f32.partialorder %v5308, 0.0
      %vm5345 = vcmp.ge.f32.partialorder %v5309, 0.0
      %vm5346 = vcmp.ge.f32.partialorder %v5310, 0.0
      %vm5347 = vcmp.ge.f32.partialorder %v5311, 0.0
      %vm5348 = vcmp.ge.f32.partialorder %v5312, 0.0
      %v5349 = vmul.f32 %v5277, 0.01
      %v5350 = vmul.f32 %v5278, 0.01
      %v5351 = vmul.f32 %v5279, 0.01
      %v5352 = vmul.f32 %v5280, 0.01
      %v5353 = vmul.f32 %v5281, 0.01
      %v5354 = vmul.f32 %v5282, 0.01
      %v5355 = vmul.f32 %v5283, 0.01
      %v5356 = vmul.f32 %v5284, 0.01
      %v5357 = vmul.f32 %v5285, 0.01
      %v5358 = vmul.f32 %v5286, 0.01
      %v5359 = vmul.f32 %v5287, 0.01
      %v5360 = vmul.f32 %v5288, 0.01
      %v5361 = vmul.f32 %v5289, 0.01
      %v5362 = vmul.f32 %v5290, 0.01
      %v5363 = vmul.f32 %v5291, 0.01
      %v5364 = vmul.f32 %v5292, 0.01
      %v5365 = vmul.f32 %v5293, 0.01
      %v5366 = vmul.f32 %v5294, 0.01
      %v5367 = vmul.f32 %v5295, 0.01
      %v5368 = vmul.f32 %v5296, 0.01
      %v5369 = vmul.f32 %v5297, 0.01
      %v5370 = vmul.f32 %v5298, 0.01
      %v5371 = vmul.f32 %v5299, 0.01
      %v5372 = vmul.f32 %v5300, 0.01
      %v5373 = vmul.f32 %v5301, 0.01
      %v5374 = vmul.f32 %v5302, 0.01
      %v5375 = vmul.f32 %v5303, 0.01
      %v5376 = vmul.f32 %v5304, 0.01
      %v5377 = vmul.f32 %v5305, 0.01
      %v5378 = vmul.f32 %v5306, 0.01
      %v5379 = vmul.f32 %v5307, 0.01
      %v5380 = vmul.f32 %v5308, 0.01
      %v5381 = vmul.f32 %v5309, 0.01
      %v5382 = vmul.f32 %v5310, 0.01
      %v5383 = vmul.f32 %v5311, 0.01
      %v5384 = vmul.f32 %v5312, 0.01
      %v5385 = vsel %vm5313, %v5277, %v5349
      %v5386 = vsel %vm5314, %v5278, %v5350
      %v5387 = vsel %vm5315, %v5279, %v5351
      %v5388 = vsel %vm5316, %v5280, %v5352
      %v5389 = vsel %vm5317, %v5281, %v5353
      %v5390 = vsel %vm5318, %v5282, %v5354
      %v5391 = vsel %vm5319, %v5283, %v5355
      %v5392 = vsel %vm5320, %v5284, %v5356
      %v5393 = vsel %vm5321, %v5285, %v5357
      %v5394 = vsel %vm5322, %v5286, %v5358
      %v5395 = vsel %vm5323, %v5287, %v5359
      %v5396 = vsel %vm5324, %v5288, %v5360
      %v5397 = vsel %vm5325, %v5289, %v5361
      %v5398 = vsel %vm5326, %v5290, %v5362
      %v5399 = vsel %vm5327, %v5291, %v5363
      %v5400 = vsel %vm5328, %v5292, %v5364
      %v5401 = vsel %vm5329, %v5293, %v5365
      %v5402 = vsel %vm5330, %v5294, %v5366
      %v5403 = vsel %vm5331, %v5295, %v5367
      %v5404 = vsel %vm5332, %v5296, %v5368
      %v5405 = vsel %vm5333, %v5297, %v5369
      %v5406 = vsel %vm5334, %v5298, %v5370
      %v5407 = vsel %vm5335, %v5299, %v5371
      %v5408 = vsel %vm5336, %v5300, %v5372
      %v5409 = vsel %vm5337, %v5301, %v5373
      %v5410 = vsel %vm5338, %v5302, %v5374
      %v5411 = vsel %vm5339, %v5303, %v5375
      %v5412 = vsel %vm5340, %v5304, %v5376
      %v5413 = vsel %vm5341, %v5305, %v5377
      %v5414 = vsel %vm5342, %v5306, %v5378
      %v5415 = vsel %vm5343, %v5307, %v5379
      %v5416 = vsel %vm5344, %v5308, %v5380
      %v5417 = vsel %vm5345, %v5309, %v5381
      %v5418 = vsel %vm5346, %v5310, %v5382
      %v5419 = vsel %vm5347, %v5311, %v5383
      %v5420 = vsel %vm5348, %v5312, %v5384
      %v5421 = vpack.c.bf16 %v5386, %v5385
      %v5422 = vpack.c.bf16 %v5387, %v5387
      %v5423 = vpack.c.bf16 %v5389, %v5388
      %v5424 = vpack.c.bf16 %v5390, %v5390
      %v5425 = vpack.c.bf16 %v5392, %v5391
      %v5426 = vpack.c.bf16 %v5393, %v5393
      %v5427 = vpack.c.bf16 %v5395, %v5394
      %v5428 = vpack.c.bf16 %v5396, %v5396
      %v5429 = vpack.c.bf16 %v5398, %v5397
      %v5430 = vpack.c.bf16 %v5399, %v5399
      %v5431 = vpack.c.bf16 %v5401, %v5400
      %v5432 = vpack.c.bf16 %v5402, %v5402
      %v5433 = vpack.c.bf16 %v5404, %v5403
      %v5434 = vpack.c.bf16 %v5405, %v5405
      %v5435 = vpack.c.bf16 %v5407, %v5406
      %v5436 = vpack.c.bf16 %v5408, %v5408
      %v5437 = vpack.c.bf16 %v5410, %v5409
      %v5438 = vpack.c.bf16 %v5411, %v5411
      %v5439 = vpack.c.bf16 %v5413, %v5412
      %v5440 = vpack.c.bf16 %v5414, %v5414
      %v5441 = vpack.c.bf16 %v5416, %v5415
      %v5442 = vpack.c.bf16 %v5417, %v5417
      %v5443 = vpack.c.bf16 %v5419, %v5418
      %v5444 = vpack.c.bf16 %v5420, %v5420
      %v5469 = vunpack.c.l.b16 %v5421
      %v5470 = vunpack.c.h.b16 %v5421
      %v5471 = vunpack.c.l.b16 %v5422
      %v5472 = vunpack.c.l.b16 %v5423
      %v5473 = vunpack.c.h.b16 %v5423
      %v5474 = vunpack.c.l.b16 %v5424
      %v5475 = vunpack.c.l.b16 %v5425
      %v5476 = vunpack.c.h.b16 %v5425
      %v5477 = vunpack.c.l.b16 %v5426
      %v5478 = vunpack.c.l.b16 %v5427
      %v5479 = vunpack.c.h.b16 %v5427
      %v5480 = vunpack.c.l.b16 %v5428
      %v5481 = vunpack.c.l.b16 %v5429
      %v5482 = vunpack.c.h.b16 %v5429
      %v5483 = vunpack.c.l.b16 %v5430
      %v5484 = vunpack.c.l.b16 %v5431
      %v5485 = vunpack.c.h.b16 %v5431
      %v5486 = vunpack.c.l.b16 %v5432
      %v5487 = vunpack.c.l.b16 %v5433
      %v5488 = vunpack.c.h.b16 %v5433
      %v5489 = vunpack.c.l.b16 %v5434
      %v5490 = vunpack.c.l.b16 %v5435
      %v5491 = vunpack.c.h.b16 %v5435
      %v5492 = vunpack.c.l.b16 %v5436
      %v5493 = vunpack.c.l.b16 %v5437
      %v5494 = vunpack.c.h.b16 %v5437
      %v5495 = vunpack.c.l.b16 %v5438
      %v5496 = vunpack.c.l.b16 %v5439
      %v5497 = vunpack.c.h.b16 %v5439
      %v5498 = vunpack.c.l.b16 %v5440
      %v5499 = vunpack.c.l.b16 %v5441
      %v5500 = vunpack.c.h.b16 %v5441
      %v5501 = vunpack.c.l.b16 %v5442
      %v5502 = vunpack.c.l.b16 %v5443
      %v5503 = vunpack.c.h.b16 %v5443
      %v5504 = vunpack.c.l.b16 %v5444
      %v5505 = vpack.c.b16 %v5469, %v5469
      %v5506 = vpack.c.b16 %v5470, %v5470
      %v5507 = vpack.c.b16 %v5471, %v5471
      %v5508 = vpack.c.b16 %v5472, %v5472
      %v5509 = vpack.c.b16 %v5473, %v5473
      %v5510 = vpack.c.b16 %v5474, %v5474
      %v5511 = vpack.c.b16 %v5475, %v5475
      %v5512 = vpack.c.b16 %v5476, %v5476
      %v5513 = vpack.c.b16 %v5477, %v5477
      %v5514 = vpack.c.b16 %v5478, %v5478
      %v5515 = vpack.c.b16 %v5479, %v5479
      %v5516 = vpack.c.b16 %v5480, %v5480
      %v5517 = vpack.c.b16 %v5481, %v5481
      %v5518 = vpack.c.b16 %v5482, %v5482
      %v5519 = vpack.c.b16 %v5483, %v5483
      %v5520 = vpack.c.b16 %v5484, %v5484
      %v5521 = vpack.c.b16 %v5485, %v5485
      %v5522 = vpack.c.b16 %v5486, %v5486
      %v5523 = vpack.c.b16 %v5487, %v5487
      %v5524 = vpack.c.b16 %v5488, %v5488
      %v5525 = vpack.c.b16 %v5489, %v5489
      %v5526 = vpack.c.b16 %v5490, %v5490
      %v5527 = vpack.c.b16 %v5491, %v5491
      %v5528 = vpack.c.b16 %v5492, %v5492
      %v5529 = vpack.c.b16 %v5493, %v5493
      %v5530 = vpack.c.b16 %v5494, %v5494
      %v5531 = vpack.c.b16 %v5495, %v5495
      %v5532 = vpack.c.b16 %v5496, %v5496
      %v5533 = vpack.c.b16 %v5497, %v5497
      %v5534 = vpack.c.b16 %v5498, %v5498
      %v5535 = vpack.c.b16 %v5499, %v5499
      %v5536 = vpack.c.b16 %v5500, %v5500
      %v5537 = vpack.c.b16 %v5501, %v5501
      %v5538 = vpack.c.b16 %v5502, %v5502
      %v5539 = vpack.c.b16 %v5503, %v5503
      %v5540 = vpack.c.b16 %v5504, %v5504
      %v5542 = vshrl.u32 %v5505, 16
      %v5544 = vrot.slane %v5542, 7
      %v5545 = vshll.u32 %v5505, 16
      %v5547 = vor.u32 %v5544, %v5545
      %v5548 = vrot.slane %v5544, 4
      %v5550 = vshrl.u32 %v5506, 16
      %v5552 = vrot.slane %v5550, 7
      %v5553 = vshll.u32 %v5506, 16
      %v5555 = vor.u32 %v5552, %v5553
      %v5556 = vsel %vm1008, %v5548, %v5555
      %v5557 = vrot.slane %v5552, 4
      %v5559 = vshrl.u32 %v5507, 16
      %v5561 = vrot.slane %v5559, 7
      %v5562 = vshll.u32 %v5507, 16
      %v5564 = vor.u32 %v5561, %v5562
      %v5565 = vsel %vm1008, %v5557, %v5564
      %v5566 = vrot.slane %v5561, 4
      %v5568 = vshrl.u32 %v5508, 16
      %v5570 = vrot.slane %v5568, 7
      %v5571 = vshll.u32 %v5508, 16
      %v5573 = vor.u32 %v5570, %v5571
      %v5574 = vrot.slane %v5570, 4
      %v5576 = vshrl.u32 %v5509, 16
      %v5578 = vrot.slane %v5576, 7
      %v5579 = vshll.u32 %v5509, 16
      %v5581 = vor.u32 %v5578, %v5579
      %v5582 = vsel %vm1008, %v5574, %v5581
      %v5583 = vrot.slane %v5578, 4
      %v5585 = vshrl.u32 %v5510, 16
      %v5587 = vrot.slane %v5585, 7
      %v5588 = vshll.u32 %v5510, 16
      %v5590 = vor.u32 %v5587, %v5588
      %v5591 = vsel %vm1008, %v5583, %v5590
      %v5592 = vrot.slane %v5587, 4
      %v5594 = vshrl.u32 %v5511, 16
      %v5596 = vrot.slane %v5594, 7
      %v5597 = vshll.u32 %v5511, 16
      %v5599 = vor.u32 %v5596, %v5597
      %v5600 = vrot.slane %v5596, 4
      %v5602 = vshrl.u32 %v5512, 16
      %v5604 = vrot.slane %v5602, 7
      %v5605 = vshll.u32 %v5512, 16
      %v5607 = vor.u32 %v5604, %v5605
      %v5608 = vsel %vm1008, %v5600, %v5607
      %v5609 = vrot.slane %v5604, 4
      %v5611 = vshrl.u32 %v5513, 16
      %v5613 = vrot.slane %v5611, 7
      %v5614 = vshll.u32 %v5513, 16
      %v5616 = vor.u32 %v5613, %v5614
      %v5617 = vsel %vm1008, %v5609, %v5616
      %v5618 = vrot.slane %v5613, 4
      %v5620 = vshrl.u32 %v5514, 16
      %v5622 = vrot.slane %v5620, 7
      %v5623 = vshll.u32 %v5514, 16
      %v5625 = vor.u32 %v5622, %v5623
      %v5626 = vrot.slane %v5622, 4
      %v5628 = vshrl.u32 %v5515, 16
      %v5630 = vrot.slane %v5628, 7
      %v5631 = vshll.u32 %v5515, 16
      %v5633 = vor.u32 %v5630, %v5631
      %v5634 = vsel %vm1008, %v5626, %v5633
      %v5635 = vrot.slane %v5630, 4
      %v5637 = vshrl.u32 %v5516, 16
      %v5639 = vrot.slane %v5637, 7
      %v5640 = vshll.u32 %v5516, 16
      %v5642 = vor.u32 %v5639, %v5640
      %v5643 = vsel %vm1008, %v5635, %v5642
      %v5644 = vrot.slane %v5639, 4
      %v5646 = vshrl.u32 %v5517, 16
      %v5648 = vrot.slane %v5646, 7
      %v5649 = vshll.u32 %v5517, 16
      %v5651 = vor.u32 %v5648, %v5649
      %v5652 = vrot.slane %v5648, 4
      %v5654 = vshrl.u32 %v5518, 16
      %v5656 = vrot.slane %v5654, 7
      %v5657 = vshll.u32 %v5518, 16
      %v5659 = vor.u32 %v5656, %v5657
      %v5660 = vsel %vm1008, %v5652, %v5659
      %v5661 = vrot.slane %v5656, 4
      %v5663 = vshrl.u32 %v5519, 16
      %v5665 = vrot.slane %v5663, 7
      %v5666 = vshll.u32 %v5519, 16
      %v5668 = vor.u32 %v5665, %v5666
      %v5669 = vsel %vm1008, %v5661, %v5668
      %v5670 = vrot.slane %v5665, 4
      %v5672 = vshrl.u32 %v5520, 16
      %v5674 = vrot.slane %v5672, 7
      %v5675 = vshll.u32 %v5520, 16
      %v5677 = vor.u32 %v5674, %v5675
      %v5678 = vrot.slane %v5674, 4
      %v5680 = vshrl.u32 %v5521, 16
      %v5682 = vrot.slane %v5680, 7
      %v5683 = vshll.u32 %v5521, 16
      %v5685 = vor.u32 %v5682, %v5683
      %v5686 = vsel %vm1008, %v5678, %v5685
      %v5687 = vrot.slane %v5682, 4
      %v5689 = vshrl.u32 %v5522, 16
      %v5691 = vrot.slane %v5689, 7
      %v5692 = vshll.u32 %v5522, 16
      %v5694 = vor.u32 %v5691, %v5692
      %v5695 = vsel %vm1008, %v5687, %v5694
      %v5696 = vrot.slane %v5691, 4
      %v5698 = vshrl.u32 %v5523, 16
      %v5700 = vrot.slane %v5698, 7
      %v5701 = vshll.u32 %v5523, 16
      %v5703 = vor.u32 %v5700, %v5701
      %v5704 = vrot.slane %v5700, 4
      %v5706 = vshrl.u32 %v5524, 16
      %v5708 = vrot.slane %v5706, 7
      %v5709 = vshll.u32 %v5524, 16
      %v5711 = vor.u32 %v5708, %v5709
      %v5712 = vsel %vm1008, %v5704, %v5711
      %v5713 = vrot.slane %v5708, 4
      %v5715 = vshrl.u32 %v5525, 16
      %v5717 = vrot.slane %v5715, 7
      %v5718 = vshll.u32 %v5525, 16
      %v5720 = vor.u32 %v5717, %v5718
      %v5721 = vsel %vm1008, %v5713, %v5720
      %v5722 = vrot.slane %v5717, 4
      %v5724 = vshrl.u32 %v5526, 16
      %v5726 = vrot.slane %v5724, 7
      %v5727 = vshll.u32 %v5526, 16
      %v5729 = vor.u32 %v5726, %v5727
      %v5730 = vrot.slane %v5726, 4
      %v5732 = vshrl.u32 %v5527, 16
      %v5734 = vrot.slane %v5732, 7
      %v5735 = vshll.u32 %v5527, 16
      %v5737 = vor.u32 %v5734, %v5735
      %v5738 = vsel %vm1008, %v5730, %v5737
      %v5739 = vrot.slane %v5734, 4
      %v5741 = vshrl.u32 %v5528, 16
      %v5743 = vrot.slane %v5741, 7
      %v5744 = vshll.u32 %v5528, 16
      %v5746 = vor.u32 %v5743, %v5744
      %v5747 = vsel %vm1008, %v5739, %v5746
      %v5748 = vrot.slane %v5743, 4
      %v5750 = vshrl.u32 %v5529, 16
      %v5752 = vrot.slane %v5750, 7
      %v5753 = vshll.u32 %v5529, 16
      %v5755 = vor.u32 %v5752, %v5753
      %v5756 = vrot.slane %v5752, 4
      %v5758 = vshrl.u32 %v5530, 16
      %v5760 = vrot.slane %v5758, 7
      %v5761 = vshll.u32 %v5530, 16
      %v5763 = vor.u32 %v5760, %v5761
      %v5764 = vsel %vm1008, %v5756, %v5763
      %v5765 = vrot.slane %v5760, 4
      %v5767 = vshrl.u32 %v5531, 16
      %v5769 = vrot.slane %v5767, 7
      %v5770 = vshll.u32 %v5531, 16
      %v5772 = vor.u32 %v5769, %v5770
      %v5773 = vsel %vm1008, %v5765, %v5772
      %v5774 = vrot.slane %v5769, 4
      %v5776 = vshrl.u32 %v5532, 16
      %v5778 = vrot.slane %v5776, 7
      %v5779 = vshll.u32 %v5532, 16
      %v5781 = vor.u32 %v5778, %v5779
      %v5782 = vrot.slane %v5778, 4
      %v5784 = vshrl.u32 %v5533, 16
      %v5786 = vrot.slane %v5784, 7
      %v5787 = vshll.u32 %v5533, 16
      %v5789 = vor.u32 %v5786, %v5787
      %v5790 = vsel %vm1008, %v5782, %v5789
      %v5791 = vrot.slane %v5786, 4
      %v5793 = vshrl.u32 %v5534, 16
      %v5795 = vrot.slane %v5793, 7
      %v5796 = vshll.u32 %v5534, 16
      %v5798 = vor.u32 %v5795, %v5796
      %v5799 = vsel %vm1008, %v5791, %v5798
      %v5800 = vrot.slane %v5795, 4
      %v5802 = vshrl.u32 %v5535, 16
      %v5804 = vrot.slane %v5802, 7
      %v5805 = vshll.u32 %v5535, 16
      %v5807 = vor.u32 %v5804, %v5805
      %v5808 = vrot.slane %v5804, 4
      %v5810 = vshrl.u32 %v5536, 16
      %v5812 = vrot.slane %v5810, 7
      %v5813 = vshll.u32 %v5536, 16
      %v5815 = vor.u32 %v5812, %v5813
      %v5816 = vsel %vm1008, %v5808, %v5815
      %v5817 = vrot.slane %v5812, 4
      %v5819 = vshrl.u32 %v5537, 16
      %v5821 = vrot.slane %v5819, 7
      %v5822 = vshll.u32 %v5537, 16
      %v5824 = vor.u32 %v5821, %v5822
      %v5825 = vsel %vm1008, %v5817, %v5824
      %v5826 = vrot.slane %v5821, 4
      %v5828 = vshrl.u32 %v5538, 16
      %v5830 = vrot.slane %v5828, 7
      %v5831 = vshll.u32 %v5538, 16
      %v5833 = vor.u32 %v5830, %v5831
      %v5834 = vrot.slane %v5830, 4
      %v5836 = vshrl.u32 %v5539, 16
      %v5838 = vrot.slane %v5836, 7
      %v5839 = vshll.u32 %v5539, 16
      %v5841 = vor.u32 %v5838, %v5839
      %v5842 = vsel %vm1008, %v5834, %v5841
      %v5843 = vrot.slane %v5838, 4
      %v5845 = vshrl.u32 %v5540, 16
      %v5847 = vrot.slane %v5845, 7
      %v5848 = vshll.u32 %v5540, 16
      %v5850 = vor.u32 %v5847, %v5848
      %v5851 = vsel %vm1008, %v5843, %v5850
      %v5852 = vrot.slane %v5847, 4
      %v5901 = vsel %vm1101, %v5547, %v1916
      %5902 = vst [vmem:[#allocation2] sm:$0xf] %v5901
      %5903 = vst [vmem:[#allocation2 + $0x4] sm:$0xf] %v5556
      %5904 = vst [vmem:[#allocation2 + $0x8] sm:$0xf] %v5565
      %v5905 = vld [vmem:[#allocation2 + $0xc] sm:$0x1]
      %v5906 = vsel %vm1108, %v5566, %v5905
      %5907 = vst [vmem:[#allocation2 + $0xc] sm:$0x1] %v5906
      %v5908 = vld [vmem:[#allocation2 + $0x10] sm:$0xf]
      %v5909 = vsel %vm1101, %v5573, %v5908
      %5910 = vst [vmem:[#allocation2 + $0x10] sm:$0xf] %v5909
      %5911 = vst [vmem:[#allocation2 + $0x14] sm:$0xf] %v5582
      %5912 = vst [vmem:[#allocation2 + $0x18] sm:$0xf] %v5591
      %v5913 = vld [vmem:[#allocation2 + $0x1c] sm:$0x1]
      %v5914 = vsel %vm1108, %v5592, %v5913
      %5915 = vst [vmem:[#allocation2 + $0x1c] sm:$0x1] %v5914
      %v5916 = vld [vmem:[#allocation2 + $0x20] sm:$0xf]
      %v5917 = vsel %vm1101, %v5599, %v5916
      %5918 = vst [vmem:[#allocation2 + $0x20] sm:$0xf] %v5917
      %5919 = vst [vmem:[#allocation2 + $0x24] sm:$0xf] %v5608
      %5920 = vst [vmem:[#allocation2 + $0x28] sm:$0xf] %v5617
      %v5921 = vld [vmem:[#allocation2 + $0x2c] sm:$0x1]
      %v5922 = vsel %vm1108, %v5618, %v5921
      %5923 = vst [vmem:[#allocation2 + $0x2c] sm:$0x1] %v5922
      %v5924 = vld [vmem:[#allocation2 + $0x30] sm:$0xf]
      %v5925 = vsel %vm1101, %v5625, %v5924
      %5926 = vst [vmem:[#allocation2 + $0x30] sm:$0xf] %v5925
      %5927 = vst [vmem:[#allocation2 + $0x34] sm:$0xf] %v5634
      %5928 = vst [vmem:[#allocation2 + $0x38] sm:$0xf] %v5643
      %v5929 = vld [vmem:[#allocation2 + $0x3c] sm:$0x1]
      %v5930 = vsel %vm1108, %v5644, %v5929
      %5931 = vst [vmem:[#allocation2 + $0x3c] sm:$0x1] %v5930
      %v5932 = vld [vmem:[#allocation2 + $0x40] sm:$0xf]
      %v5933 = vsel %vm1101, %v5651, %v5932
      %5934 = vst [vmem:[#allocation2 + $0x40] sm:$0xf] %v5933
      %5935 = vst [vmem:[#allocation2 + $0x44] sm:$0xf] %v5660
      %5936 = vst [vmem:[#allocation2 + $0x48] sm:$0xf] %v5669
      %v5937 = vld [vmem:[#allocation2 + $0x4c] sm:$0x1]
      %v5938 = vsel %vm1108, %v5670, %v5937
      %5939 = vst [vmem:[#allocation2 + $0x4c] sm:$0x1] %v5938
      %v5940 = vld [vmem:[#allocation2 + $0x50] sm:$0xf]
      %v5941 = vsel %vm1101, %v5677, %v5940
      %5942 = vst [vmem:[#allocation2 + $0x50] sm:$0xf] %v5941
      %5943 = vst [vmem:[#allocation2 + $0x54] sm:$0xf] %v5686
      %5944 = vst [vmem:[#allocation2 + $0x58] sm:$0xf] %v5695
      %v5945 = vld [vmem:[#allocation2 + $0x5c] sm:$0x1]
      %v5946 = vsel %vm1108, %v5696, %v5945
      %5947 = vst [vmem:[#allocation2 + $0x5c] sm:$0x1] %v5946
      %v5948 = vld [vmem:[#allocation2 + $0x60] sm:$0xf]
      %v5949 = vsel %vm1101, %v5703, %v5948
      %5950 = vst [vmem:[#allocation2 + $0x60] sm:$0xf] %v5949
      %5951 = vst [vmem:[#allocation2 + $0x64] sm:$0xf] %v5712
      %5952 = vst [vmem:[#allocation2 + $0x68] sm:$0xf] %v5721
      %v5953 = vld [vmem:[#allocation2 + $0x6c] sm:$0x1]
      %v5954 = vsel %vm1108, %v5722, %v5953
      %5955 = vst [vmem:[#allocation2 + $0x6c] sm:$0x1] %v5954
      %v5956 = vld [vmem:[#allocation2 + $0x70] sm:$0xf]
      %v5957 = vsel %vm1101, %v5729, %v5956
      %5958 = vst [vmem:[#allocation2 + $0x70] sm:$0xf] %v5957
      %5959 = vst [vmem:[#allocation2 + $0x74] sm:$0xf] %v5738
      %5960 = vst [vmem:[#allocation2 + $0x78] sm:$0xf] %v5747
      %v5961 = vld [vmem:[#allocation2 + $0x7c] sm:$0x1]
      %v5962 = vsel %vm1108, %v5748, %v5961
      %5963 = vst [vmem:[#allocation2 + $0x7c] sm:$0x1] %v5962
      %v5964 = vld [vmem:[#allocation2 + $0x80] sm:$0xf]
      %v5965 = vsel %vm1101, %v5755, %v5964
      %5966 = vst [vmem:[#allocation2 + $0x80] sm:$0xf] %v5965
      %5967 = vst [vmem:[#allocation2 + $0x84] sm:$0xf] %v5764
      %5968 = vst [vmem:[#allocation2 + $0x88] sm:$0xf] %v5773
      %v5969 = vld [vmem:[#allocation2 + $0x8c] sm:$0x1]
      %v5970 = vsel %vm1108, %v5774, %v5969
      %5971 = vst [vmem:[#allocation2 + $0x8c] sm:$0x1] %v5970
      %v5972 = vld [vmem:[#allocation2 + $0x90] sm:$0xf]
      %v5973 = vsel %vm1101, %v5781, %v5972
      %5974 = vst [vmem:[#allocation2 + $0x90] sm:$0xf] %v5973
      %5975 = vst [vmem:[#allocation2 + $0x94] sm:$0xf] %v5790
      %5976 = vst [vmem:[#allocation2 + $0x98] sm:$0xf] %v5799
      %v5977 = vld [vmem:[#allocation2 + $0x9c] sm:$0x1]
      %v5978 = vsel %vm1108, %v5800, %v5977
      %5979 = vst [vmem:[#allocation2 + $0x9c] sm:$0x1] %v5978
      %v5980 = vld [vmem:[#allocation2 + $0xa0] sm:$0xf]
      %v5981 = vsel %vm1101, %v5807, %v5980
      %5982 = vst [vmem:[#allocation2 + $0xa0] sm:$0xf] %v5981
      %5983 = vst [vmem:[#allocation2 + $0xa4] sm:$0xf] %v5816
      %5984 = vst [vmem:[#allocation2 + $0xa8] sm:$0xf] %v5825
      %v5985 = vld [vmem:[#allocation2 + $0xac] sm:$0x1]
      %v5986 = vsel %vm1108, %v5826, %v5985
      %5987 = vst [vmem:[#allocation2 + $0xac] sm:$0x1] %v5986
      %v5988 = vld [vmem:[#allocation2 + $0xb0] sm:$0xf]
      %v5989 = vsel %vm1101, %v5833, %v5988
      %5990 = vst [vmem:[#allocation2 + $0xb0] sm:$0xf] %v5989
      %5991 = vst [vmem:[#allocation2 + $0xb4] sm:$0xf] %v5842
      %5992 = vst [vmem:[#allocation2 + $0xb8] sm:$0xf] %v5851
      %v5993 = vld [vmem:[#allocation2 + $0xbc] sm:$0x1]
      %v5994 = vsel %vm1108, %v5852, %v5993
      %5995 = vst [vmem:[#allocation2 + $0xbc] sm:$0x1] %v5994
      // Predicated region
      $region61: #{down_forward.1} parent=51 // pred_check
        %p5996 = pneg %p385
      $region62: #{down_forward.1} parent=51 // pred_check_branch
        %5998 = sbr.rel (%p5996) target = $region64
      $region63: #{down_forward.1} parent=51 // pred_region
        %v5999 = vld [vmem:[%s1448] sm:$0xf]
        %v6000 = vld [vmem:[%s1448 + $0x4] sm:$0xf]
        %v6001 = vld [vmem:[%s1448 + $0x8] sm:$0xf]
        %v6002 = vld [vmem:[%s1448 + $0xc] sm:$0x1]
        %v6003 = vld [vmem:[%s2422] sm:$0xf]
        %v6004 = vsel %vm1101, %v5999, %v6003
        %6005 = vst [vmem:[%s2422] sm:$0xf] %v6004
        %6006 = vst [vmem:[%s2422 + $0x4] sm:$0xf] %v6000
        %6007 = vst [vmem:[%s2422 + $0x8] sm:$0xf] %v6001
        %v6008 = vld [vmem:[%s2422 + $0xc] sm:$0x1]
        %v6009 = vsel %vm1108, %v6002, %v6008
        %6010 = vst [vmem:[%s2422 + $0xc] sm:$0x1] %v6009
      $region64: #{down_forward.1} parent=51 // pred_fallthru
        _
      // Predicated region
      $region65: #{down_forward.1} parent=51 // pred_check
        %p6011 = pneg %p386
      $region66: #{down_forward.1} parent=51 // pred_check_branch
        %6013 = sbr.rel (%p6011) target = $region68
      $region67: #{down_forward.1} parent=51 // pred_region
        %s6014 = scalar_lea.vmem [#allocation2], 128
        %v6015 = vld [vmem:[%s6014] sm:$0xf]
        %v6016 = vld [vmem:[%s6014 + $0x4] sm:$0xf]
        %v6017 = vld [vmem:[%s6014 + $0x8] sm:$0xf]
        %v6018 = vld [vmem:[%s6014 + $0xc] sm:$0x1]
        %s6019 = scalar_lea.vmem [#allocation2], 160
        %v6020 = vld [vmem:[%s6019] sm:$0xf]
        %v6021 = vsel %vm1101, %v6015, %v6020
        %6022 = vst [vmem:[%s6019] sm:$0xf] %v6021
        %6023 = vst [vmem:[%s6019 + $0x4] sm:$0xf] %v6016
        %6024 = vst [vmem:[%s6019 + $0x8] sm:$0xf] %v6017
        %v6025 = vld [vmem:[%s6019 + $0xc] sm:$0x1]
        %v6026 = vsel %vm1108, %v6018, %v6025
        %6027 = vst [vmem:[%s6019 + $0xc] sm:$0x1] %v6026
      $region68: #{down_forward.1} parent=51 // pred_fallthru
        _
      %v6028 = vld [vmem:[#allocation2] sm:$0x2]
      %v6029 = vld [vmem:[#allocation2 + $0x10] sm:$0x2]
      %v6030 = vld [vmem:[#allocation2 + $0x20] sm:$0x2]
      %v6031 = vld [vmem:[#allocation2 + $0x30] sm:$0x2]
      %v6032 = vld [vmem:[#allocation2 + $0x40] sm:$0x2]
      %v6033 = vld [vmem:[#allocation2 + $0x50] sm:$0x2]
      %v6034 = vld [vmem:[#allocation2 + $0x60] sm:$0x2]
      %v6035 = vld [vmem:[#allocation2 + $0x70] sm:$0x2]
      %v6036 = vld [vmem:[#allocation2 + $0x80] sm:$0x2]
      %v6037 = vld [vmem:[#allocation2 + $0x90] sm:$0x2]
      %v6038 = vld [vmem:[#allocation2 + $0xa0] sm:$0x2]
      %v6039 = vld [vmem:[#allocation2 + $0xb0] sm:$0x2]
      %v6052 = vrot.slane %v6028, 5
      %v6053 = vrot.slane %v6052, 4
      %v6054 = vrot.slane %v6029, 5
      %v6055 = vrot.slane %v6054, 4
      %v6056 = vrot.slane %v6030, 5
      %v6057 = vrot.slane %v6056, 4
      %v6058 = vrot.slane %v6031, 5
      %v6059 = vrot.slane %v6058, 4
      %v6060 = vrot.slane %v6032, 5
      %v6061 = vrot.slane %v6060, 4
      %v6062 = vrot.slane %v6033, 5
      %v6063 = vrot.slane %v6062, 4
      %v6064 = vrot.slane %v6034, 5
      %v6065 = vrot.slane %v6064, 4
      %v6066 = vrot.slane %v6035, 5
      %v6067 = vrot.slane %v6066, 4
      %v6068 = vrot.slane %v6036, 5
      %v6069 = vrot.slane %v6068, 4
      %v6070 = vrot.slane %v6037, 5
      %v6071 = vrot.slane %v6070, 4
      %v6072 = vrot.slane %v6038, 5
      %v6073 = vrot.slane %v6072, 4
      %v6074 = vrot.slane %v6039, 5
      %v6075 = vrot.slane %v6074, 4
      %v6088 = vld [vmem:[#allocation2] sm:$0x1]
      %v6089 = vsel %vm1108, %v6053, %v6088
      %6090 = vst [vmem:[#allocation2] sm:$0x1] %v6089
      %v6091 = vld [vmem:[#allocation2 + $0x10] sm:$0x1]
      %v6092 = vsel %vm1108, %v6055, %v6091
      %6093 = vst [vmem:[#allocation2 + $0x10] sm:$0x1] %v6092
      %v6094 = vld [vmem:[#allocation2 + $0x20] sm:$0x1]
      %v6095 = vsel %vm1108, %v6057, %v6094
      %6096 = vst [vmem:[#allocation2 + $0x20] sm:$0x1] %v6095
      %v6097 = vld [vmem:[#allocation2 + $0x30] sm:$0x1]
      %v6098 = vsel %vm1108, %v6059, %v6097
      %6099 = vst [vmem:[#allocation2 + $0x30] sm:$0x1] %v6098
      %v6100 = vld [vmem:[#allocation2 + $0x40] sm:$0x1]
      %v6101 = vsel %vm1108, %v6061, %v6100
      %6102 = vst [vmem:[#allocation2 + $0x40] sm:$0x1] %v6101
      %v6103 = vld [vmem:[#allocation2 + $0x50] sm:$0x1]
      %v6104 = vsel %vm1108, %v6063, %v6103
      %6105 = vst [vmem:[#allocation2 + $0x50] sm:$0x1] %v6104
      %v6106 = vld [vmem:[#allocation2 + $0x60] sm:$0x1]
      %v6107 = vsel %vm1108, %v6065, %v6106
      %6108 = vst [vmem:[#allocation2 + $0x60] sm:$0x1] %v6107
      %v6109 = vld [vmem:[#allocation2 + $0x70] sm:$0x1]
      %v6110 = vsel %vm1108, %v6067, %v6109
      %6111 = vst [vmem:[#allocation2 + $0x70] sm:$0x1] %v6110
      %v6112 = vld [vmem:[#allocation2 + $0x80] sm:$0x1]
      %v6113 = vsel %vm1108, %v6069, %v6112
      %6114 = vst [vmem:[#allocation2 + $0x80] sm:$0x1] %v6113
      %v6115 = vld [vmem:[#allocation2 + $0x90] sm:$0x1]
      %v6116 = vsel %vm1108, %v6071, %v6115
      %6117 = vst [vmem:[#allocation2 + $0x90] sm:$0x1] %v6116
      %v6118 = vld [vmem:[#allocation2 + $0xa0] sm:$0x1]
      %v6119 = vsel %vm1108, %v6073, %v6118
      %6120 = vst [vmem:[#allocation2 + $0xa0] sm:$0x1] %v6119
      %v6121 = vld [vmem:[#allocation2 + $0xb0] sm:$0x1]
      %v6122 = vsel %vm1108, %v6075, %v6121
      %6123 = vst [vmem:[#allocation2 + $0xb0] sm:$0x1] %v6122
      %v6124 = vld [vmem:[#allocation2 + $0x8] sm:$0x8]
      %v6125 = vld [vmem:[#allocation2 + $0x18] sm:$0x8]
      %v6126 = vld [vmem:[#allocation2 + $0x28] sm:$0x8]
      %v6127 = vld [vmem:[#allocation2 + $0x38] sm:$0x8]
      %v6128 = vld [vmem:[#allocation2 + $0x48] sm:$0x8]
      %v6129 = vld [vmem:[#allocation2 + $0x58] sm:$0x8]
      %v6130 = vld [vmem:[#allocation2 + $0x68] sm:$0x8]
      %v6131 = vld [vmem:[#allocation2 + $0x78] sm:$0x8]
      %v6132 = vld [vmem:[#allocation2 + $0x88] sm:$0x8]
      %v6133 = vld [vmem:[#allocation2 + $0x98] sm:$0x8]
      %v6134 = vld [vmem:[#allocation2 + $0xa8] sm:$0x8]
      %v6135 = vld [vmem:[#allocation2 + $0xb8] sm:$0x8]
      %v6148 = vrot.slane %v6124, 7
      %v6149 = vrot.slane %v6148, 4
      %v6150 = vrot.slane %v6125, 7
      %v6151 = vrot.slane %v6150, 4
      %v6152 = vrot.slane %v6126, 7
      %v6153 = vrot.slane %v6152, 4
      %v6154 = vrot.slane %v6127, 7
      %v6155 = vrot.slane %v6154, 4
      %v6156 = vrot.slane %v6128, 7
      %v6157 = vrot.slane %v6156, 4
      %v6158 = vrot.slane %v6129, 7
      %v6159 = vrot.slane %v6158, 4
      %v6160 = vrot.slane %v6130, 7
      %v6161 = vrot.slane %v6160, 4
      %v6162 = vrot.slane %v6131, 7
      %v6163 = vrot.slane %v6162, 4
      %v6164 = vrot.slane %v6132, 7
      %v6165 = vrot.slane %v6164, 4
      %v6166 = vrot.slane %v6133, 7
      %v6167 = vrot.slane %v6166, 4
      %v6168 = vrot.slane %v6134, 7
      %v6169 = vrot.slane %v6168, 4
      %v6170 = vrot.slane %v6135, 7
      %v6171 = vrot.slane %v6170, 4
      %v6184 = vld [vmem:[#allocation2 + $0xc] sm:$0x1]
      %v6185 = vsel %vm1873, %v6149, %v6184
      %6186 = vst [vmem:[#allocation2 + $0xc] sm:$0x1] %v6185
      %v6187 = vld [vmem:[#allocation2 + $0x1c] sm:$0x1]
      %v6188 = vsel %vm1873, %v6151, %v6187
      %6189 = vst [vmem:[#allocation2 + $0x1c] sm:$0x1] %v6188
      %v6190 = vld [vmem:[#allocation2 + $0x2c] sm:$0x1]
      %v6191 = vsel %vm1873, %v6153, %v6190
      %6192 = vst [vmem:[#allocation2 + $0x2c] sm:$0x1] %v6191
      %v6193 = vld [vmem:[#allocation2 + $0x3c] sm:$0x1]
      %v6194 = vsel %vm1873, %v6155, %v6193
      %6195 = vst [vmem:[#allocation2 + $0x3c] sm:$0x1] %v6194
      %v6196 = vld [vmem:[#allocation2 + $0x4c] sm:$0x1]
      %v6197 = vsel %vm1873, %v6157, %v6196
      %6198 = vst [vmem:[#allocation2 + $0x4c] sm:$0x1] %v6197
      %v6199 = vld [vmem:[#allocation2 + $0x5c] sm:$0x1]
      %v6200 = vsel %vm1873, %v6159, %v6199
      %6201 = vst [vmem:[#allocation2 + $0x5c] sm:$0x1] %v6200
      %v6202 = vld [vmem:[#allocation2 + $0x6c] sm:$0x1]
      %v6203 = vsel %vm1873, %v6161, %v6202
      %6204 = vst [vmem:[#allocation2 + $0x6c] sm:$0x1] %v6203
      %v6205 = vld [vmem:[#allocation2 + $0x7c] sm:$0x1]
      %v6206 = vsel %vm1873, %v6163, %v6205
      %6207 = vst [vmem:[#allocation2 + $0x7c] sm:$0x1] %v6206
      %v6208 = vld [vmem:[#allocation2 + $0x8c] sm:$0x1]
      %v6209 = vsel %vm1873, %v6165, %v6208
      %6210 = vst [vmem:[#allocation2 + $0x8c] sm:$0x1] %v6209
      %v6211 = vld [vmem:[#allocation2 + $0x9c] sm:$0x1]
      %v6212 = vsel %vm1873, %v6167, %v6211
      %6213 = vst [vmem:[#allocation2 + $0x9c] sm:$0x1] %v6212
      %v6214 = vld [vmem:[#allocation2 + $0xac] sm:$0x1]
      %v6215 = vsel %vm1873, %v6169, %v6214
      %6216 = vst [vmem:[#allocation2 + $0xac] sm:$0x1] %v6215
      %v6217 = vld [vmem:[#allocation2 + $0xbc] sm:$0x1]
      %v6218 = vsel %vm1873, %v6171, %v6217
      %6219 = vst [vmem:[#allocation2 + $0xbc] sm:$0x1] %v6218
      %v6220 = vld [vmem:[#allocation2] sm:$0xf]
      %v6221 = vld [vmem:[#allocation2 + $0x4] sm:$0xf]
      %v6222 = vld [vmem:[#allocation2 + $0x8] sm:$0xf]
      %v6223 = vld [vmem:[#allocation2 + $0xc] sm:$0x1]
      %v6224 = vld [vmem:[#allocation2 + $0x10] sm:$0xf]
      %v6225 = vld [vmem:[#allocation2 + $0x14] sm:$0xf]
      %v6226 = vld [vmem:[#allocation2 + $0x18] sm:$0xf]
      %v6227 = vld [vmem:[#allocation2 + $0x1c] sm:$0x1]
      %v6228 = vld [vmem:[#allocation2 + $0x20] sm:$0xf]
      %v6229 = vld [vmem:[#allocation2 + $0x24] sm:$0xf]
      %v6230 = vld [vmem:[#allocation2 + $0x28] sm:$0xf]
      %v6231 = vld [vmem:[#allocation2 + $0x2c] sm:$0x1]
      %v6232 = vld [vmem:[#allocation2 + $0x30] sm:$0xf]
      %v6233 = vld [vmem:[#allocation2 + $0x34] sm:$0xf]
      %v6234 = vld [vmem:[#allocation2 + $0x38] sm:$0xf]
      %v6235 = vld [vmem:[#allocation2 + $0x3c] sm:$0x1]
      %v6236 = vld [vmem:[#allocation2 + $0x40] sm:$0xf]
      %v6237 = vld [vmem:[#allocation2 + $0x44] sm:$0xf]
      %v6238 = vld [vmem:[#allocation2 + $0x48] sm:$0xf]
      %v6239 = vld [vmem:[#allocation2 + $0x4c] sm:$0x1]
      %v6240 = vld [vmem:[#allocation2 + $0x50] sm:$0xf]
      %v6241 = vld [vmem:[#allocation2 + $0x54] sm:$0xf]
      %v6242 = vld [vmem:[#allocation2 + $0x58] sm:$0xf]
      %v6243 = vld [vmem:[#allocation2 + $0x5c] sm:$0x1]
      %v6244 = vld [vmem:[#allocation2 + $0x60] sm:$0xf]
      %v6245 = vld [vmem:[#allocation2 + $0x64] sm:$0xf]
      %v6246 = vld [vmem:[#allocation2 + $0x68] sm:$0xf]
      %v6247 = vld [vmem:[#allocation2 + $0x6c] sm:$0x1]
      %v6248 = vld [vmem:[#allocation2 + $0x70] sm:$0xf]
      %v6249 = vld [vmem:[#allocation2 + $0x74] sm:$0xf]
      %v6250 = vld [vmem:[#allocation2 + $0x78] sm:$0xf]
      %v6251 = vld [vmem:[#allocation2 + $0x7c] sm:$0x1]
      %v6252 = vld [vmem:[#allocation2 + $0x80] sm:$0xf]
      %v6253 = vld [vmem:[#allocation2 + $0x84] sm:$0xf]
      %v6254 = vld [vmem:[#allocation2 + $0x88] sm:$0xf]
      %v6255 = vld [vmem:[#allocation2 + $0x8c] sm:$0x1]
      %v6256 = vld [vmem:[#allocation2 + $0x90] sm:$0xf]
      %v6257 = vld [vmem:[#allocation2 + $0x94] sm:$0xf]
      %v6258 = vld [vmem:[#allocation2 + $0x98] sm:$0xf]
      %v6259 = vld [vmem:[#allocation2 + $0x9c] sm:$0x1]
      %v6290 = vunpack.c.l.b16 %v6220
      %v6291 = vunpack.c.l.b16 %v6221
      %v6292 = vunpack.c.l.b16 %v6222
      %v6293 = vunpack.c.l.b16 %v6224
      %v6294 = vunpack.c.l.b16 %v6225
      %v6295 = vunpack.c.l.b16 %v6226
      %v6296 = vunpack.c.l.b16 %v6228
      %v6297 = vunpack.c.l.b16 %v6229
      %v6298 = vunpack.c.l.b16 %v6230
      %v6299 = vunpack.c.l.b16 %v6232
      %v6300 = vunpack.c.l.b16 %v6233
      %v6301 = vunpack.c.l.b16 %v6234
      %v6302 = vunpack.c.l.b16 %v6236
      %v6303 = vunpack.c.l.b16 %v6237
      %v6304 = vunpack.c.l.b16 %v6238
      %v6305 = vunpack.c.l.b16 %v6240
      %v6306 = vunpack.c.l.b16 %v6241
      %v6307 = vunpack.c.l.b16 %v6242
      %v6308 = vunpack.c.l.b16 %v6244
      %v6309 = vunpack.c.l.b16 %v6245
      %v6310 = vunpack.c.l.b16 %v6246
      %v6311 = vunpack.c.l.b16 %v6248
      %v6312 = vunpack.c.l.b16 %v6249
      %v6313 = vunpack.c.l.b16 %v6250
      %v6314 = vunpack.c.l.b16 %v6252
      %v6315 = vunpack.c.l.b16 %v6253
      %v6316 = vunpack.c.l.b16 %v6254
      %v6317 = vunpack.c.l.b16 %v6256
      %v6318 = vunpack.c.l.b16 %v6257
      %v6319 = vunpack.c.l.b16 %v6258
      %v6330 = vunpack.c.l.b16 %v6223
      %v6331 = vunpack.c.l.b16 %v6227
      %v6332 = vunpack.c.l.b16 %v6231
      %v6333 = vunpack.c.l.b16 %v6235
      %v6334 = vunpack.c.l.b16 %v6239
      %v6335 = vunpack.c.l.b16 %v6243
      %v6336 = vunpack.c.l.b16 %v6247
      %v6337 = vunpack.c.l.b16 %v6251
      %v6338 = vunpack.c.l.b16 %v6255
      %v6339 = vunpack.c.l.b16 %v6259
      %v6340 = vpack.c.b16 %v6291, %v6290
      %v6341 = vpack.c.b16 %v6330, %v6292
      %v6342 = vpack.c.b16 %v6294, %v6293
      %v6343 = vpack.c.b16 %v6331, %v6295
      %v6344 = vpack.c.b16 %v6297, %v6296
      %v6345 = vpack.c.b16 %v6332, %v6298
      %v6346 = vpack.c.b16 %v6300, %v6299
      %v6347 = vpack.c.b16 %v6333, %v6301
      %v6348 = vpack.c.b16 %v6303, %v6302
      %v6349 = vpack.c.b16 %v6334, %v6304
      %v6350 = vpack.c.b16 %v6306, %v6305
      %v6351 = vpack.c.b16 %v6335, %v6307
      %v6352 = vpack.c.b16 %v6309, %v6308
      %v6353 = vpack.c.b16 %v6336, %v6310
      %v6354 = vpack.c.b16 %v6312, %v6311
      %v6355 = vpack.c.b16 %v6337, %v6313
      %v6356 = vpack.c.b16 %v6315, %v6314
      %v6357 = vpack.c.b16 %v6338, %v6316
      %v6358 = vpack.c.b16 %v6318, %v6317
      %v6359 = vpack.c.b16 %v6339, %v6319
      %v6361 = vshrl.u32 %v6340, 16
      %v6363 = vshll.u32 %v6340, 16
      %v6365 = vrot.slane %v6363, 1
      %v6366 = vor.u32 %v6361, %v6365
      %v6368 = vshll.u32 %v6341, 16
      %v6370 = vrot.slane %v6368, 1
      %v6371 = vsel %vm2084, %v6366, %v6370
      %v6372 = vshrl.u32 %v6341, 16
      %v6374 = vor.u32 %v6372, %v6370
      %v6376 = vshrl.u32 %v6342, 16
      %v6378 = vshll.u32 %v6342, 16
      %v6380 = vrot.slane %v6378, 1
      %v6381 = vor.u32 %v6376, %v6380
      %v6383 = vshll.u32 %v6343, 16
      %v6385 = vrot.slane %v6383, 1
      %v6386 = vsel %vm2084, %v6381, %v6385
      %v6387 = vshrl.u32 %v6343, 16
      %v6389 = vor.u32 %v6387, %v6385
      %v6391 = vshrl.u32 %v6344, 16
      %v6393 = vshll.u32 %v6344, 16
      %v6395 = vrot.slane %v6393, 1
      %v6396 = vor.u32 %v6391, %v6395
      %v6398 = vshll.u32 %v6345, 16
      %v6400 = vrot.slane %v6398, 1
      %v6401 = vsel %vm2084, %v6396, %v6400
      %v6402 = vshrl.u32 %v6345, 16
      %v6404 = vor.u32 %v6402, %v6400
      %v6406 = vshrl.u32 %v6346, 16
      %v6408 = vshll.u32 %v6346, 16
      %v6410 = vrot.slane %v6408, 1
      %v6411 = vor.u32 %v6406, %v6410
      %v6413 = vshll.u32 %v6347, 16
      %v6415 = vrot.slane %v6413, 1
      %v6416 = vsel %vm2084, %v6411, %v6415
      %v6417 = vshrl.u32 %v6347, 16
      %v6419 = vor.u32 %v6417, %v6415
      %v6421 = vshrl.u32 %v6348, 16
      %v6423 = vshll.u32 %v6348, 16
      %v6425 = vrot.slane %v6423, 1
      %v6426 = vor.u32 %v6421, %v6425
      %v6428 = vshll.u32 %v6349, 16
      %v6430 = vrot.slane %v6428, 1
      %v6431 = vsel %vm2084, %v6426, %v6430
      %v6432 = vshrl.u32 %v6349, 16
      %v6434 = vor.u32 %v6432, %v6430
      %v6436 = vshrl.u32 %v6350, 16
      %v6438 = vshll.u32 %v6350, 16
      %v6440 = vrot.slane %v6438, 1
      %v6441 = vor.u32 %v6436, %v6440
      %v6443 = vshll.u32 %v6351, 16
      %v6445 = vrot.slane %v6443, 1
      %v6446 = vsel %vm2084, %v6441, %v6445
      %v6447 = vshrl.u32 %v6351, 16
      %v6449 = vor.u32 %v6447, %v6445
      %v6451 = vshrl.u32 %v6352, 16
      %v6453 = vshll.u32 %v6352, 16
      %v6455 = vrot.slane %v6453, 1
      %v6456 = vor.u32 %v6451, %v6455
      %v6458 = vshll.u32 %v6353, 16
      %v6460 = vrot.slane %v6458, 1
      %v6461 = vsel %vm2084, %v6456, %v6460
      %v6462 = vshrl.u32 %v6353, 16
      %v6464 = vor.u32 %v6462, %v6460
      %v6466 = vshrl.u32 %v6354, 16
      %v6468 = vshll.u32 %v6354, 16
      %v6470 = vrot.slane %v6468, 1
      %v6471 = vor.u32 %v6466, %v6470
      %v6473 = vshll.u32 %v6355, 16
      %v6475 = vrot.slane %v6473, 1
      %v6476 = vsel %vm2084, %v6471, %v6475
      %v6477 = vshrl.u32 %v6355, 16
      %v6479 = vor.u32 %v6477, %v6475
      %v6481 = vshrl.u32 %v6356, 16
      %v6483 = vshll.u32 %v6356, 16
      %v6485 = vrot.slane %v6483, 1
      %v6486 = vor.u32 %v6481, %v6485
      %v6488 = vshll.u32 %v6357, 16
      %v6490 = vrot.slane %v6488, 1
      %v6491 = vsel %vm2084, %v6486, %v6490
      %v6492 = vshrl.u32 %v6357, 16
      %v6494 = vor.u32 %v6492, %v6490
      %v6496 = vshrl.u32 %v6358, 16
      %v6498 = vshll.u32 %v6358, 16
      %v6500 = vrot.slane %v6498, 1
      %v6501 = vor.u32 %v6496, %v6500
      %v6503 = vshll.u32 %v6359, 16
      %v6505 = vrot.slane %v6503, 1
      %v6506 = vsel %vm2084, %v6501, %v6505
      %v6507 = vshrl.u32 %v6359, 16
      %v6509 = vor.u32 %v6507, %v6505
      %v6510 = vrot.slane %v6340, 1
      %v6511 = vrot.slane %v6341, 1
      %v6512 = vsel %vm2265, %v6510, %v6511
      %v6513 = vrot.slane %v6342, 1
      %v6514 = vrot.slane %v6343, 1
      %v6515 = vsel %vm2265, %v6513, %v6514
      %v6516 = vrot.slane %v6344, 1
      %v6517 = vrot.slane %v6345, 1
      %v6518 = vsel %vm2265, %v6516, %v6517
      %v6519 = vrot.slane %v6346, 1
      %v6520 = vrot.slane %v6347, 1
      %v6521 = vsel %vm2265, %v6519, %v6520
      %v6522 = vrot.slane %v6348, 1
      %v6523 = vrot.slane %v6349, 1
      %v6524 = vsel %vm2265, %v6522, %v6523
      %v6525 = vrot.slane %v6350, 1
      %v6526 = vrot.slane %v6351, 1
      %v6527 = vsel %vm2265, %v6525, %v6526
      %v6528 = vrot.slane %v6352, 1
      %v6529 = vrot.slane %v6353, 1
      %v6530 = vsel %vm2265, %v6528, %v6529
      %v6531 = vrot.slane %v6354, 1
      %v6532 = vrot.slane %v6355, 1
      %v6533 = vsel %vm2265, %v6531, %v6532
      %v6534 = vrot.slane %v6356, 1
      %v6535 = vrot.slane %v6357, 1
      %v6536 = vsel %vm2265, %v6534, %v6535
      %v6537 = vrot.slane %v6358, 1
      %v6538 = vrot.slane %v6359, 1
      %v6539 = vsel %vm2265, %v6537, %v6538
      %v6540 = vunpack.c.l.b16 %v6371
      %v6541 = vunpack.c.l.b16 %v6512
      %v6542 = vunpack.c.h.b16 %v6371
      %v6543 = vunpack.c.h.b16 %v6512
      %v6544 = vunpack.c.l.b16 %v6374
      %v6545 = vunpack.c.l.b16 %v6511
      %v6546 = vunpack.c.l.b16 %v6386
      %v6547 = vunpack.c.l.b16 %v6515
      %v6548 = vunpack.c.h.b16 %v6386
      %v6549 = vunpack.c.h.b16 %v6515
      %v6550 = vunpack.c.l.b16 %v6389
      %v6551 = vunpack.c.l.b16 %v6514
      %v6552 = vunpack.c.l.b16 %v6401
      %v6553 = vunpack.c.l.b16 %v6518
      %v6554 = vunpack.c.h.b16 %v6401
      %v6555 = vunpack.c.h.b16 %v6518
      %v6556 = vunpack.c.l.b16 %v6404
      %v6557 = vunpack.c.l.b16 %v6517
      %v6558 = vunpack.c.l.b16 %v6416
      %v6559 = vunpack.c.l.b16 %v6521
      %v6560 = vunpack.c.h.b16 %v6416
      %v6561 = vunpack.c.h.b16 %v6521
      %v6562 = vunpack.c.l.b16 %v6419
      %v6563 = vunpack.c.l.b16 %v6520
      %v6564 = vunpack.c.l.b16 %v6431
      %v6565 = vunpack.c.l.b16 %v6524
      %v6566 = vunpack.c.h.b16 %v6431
      %v6567 = vunpack.c.h.b16 %v6524
      %v6568 = vunpack.c.l.b16 %v6434
      %v6569 = vunpack.c.l.b16 %v6523
      %v6570 = vunpack.c.l.b16 %v6446
      %v6571 = vunpack.c.l.b16 %v6527
      %v6572 = vunpack.c.h.b16 %v6446
      %v6573 = vunpack.c.h.b16 %v6527
      %v6574 = vunpack.c.l.b16 %v6449
      %v6575 = vunpack.c.l.b16 %v6526
      %v6576 = vunpack.c.l.b16 %v6461
      %v6577 = vunpack.c.l.b16 %v6530
      %v6578 = vunpack.c.h.b16 %v6461
      %v6579 = vunpack.c.h.b16 %v6530
      %v6580 = vunpack.c.l.b16 %v6464
      %v6581 = vunpack.c.l.b16 %v6529
      %v6582 = vunpack.c.l.b16 %v6476
      %v6583 = vunpack.c.l.b16 %v6533
      %v6584 = vunpack.c.h.b16 %v6476
      %v6585 = vunpack.c.h.b16 %v6533
      %v6586 = vunpack.c.l.b16 %v6479
      %v6587 = vunpack.c.l.b16 %v6532
      %v6588 = vunpack.c.l.b16 %v6491
      %v6589 = vunpack.c.l.b16 %v6536
      %v6590 = vunpack.c.h.b16 %v6491
      %v6591 = vunpack.c.h.b16 %v6536
      %v6592 = vunpack.c.l.b16 %v6494
      %v6593 = vunpack.c.l.b16 %v6535
      %v6594 = vunpack.c.l.b16 %v6506
      %v6595 = vunpack.c.l.b16 %v6539
      %v6596 = vunpack.c.h.b16 %v6506
      %v6597 = vunpack.c.h.b16 %v6539
      %v6598 = vunpack.c.l.b16 %v6509
      %v6599 = vunpack.c.l.b16 %v6538
      %v6600 = vld [vmem:[%s4] sm:$0xf]
      %v6601 = vld [vmem:[%s4 + $0x4] sm:$0xf]
      %v6602 = vld [vmem:[%s4 + $0x8] sm:$0xf]
      %v6603 = vld [vmem:[%s4 + $0xc] sm:$0xf]
      %v6604 = vld [vmem:[%s4 + $0x10] sm:$0xf]
      %v6605 = vld [vmem:[%s4 + $0x14] sm:$0xf]
      %v6606 = vld [vmem:[%s4 + $0x18] sm:$0xf]
      %v6607 = vld [vmem:[%s4 + $0x1c] sm:$0xf]
      %v6608 = vld [vmem:[%s4 + $0x20] sm:$0xf]
      %v6609 = vld [vmem:[%s4 + $0x24] sm:$0xf]
      %v6610 = vld [vmem:[%s4 + $0x28] sm:$0xf]
      %v6611 = vld [vmem:[%s4 + $0x2c] sm:$0xf]
      %v6612 = vld [vmem:[%s4 + $0x30] sm:$0xf]
      %v6613 = vld [vmem:[%s4 + $0x34] sm:$0xf]
      %v6614 = vld [vmem:[%s4 + $0x38] sm:$0xf]
      %v6615 = vld [vmem:[%s4 + $0x3c] sm:$0xf]
      %v6616 = vld [vmem:[%s4 + $0x40] sm:$0xf]
      %v6617 = vld [vmem:[%s4 + $0x44] sm:$0xf]
      %v6618 = vld [vmem:[%s4 + $0x48] sm:$0xf]
      %v6619 = vld [vmem:[%s4 + $0x4c] sm:$0xf]
      %v6620 = vld [vmem:[%s4 + $0x50] sm:$0xf]
      %v6621 = vld [vmem:[%s4 + $0x54] sm:$0xf]
      %v6622 = vld [vmem:[%s4 + $0x58] sm:$0xf]
      %v6623 = vld [vmem:[%s4 + $0x5c] sm:$0xf]
      %v6624 = vld [vmem:[%s4 + $0x60] sm:$0xf]
      %v6625 = vld [vmem:[%s4 + $0x64] sm:$0xf]
      %v6626 = vld [vmem:[%s4 + $0x68] sm:$0xf]
      %v6627 = vld [vmem:[%s4 + $0x6c] sm:$0xf]
      %v6628 = vld [vmem:[%s4 + $0x70] sm:$0xf]
      %v6629 = vld [vmem:[%s4 + $0x74] sm:$0xf]
      %v6630 = vld [vmem:[%s4 + $0x78] sm:$0xf]
      %v6631 = vld [vmem:[%s4 + $0x7c] sm:$0xf]
      %v6632 = vld [vmem:[%s4 + $0x80] sm:$0xf]
      %v6633 = vld [vmem:[%s4 + $0x84] sm:$0xf]
      %v6634 = vld [vmem:[%s4 + $0x88] sm:$0xf]
      %v6635 = vld [vmem:[%s4 + $0x8c] sm:$0xf]
      %v6636 = vld [vmem:[%s4 + $0x90] sm:$0xf]
      %v6637 = vld [vmem:[%s4 + $0x94] sm:$0xf]
      %v6638 = vld [vmem:[%s4 + $0x98] sm:$0xf]
      %v6639 = vld [vmem:[%s4 + $0x9c] sm:$0xf]
      %v6640 = vld [vmem:[%s4 + $0xa0] sm:$0xf]
      %v6641 = vld [vmem:[%s4 + $0xa4] sm:$0xf]
      %v6642 = vld [vmem:[%s4 + $0xa8] sm:$0xf]
      %v6643 = vld [vmem:[%s4 + $0xac] sm:$0xf]
      %v6644 = vld [vmem:[%s4 + $0xb0] sm:$0xf]
      %v6645 = vld [vmem:[%s4 + $0xb4] sm:$0xf]
      %v6646 = vld [vmem:[%s4 + $0xb8] sm:$0xf]
      %v6647 = vld [vmem:[%s4 + $0xbc] sm:$0xf]
      %v6648 = vld [vmem:[%s2422] sm:$0xf]
      %v6649 = vld [vmem:[%s2422 + $0x4] sm:$0xf]
      %v6650 = vld [vmem:[%s2422 + $0x8] sm:$0xf]
      %v6651 = vld [vmem:[%s2422 + $0xc] sm:$0x1]
      %v6652 = vld [vmem:[%s2422 + $0x10] sm:$0xf]
      %v6653 = vld [vmem:[%s2422 + $0x14] sm:$0xf]
      %v6654 = vld [vmem:[%s2422 + $0x18] sm:$0xf]
      %v6655 = vld [vmem:[%s2422 + $0x1c] sm:$0x1]
      %v6656 = vld [vmem:[%s2422 + $0x20] sm:$0xf]
      %v6657 = vld [vmem:[%s2422 + $0x24] sm:$0xf]
      %v6658 = vld [vmem:[%s2422 + $0x28] sm:$0xf]
      %v6659 = vld [vmem:[%s2422 + $0x2c] sm:$0x1]
      %v6660 = vld [vmem:[%s2422 + $0x30] sm:$0xf]
      %v6661 = vld [vmem:[%s2422 + $0x34] sm:$0xf]
      %v6662 = vld [vmem:[%s2422 + $0x38] sm:$0xf]
      %v6663 = vld [vmem:[%s2422 + $0x3c] sm:$0x1]
      %v6664 = vld [vmem:[%s2422 + $0x40] sm:$0xf]
      %v6665 = vld [vmem:[%s2422 + $0x44] sm:$0xf]
      %v6666 = vld [vmem:[%s2422 + $0x48] sm:$0xf]
      %v6667 = vld [vmem:[%s2422 + $0x4c] sm:$0x1]
      %v6668 = vld [vmem:[%s2422 + $0x50] sm:$0xf]
      %v6669 = vld [vmem:[%s2422 + $0x54] sm:$0xf]
      %v6670 = vld [vmem:[%s2422 + $0x58] sm:$0xf]
      %v6671 = vld [vmem:[%s2422 + $0x5c] sm:$0x1]
      %v6672 = vld [vmem:[%s2422 + $0x60] sm:$0xf]
      %v6673 = vld [vmem:[%s2422 + $0x64] sm:$0xf]
      %v6674 = vld [vmem:[%s2422 + $0x68] sm:$0xf]
      %v6675 = vld [vmem:[%s2422 + $0x6c] sm:$0x1]
      %v6676 = vld [vmem:[%s2422 + $0x70] sm:$0xf]
      %v6677 = vld [vmem:[%s2422 + $0x74] sm:$0xf]
      %v6678 = vld [vmem:[%s2422 + $0x78] sm:$0xf]
      %v6679 = vld [vmem:[%s2422 + $0x7c] sm:$0x1]
      %v6680 = vld [vmem:[%s2422 + $0x80] sm:$0xf]
      %v6681 = vld [vmem:[%s2422 + $0x84] sm:$0xf]
      %v6682 = vld [vmem:[%s2422 + $0x88] sm:$0xf]
      %v6683 = vld [vmem:[%s2422 + $0x8c] sm:$0x1]
      %v6684 = vld [vmem:[%s2422 + $0x90] sm:$0xf]
      %v6685 = vld [vmem:[%s2422 + $0x94] sm:$0xf]
      %v6686 = vld [vmem:[%s2422 + $0x98] sm:$0xf]
      %v6687 = vld [vmem:[%s2422 + $0x9c] sm:$0x1]
      %v6718 = vunpack.c.l.b16 %v6648
      %v6719 = vunpack.c.l.b16 %v6649
      %v6720 = vunpack.c.l.b16 %v6650
      %v6721 = vunpack.c.l.b16 %v6652
      %v6722 = vunpack.c.l.b16 %v6653
      %v6723 = vunpack.c.l.b16 %v6654
      %v6724 = vunpack.c.l.b16 %v6656
      %v6725 = vunpack.c.l.b16 %v6657
      %v6726 = vunpack.c.l.b16 %v6658
      %v6727 = vunpack.c.l.b16 %v6660
      %v6728 = vunpack.c.l.b16 %v6661
      %v6729 = vunpack.c.l.b16 %v6662
      %v6730 = vunpack.c.l.b16 %v6664
      %v6731 = vunpack.c.l.b16 %v6665
      %v6732 = vunpack.c.l.b16 %v6666
      %v6733 = vunpack.c.l.b16 %v6668
      %v6734 = vunpack.c.l.b16 %v6669
      %v6735 = vunpack.c.l.b16 %v6670
      %v6736 = vunpack.c.l.b16 %v6672
      %v6737 = vunpack.c.l.b16 %v6673
      %v6738 = vunpack.c.l.b16 %v6674
      %v6739 = vunpack.c.l.b16 %v6676
      %v6740 = vunpack.c.l.b16 %v6677
      %v6741 = vunpack.c.l.b16 %v6678
      %v6742 = vunpack.c.l.b16 %v6680
      %v6743 = vunpack.c.l.b16 %v6681
      %v6744 = vunpack.c.l.b16 %v6682
      %v6745 = vunpack.c.l.b16 %v6684
      %v6746 = vunpack.c.l.b16 %v6685
      %v6747 = vunpack.c.l.b16 %v6686
      %v6758 = vunpack.c.l.b16 %v6651
      %v6759 = vunpack.c.l.b16 %v6655
      %v6760 = vunpack.c.l.b16 %v6659
      %v6761 = vunpack.c.l.b16 %v6663
      %v6762 = vunpack.c.l.b16 %v6667
      %v6763 = vunpack.c.l.b16 %v6671
      %v6764 = vunpack.c.l.b16 %v6675
      %v6765 = vunpack.c.l.b16 %v6679
      %v6766 = vunpack.c.l.b16 %v6683
      %v6767 = vunpack.c.l.b16 %v6687
      %v6768 = vpack.c.b16 %v6719, %v6718
      %v6769 = vpack.c.b16 %v6758, %v6720
      %v6770 = vpack.c.b16 %v6722, %v6721
      %v6771 = vpack.c.b16 %v6759, %v6723
      %v6772 = vpack.c.b16 %v6725, %v6724
      %v6773 = vpack.c.b16 %v6760, %v6726
      %v6774 = vpack.c.b16 %v6728, %v6727
      %v6775 = vpack.c.b16 %v6761, %v6729
      %v6776 = vpack.c.b16 %v6731, %v6730
      %v6777 = vpack.c.b16 %v6762, %v6732
      %v6778 = vpack.c.b16 %v6734, %v6733
      %v6779 = vpack.c.b16 %v6763, %v6735
      %v6780 = vpack.c.b16 %v6737, %v6736
      %v6781 = vpack.c.b16 %v6764, %v6738
      %v6782 = vpack.c.b16 %v6740, %v6739
      %v6783 = vpack.c.b16 %v6765, %v6741
      %v6784 = vpack.c.b16 %v6743, %v6742
      %v6785 = vpack.c.b16 %v6766, %v6744
      %v6786 = vpack.c.b16 %v6746, %v6745
      %v6787 = vpack.c.b16 %v6767, %v6747
      %v6789 = vshrl.u32 %v6768, 16
      %v6791 = vshll.u32 %v6768, 16
      %v6793 = vrot.slane %v6791, 1
      %v6794 = vor.u32 %v6789, %v6793
      %v6796 = vshll.u32 %v6769, 16
      %v6798 = vrot.slane %v6796, 1
      %v6799 = vsel %vm2084, %v6794, %v6798
      %v6800 = vshrl.u32 %v6769, 16
      %v6802 = vor.u32 %v6800, %v6798
      %v6804 = vshrl.u32 %v6770, 16
      %v6806 = vshll.u32 %v6770, 16
      %v6808 = vrot.slane %v6806, 1
      %v6809 = vor.u32 %v6804, %v6808
      %v6811 = vshll.u32 %v6771, 16
      %v6813 = vrot.slane %v6811, 1
      %v6814 = vsel %vm2084, %v6809, %v6813
      %v6815 = vshrl.u32 %v6771, 16
      %v6817 = vor.u32 %v6815, %v6813
      %v6819 = vshrl.u32 %v6772, 16
      %v6821 = vshll.u32 %v6772, 16
      %v6823 = vrot.slane %v6821, 1
      %v6824 = vor.u32 %v6819, %v6823
      %v6826 = vshll.u32 %v6773, 16
      %v6828 = vrot.slane %v6826, 1
      %v6829 = vsel %vm2084, %v6824, %v6828
      %v6830 = vshrl.u32 %v6773, 16
      %v6832 = vor.u32 %v6830, %v6828
      %v6834 = vshrl.u32 %v6774, 16
      %v6836 = vshll.u32 %v6774, 16
      %v6838 = vrot.slane %v6836, 1
      %v6839 = vor.u32 %v6834, %v6838
      %v6841 = vshll.u32 %v6775, 16
      %v6843 = vrot.slane %v6841, 1
      %v6844 = vsel %vm2084, %v6839, %v6843
      %v6845 = vshrl.u32 %v6775, 16
      %v6847 = vor.u32 %v6845, %v6843
      %v6849 = vshrl.u32 %v6776, 16
      %v6851 = vshll.u32 %v6776, 16
      %v6853 = vrot.slane %v6851, 1
      %v6854 = vor.u32 %v6849, %v6853
      %v6856 = vshll.u32 %v6777, 16
      %v6858 = vrot.slane %v6856, 1
      %v6859 = vsel %vm2084, %v6854, %v6858
      %v6860 = vshrl.u32 %v6777, 16
      %v6862 = vor.u32 %v6860, %v6858
      %v6864 = vshrl.u32 %v6778, 16
      %v6866 = vshll.u32 %v6778, 16
      %v6868 = vrot.slane %v6866, 1
      %v6869 = vor.u32 %v6864, %v6868
      %v6871 = vshll.u32 %v6779, 16
      %v6873 = vrot.slane %v6871, 1
      %v6874 = vsel %vm2084, %v6869, %v6873
      %v6875 = vshrl.u32 %v6779, 16
      %v6877 = vor.u32 %v6875, %v6873
      %v6879 = vshrl.u32 %v6780, 16
      %v6881 = vshll.u32 %v6780, 16
      %v6883 = vrot.slane %v6881, 1
      %v6884 = vor.u32 %v6879, %v6883
      %v6886 = vshll.u32 %v6781, 16
      %v6888 = vrot.slane %v6886, 1
      %v6889 = vsel %vm2084, %v6884, %v6888
      %v6890 = vshrl.u32 %v6781, 16
      %v6892 = vor.u32 %v6890, %v6888
      %v6894 = vshrl.u32 %v6782, 16
      %v6896 = vshll.u32 %v6782, 16
      %v6898 = vrot.slane %v6896, 1
      %v6899 = vor.u32 %v6894, %v6898
      %v6901 = vshll.u32 %v6783, 16
      %v6903 = vrot.slane %v6901, 1
      %v6904 = vsel %vm2084, %v6899, %v6903
      %v6905 = vshrl.u32 %v6783, 16
      %v6907 = vor.u32 %v6905, %v6903
      %v6909 = vshrl.u32 %v6784, 16
      %v6911 = vshll.u32 %v6784, 16
      %v6913 = vrot.slane %v6911, 1
      %v6914 = vor.u32 %v6909, %v6913
      %v6916 = vshll.u32 %v6785, 16
      %v6918 = vrot.slane %v6916, 1
      %v6919 = vsel %vm2084, %v6914, %v6918
      %v6920 = vshrl.u32 %v6785, 16
      %v6922 = vor.u32 %v6920, %v6918
      %v6924 = vshrl.u32 %v6786, 16
      %v6926 = vshll.u32 %v6786, 16
      %v6928 = vrot.slane %v6926, 1
      %v6929 = vor.u32 %v6924, %v6928
      %v6931 = vshll.u32 %v6787, 16
      %v6933 = vrot.slane %v6931, 1
      %v6934 = vsel %vm2084, %v6929, %v6933
      %v6935 = vshrl.u32 %v6787, 16
      %v6937 = vor.u32 %v6935, %v6933
      %v6938 = vrot.slane %v6768, 1
      %v6939 = vrot.slane %v6769, 1
      %v6940 = vsel %vm2265, %v6938, %v6939
      %v6941 = vrot.slane %v6770, 1
      %v6942 = vrot.slane %v6771, 1
      %v6943 = vsel %vm2265, %v6941, %v6942
      %v6944 = vrot.slane %v6772, 1
      %v6945 = vrot.slane %v6773, 1
      %v6946 = vsel %vm2265, %v6944, %v6945
      %v6947 = vrot.slane %v6774, 1
      %v6948 = vrot.slane %v6775, 1
      %v6949 = vsel %vm2265, %v6947, %v6948
      %v6950 = vrot.slane %v6776, 1
      %v6951 = vrot.slane %v6777, 1
      %v6952 = vsel %vm2265, %v6950, %v6951
      %v6953 = vrot.slane %v6778, 1
      %v6954 = vrot.slane %v6779, 1
      %v6955 = vsel %vm2265, %v6953, %v6954
      %v6956 = vrot.slane %v6780, 1
      %v6957 = vrot.slane %v6781, 1
      %v6958 = vsel %vm2265, %v6956, %v6957
      %v6959 = vrot.slane %v6782, 1
      %v6960 = vrot.slane %v6783, 1
      %v6961 = vsel %vm2265, %v6959, %v6960
      %v6962 = vrot.slane %v6784, 1
      %v6963 = vrot.slane %v6785, 1
      %v6964 = vsel %vm2265, %v6962, %v6963
      %v6965 = vrot.slane %v6786, 1
      %v6966 = vrot.slane %v6787, 1
      %v6967 = vsel %vm2265, %v6965, %v6966
      %v6968 = vunpack.c.l.b16 %v6799
      %v6969 = vunpack.c.l.b16 %v6940
      %v6970 = vunpack.c.h.b16 %v6799
      %v6971 = vunpack.c.h.b16 %v6940
      %v6972 = vunpack.c.l.b16 %v6802
      %v6973 = vunpack.c.l.b16 %v6939
      %v6974 = vunpack.c.l.b16 %v6814
      %v6975 = vunpack.c.l.b16 %v6943
      %v6976 = vunpack.c.h.b16 %v6814
      %v6977 = vunpack.c.h.b16 %v6943
      %v6978 = vunpack.c.l.b16 %v6817
      %v6979 = vunpack.c.l.b16 %v6942
      %v6980 = vunpack.c.l.b16 %v6829
      %v6981 = vunpack.c.l.b16 %v6946
      %v6982 = vunpack.c.h.b16 %v6829
      %v6983 = vunpack.c.h.b16 %v6946
      %v6984 = vunpack.c.l.b16 %v6832
      %v6985 = vunpack.c.l.b16 %v6945
      %v6986 = vunpack.c.l.b16 %v6844
      %v6987 = vunpack.c.l.b16 %v6949
      %v6988 = vunpack.c.h.b16 %v6844
      %v6989 = vunpack.c.h.b16 %v6949
      %v6990 = vunpack.c.l.b16 %v6847
      %v6991 = vunpack.c.l.b16 %v6948
      %v6992 = vunpack.c.l.b16 %v6859
      %v6993 = vunpack.c.l.b16 %v6952
      %v6994 = vunpack.c.h.b16 %v6859
      %v6995 = vunpack.c.h.b16 %v6952
      %v6996 = vunpack.c.l.b16 %v6862
      %v6997 = vunpack.c.l.b16 %v6951
      %v6998 = vunpack.c.l.b16 %v6874
      %v6999 = vunpack.c.l.b16 %v6955
      %v7000 = vunpack.c.h.b16 %v6874
      %v7001 = vunpack.c.h.b16 %v6955
      %v7002 = vunpack.c.l.b16 %v6877
      %v7003 = vunpack.c.l.b16 %v6954
      %v7004 = vunpack.c.l.b16 %v6889
      %v7005 = vunpack.c.l.b16 %v6958
      %v7006 = vunpack.c.h.b16 %v6889
      %v7007 = vunpack.c.h.b16 %v6958
      %v7008 = vunpack.c.l.b16 %v6892
      %v7009 = vunpack.c.l.b16 %v6957
      %v7010 = vunpack.c.l.b16 %v6904
      %v7011 = vunpack.c.l.b16 %v6961
      %v7012 = vunpack.c.h.b16 %v6904
      %v7013 = vunpack.c.h.b16 %v6961
      %v7014 = vunpack.c.l.b16 %v6907
      %v7015 = vunpack.c.l.b16 %v6960
      %v7016 = vunpack.c.l.b16 %v6919
      %v7017 = vunpack.c.l.b16 %v6964
      %v7018 = vunpack.c.h.b16 %v6919
      %v7019 = vunpack.c.h.b16 %v6964
      %v7020 = vunpack.c.l.b16 %v6922
      %v7021 = vunpack.c.l.b16 %v6963
      %v7022 = vunpack.c.l.b16 %v6934
      %v7023 = vunpack.c.l.b16 %v6967
      %v7024 = vunpack.c.h.b16 %v6934
      %v7025 = vunpack.c.h.b16 %v6967
      %v7026 = vunpack.c.l.b16 %v6937
      %v7027 = vunpack.c.l.b16 %v6966
      %s7028 = scalar_lea.vmem %s4, 192
      %v7029 = vld [vmem:[%s7028] sm:$0xf]
      %v7030 = vld [vmem:[%s7028 + $0x4] sm:$0xf]
      %v7031 = vld [vmem:[%s7028 + $0x8] sm:$0xf]
      %v7032 = vld [vmem:[%s7028 + $0xc] sm:$0xf]
      %v7033 = vld [vmem:[%s7028 + $0x10] sm:$0xf]
      %v7034 = vld [vmem:[%s7028 + $0x14] sm:$0xf]
      %v7035 = vld [vmem:[%s7028 + $0x18] sm:$0xf]
      %v7036 = vld [vmem:[%s7028 + $0x1c] sm:$0xf]
      %v7037 = vld [vmem:[%s7028 + $0x20] sm:$0xf]
      %v7038 = vld [vmem:[%s7028 + $0x24] sm:$0xf]
      %v7039 = vld [vmem:[%s7028 + $0x28] sm:$0xf]
      %v7040 = vld [vmem:[%s7028 + $0x2c] sm:$0xf]
      %v7041 = vld [vmem:[%s7028 + $0x30] sm:$0xf]
      %v7042 = vld [vmem:[%s7028 + $0x34] sm:$0xf]
      %v7043 = vld [vmem:[%s7028 + $0x38] sm:$0xf]
      %v7044 = vld [vmem:[%s7028 + $0x3c] sm:$0xf]
      %v7045 = vld [vmem:[%s7028 + $0x40] sm:$0xf]
      %v7046 = vld [vmem:[%s7028 + $0x44] sm:$0xf]
      %v7047 = vld [vmem:[%s7028 + $0x48] sm:$0xf]
      %v7048 = vld [vmem:[%s7028 + $0x4c] sm:$0xf]
      %v7049 = vld [vmem:[%s7028 + $0x50] sm:$0xf]
      %v7050 = vld [vmem:[%s7028 + $0x54] sm:$0xf]
      %v7051 = vld [vmem:[%s7028 + $0x58] sm:$0xf]
      %v7052 = vld [vmem:[%s7028 + $0x5c] sm:$0xf]
      %v7053 = vld [vmem:[%s7028 + $0x60] sm:$0xf]
      %v7054 = vld [vmem:[%s7028 + $0x64] sm:$0xf]
      %v7055 = vld [vmem:[%s7028 + $0x68] sm:$0xf]
      %v7056 = vld [vmem:[%s7028 + $0x6c] sm:$0xf]
      %v7057 = vld [vmem:[%s7028 + $0x70] sm:$0xf]
      %v7058 = vld [vmem:[%s7028 + $0x74] sm:$0xf]
      %v7059 = vld [vmem:[%s7028 + $0x78] sm:$0xf]
      %v7060 = vld [vmem:[%s7028 + $0x7c] sm:$0xf]
      %v7061 = vld [vmem:[%s7028 + $0x80] sm:$0xf]
      %v7062 = vld [vmem:[%s7028 + $0x84] sm:$0xf]
      %v7063 = vld [vmem:[%s7028 + $0x88] sm:$0xf]
      %v7064 = vld [vmem:[%s7028 + $0x8c] sm:$0xf]
      %v7065 = vld [vmem:[%s7028 + $0x90] sm:$0xf]
      %v7066 = vld [vmem:[%s7028 + $0x94] sm:$0xf]
      %v7067 = vld [vmem:[%s7028 + $0x98] sm:$0xf]
      %v7068 = vld [vmem:[%s7028 + $0x9c] sm:$0xf]
      %v7069 = vld [vmem:[%s7028 + $0xa0] sm:$0xf]
      %v7070 = vld [vmem:[%s7028 + $0xa4] sm:$0xf]
      %v7071 = vld [vmem:[%s7028 + $0xa8] sm:$0xf]
      %v7072 = vld [vmem:[%s7028 + $0xac] sm:$0xf]
      %v7073 = vld [vmem:[%s7028 + $0xb0] sm:$0xf]
      %v7074 = vld [vmem:[%s7028 + $0xb4] sm:$0xf]
      %v7075 = vld [vmem:[%s7028 + $0xb8] sm:$0xf]
      %v7076 = vld [vmem:[%s7028 + $0xbc] sm:$0xf]
      %v7077 = vpack.c.b16 %v6970, %v6968
      %v7078 = vpack.c.b16 %v6971, %v6969
      %v7079 = vpack.c.b16 %v6721, %v6720
      %v7080 = vpack.c.b16 %v6974, %v6972
      %v7081 = vpack.c.b16 %v6975, %v6973
      %v7082 = vpack.c.b16 %v6723, %v6722
      %v7083 = vpack.c.b16 %v6978, %v6976
      %v7084 = vpack.c.b16 %v6979, %v6977
      %v7085 = vpack.c.b16 %v6982, %v6980
      %v7086 = vpack.c.b16 %v6983, %v6981
      %v7087 = vpack.c.b16 %v6727, %v6726
      %v7088 = vpack.c.b16 %v6986, %v6984
      %v7089 = vpack.c.b16 %v6987, %v6985
      %v7090 = vpack.c.b16 %v6729, %v6728
      %v7091 = vpack.c.b16 %v6990, %v6988
      %v7092 = vpack.c.b16 %v6991, %v6989
      %v7093 = vpack.c.b16 %v6994, %v6992
      %v7094 = vpack.c.b16 %v6995, %v6993
      %v7095 = vpack.c.b16 %v6733, %v6732
      %v7096 = vpack.c.b16 %v6998, %v6996
      %v7097 = vpack.c.b16 %v6999, %v6997
      %v7098 = vpack.c.b16 %v6735, %v6734
      %v7099 = vpack.c.b16 %v7002, %v7000
      %v7100 = vpack.c.b16 %v7003, %v7001
      %v7101 = vpack.c.b16 %v7006, %v7004
      %v7102 = vpack.c.b16 %v7007, %v7005
      %v7103 = vpack.c.b16 %v6739, %v6738
      %v7104 = vpack.c.b16 %v7010, %v7008
      %v7105 = vpack.c.b16 %v7011, %v7009
      %v7106 = vpack.c.b16 %v6741, %v6740
      %v7107 = vpack.c.b16 %v7014, %v7012
      %v7108 = vpack.c.b16 %v7015, %v7013
      %v7109 = vpack.c.b16 %v7018, %v7016
      %v7110 = vpack.c.b16 %v7019, %v7017
      %v7111 = vpack.c.b16 %v6745, %v6744
      %v7112 = vpack.c.b16 %v7022, %v7020
      %v7113 = vpack.c.b16 %v7023, %v7021
      %v7114 = vpack.c.b16 %v6747, %v6746
      %v7115 = vpack.c.b16 %v7026, %v7024
      %v7116 = vpack.c.b16 %v7027, %v7025
      %v7210 = vunpack.c.l.b16 %v7029
      %v7211 = vunpack.c.l.b16 %v7030
      %v7212 = vunpack.c.l.b16 %v7031
      %v7213 = vunpack.c.l.b16 %v7032
      %v7214 = vunpack.c.l.b16 %v7033
      %v7215 = vunpack.c.l.b16 %v7034
      %v7216 = vunpack.c.l.b16 %v7035
      %v7217 = vunpack.c.l.b16 %v7036
      %v7218 = vunpack.c.l.b16 %v7037
      %v7219 = vunpack.c.l.b16 %v7038
      %v7220 = vunpack.c.l.b16 %v7039
      %v7221 = vunpack.c.l.b16 %v7040
      %v7222 = vunpack.c.l.b16 %v7041
      %v7223 = vunpack.c.l.b16 %v7042
      %v7224 = vunpack.c.l.b16 %v7043
      %v7225 = vunpack.c.l.b16 %v7044
      %v7226 = vunpack.c.l.b16 %v7045
      %v7227 = vunpack.c.l.b16 %v7046
      %v7228 = vunpack.c.l.b16 %v7047
      %v7229 = vunpack.c.l.b16 %v7048
      %v7230 = vunpack.c.l.b16 %v7049
      %v7231 = vunpack.c.l.b16 %v7050
      %v7232 = vunpack.c.l.b16 %v7051
      %v7233 = vunpack.c.l.b16 %v7052
      %v7234 = vunpack.c.l.b16 %v7053
      %v7235 = vunpack.c.l.b16 %v7054
      %v7236 = vunpack.c.l.b16 %v7055
      %v7237 = vunpack.c.l.b16 %v7056
      %v7238 = vunpack.c.l.b16 %v7057
      %v7239 = vunpack.c.l.b16 %v7058
      %v7240 = vunpack.c.l.b16 %v7059
      %v7241 = vunpack.c.l.b16 %v7060
      %v7242 = vunpack.c.l.b16 %v7061
      %v7243 = vunpack.c.l.b16 %v7062
      %v7244 = vunpack.c.l.b16 %v7063
      %v7245 = vunpack.c.l.b16 %v7064
      %v7246 = vunpack.c.l.b16 %v7065
      %v7247 = vunpack.c.l.b16 %v7066
      %v7248 = vunpack.c.l.b16 %v7067
      %v7249 = vunpack.c.l.b16 %v7068
      %v7250 = vunpack.c.l.b16 %v7069
      %v7251 = vunpack.c.l.b16 %v7070
      %v7252 = vunpack.c.l.b16 %v7071
      %v7253 = vunpack.c.l.b16 %v7072
      %v7254 = vunpack.c.l.b16 %v7073
      %v7255 = vunpack.c.l.b16 %v7074
      %v7256 = vunpack.c.l.b16 %v7075
      %v7257 = vunpack.c.l.b16 %v7076
      %v7258 = vpack.c.b16 %v7211, %v7210
      %v7259 = vpack.c.b16 %v7213, %v7212
      %v7260 = vpack.c.b16 %v7215, %v7214
      %v7261 = vpack.c.b16 %v7217, %v7216
      %v7262 = vpack.c.b16 %v7219, %v7218
      %v7263 = vpack.c.b16 %v7221, %v7220
      %v7264 = vpack.c.b16 %v7223, %v7222
      %v7265 = vpack.c.b16 %v7225, %v7224
      %v7266 = vpack.c.b16 %v7227, %v7226
      %v7267 = vpack.c.b16 %v7229, %v7228
      %v7268 = vpack.c.b16 %v7231, %v7230
      %v7269 = vpack.c.b16 %v7233, %v7232
      %v7270 = vpack.c.b16 %v7235, %v7234
      %v7271 = vpack.c.b16 %v7237, %v7236
      %v7272 = vpack.c.b16 %v7239, %v7238
      %v7273 = vpack.c.b16 %v7241, %v7240
      %v7274 = vpack.c.b16 %v7243, %v7242
      %v7275 = vpack.c.b16 %v7245, %v7244
      %v7276 = vpack.c.b16 %v7247, %v7246
      %v7277 = vpack.c.b16 %v7249, %v7248
      %v7278 = vpack.c.b16 %v7251, %v7250
      %v7279 = vpack.c.b16 %v7253, %v7252
      %v7280 = vpack.c.b16 %v7255, %v7254
      %v7281 = vpack.c.b16 %v7257, %v7256
      %7306 = vmatprep.subr.bf16.mxu0 0
      %7307 = vmatpush1.bf16.msra.mxu0 %v7258
      %7308 = vmatprep.subr.bf16.mxu0 0
      %7309 = vmatpush1.bf16.msra.mxu0 %v7259
      %7310 = vmatprep.subr.bf16.mxu0 0
      %7311 = vmatpush1.bf16.msra.mxu0 %v7260
      %7312 = vmatprep.subr.bf16.mxu0 0
      %7313 = vmatpush1.bf16.msra.mxu0 %v7261
      %7314 = vmatprep.subr.bf16.mxu0 0
      %7315 = vmatpush1.bf16.msra.mxu0 %v7262
      %7316 = vmatprep.subr.bf16.mxu0 0
      %7317 = vmatpush1.bf16.msra.mxu0 %v7263
      %7318 = vmatprep.subr.bf16.mxu0 0
      %7319 = vmatpush1.bf16.msra.mxu0 %v7264
      %7320 = vmatprep.subr.bf16.mxu0 0
      %7321 = vmatpush1.bf16.msra.mxu0 %v7265
      %7322 = vmatprep.subr.bf16.mxu0 0
      %7323 = vmatpush1.bf16.msra.mxu0 %v7266
      %7324 = vmatprep.subr.bf16.mxu0 0
      %7325 = vmatpush1.bf16.msra.mxu0 %v7267
      %7326 = vmatprep.subr.bf16.mxu0 0
      %7327 = vmatpush1.bf16.msra.mxu0 %v7268
      %7328 = vmatprep.subr.bf16.mxu0 0
      %7329 = vmatpush1.bf16.msra.mxu0 %v7269
      %7330 = vmatprep.subr.bf16.mxu0 0
      %7331 = vmatpush1.bf16.msra.mxu0 %v7270
      %7332 = vmatprep.subr.bf16.mxu0 0
      %7333 = vmatpush1.bf16.msra.mxu0 %v7271
      %7334 = vmatprep.subr.bf16.mxu0 0
      %7335 = vmatpush1.bf16.msra.mxu0 %v7272
      %7336 = vmatprep.subr.bf16.mxu0 0
      %7337 = vmatpush1.bf16.msra.mxu0 %v7273
      %7338 = vmatprep.mubr.bf16.mxu0 %v7077
      %7339 = vmatmul.mubr.bf16.gmra.mrb[0].mxu0 %v6768
      %v7340 = vpop.f32.mrb[0].mxu0
      %v7341 = vadd.f32 0.0, %v7340
      %v7342 = vpop.f32.mrb[0].mxu0
      %v7343 = vpop.f32.mrb[0].mxu0
      %v7344 = vadd.f32 0.0, %v7343
      %v7345 = vpop.f32.mrb[0].mxu0
      %7346 = vmatprep.mubr.bf16.mxu0 %v7080
      %7347 = vmatmul.mubr.bf16.gmra.mrb[0].mxu0 %v7079
      %v7348 = vpop.f32.mrb[0].mxu0
      %v7349 = vadd.f32 0.0, %v7348
      %v7350 = vpop.f32.mrb[0].mxu0
      %v7351 = vpop.f32.mrb[0].mxu0
      %v7352 = vadd.f32 0.0, %v7351
      %v7353 = vpop.f32.mrb[0].mxu0
      %7354 = vmatprep.mubr.bf16.mxu0 %v7083
      %7355 = vmatmul.mubr.bf16.gmra.mrb[0].mxu0 %v7082
      %v7356 = vpop.f32.mrb[0].mxu0
      %v7357 = vadd.f32 0.0, %v7356
      %v7358 = vpop.f32.mrb[0].mxu0
      %v7359 = vpop.f32.mrb[0].mxu0
      %v7360 = vadd.f32 0.0, %v7359
      %v7361 = vpop.f32.mrb[0].mxu0
      %7362 = vmatprep.mubr.bf16.mxu0 %v7085
      %7363 = vmatmul.mubr.bf16.gmra.mrb[0].mxu0 %v6772
      %v7364 = vpop.f32.mrb[0].mxu0
      %v7365 = vadd.f32 0.0, %v7364
      %v7366 = vpop.f32.mrb[0].mxu0
      %v7367 = vpop.f32.mrb[0].mxu0
      %v7368 = vadd.f32 0.0, %v7367
      %v7369 = vpop.f32.mrb[0].mxu0
      %7370 = vmatprep.mubr.bf16.mxu0 %v7088
      %7371 = vmatmul.mubr.bf16.gmra.mrb[0].mxu0 %v7087
      %v7372 = vpop.f32.mrb[0].mxu0
      %v7373 = vadd.f32 0.0, %v7372
      %v7374 = vpop.f32.mrb[0].mxu0
      %v7375 = vpop.f32.mrb[0].mxu0
      %v7376 = vadd.f32 0.0, %v7375
      %v7377 = vpop.f32.mrb[0].mxu0
      %7378 = vmatprep.mubr.bf16.mxu0 %v7091
      %7379 = vmatmul.mubr.bf16.gmra.mrb[0].mxu0 %v7090
      %v7380 = vpop.f32.mrb[0].mxu0
      %v7381 = vadd.f32 0.0, %v7380
      %v7382 = vpop.f32.mrb[0].mxu0
      %v7383 = vpop.f32.mrb[0].mxu0
      %v7384 = vadd.f32 0.0, %v7383
      %v7385 = vpop.f32.mrb[0].mxu0
      %7386 = vmatprep.mubr.bf16.mxu0 %v7093
      %7387 = vmatmul.mubr.bf16.gmra.mrb[0].mxu0 %v6776
      %v7388 = vpop.f32.mrb[0].mxu0
      %v7389 = vadd.f32 0.0, %v7388
      %v7390 = vpop.f32.mrb[0].mxu0
      %v7391 = vpop.f32.mrb[0].mxu0
      %v7392 = vadd.f32 0.0, %v7391
      %v7393 = vpop.f32.mrb[0].mxu0
      %7394 = vmatprep.mubr.bf16.mxu0 %v7096
      %7395 = vmatmul.mubr.bf16.gmra.mrb[0].mxu0 %v7095
      %v7396 = vpop.f32.mrb[0].mxu0
      %v7397 = vadd.f32 0.0, %v7396
      %v7398 = vpop.f32.mrb[0].mxu0
      %v7399 = vpop.f32.mrb[0].mxu0
      %v7400 = vadd.f32 0.0, %v7399
      %v7401 = vpop.f32.mrb[0].mxu0
      %7402 = vmatprep.mubr.bf16.mxu0 %v7099
      %7403 = vmatmul.mubr.bf16.gmra.mrb[0].mxu0 %v7098
      %v7404 = vpop.f32.mrb[0].mxu0
      %v7405 = vadd.f32 0.0, %v7404
      %v7406 = vpop.f32.mrb[0].mxu0
      %v7407 = vpop.f32.mrb[0].mxu0
      %v7408 = vadd.f32 0.0, %v7407
      %v7409 = vpop.f32.mrb[0].mxu0
      %7410 = vmatprep.mubr.bf16.mxu0 %v7101
      %7411 = vmatmul.mubr.bf16.gmra.mrb[0].mxu0 %v6780
      %v7412 = vpop.f32.mrb[0].mxu0
      %v7413 = vadd.f32 0.0, %v7412
      %v7414 = vpop.f32.mrb[0].mxu0
      %v7415 = vpop.f32.mrb[0].mxu0
      %v7416 = vadd.f32 0.0, %v7415
      %v7417 = vpop.f32.mrb[0].mxu0
      %7418 = vmatprep.mubr.bf16.mxu0 %v7104
      %7419 = vmatmul.mubr.bf16.gmra.mrb[0].mxu0 %v7103
      %v7420 = vpop.f32.mrb[0].mxu0
      %v7421 = vadd.f32 0.0, %v7420
      %v7422 = vpop.f32.mrb[0].mxu0
      %v7423 = vpop.f32.mrb[0].mxu0
      %v7424 = vadd.f32 0.0, %v7423
      %v7425 = vpop.f32.mrb[0].mxu0
      %7426 = vmatprep.mubr.bf16.mxu0 %v7107
      %7427 = vmatmul.mubr.bf16.gmra.mrb[0].mxu0 %v7106
      %v7428 = vpop.f32.mrb[0].mxu0
      %v7429 = vadd.f32 0.0, %v7428
      %v7430 = vpop.f32.mrb[0].mxu0
      %v7431 = vpop.f32.mrb[0].mxu0
      %v7432 = vadd.f32 0.0, %v7431
      %v7433 = vpop.f32.mrb[0].mxu0
      %7434 = vmatprep.mubr.bf16.mxu0 %v7109
      %7435 = vmatmul.mubr.bf16.gmra.mrb[0].mxu0 %v6784
      %v7436 = vpop.f32.mrb[0].mxu0
      %v7437 = vadd.f32 0.0, %v7436
      %v7438 = vpop.f32.mrb[0].mxu0
      %v7439 = vpop.f32.mrb[0].mxu0
      %v7440 = vadd.f32 0.0, %v7439
      %v7441 = vpop.f32.mrb[0].mxu0
      %7442 = vmatprep.mubr.bf16.mxu0 %v7112
      %7443 = vmatmul.mubr.bf16.gmra.mrb[0].mxu0 %v7111
      %v7444 = vpop.f32.mrb[0].mxu0
      %v7445 = vadd.f32 0.0, %v7444
      %v7446 = vpop.f32.mrb[0].mxu0
      %v7447 = vpop.f32.mrb[0].mxu0
      %v7448 = vadd.f32 0.0, %v7447
      %v7449 = vpop.f32.mrb[0].mxu0
      %7450 = vmatprep.mubr.bf16.mxu0 %v7115
      %7451 = vmatmul.mubr.bf16.gmra.mrb[0].mxu0 %v7114
      %v7452 = vpop.f32.mrb[0].mxu0
      %v7453 = vadd.f32 0.0, %v7452
      %v7454 = vpop.f32.mrb[0].mxu0
      %v7455 = vpop.f32.mrb[0].mxu0
      %v7456 = vadd.f32 0.0, %v7455
      %v7457 = vpop.f32.mrb[0].mxu0
      %7458 = vdwg.mxu0
      %7459 = vmatprep.subr.bf16.mxu0 0
      %7460 = vmatpush1.bf16.msra.mxu0 %v7274
      %7461 = vmatprep.subr.bf16.mxu0 0
      %7462 = vmatpush1.bf16.msra.mxu0 %v7275
      %7463 = vmatprep.subr.bf16.mxu0 0
      %7464 = vmatpush1.bf16.msra.mxu0 %v7276
      %7465 = vmatprep.subr.bf16.mxu0 0
      %7466 = vmatpush1.bf16.msra.mxu0 %v7277
      %7467 = vmatprep.subr.bf16.mxu0 0
      %7468 = vmatpush1.bf16.msra.mxu0 %v7278
      %7469 = vmatprep.subr.bf16.mxu0 0
      %7470 = vmatpush1.bf16.msra.mxu0 %v7279
      %7471 = vmatprep.subr.bf16.mxu0 0
      %7472 = vmatpush1.bf16.msra.mxu0 %v7280
      %7473 = vmatprep.subr.bf16.mxu0 0
      %7474 = vmatpush1.bf16.msra.mxu0 %v7281
      %7475 = vmatprep.subr.bf16.mxu0 0
      %7476 = vmatpush1.bf16.msra.mxu0 0
      %7477 = vmatprep.subr.bf16.mxu0 0
      %7478 = vmatpush1.bf16.msra.mxu0 0
      %7479 = vmatprep.subr.bf16.mxu0 0
      %7480 = vmatpush1.bf16.msra.mxu0 0
      %7481 = vmatprep.subr.bf16.mxu0 0
      %7482 = vmatpush1.bf16.msra.mxu0 0
      %7483 = vmatprep.subr.bf16.mxu0 0
      %7484 = vmatpush1.bf16.msra.mxu0 0
      %7485 = vmatprep.subr.bf16.mxu0 0
      %7486 = vmatpush1.bf16.msra.mxu0 0
      %7487 = vmatprep.subr.bf16.mxu0 0
      %7488 = vmatpush1.bf16.msra.mxu0 0
      %7489 = vmatprep.subr.bf16.mxu0 0
      %7490 = vmatpush1.bf16.msra.mxu0 0
      %7491 = vmatprep.mubr.bf16.mxu0 0
      %7492 = vmatmul.mubr.bf16.gmra.mrb[0].mxu0 %v7078
      %v7493 = vpop.f32.mrb[0].mxu0
      %v7494 = vadd.f32 %v7341, %v7493
      %v7495 = vpop.f32.mrb[0].mxu0
      %v7496 = vpop.f32.mrb[0].mxu0
      %v7497 = vadd.f32 %v7344, %v7496
      %v7498 = vpop.f32.mrb[0].mxu0
      %7499 = vmatprep.mubr.bf16.mxu0 0
      %7500 = vmatmul.mubr.bf16.gmra.mrb[0].mxu0 %v7081
      %v7501 = vpop.f32.mrb[0].mxu0
      %v7502 = vadd.f32 %v7349, %v7501
      %v7503 = vpop.f32.mrb[0].mxu0
      %v7504 = vpop.f32.mrb[0].mxu0
      %v7505 = vadd.f32 %v7352, %v7504
      %v7506 = vpop.f32.mrb[0].mxu0
      %7507 = vmatprep.mubr.bf16.mxu0 0
      %7508 = vmatmul.mubr.bf16.gmra.mrb[0].mxu0 %v7084
      %v7509 = vpop.f32.mrb[0].mxu0
      %v7510 = vadd.f32 %v7357, %v7509
      %v7511 = vpop.f32.mrb[0].mxu0
      %v7512 = vpop.f32.mrb[0].mxu0
      %v7513 = vadd.f32 %v7360, %v7512
      %v7514 = vpop.f32.mrb[0].mxu0
      %7515 = vmatprep.mubr.bf16.mxu0 0
      %7516 = vmatmul.mubr.bf16.gmra.mrb[0].mxu0 %v7086
      %v7517 = vpop.f32.mrb[0].mxu0
      %v7518 = vadd.f32 %v7365, %v7517
      %v7519 = vpop.f32.mrb[0].mxu0
      %v7520 = vpop.f32.mrb[0].mxu0
      %v7521 = vadd.f32 %v7368, %v7520
      %v7522 = vpop.f32.mrb[0].mxu0
      %7523 = vmatprep.mubr.bf16.mxu0 0
      %7524 = vmatmul.mubr.bf16.gmra.mrb[0].mxu0 %v7089
      %v7525 = vpop.f32.mrb[0].mxu0
      %v7526 = vadd.f32 %v7373, %v7525
      %v7527 = vpop.f32.mrb[0].mxu0
      %v7528 = vpop.f32.mrb[0].mxu0
      %v7529 = vadd.f32 %v7376, %v7528
      %v7530 = vpop.f32.mrb[0].mxu0
      %7531 = vmatprep.mubr.bf16.mxu0 0
      %7532 = vmatmul.mubr.bf16.gmra.mrb[0].mxu0 %v7092
      %v7533 = vpop.f32.mrb[0].mxu0
      %v7534 = vadd.f32 %v7381, %v7533
      %v7535 = vpop.f32.mrb[0].mxu0
      %v7536 = vpop.f32.mrb[0].mxu0
      %v7537 = vadd.f32 %v7384, %v7536
      %v7538 = vpop.f32.mrb[0].mxu0
      %7539 = vmatprep.mubr.bf16.mxu0 0
      %7540 = vmatmul.mubr.bf16.gmra.mrb[0].mxu0 %v7094
      %v7541 = vpop.f32.mrb[0].mxu0
      %v7542 = vadd.f32 %v7389, %v7541
      %v7543 = vpop.f32.mrb[0].mxu0
      %v7544 = vpop.f32.mrb[0].mxu0
      %v7545 = vadd.f32 %v7392, %v7544
      %v7546 = vpop.f32.mrb[0].mxu0
      %7547 = vmatprep.mubr.bf16.mxu0 0
      %7548 = vmatmul.mubr.bf16.gmra.mrb[0].mxu0 %v7097
      %v7549 = vpop.f32.mrb[0].mxu0
      %v7550 = vadd.f32 %v7397, %v7549
      %v7551 = vpop.f32.mrb[0].mxu0
      %v7552 = vpop.f32.mrb[0].mxu0
      %v7553 = vadd.f32 %v7400, %v7552
      %v7554 = vpop.f32.mrb[0].mxu0
      %7555 = vmatprep.mubr.bf16.mxu0 0
      %7556 = vmatmul.mubr.bf16.gmra.mrb[0].mxu0 %v7100
      %v7557 = vpop.f32.mrb[0].mxu0
      %v7558 = vadd.f32 %v7405, %v7557
      %v7559 = vpop.f32.mrb[0].mxu0
      %v7560 = vpop.f32.mrb[0].mxu0
      %v7561 = vadd.f32 %v7408, %v7560
      %v7562 = vpop.f32.mrb[0].mxu0
      %7563 = vmatprep.mubr.bf16.mxu0 0
      %7564 = vmatmul.mubr.bf16.gmra.mrb[0].mxu0 %v7102
      %v7565 = vpop.f32.mrb[0].mxu0
      %v7566 = vadd.f32 %v7413, %v7565
      %v7567 = vpop.f32.mrb[0].mxu0
      %v7568 = vpop.f32.mrb[0].mxu0
      %v7569 = vadd.f32 %v7416, %v7568
      %v7570 = vpop.f32.mrb[0].mxu0
      %7571 = vmatprep.mubr.bf16.mxu0 0
      %7572 = vmatmul.mubr.bf16.gmra.mrb[0].mxu0 %v7105
      %v7573 = vpop.f32.mrb[0].mxu0
      %v7574 = vadd.f32 %v7421, %v7573
      %v7575 = vpop.f32.mrb[0].mxu0
      %v7576 = vpop.f32.mrb[0].mxu0
      %v7577 = vadd.f32 %v7424, %v7576
      %v7578 = vpop.f32.mrb[0].mxu0
      %7579 = vmatprep.mubr.bf16.mxu0 0
      %7580 = vmatmul.mubr.bf16.gmra.mrb[0].mxu0 %v7108
      %v7581 = vpop.f32.mrb[0].mxu0
      %v7582 = vadd.f32 %v7429, %v7581
      %v7583 = vpop.f32.mrb[0].mxu0
      %v7584 = vpop.f32.mrb[0].mxu0
      %v7585 = vadd.f32 %v7432, %v7584
      %v7586 = vpop.f32.mrb[0].mxu0
      %7587 = vmatprep.mubr.bf16.mxu0 0
      %7588 = vmatmul.mubr.bf16.gmra.mrb[0].mxu0 %v7110
      %v7589 = vpop.f32.mrb[0].mxu0
      %v7590 = vadd.f32 %v7437, %v7589
      %v7591 = vpop.f32.mrb[0].mxu0
      %v7592 = vpop.f32.mrb[0].mxu0
      %v7593 = vadd.f32 %v7440, %v7592
      %v7594 = vpop.f32.mrb[0].mxu0
      %7595 = vmatprep.mubr.bf16.mxu0 0
      %7596 = vmatmul.mubr.bf16.gmra.mrb[0].mxu0 %v7113
      %v7597 = vpop.f32.mrb[0].mxu0
      %v7598 = vadd.f32 %v7445, %v7597
      %v7599 = vpop.f32.mrb[0].mxu0
      %v7600 = vpop.f32.mrb[0].mxu0
      %v7601 = vadd.f32 %v7448, %v7600
      %v7602 = vpop.f32.mrb[0].mxu0
      %7603 = vmatprep.mubr.bf16.mxu0 0
      %7604 = vmatmul.mubr.bf16.gmra.mrb[0].mxu0 %v7116
      %v7605 = vpop.f32.mrb[0].mxu0
      %v7606 = vadd.f32 %v7453, %v7605
      %v7607 = vpop.f32.mrb[0].mxu0
      %v7608 = vpop.f32.mrb[0].mxu0
      %v7609 = vadd.f32 %v7456, %v7608
      %v7610 = vpop.f32.mrb[0].mxu0
      %7611 = vdwg.mxu0
      %v7612 = vpack.c.b16 %v6542, %v6540
      %v7613 = vpack.c.b16 %v6543, %v6541
      %v7614 = vpack.c.b16 %v6293, %v6292
      %v7615 = vpack.c.b16 %v6546, %v6544
      %v7616 = vpack.c.b16 %v6547, %v6545
      %v7617 = vpack.c.b16 %v6295, %v6294
      %v7618 = vpack.c.b16 %v6550, %v6548
      %v7619 = vpack.c.b16 %v6551, %v6549
      %v7620 = vpack.c.b16 %v6554, %v6552
      %v7621 = vpack.c.b16 %v6555, %v6553
      %v7622 = vpack.c.b16 %v6299, %v6298
      %v7623 = vpack.c.b16 %v6558, %v6556
      %v7624 = vpack.c.b16 %v6559, %v6557
      %v7625 = vpack.c.b16 %v6301, %v6300
      %v7626 = vpack.c.b16 %v6562, %v6560
      %v7627 = vpack.c.b16 %v6563, %v6561
      %v7628 = vpack.c.b16 %v6566, %v6564
      %v7629 = vpack.c.b16 %v6567, %v6565
      %v7630 = vpack.c.b16 %v6305, %v6304
      %v7631 = vpack.c.b16 %v6570, %v6568
      %v7632 = vpack.c.b16 %v6571, %v6569
      %v7633 = vpack.c.b16 %v6307, %v6306
      %v7634 = vpack.c.b16 %v6574, %v6572
      %v7635 = vpack.c.b16 %v6575, %v6573
      %v7636 = vpack.c.b16 %v6578, %v6576
      %v7637 = vpack.c.b16 %v6579, %v6577
      %v7638 = vpack.c.b16 %v6311, %v6310
      %v7639 = vpack.c.b16 %v6582, %v6580
      %v7640 = vpack.c.b16 %v6583, %v6581
      %v7641 = vpack.c.b16 %v6313, %v6312
      %v7642 = vpack.c.b16 %v6586, %v6584
      %v7643 = vpack.c.b16 %v6587, %v6585
      %v7644 = vpack.c.b16 %v6590, %v6588
      %v7645 = vpack.c.b16 %v6591, %v6589
      %v7646 = vpack.c.b16 %v6317, %v6316
      %v7647 = vpack.c.b16 %v6594, %v6592
      %v7648 = vpack.c.b16 %v6595, %v6593
      %v7649 = vpack.c.b16 %v6319, %v6318
      %v7650 = vpack.c.b16 %v6598, %v6596
      %v7651 = vpack.c.b16 %v6599, %v6597
      %v7745 = vunpack.c.l.b16 %v6600
      %v7746 = vunpack.c.l.b16 %v6601
      %v7747 = vunpack.c.l.b16 %v6602
      %v7748 = vunpack.c.l.b16 %v6603
      %v7749 = vunpack.c.l.b16 %v6604
      %v7750 = vunpack.c.l.b16 %v6605
      %v7751 = vunpack.c.l.b16 %v6606
      %v7752 = vunpack.c.l.b16 %v6607
      %v7753 = vunpack.c.l.b16 %v6608
      %v7754 = vunpack.c.l.b16 %v6609
      %v7755 = vunpack.c.l.b16 %v6610
      %v7756 = vunpack.c.l.b16 %v6611
      %v7757 = vunpack.c.l.b16 %v6612
      %v7758 = vunpack.c.l.b16 %v6613
      %v7759 = vunpack.c.l.b16 %v6614
      %v7760 = vunpack.c.l.b16 %v6615
      %v7761 = vunpack.c.l.b16 %v6616
      %v7762 = vunpack.c.l.b16 %v6617
      %v7763 = vunpack.c.l.b16 %v6618
      %v7764 = vunpack.c.l.b16 %v6619
      %v7765 = vunpack.c.l.b16 %v6620
      %v7766 = vunpack.c.l.b16 %v6621
      %v7767 = vunpack.c.l.b16 %v6622
      %v7768 = vunpack.c.l.b16 %v6623
      %v7769 = vunpack.c.l.b16 %v6624
      %v7770 = vunpack.c.l.b16 %v6625
      %v7771 = vunpack.c.l.b16 %v6626
      %v7772 = vunpack.c.l.b16 %v6627
      %v7773 = vunpack.c.l.b16 %v6628
      %v7774 = vunpack.c.l.b16 %v6629
      %v7775 = vunpack.c.l.b16 %v6630
      %v7776 = vunpack.c.l.b16 %v6631
      %v7777 = vunpack.c.l.b16 %v6632
      %v7778 = vunpack.c.l.b16 %v6633
      %v7779 = vunpack.c.l.b16 %v6634
      %v7780 = vunpack.c.l.b16 %v6635
      %v7781 = vunpack.c.l.b16 %v6636
      %v7782 = vunpack.c.l.b16 %v6637
      %v7783 = vunpack.c.l.b16 %v6638
      %v7784 = vunpack.c.l.b16 %v6639
      %v7785 = vunpack.c.l.b16 %v6640
      %v7786 = vunpack.c.l.b16 %v6641
      %v7787 = vunpack.c.l.b16 %v6642
      %v7788 = vunpack.c.l.b16 %v6643
      %v7789 = vunpack.c.l.b16 %v6644
      %v7790 = vunpack.c.l.b16 %v6645
      %v7791 = vunpack.c.l.b16 %v6646
      %v7792 = vunpack.c.l.b16 %v6647
      %v7793 = vpack.c.b16 %v7746, %v7745
      %v7794 = vpack.c.b16 %v7748, %v7747
      %v7795 = vpack.c.b16 %v7750, %v7749
      %v7796 = vpack.c.b16 %v7752, %v7751
      %v7797 = vpack.c.b16 %v7754, %v7753
      %v7798 = vpack.c.b16 %v7756, %v7755
      %v7799 = vpack.c.b16 %v7758, %v7757
      %v7800 = vpack.c.b16 %v7760, %v7759
      %v7801 = vpack.c.b16 %v7762, %v7761
      %v7802 = vpack.c.b16 %v7764, %v7763
      %v7803 = vpack.c.b16 %v7766, %v7765
      %v7804 = vpack.c.b16 %v7768, %v7767
      %v7805 = vpack.c.b16 %v7770, %v7769
      %v7806 = vpack.c.b16 %v7772, %v7771
      %v7807 = vpack.c.b16 %v7774, %v7773
      %v7808 = vpack.c.b16 %v7776, %v7775
      %v7809 = vpack.c.b16 %v7778, %v7777
      %v7810 = vpack.c.b16 %v7780, %v7779
      %v7811 = vpack.c.b16 %v7782, %v7781
      %v7812 = vpack.c.b16 %v7784, %v7783
      %v7813 = vpack.c.b16 %v7786, %v7785
      %v7814 = vpack.c.b16 %v7788, %v7787
      %v7815 = vpack.c.b16 %v7790, %v7789
      %v7816 = vpack.c.b16 %v7792, %v7791
      %7841 = vmatprep.subr.bf16.mxu0 0
      %7842 = vmatpush1.bf16.msra.mxu0 %v7793
      %7843 = vmatprep.subr.bf16.mxu0 0
      %7844 = vmatpush1.bf16.msra.mxu0 %v7794
      %7845 = vmatprep.subr.bf16.mxu0 0
      %7846 = vmatpush1.bf16.msra.mxu0 %v7795
      %7847 = vmatprep.subr.bf16.mxu0 0
      %7848 = vmatpush1.bf16.msra.mxu0 %v7796
      %7849 = vmatprep.subr.bf16.mxu0 0
      %7850 = vmatpush1.bf16.msra.mxu0 %v7797
      %7851 = vmatprep.subr.bf16.mxu0 0
      %7852 = vmatpush1.bf16.msra.mxu0 %v7798
      %7853 = vmatprep.subr.bf16.mxu0 0
      %7854 = vmatpush1.bf16.msra.mxu0 %v7799
      %7855 = vmatprep.subr.bf16.mxu0 0
      %7856 = vmatpush1.bf16.msra.mxu0 %v7800
      %7857 = vmatprep.subr.bf16.mxu0 0
      %7858 = vmatpush1.bf16.msra.mxu0 %v7801
      %7859 = vmatprep.subr.bf16.mxu0 0
      %7860 = vmatpush1.bf16.msra.mxu0 %v7802
      %7861 = vmatprep.subr.bf16.mxu0 0
      %7862 = vmatpush1.bf16.msra.mxu0 %v7803
      %7863 = vmatprep.subr.bf16.mxu0 0
      %7864 = vmatpush1.bf16.msra.mxu0 %v7804
      %7865 = vmatprep.subr.bf16.mxu0 0
      %7866 = vmatpush1.bf16.msra.mxu0 %v7805
      %7867 = vmatprep.subr.bf16.mxu0 0
      %7868 = vmatpush1.bf16.msra.mxu0 %v7806
      %7869 = vmatprep.subr.bf16.mxu0 0
      %7870 = vmatpush1.bf16.msra.mxu0 %v7807
      %7871 = vmatprep.subr.bf16.mxu0 0
      %7872 = vmatpush1.bf16.msra.mxu0 %v7808
      %7873 = vmatprep.mubr.bf16.mxu0 %v7612
      %7874 = vmatmul.mubr.bf16.gmra.mrb[0].mxu0 %v6340
      %v7875 = vpop.f32.mrb[0].mxu0
      %v7876 = vadd.f32 %v7494, %v7875
      %v7877 = vpop.f32.mrb[0].mxu0
      %v7878 = vpop.f32.mrb[0].mxu0
      %v7879 = vadd.f32 %v7497, %v7878
      %v7880 = vpop.f32.mrb[0].mxu0
      %7881 = vmatprep.mubr.bf16.mxu0 %v7615
      %7882 = vmatmul.mubr.bf16.gmra.mrb[0].mxu0 %v7614
      %v7883 = vpop.f32.mrb[0].mxu0
      %v7884 = vadd.f32 %v7502, %v7883
      %v7885 = vpop.f32.mrb[0].mxu0
      %v7886 = vpop.f32.mrb[0].mxu0
      %v7887 = vadd.f32 %v7505, %v7886
      %v7888 = vpop.f32.mrb[0].mxu0
      %7889 = vmatprep.mubr.bf16.mxu0 %v7618
      %7890 = vmatmul.mubr.bf16.gmra.mrb[0].mxu0 %v7617
      %v7891 = vpop.f32.mrb[0].mxu0
      %v7892 = vadd.f32 %v7510, %v7891
      %v7893 = vpop.f32.mrb[0].mxu0
      %v7894 = vpop.f32.mrb[0].mxu0
      %v7895 = vadd.f32 %v7513, %v7894
      %v7896 = vpop.f32.mrb[0].mxu0
      %7897 = vmatprep.mubr.bf16.mxu0 %v7620
      %7898 = vmatmul.mubr.bf16.gmra.mrb[0].mxu0 %v6344
      %v7899 = vpop.f32.mrb[0].mxu0
      %v7900 = vadd.f32 %v7518, %v7899
      %v7901 = vpop.f32.mrb[0].mxu0
      %v7902 = vpop.f32.mrb[0].mxu0
      %v7903 = vadd.f32 %v7521, %v7902
      %v7904 = vpop.f32.mrb[0].mxu0
      %7905 = vmatprep.mubr.bf16.mxu0 %v7623
      %7906 = vmatmul.mubr.bf16.gmra.mrb[0].mxu0 %v7622
      %v7907 = vpop.f32.mrb[0].mxu0
      %v7908 = vadd.f32 %v7526, %v7907
      %v7909 = vpop.f32.mrb[0].mxu0
      %v7910 = vpop.f32.mrb[0].mxu0
      %v7911 = vadd.f32 %v7529, %v7910
      %v7912 = vpop.f32.mrb[0].mxu0
      %7913 = vmatprep.mubr.bf16.mxu0 %v7626
      %7914 = vmatmul.mubr.bf16.gmra.mrb[0].mxu0 %v7625
      %v7915 = vpop.f32.mrb[0].mxu0
      %v7916 = vadd.f32 %v7534, %v7915
      %v7917 = vpop.f32.mrb[0].mxu0
      %v7918 = vpop.f32.mrb[0].mxu0
      %v7919 = vadd.f32 %v7537, %v7918
      %v7920 = vpop.f32.mrb[0].mxu0
      %7921 = vmatprep.mubr.bf16.mxu0 %v7628
      %7922 = vmatmul.mubr.bf16.gmra.mrb[0].mxu0 %v6348
      %v7923 = vpop.f32.mrb[0].mxu0
      %v7924 = vadd.f32 %v7542, %v7923
      %v7925 = vpop.f32.mrb[0].mxu0
      %v7926 = vpop.f32.mrb[0].mxu0
      %v7927 = vadd.f32 %v7545, %v7926
      %v7928 = vpop.f32.mrb[0].mxu0
      %7929 = vmatprep.mubr.bf16.mxu0 %v7631
      %7930 = vmatmul.mubr.bf16.gmra.mrb[0].mxu0 %v7630
      %v7931 = vpop.f32.mrb[0].mxu0
      %v7932 = vadd.f32 %v7550, %v7931
      %v7933 = vpop.f32.mrb[0].mxu0
      %v7934 = vpop.f32.mrb[0].mxu0
      %v7935 = vadd.f32 %v7553, %v7934
      %v7936 = vpop.f32.mrb[0].mxu0
      %7937 = vmatprep.mubr.bf16.mxu0 %v7634
      %7938 = vmatmul.mubr.bf16.gmra.mrb[0].mxu0 %v7633
      %v7939 = vpop.f32.mrb[0].mxu0
      %v7940 = vadd.f32 %v7558, %v7939
      %v7941 = vpop.f32.mrb[0].mxu0
      %v7942 = vpop.f32.mrb[0].mxu0
      %v7943 = vadd.f32 %v7561, %v7942
      %v7944 = vpop.f32.mrb[0].mxu0
      %7945 = vmatprep.mubr.bf16.mxu0 %v7636
      %7946 = vmatmul.mubr.bf16.gmra.mrb[0].mxu0 %v6352
      %v7947 = vpop.f32.mrb[0].mxu0
      %v7948 = vadd.f32 %v7566, %v7947
      %v7949 = vpop.f32.mrb[0].mxu0
      %v7950 = vpop.f32.mrb[0].mxu0
      %v7951 = vadd.f32 %v7569, %v7950
      %v7952 = vpop.f32.mrb[0].mxu0
      %7953 = vmatprep.mubr.bf16.mxu0 %v7639
      %7954 = vmatmul.mubr.bf16.gmra.mrb[0].mxu0 %v7638
      %v7955 = vpop.f32.mrb[0].mxu0
      %v7956 = vadd.f32 %v7574, %v7955
      %v7957 = vpop.f32.mrb[0].mxu0
      %v7958 = vpop.f32.mrb[0].mxu0
      %v7959 = vadd.f32 %v7577, %v7958
      %v7960 = vpop.f32.mrb[0].mxu0
      %7961 = vmatprep.mubr.bf16.mxu0 %v7642
      %7962 = vmatmul.mubr.bf16.gmra.mrb[0].mxu0 %v7641
      %v7963 = vpop.f32.mrb[0].mxu0
      %v7964 = vadd.f32 %v7582, %v7963
      %v7965 = vpop.f32.mrb[0].mxu0
      %v7966 = vpop.f32.mrb[0].mxu0
      %v7967 = vadd.f32 %v7585, %v7966
      %v7968 = vpop.f32.mrb[0].mxu0
      %7969 = vmatprep.mubr.bf16.mxu0 %v7644
      %7970 = vmatmul.mubr.bf16.gmra.mrb[0].mxu0 %v6356
      %v7971 = vpop.f32.mrb[0].mxu0
      %v7972 = vadd.f32 %v7590, %v7971
      %v7973 = vpop.f32.mrb[0].mxu0
      %v7974 = vpop.f32.mrb[0].mxu0
      %v7975 = vadd.f32 %v7593, %v7974
      %v7976 = vpop.f32.mrb[0].mxu0
      %7977 = vmatprep.mubr.bf16.mxu0 %v7647
      %7978 = vmatmul.mubr.bf16.gmra.mrb[0].mxu0 %v7646
      %v7979 = vpop.f32.mrb[0].mxu0
      %v7980 = vadd.f32 %v7598, %v7979
      %v7981 = vpop.f32.mrb[0].mxu0
      %v7982 = vpop.f32.mrb[0].mxu0
      %v7983 = vadd.f32 %v7601, %v7982
      %v7984 = vpop.f32.mrb[0].mxu0
      %7985 = vmatprep.mubr.bf16.mxu0 %v7650
      %7986 = vmatmul.mubr.bf16.gmra.mrb[0].mxu0 %v7649
      %v7987 = vpop.f32.mrb[0].mxu0
      %v7988 = vadd.f32 %v7606, %v7987
      %v7989 = vpop.f32.mrb[0].mxu0
      %v7990 = vpop.f32.mrb[0].mxu0
      %v7991 = vadd.f32 %v7609, %v7990
      %v7992 = vpop.f32.mrb[0].mxu0
      %7993 = vdwg.mxu0
      %7994 = vmatprep.subr.bf16.mxu0 0
      %7995 = vmatpush1.bf16.msra.mxu0 %v7809
      %7996 = vmatprep.subr.bf16.mxu0 0
      %7997 = vmatpush1.bf16.msra.mxu0 %v7810
      %7998 = vmatprep.subr.bf16.mxu0 0
      %7999 = vmatpush1.bf16.msra.mxu0 %v7811
      %8000 = vmatprep.subr.bf16.mxu0 0
      %8001 = vmatpush1.bf16.msra.mxu0 %v7812
      %8002 = vmatprep.subr.bf16.mxu0 0
      %8003 = vmatpush1.bf16.msra.mxu0 %v7813
      %8004 = vmatprep.subr.bf16.mxu0 0
      %8005 = vmatpush1.bf16.msra.mxu0 %v7814
      %8006 = vmatprep.subr.bf16.mxu0 0
      %8007 = vmatpush1.bf16.msra.mxu0 %v7815
      %8008 = vmatprep.subr.bf16.mxu0 0
      %8009 = vmatpush1.bf16.msra.mxu0 %v7816
      %8010 = vmatprep.subr.bf16.mxu0 0
      %8011 = vmatpush1.bf16.msra.mxu0 0
      %8012 = vmatprep.subr.bf16.mxu0 0
      %8013 = vmatpush1.bf16.msra.mxu0 0
      %8014 = vmatprep.subr.bf16.mxu0 0
      %8015 = vmatpush1.bf16.msra.mxu0 0
      %8016 = vmatprep.subr.bf16.mxu0 0
      %8017 = vmatpush1.bf16.msra.mxu0 0
      %8018 = vmatprep.subr.bf16.mxu0 0
      %8019 = vmatpush1.bf16.msra.mxu0 0
      %8020 = vmatprep.subr.bf16.mxu0 0
      %8021 = vmatpush1.bf16.msra.mxu0 0
      %8022 = vmatprep.subr.bf16.mxu0 0
      %8023 = vmatpush1.bf16.msra.mxu0 0
      %8024 = vmatprep.subr.bf16.mxu0 0
      %8025 = vmatpush1.bf16.msra.mxu0 0
      %8026 = vmatprep.mubr.bf16.mxu0 0
      %8027 = vmatmul.mubr.bf16.gmra.mrb[0].mxu0 %v7613
      %v8028 = vpop.f32.mrb[0].mxu0
      %v8029 = vadd.f32 %v7876, %v8028
      %v8030 = vpop.f32.mrb[0].mxu0
      %v8031 = vpop.f32.mrb[0].mxu0
      %v8032 = vadd.f32 %v7879, %v8031
      %v8033 = vpop.f32.mrb[0].mxu0
      %8034 = vmatprep.mubr.bf16.mxu0 0
      %8035 = vmatmul.mubr.bf16.gmra.mrb[0].mxu0 %v7616
      %v8036 = vpop.f32.mrb[0].mxu0
      %v8037 = vadd.f32 %v7884, %v8036
      %v8038 = vpop.f32.mrb[0].mxu0
      %v8039 = vpop.f32.mrb[0].mxu0
      %v8040 = vadd.f32 %v7887, %v8039
      %v8041 = vpop.f32.mrb[0].mxu0
      %8042 = vmatprep.mubr.bf16.mxu0 0
      %8043 = vmatmul.mubr.bf16.gmra.mrb[0].mxu0 %v7619
      %v8044 = vpop.f32.mrb[0].mxu0
      %v8045 = vadd.f32 %v7892, %v8044
      %v8046 = vpop.f32.mrb[0].mxu0
      %v8047 = vpop.f32.mrb[0].mxu0
      %v8048 = vadd.f32 %v7895, %v8047
      %v8049 = vpop.f32.mrb[0].mxu0
      %8050 = vmatprep.mubr.bf16.mxu0 0
      %8051 = vmatmul.mubr.bf16.gmra.mrb[0].mxu0 %v7621
      %v8052 = vpop.f32.mrb[0].mxu0
      %v8053 = vadd.f32 %v7900, %v8052
      %v8054 = vpop.f32.mrb[0].mxu0
      %v8055 = vpop.f32.mrb[0].mxu0
      %v8056 = vadd.f32 %v7903, %v8055
      %v8057 = vpop.f32.mrb[0].mxu0
      %8058 = vmatprep.mubr.bf16.mxu0 0
      %8059 = vmatmul.mubr.bf16.gmra.mrb[0].mxu0 %v7624
      %v8060 = vpop.f32.mrb[0].mxu0
      %v8061 = vadd.f32 %v7908, %v8060
      %v8062 = vpop.f32.mrb[0].mxu0
      %v8063 = vpop.f32.mrb[0].mxu0
      %v8064 = vadd.f32 %v7911, %v8063
      %v8065 = vpop.f32.mrb[0].mxu0
      %8066 = vmatprep.mubr.bf16.mxu0 0
      %8067 = vmatmul.mubr.bf16.gmra.mrb[0].mxu0 %v7627
      %v8068 = vpop.f32.mrb[0].mxu0
      %v8069 = vadd.f32 %v7916, %v8068
      %v8070 = vpop.f32.mrb[0].mxu0
      %v8071 = vpop.f32.mrb[0].mxu0
      %v8072 = vadd.f32 %v7919, %v8071
      %v8073 = vpop.f32.mrb[0].mxu0
      %8074 = vmatprep.mubr.bf16.mxu0 0
      %8075 = vmatmul.mubr.bf16.gmra.mrb[0].mxu0 %v7629
      %v8076 = vpop.f32.mrb[0].mxu0
      %v8077 = vadd.f32 %v7924, %v8076
      %v8078 = vpop.f32.mrb[0].mxu0
      %v8079 = vpop.f32.mrb[0].mxu0
      %v8080 = vadd.f32 %v7927, %v8079
      %v8081 = vpop.f32.mrb[0].mxu0
      %8082 = vmatprep.mubr.bf16.mxu0 0
      %8083 = vmatmul.mubr.bf16.gmra.mrb[0].mxu0 %v7632
      %v8084 = vpop.f32.mrb[0].mxu0
      %v8085 = vadd.f32 %v7932, %v8084
      %v8086 = vpop.f32.mrb[0].mxu0
      %v8087 = vpop.f32.mrb[0].mxu0
      %v8088 = vadd.f32 %v7935, %v8087
      %v8089 = vpop.f32.mrb[0].mxu0
      %8090 = vmatprep.mubr.bf16.mxu0 0
      %8091 = vmatmul.mubr.bf16.gmra.mrb[0].mxu0 %v7635
      %v8092 = vpop.f32.mrb[0].mxu0
      %v8093 = vadd.f32 %v7940, %v8092
      %v8094 = vpop.f32.mrb[0].mxu0
      %v8095 = vpop.f32.mrb[0].mxu0
      %v8096 = vadd.f32 %v7943, %v8095
      %v8097 = vpop.f32.mrb[0].mxu0
      %8098 = vmatprep.mubr.bf16.mxu0 0
      %8099 = vmatmul.mubr.bf16.gmra.mrb[0].mxu0 %v7637
      %v8100 = vpop.f32.mrb[0].mxu0
      %v8101 = vadd.f32 %v7948, %v8100
      %v8102 = vpop.f32.mrb[0].mxu0
      %v8103 = vpop.f32.mrb[0].mxu0
      %v8104 = vadd.f32 %v7951, %v8103
      %v8105 = vpop.f32.mrb[0].mxu0
      %8106 = vmatprep.mubr.bf16.mxu0 0
      %8107 = vmatmul.mubr.bf16.gmra.mrb[0].mxu0 %v7640
      %v8108 = vpop.f32.mrb[0].mxu0
      %v8109 = vadd.f32 %v7956, %v8108
      %v8110 = vpop.f32.mrb[0].mxu0
      %v8111 = vpop.f32.mrb[0].mxu0
      %v8112 = vadd.f32 %v7959, %v8111
      %v8113 = vpop.f32.mrb[0].mxu0
      %8114 = vmatprep.mubr.bf16.mxu0 0
      %8115 = vmatmul.mubr.bf16.gmra.mrb[0].mxu0 %v7643
      %v8116 = vpop.f32.mrb[0].mxu0
      %v8117 = vadd.f32 %v7964, %v8116
      %v8118 = vpop.f32.mrb[0].mxu0
      %v8119 = vpop.f32.mrb[0].mxu0
      %v8120 = vadd.f32 %v7967, %v8119
      %v8121 = vpop.f32.mrb[0].mxu0
      %8122 = vmatprep.mubr.bf16.mxu0 0
      %8123 = vmatmul.mubr.bf16.gmra.mrb[0].mxu0 %v7645
      %v8124 = vpop.f32.mrb[0].mxu0
      %v8125 = vadd.f32 %v7972, %v8124
      %v8126 = vpop.f32.mrb[0].mxu0
      %v8127 = vpop.f32.mrb[0].mxu0
      %v8128 = vadd.f32 %v7975, %v8127
      %v8129 = vpop.f32.mrb[0].mxu0
      %8130 = vmatprep.mubr.bf16.mxu0 0
      %8131 = vmatmul.mubr.bf16.gmra.mrb[0].mxu0 %v7648
      %v8132 = vpop.f32.mrb[0].mxu0
      %v8133 = vadd.f32 %v7980, %v8132
      %v8134 = vpop.f32.mrb[0].mxu0
      %v8135 = vpop.f32.mrb[0].mxu0
      %v8136 = vadd.f32 %v7983, %v8135
      %v8137 = vpop.f32.mrb[0].mxu0
      %8138 = vmatprep.mubr.bf16.mxu0 0
      %8139 = vmatmul.mubr.bf16.gmra.mrb[0].mxu0 %v7651
      %v8140 = vpop.f32.mrb[0].mxu0
      %v8141 = vadd.f32 %v7988, %v8140
      %v8142 = vpop.f32.mrb[0].mxu0
      %v8143 = vpop.f32.mrb[0].mxu0
      %v8144 = vadd.f32 %v7991, %v8143
      %v8145 = vpop.f32.mrb[0].mxu0
      %8146 = vdwg.mxu0
      %v8147 = vld [vmem:[%s4128] sm:$0xf]
      %v8148 = vld [vmem:[%s4128 + $0x4] sm:$0xf]
      %v8149 = vld [vmem:[%s4128 + $0x8] sm:$0xf]
      %v8150 = vld [vmem:[%s4128 + $0xc] sm:$0x1]
      %v8151 = vld [vmem:[%s4128 + $0x10] sm:$0xf]
      %v8152 = vld [vmem:[%s4128 + $0x14] sm:$0xf]
      %v8153 = vld [vmem:[%s4128 + $0x18] sm:$0xf]
      %v8154 = vld [vmem:[%s4128 + $0x1c] sm:$0x1]
      %v8155 = vld [vmem:[%s4128 + $0x20] sm:$0xf]
      %v8156 = vld [vmem:[%s4128 + $0x24] sm:$0xf]
      %v8157 = vld [vmem:[%s4128 + $0x28] sm:$0xf]
      %v8158 = vld [vmem:[%s4128 + $0x2c] sm:$0x1]
      %v8159 = vld [vmem:[%s4128 + $0x30] sm:$0xf]
      %v8160 = vld [vmem:[%s4128 + $0x34] sm:$0xf]
      %v8161 = vld [vmem:[%s4128 + $0x38] sm:$0xf]
      %v8162 = vld [vmem:[%s4128 + $0x3c] sm:$0x1]
      %v8163 = vld [vmem:[%s4128 + $0x40] sm:$0xf]
      %v8164 = vld [vmem:[%s4128 + $0x44] sm:$0xf]
      %v8165 = vld [vmem:[%s4128 + $0x48] sm:$0xf]
      %v8166 = vld [vmem:[%s4128 + $0x4c] sm:$0x1]
      %v8167 = vld [vmem:[%s4128 + $0x50] sm:$0xf]
      %v8168 = vld [vmem:[%s4128 + $0x54] sm:$0xf]
      %v8169 = vld [vmem:[%s4128 + $0x58] sm:$0xf]
      %v8170 = vld [vmem:[%s4128 + $0x5c] sm:$0x1]
      %v8171 = vld [vmem:[%s4128 + $0x60] sm:$0xf]
      %v8172 = vld [vmem:[%s4128 + $0x64] sm:$0xf]
      %v8173 = vld [vmem:[%s4128 + $0x68] sm:$0xf]
      %v8174 = vld [vmem:[%s4128 + $0x6c] sm:$0x1]
      %v8175 = vld [vmem:[%s4128 + $0x70] sm:$0xf]
      %v8176 = vld [vmem:[%s4128 + $0x74] sm:$0xf]
      %v8177 = vld [vmem:[%s4128 + $0x78] sm:$0xf]
      %v8178 = vld [vmem:[%s4128 + $0x7c] sm:$0x1]
      %v8179 = vld [vmem:[%s4128 + $0x80] sm:$0xf]
      %v8180 = vld [vmem:[%s4128 + $0x84] sm:$0xf]
      %v8181 = vld [vmem:[%s4128 + $0x88] sm:$0xf]
      %v8182 = vld [vmem:[%s4128 + $0x8c] sm:$0x1]
      %v8183 = vld [vmem:[%s4128 + $0x90] sm:$0xf]
      %v8184 = vld [vmem:[%s4128 + $0x94] sm:$0xf]
      %v8185 = vld [vmem:[%s4128 + $0x98] sm:$0xf]
      %v8186 = vld [vmem:[%s4128 + $0x9c] sm:$0x1]
      %v8217 = vunpack.c.l.b16 %v8147
      %v8218 = vunpack.c.l.b16 %v8148
      %v8219 = vunpack.c.l.b16 %v8149
      %v8220 = vunpack.c.l.b16 %v8151
      %v8221 = vunpack.c.l.b16 %v8152
      %v8222 = vunpack.c.l.b16 %v8153
      %v8223 = vunpack.c.l.b16 %v8155
      %v8224 = vunpack.c.l.b16 %v8156
      %v8225 = vunpack.c.l.b16 %v8157
      %v8226 = vunpack.c.l.b16 %v8159
      %v8227 = vunpack.c.l.b16 %v8160
      %v8228 = vunpack.c.l.b16 %v8161
      %v8229 = vunpack.c.l.b16 %v8163
      %v8230 = vunpack.c.l.b16 %v8164
      %v8231 = vunpack.c.l.b16 %v8165
      %v8232 = vunpack.c.l.b16 %v8167
      %v8233 = vunpack.c.l.b16 %v8168
      %v8234 = vunpack.c.l.b16 %v8169
      %v8235 = vunpack.c.l.b16 %v8171
      %v8236 = vunpack.c.l.b16 %v8172
      %v8237 = vunpack.c.l.b16 %v8173
      %v8238 = vunpack.c.l.b16 %v8175
      %v8239 = vunpack.c.l.b16 %v8176
      %v8240 = vunpack.c.l.b16 %v8177
      %v8241 = vunpack.c.l.b16 %v8179
      %v8242 = vunpack.c.l.b16 %v8180
      %v8243 = vunpack.c.l.b16 %v8181
      %v8244 = vunpack.c.l.b16 %v8183
      %v8245 = vunpack.c.l.b16 %v8184
      %v8246 = vunpack.c.l.b16 %v8185
      %v8257 = vunpack.c.l.b16 %v8150
      %v8258 = vunpack.c.l.b16 %v8154
      %v8259 = vunpack.c.l.b16 %v8158
      %v8260 = vunpack.c.l.b16 %v8162
      %v8261 = vunpack.c.l.b16 %v8166
      %v8262 = vunpack.c.l.b16 %v8170
      %v8263 = vunpack.c.l.b16 %v8174
      %v8264 = vunpack.c.l.b16 %v8178
      %v8265 = vunpack.c.l.b16 %v8182
      %v8266 = vunpack.c.l.b16 %v8186
      %v8267 = vpack.c.b16 %v8218, %v8217
      %v8268 = vpack.c.b16 %v8257, %v8219
      %v8269 = vpack.c.b16 %v8221, %v8220
      %v8270 = vpack.c.b16 %v8258, %v8222
      %v8271 = vpack.c.b16 %v8224, %v8223
      %v8272 = vpack.c.b16 %v8259, %v8225
      %v8273 = vpack.c.b16 %v8227, %v8226
      %v8274 = vpack.c.b16 %v8260, %v8228
      %v8275 = vpack.c.b16 %v8230, %v8229
      %v8276 = vpack.c.b16 %v8261, %v8231
      %v8277 = vpack.c.b16 %v8233, %v8232
      %v8278 = vpack.c.b16 %v8262, %v8234
      %v8279 = vpack.c.b16 %v8236, %v8235
      %v8280 = vpack.c.b16 %v8263, %v8237
      %v8281 = vpack.c.b16 %v8239, %v8238
      %v8282 = vpack.c.b16 %v8264, %v8240
      %v8283 = vpack.c.b16 %v8242, %v8241
      %v8284 = vpack.c.b16 %v8265, %v8243
      %v8285 = vpack.c.b16 %v8245, %v8244
      %v8286 = vpack.c.b16 %v8266, %v8246
      %v8288 = vshrl.u32 %v8267, 16
      %v8290 = vshll.u32 %v8267, 16
      %v8292 = vrot.slane %v8290, 1
      %v8293 = vor.u32 %v8288, %v8292
      %v8295 = vshll.u32 %v8268, 16
      %v8297 = vrot.slane %v8295, 1
      %v8298 = vsel %vm2084, %v8293, %v8297
      %v8299 = vshrl.u32 %v8268, 16
      %v8301 = vor.u32 %v8299, %v8297
      %v8303 = vshrl.u32 %v8269, 16
      %v8305 = vshll.u32 %v8269, 16
      %v8307 = vrot.slane %v8305, 1
      %v8308 = vor.u32 %v8303, %v8307
      %v8310 = vshll.u32 %v8270, 16
      %v8312 = vrot.slane %v8310, 1
      %v8313 = vsel %vm2084, %v8308, %v8312
      %v8314 = vshrl.u32 %v8270, 16
      %v8316 = vor.u32 %v8314, %v8312
      %v8318 = vshrl.u32 %v8271, 16
      %v8320 = vshll.u32 %v8271, 16
      %v8322 = vrot.slane %v8320, 1
      %v8323 = vor.u32 %v8318, %v8322
      %v8325 = vshll.u32 %v8272, 16
      %v8327 = vrot.slane %v8325, 1
      %v8328 = vsel %vm2084, %v8323, %v8327
      %v8329 = vshrl.u32 %v8272, 16
      %v8331 = vor.u32 %v8329, %v8327
      %v8333 = vshrl.u32 %v8273, 16
      %v8335 = vshll.u32 %v8273, 16
      %v8337 = vrot.slane %v8335, 1
      %v8338 = vor.u32 %v8333, %v8337
      %v8340 = vshll.u32 %v8274, 16
      %v8342 = vrot.slane %v8340, 1
      %v8343 = vsel %vm2084, %v8338, %v8342
      %v8344 = vshrl.u32 %v8274, 16
      %v8346 = vor.u32 %v8344, %v8342
      %v8348 = vshrl.u32 %v8275, 16
      %v8350 = vshll.u32 %v8275, 16
      %v8352 = vrot.slane %v8350, 1
      %v8353 = vor.u32 %v8348, %v8352
      %v8355 = vshll.u32 %v8276, 16
      %v8357 = vrot.slane %v8355, 1
      %v8358 = vsel %vm2084, %v8353, %v8357
      %v8359 = vshrl.u32 %v8276, 16
      %v8361 = vor.u32 %v8359, %v8357
      %v8363 = vshrl.u32 %v8277, 16
      %v8365 = vshll.u32 %v8277, 16
      %v8367 = vrot.slane %v8365, 1
      %v8368 = vor.u32 %v8363, %v8367
      %v8370 = vshll.u32 %v8278, 16
      %v8372 = vrot.slane %v8370, 1
      %v8373 = vsel %vm2084, %v8368, %v8372
      %v8374 = vshrl.u32 %v8278, 16
      %v8376 = vor.u32 %v8374, %v8372
      %v8378 = vshrl.u32 %v8279, 16
      %v8380 = vshll.u32 %v8279, 16
      %v8382 = vrot.slane %v8380, 1
      %v8383 = vor.u32 %v8378, %v8382
      %v8385 = vshll.u32 %v8280, 16
      %v8387 = vrot.slane %v8385, 1
      %v8388 = vsel %vm2084, %v8383, %v8387
      %v8389 = vshrl.u32 %v8280, 16
      %v8391 = vor.u32 %v8389, %v8387
      %v8393 = vshrl.u32 %v8281, 16
      %v8395 = vshll.u32 %v8281, 16
      %v8397 = vrot.slane %v8395, 1
      %v8398 = vor.u32 %v8393, %v8397
      %v8400 = vshll.u32 %v8282, 16
      %v8402 = vrot.slane %v8400, 1
      %v8403 = vsel %vm2084, %v8398, %v8402
      %v8404 = vshrl.u32 %v8282, 16
      %v8406 = vor.u32 %v8404, %v8402
      %v8408 = vshrl.u32 %v8283, 16
      %v8410 = vshll.u32 %v8283, 16
      %v8412 = vrot.slane %v8410, 1
      %v8413 = vor.u32 %v8408, %v8412
      %v8415 = vshll.u32 %v8284, 16
      %v8417 = vrot.slane %v8415, 1
      %v8418 = vsel %vm2084, %v8413, %v8417
      %v8419 = vshrl.u32 %v8284, 16
      %v8421 = vor.u32 %v8419, %v8417
      %v8423 = vshrl.u32 %v8285, 16
      %v8425 = vshll.u32 %v8285, 16
      %v8427 = vrot.slane %v8425, 1
      %v8428 = vor.u32 %v8423, %v8427
      %v8430 = vshll.u32 %v8286, 16
      %v8432 = vrot.slane %v8430, 1
      %v8433 = vsel %vm2084, %v8428, %v8432
      %v8434 = vshrl.u32 %v8286, 16
      %v8436 = vor.u32 %v8434, %v8432
      %v8437 = vrot.slane %v8267, 1
      %v8438 = vrot.slane %v8268, 1
      %v8439 = vsel %vm2265, %v8437, %v8438
      %v8440 = vrot.slane %v8269, 1
      %v8441 = vrot.slane %v8270, 1
      %v8442 = vsel %vm2265, %v8440, %v8441
      %v8443 = vrot.slane %v8271, 1
      %v8444 = vrot.slane %v8272, 1
      %v8445 = vsel %vm2265, %v8443, %v8444
      %v8446 = vrot.slane %v8273, 1
      %v8447 = vrot.slane %v8274, 1
      %v8448 = vsel %vm2265, %v8446, %v8447
      %v8449 = vrot.slane %v8275, 1
      %v8450 = vrot.slane %v8276, 1
      %v8451 = vsel %vm2265, %v8449, %v8450
      %v8452 = vrot.slane %v8277, 1
      %v8453 = vrot.slane %v8278, 1
      %v8454 = vsel %vm2265, %v8452, %v8453
      %v8455 = vrot.slane %v8279, 1
      %v8456 = vrot.slane %v8280, 1
      %v8457 = vsel %vm2265, %v8455, %v8456
      %v8458 = vrot.slane %v8281, 1
      %v8459 = vrot.slane %v8282, 1
      %v8460 = vsel %vm2265, %v8458, %v8459
      %v8461 = vrot.slane %v8283, 1
      %v8462 = vrot.slane %v8284, 1
      %v8463 = vsel %vm2265, %v8461, %v8462
      %v8464 = vrot.slane %v8285, 1
      %v8465 = vrot.slane %v8286, 1
      %v8466 = vsel %vm2265, %v8464, %v8465
      %v8467 = vunpack.c.l.b16 %v8298
      %v8468 = vunpack.c.l.b16 %v8439
      %v8469 = vunpack.c.h.b16 %v8298
      %v8470 = vunpack.c.h.b16 %v8439
      %v8471 = vunpack.c.l.b16 %v8301
      %v8472 = vunpack.c.l.b16 %v8438
      %v8473 = vunpack.c.l.b16 %v8313
      %v8474 = vunpack.c.l.b16 %v8442
      %v8475 = vunpack.c.h.b16 %v8313
      %v8476 = vunpack.c.h.b16 %v8442
      %v8477 = vunpack.c.l.b16 %v8316
      %v8478 = vunpack.c.l.b16 %v8441
      %v8479 = vunpack.c.l.b16 %v8328
      %v8480 = vunpack.c.l.b16 %v8445
      %v8481 = vunpack.c.h.b16 %v8328
      %v8482 = vunpack.c.h.b16 %v8445
      %v8483 = vunpack.c.l.b16 %v8331
      %v8484 = vunpack.c.l.b16 %v8444
      %v8485 = vunpack.c.l.b16 %v8343
      %v8486 = vunpack.c.l.b16 %v8448
      %v8487 = vunpack.c.h.b16 %v8343
      %v8488 = vunpack.c.h.b16 %v8448
      %v8489 = vunpack.c.l.b16 %v8346
      %v8490 = vunpack.c.l.b16 %v8447
      %v8491 = vunpack.c.l.b16 %v8358
      %v8492 = vunpack.c.l.b16 %v8451
      %v8493 = vunpack.c.h.b16 %v8358
      %v8494 = vunpack.c.h.b16 %v8451
      %v8495 = vunpack.c.l.b16 %v8361
      %v8496 = vunpack.c.l.b16 %v8450
      %v8497 = vunpack.c.l.b16 %v8373
      %v8498 = vunpack.c.l.b16 %v8454
      %v8499 = vunpack.c.h.b16 %v8373
      %v8500 = vunpack.c.h.b16 %v8454
      %v8501 = vunpack.c.l.b16 %v8376
      %v8502 = vunpack.c.l.b16 %v8453
      %v8503 = vunpack.c.l.b16 %v8388
      %v8504 = vunpack.c.l.b16 %v8457
      %v8505 = vunpack.c.h.b16 %v8388
      %v8506 = vunpack.c.h.b16 %v8457
      %v8507 = vunpack.c.l.b16 %v8391
      %v8508 = vunpack.c.l.b16 %v8456
      %v8509 = vunpack.c.l.b16 %v8403
      %v8510 = vunpack.c.l.b16 %v8460
      %v8511 = vunpack.c.h.b16 %v8403
      %v8512 = vunpack.c.h.b16 %v8460
      %v8513 = vunpack.c.l.b16 %v8406
      %v8514 = vunpack.c.l.b16 %v8459
      %v8515 = vunpack.c.l.b16 %v8418
      %v8516 = vunpack.c.l.b16 %v8463
      %v8517 = vunpack.c.h.b16 %v8418
      %v8518 = vunpack.c.h.b16 %v8463
      %v8519 = vunpack.c.l.b16 %v8421
      %v8520 = vunpack.c.l.b16 %v8462
      %v8521 = vunpack.c.l.b16 %v8433
      %v8522 = vunpack.c.l.b16 %v8466
      %v8523 = vunpack.c.h.b16 %v8433
      %v8524 = vunpack.c.h.b16 %v8466
      %v8525 = vunpack.c.l.b16 %v8436
      %v8526 = vunpack.c.l.b16 %v8465
      %s8527 = scalar_lea.vmem %s4, 384
      %v8528 = vld [vmem:[%s8527] sm:$0xf]
      %v8529 = vld [vmem:[%s8527 + $0x4] sm:$0xf]
      %v8530 = vld [vmem:[%s8527 + $0x8] sm:$0xf]
      %v8531 = vld [vmem:[%s8527 + $0xc] sm:$0xf]
      %v8532 = vld [vmem:[%s8527 + $0x10] sm:$0xf]
      %v8533 = vld [vmem:[%s8527 + $0x14] sm:$0xf]
      %v8534 = vld [vmem:[%s8527 + $0x18] sm:$0xf]
      %v8535 = vld [vmem:[%s8527 + $0x1c] sm:$0xf]
      %v8536 = vld [vmem:[%s8527 + $0x20] sm:$0xf]
      %v8537 = vld [vmem:[%s8527 + $0x24] sm:$0xf]
      %v8538 = vld [vmem:[%s8527 + $0x28] sm:$0xf]
      %v8539 = vld [vmem:[%s8527 + $0x2c] sm:$0xf]
      %v8540 = vld [vmem:[%s8527 + $0x30] sm:$0xf]
      %v8541 = vld [vmem:[%s8527 + $0x34] sm:$0xf]
      %v8542 = vld [vmem:[%s8527 + $0x38] sm:$0xf]
      %v8543 = vld [vmem:[%s8527 + $0x3c] sm:$0xf]
      %v8544 = vld [vmem:[%s8527 + $0x40] sm:$0xf]
      %v8545 = vld [vmem:[%s8527 + $0x44] sm:$0xf]
      %v8546 = vld [vmem:[%s8527 + $0x48] sm:$0xf]
      %v8547 = vld [vmem:[%s8527 + $0x4c] sm:$0xf]
      %v8548 = vld [vmem:[%s8527 + $0x50] sm:$0xf]
      %v8549 = vld [vmem:[%s8527 + $0x54] sm:$0xf]
      %v8550 = vld [vmem:[%s8527 + $0x58] sm:$0xf]
      %v8551 = vld [vmem:[%s8527 + $0x5c] sm:$0xf]
      %v8552 = vld [vmem:[%s8527 + $0x60] sm:$0xf]
      %v8553 = vld [vmem:[%s8527 + $0x64] sm:$0xf]
      %v8554 = vld [vmem:[%s8527 + $0x68] sm:$0xf]
      %v8555 = vld [vmem:[%s8527 + $0x6c] sm:$0xf]
      %v8556 = vld [vmem:[%s8527 + $0x70] sm:$0xf]
      %v8557 = vld [vmem:[%s8527 + $0x74] sm:$0xf]
      %v8558 = vld [vmem:[%s8527 + $0x78] sm:$0xf]
      %v8559 = vld [vmem:[%s8527 + $0x7c] sm:$0xf]
      %v8560 = vld [vmem:[%s8527 + $0x80] sm:$0xf]
      %v8561 = vld [vmem:[%s8527 + $0x84] sm:$0xf]
      %v8562 = vld [vmem:[%s8527 + $0x88] sm:$0xf]
      %v8563 = vld [vmem:[%s8527 + $0x8c] sm:$0xf]
      %v8564 = vld [vmem:[%s8527 + $0x90] sm:$0xf]
      %v8565 = vld [vmem:[%s8527 + $0x94] sm:$0xf]
      %v8566 = vld [vmem:[%s8527 + $0x98] sm:$0xf]
      %v8567 = vld [vmem:[%s8527 + $0x9c] sm:$0xf]
      %v8568 = vld [vmem:[%s8527 + $0xa0] sm:$0xf]
      %v8569 = vld [vmem:[%s8527 + $0xa4] sm:$0xf]
      %v8570 = vld [vmem:[%s8527 + $0xa8] sm:$0xf]
      %v8571 = vld [vmem:[%s8527 + $0xac] sm:$0xf]
      %v8572 = vld [vmem:[%s8527 + $0xb0] sm:$0xf]
      %v8573 = vld [vmem:[%s8527 + $0xb4] sm:$0xf]
      %v8574 = vld [vmem:[%s8527 + $0xb8] sm:$0xf]
      %v8575 = vld [vmem:[%s8527 + $0xbc] sm:$0xf]
      %v8576 = vpack.c.b16 %v8469, %v8467
      %v8577 = vpack.c.b16 %v8470, %v8468
      %v8578 = vpack.c.b16 %v8220, %v8219
      %v8579 = vpack.c.b16 %v8473, %v8471
      %v8580 = vpack.c.b16 %v8474, %v8472
      %v8581 = vpack.c.b16 %v8222, %v8221
      %v8582 = vpack.c.b16 %v8477, %v8475
      %v8583 = vpack.c.b16 %v8478, %v8476
      %v8584 = vpack.c.b16 %v8481, %v8479
      %v8585 = vpack.c.b16 %v8482, %v8480
      %v8586 = vpack.c.b16 %v8226, %v8225
      %v8587 = vpack.c.b16 %v8485, %v8483
      %v8588 = vpack.c.b16 %v8486, %v8484
      %v8589 = vpack.c.b16 %v8228, %v8227
      %v8590 = vpack.c.b16 %v8489, %v8487
      %v8591 = vpack.c.b16 %v8490, %v8488
      %v8592 = vpack.c.b16 %v8493, %v8491
      %v8593 = vpack.c.b16 %v8494, %v8492
      %v8594 = vpack.c.b16 %v8232, %v8231
      %v8595 = vpack.c.b16 %v8497, %v8495
      %v8596 = vpack.c.b16 %v8498, %v8496
      %v8597 = vpack.c.b16 %v8234, %v8233
      %v8598 = vpack.c.b16 %v8501, %v8499
      %v8599 = vpack.c.b16 %v8502, %v8500
      %v8600 = vpack.c.b16 %v8505, %v8503
      %v8601 = vpack.c.b16 %v8506, %v8504
      %v8602 = vpack.c.b16 %v8238, %v8237
      %v8603 = vpack.c.b16 %v8509, %v8507
      %v8604 = vpack.c.b16 %v8510, %v8508
      %v8605 = vpack.c.b16 %v8240, %v8239
      %v8606 = vpack.c.b16 %v8513, %v8511
      %v8607 = vpack.c.b16 %v8514, %v8512
      %v8608 = vpack.c.b16 %v8517, %v8515
      %v8609 = vpack.c.b16 %v8518, %v8516
      %v8610 = vpack.c.b16 %v8244, %v8243
      %v8611 = vpack.c.b16 %v8521, %v8519
      %v8612 = vpack.c.b16 %v8522, %v8520
      %v8613 = vpack.c.b16 %v8246, %v8245
      %v8614 = vpack.c.b16 %v8525, %v8523
      %v8615 = vpack.c.b16 %v8526, %v8524
      %v8709 = vunpack.c.l.b16 %v8528
      %v8710 = vunpack.c.l.b16 %v8529
      %v8711 = vunpack.c.l.b16 %v8530
      %v8712 = vunpack.c.l.b16 %v8531
      %v8713 = vunpack.c.l.b16 %v8532
      %v8714 = vunpack.c.l.b16 %v8533
      %v8715 = vunpack.c.l.b16 %v8534
      %v8716 = vunpack.c.l.b16 %v8535
      %v8717 = vunpack.c.l.b16 %v8536
      %v8718 = vunpack.c.l.b16 %v8537
      %v8719 = vunpack.c.l.b16 %v8538
      %v8720 = vunpack.c.l.b16 %v8539
      %v8721 = vunpack.c.l.b16 %v8540
      %v8722 = vunpack.c.l.b16 %v8541
      %v8723 = vunpack.c.l.b16 %v8542
      %v8724 = vunpack.c.l.b16 %v8543
      %v8725 = vunpack.c.l.b16 %v8544
      %v8726 = vunpack.c.l.b16 %v8545
      %v8727 = vunpack.c.l.b16 %v8546
      %v8728 = vunpack.c.l.b16 %v8547
      %v8729 = vunpack.c.l.b16 %v8548
      %v8730 = vunpack.c.l.b16 %v8549
      %v8731 = vunpack.c.l.b16 %v8550
      %v8732 = vunpack.c.l.b16 %v8551
      %v8733 = vunpack.c.l.b16 %v8552
      %v8734 = vunpack.c.l.b16 %v8553
      %v8735 = vunpack.c.l.b16 %v8554
      %v8736 = vunpack.c.l.b16 %v8555
      %v8737 = vunpack.c.l.b16 %v8556
      %v8738 = vunpack.c.l.b16 %v8557
      %v8739 = vunpack.c.l.b16 %v8558
      %v8740 = vunpack.c.l.b16 %v8559
      %v8741 = vunpack.c.l.b16 %v8560
      %v8742 = vunpack.c.l.b16 %v8561
      %v8743 = vunpack.c.l.b16 %v8562
      %v8744 = vunpack.c.l.b16 %v8563
      %v8745 = vunpack.c.l.b16 %v8564
      %v8746 = vunpack.c.l.b16 %v8565
      %v8747 = vunpack.c.l.b16 %v8566
      %v8748 = vunpack.c.l.b16 %v8567
      %v8749 = vunpack.c.l.b16 %v8568
      %v8750 = vunpack.c.l.b16 %v8569
      %v8751 = vunpack.c.l.b16 %v8570
      %v8752 = vunpack.c.l.b16 %v8571
      %v8753 = vunpack.c.l.b16 %v8572
      %v8754 = vunpack.c.l.b16 %v8573
      %v8755 = vunpack.c.l.b16 %v8574
      %v8756 = vunpack.c.l.b16 %v8575
      %v8757 = vpack.c.b16 %v8710, %v8709
      %v8758 = vpack.c.b16 %v8712, %v8711
      %v8759 = vpack.c.b16 %v8714, %v8713
      %v8760 = vpack.c.b16 %v8716, %v8715
      %v8761 = vpack.c.b16 %v8718, %v8717
      %v8762 = vpack.c.b16 %v8720, %v8719
      %v8763 = vpack.c.b16 %v8722, %v8721
      %v8764 = vpack.c.b16 %v8724, %v8723
      %v8765 = vpack.c.b16 %v8726, %v8725
      %v8766 = vpack.c.b16 %v8728, %v8727
      %v8767 = vpack.c.b16 %v8730, %v8729
      %v8768 = vpack.c.b16 %v8732, %v8731
      %v8769 = vpack.c.b16 %v8734, %v8733
      %v8770 = vpack.c.b16 %v8736, %v8735
      %v8771 = vpack.c.b16 %v8738, %v8737
      %v8772 = vpack.c.b16 %v8740, %v8739
      %v8773 = vpack.c.b16 %v8742, %v8741
      %v8774 = vpack.c.b16 %v8744, %v8743
      %v8775 = vpack.c.b16 %v8746, %v8745
      %v8776 = vpack.c.b16 %v8748, %v8747
      %v8777 = vpack.c.b16 %v8750, %v8749
      %v8778 = vpack.c.b16 %v8752, %v8751
      %v8779 = vpack.c.b16 %v8754, %v8753
      %v8780 = vpack.c.b16 %v8756, %v8755
      %8805 = vmatprep.subr.bf16.mxu0 0
      %8806 = vmatpush1.bf16.msra.mxu0 %v8757
      %8807 = vmatprep.subr.bf16.mxu0 0
      %8808 = vmatpush1.bf16.msra.mxu0 %v8758
      %8809 = vmatprep.subr.bf16.mxu0 0
      %8810 = vmatpush1.bf16.msra.mxu0 %v8759
      %8811 = vmatprep.subr.bf16.mxu0 0
      %8812 = vmatpush1.bf16.msra.mxu0 %v8760
      %8813 = vmatprep.subr.bf16.mxu0 0
      %8814 = vmatpush1.bf16.msra.mxu0 %v8761
      %8815 = vmatprep.subr.bf16.mxu0 0
      %8816 = vmatpush1.bf16.msra.mxu0 %v8762
      %8817 = vmatprep.subr.bf16.mxu0 0
      %8818 = vmatpush1.bf16.msra.mxu0 %v8763
      %8819 = vmatprep.subr.bf16.mxu0 0
      %8820 = vmatpush1.bf16.msra.mxu0 %v8764
      %8821 = vmatprep.subr.bf16.mxu0 0
      %8822 = vmatpush1.bf16.msra.mxu0 %v8765
      %8823 = vmatprep.subr.bf16.mxu0 0
      %8824 = vmatpush1.bf16.msra.mxu0 %v8766
      %8825 = vmatprep.subr.bf16.mxu0 0
      %8826 = vmatpush1.bf16.msra.mxu0 %v8767
      %8827 = vmatprep.subr.bf16.mxu0 0
      %8828 = vmatpush1.bf16.msra.mxu0 %v8768
      %8829 = vmatprep.subr.bf16.mxu0 0
      %8830 = vmatpush1.bf16.msra.mxu0 %v8769
      %8831 = vmatprep.subr.bf16.mxu0 0
      %8832 = vmatpush1.bf16.msra.mxu0 %v8770
      %8833 = vmatprep.subr.bf16.mxu0 0
      %8834 = vmatpush1.bf16.msra.mxu0 %v8771
      %8835 = vmatprep.subr.bf16.mxu0 0
      %8836 = vmatpush1.bf16.msra.mxu0 %v8772
      %8837 = vmatprep.mubr.bf16.mxu0 %v8576
      %8838 = vmatmul.mubr.bf16.gmra.mrb[0].mxu0 %v8267
      %v8839 = vpop.f32.mrb[0].mxu0
      %v8840 = vadd.f32 0.0, %v8839
      %v8841 = vpop.f32.mrb[0].mxu0
      %v8842 = vpop.f32.mrb[0].mxu0
      %v8843 = vadd.f32 0.0, %v8842
      %v8844 = vpop.f32.mrb[0].mxu0
      %8845 = vmatprep.mubr.bf16.mxu0 %v8579
      %8846 = vmatmul.mubr.bf16.gmra.mrb[0].mxu0 %v8578
      %v8847 = vpop.f32.mrb[0].mxu0
      %v8848 = vadd.f32 0.0, %v8847
      %v8849 = vpop.f32.mrb[0].mxu0
      %v8850 = vpop.f32.mrb[0].mxu0
      %v8851 = vadd.f32 0.0, %v8850
      %v8852 = vpop.f32.mrb[0].mxu0
      %8853 = vmatprep.mubr.bf16.mxu0 %v8582
      %8854 = vmatmul.mubr.bf16.gmra.mrb[0].mxu0 %v8581
      %v8855 = vpop.f32.mrb[0].mxu0
      %v8856 = vadd.f32 0.0, %v8855
      %v8857 = vpop.f32.mrb[0].mxu0
      %v8858 = vpop.f32.mrb[0].mxu0
      %v8859 = vadd.f32 0.0, %v8858
      %v8860 = vpop.f32.mrb[0].mxu0
      %8861 = vmatprep.mubr.bf16.mxu0 %v8584
      %8862 = vmatmul.mubr.bf16.gmra.mrb[0].mxu0 %v8271
      %v8863 = vpop.f32.mrb[0].mxu0
      %v8864 = vadd.f32 0.0, %v8863
      %v8865 = vpop.f32.mrb[0].mxu0
      %v8866 = vpop.f32.mrb[0].mxu0
      %v8867 = vadd.f32 0.0, %v8866
      %v8868 = vpop.f32.mrb[0].mxu0
      %8869 = vmatprep.mubr.bf16.mxu0 %v8587
      %8870 = vmatmul.mubr.bf16.gmra.mrb[0].mxu0 %v8586
      %v8871 = vpop.f32.mrb[0].mxu0
      %v8872 = vadd.f32 0.0, %v8871
      %v8873 = vpop.f32.mrb[0].mxu0
      %v8874 = vpop.f32.mrb[0].mxu0
      %v8875 = vadd.f32 0.0, %v8874
      %v8876 = vpop.f32.mrb[0].mxu0
      %8877 = vmatprep.mubr.bf16.mxu0 %v8590
      %8878 = vmatmul.mubr.bf16.gmra.mrb[0].mxu0 %v8589
      %v8879 = vpop.f32.mrb[0].mxu0
      %v8880 = vadd.f32 0.0, %v8879
      %v8881 = vpop.f32.mrb[0].mxu0
      %v8882 = vpop.f32.mrb[0].mxu0
      %v8883 = vadd.f32 0.0, %v8882
      %v8884 = vpop.f32.mrb[0].mxu0
      %8885 = vmatprep.mubr.bf16.mxu0 %v8592
      %8886 = vmatmul.mubr.bf16.gmra.mrb[0].mxu0 %v8275
      %v8887 = vpop.f32.mrb[0].mxu0
      %v8888 = vadd.f32 0.0, %v8887
      %v8889 = vpop.f32.mrb[0].mxu0
      %v8890 = vpop.f32.mrb[0].mxu0
      %v8891 = vadd.f32 0.0, %v8890
      %v8892 = vpop.f32.mrb[0].mxu0
      %8893 = vmatprep.mubr.bf16.mxu0 %v8595
      %8894 = vmatmul.mubr.bf16.gmra.mrb[0].mxu0 %v8594
      %v8895 = vpop.f32.mrb[0].mxu0
      %v8896 = vadd.f32 0.0, %v8895
      %v8897 = vpop.f32.mrb[0].mxu0
      %v8898 = vpop.f32.mrb[0].mxu0
      %v8899 = vadd.f32 0.0, %v8898
      %v8900 = vpop.f32.mrb[0].mxu0
      %8901 = vmatprep.mubr.bf16.mxu0 %v8598
      %8902 = vmatmul.mubr.bf16.gmra.mrb[0].mxu0 %v8597
      %v8903 = vpop.f32.mrb[0].mxu0
      %v8904 = vadd.f32 0.0, %v8903
      %v8905 = vpop.f32.mrb[0].mxu0
      %v8906 = vpop.f32.mrb[0].mxu0
      %v8907 = vadd.f32 0.0, %v8906
      %v8908 = vpop.f32.mrb[0].mxu0
      %8909 = vmatprep.mubr.bf16.mxu0 %v8600
      %8910 = vmatmul.mubr.bf16.gmra.mrb[0].mxu0 %v8279
      %v8911 = vpop.f32.mrb[0].mxu0
      %v8912 = vadd.f32 0.0, %v8911
      %v8913 = vpop.f32.mrb[0].mxu0
      %v8914 = vpop.f32.mrb[0].mxu0
      %v8915 = vadd.f32 0.0, %v8914
      %v8916 = vpop.f32.mrb[0].mxu0
      %8917 = vmatprep.mubr.bf16.mxu0 %v8603
      %8918 = vmatmul.mubr.bf16.gmra.mrb[0].mxu0 %v8602
      %v8919 = vpop.f32.mrb[0].mxu0
      %v8920 = vadd.f32 0.0, %v8919
      %v8921 = vpop.f32.mrb[0].mxu0
      %v8922 = vpop.f32.mrb[0].mxu0
      %v8923 = vadd.f32 0.0, %v8922
      %v8924 = vpop.f32.mrb[0].mxu0
      %8925 = vmatprep.mubr.bf16.mxu0 %v8606
      %8926 = vmatmul.mubr.bf16.gmra.mrb[0].mxu0 %v8605
      %v8927 = vpop.f32.mrb[0].mxu0
      %v8928 = vadd.f32 0.0, %v8927
      %v8929 = vpop.f32.mrb[0].mxu0
      %v8930 = vpop.f32.mrb[0].mxu0
      %v8931 = vadd.f32 0.0, %v8930
      %v8932 = vpop.f32.mrb[0].mxu0
      %8933 = vmatprep.mubr.bf16.mxu0 %v8608
      %8934 = vmatmul.mubr.bf16.gmra.mrb[0].mxu0 %v8283
      %v8935 = vpop.f32.mrb[0].mxu0
      %v8936 = vadd.f32 0.0, %v8935
      %v8937 = vpop.f32.mrb[0].mxu0
      %v8938 = vpop.f32.mrb[0].mxu0
      %v8939 = vadd.f32 0.0, %v8938
      %v8940 = vpop.f32.mrb[0].mxu0
      %8941 = vmatprep.mubr.bf16.mxu0 %v8611
      %8942 = vmatmul.mubr.bf16.gmra.mrb[0].mxu0 %v8610
      %v8943 = vpop.f32.mrb[0].mxu0
      %v8944 = vadd.f32 0.0, %v8943
      %v8945 = vpop.f32.mrb[0].mxu0
      %v8946 = vpop.f32.mrb[0].mxu0
      %v8947 = vadd.f32 0.0, %v8946
      %v8948 = vpop.f32.mrb[0].mxu0
      %8949 = vmatprep.mubr.bf16.mxu0 %v8614
      %8950 = vmatmul.mubr.bf16.gmra.mrb[0].mxu0 %v8613
      %v8951 = vpop.f32.mrb[0].mxu0
      %v8952 = vadd.f32 0.0, %v8951
      %v8953 = vpop.f32.mrb[0].mxu0
      %v8954 = vpop.f32.mrb[0].mxu0
      %v8955 = vadd.f32 0.0, %v8954
      %v8956 = vpop.f32.mrb[0].mxu0
      %8957 = vdwg.mxu0
      %8958 = vmatprep.subr.bf16.mxu0 0
      %8959 = vmatpush1.bf16.msra.mxu0 %v8773
      %8960 = vmatprep.subr.bf16.mxu0 0
      %8961 = vmatpush1.bf16.msra.mxu0 %v8774
      %8962 = vmatprep.subr.bf16.mxu0 0
      %8963 = vmatpush1.bf16.msra.mxu0 %v8775
      %8964 = vmatprep.subr.bf16.mxu0 0
      %8965 = vmatpush1.bf16.msra.mxu0 %v8776
      %8966 = vmatprep.subr.bf16.mxu0 0
      %8967 = vmatpush1.bf16.msra.mxu0 %v8777
      %8968 = vmatprep.subr.bf16.mxu0 0
      %8969 = vmatpush1.bf16.msra.mxu0 %v8778
      %8970 = vmatprep.subr.bf16.mxu0 0
      %8971 = vmatpush1.bf16.msra.mxu0 %v8779
      %8972 = vmatprep.subr.bf16.mxu0 0
      %8973 = vmatpush1.bf16.msra.mxu0 %v8780
      %8974 = vmatprep.subr.bf16.mxu0 0
      %8975 = vmatpush1.bf16.msra.mxu0 0
      %8976 = vmatprep.subr.bf16.mxu0 0
      %8977 = vmatpush1.bf16.msra.mxu0 0
      %8978 = vmatprep.subr.bf16.mxu0 0
      %8979 = vmatpush1.bf16.msra.mxu0 0
      %8980 = vmatprep.subr.bf16.mxu0 0
      %8981 = vmatpush1.bf16.msra.mxu0 0
      %8982 = vmatprep.subr.bf16.mxu0 0
      %8983 = vmatpush1.bf16.msra.mxu0 0
      %8984 = vmatprep.subr.bf16.mxu0 0
      %8985 = vmatpush1.bf16.msra.mxu0 0
      %8986 = vmatprep.subr.bf16.mxu0 0
      %8987 = vmatpush1.bf16.msra.mxu0 0
      %8988 = vmatprep.subr.bf16.mxu0 0
      %8989 = vmatpush1.bf16.msra.mxu0 0
      %8990 = vmatprep.mubr.bf16.mxu0 0
      %8991 = vmatmul.mubr.bf16.gmra.mrb[0].mxu0 %v8577
      %v8992 = vpop.f32.mrb[0].mxu0
      %v8993 = vadd.f32 %v8840, %v8992
      %v8994 = vpop.f32.mrb[0].mxu0
      %v8995 = vpop.f32.mrb[0].mxu0
      %v8996 = vadd.f32 %v8843, %v8995
      %v8997 = vpop.f32.mrb[0].mxu0
      %8998 = vmatprep.mubr.bf16.mxu0 0
      %8999 = vmatmul.mubr.bf16.gmra.mrb[0].mxu0 %v8580
      %v9000 = vpop.f32.mrb[0].mxu0
      %v9001 = vadd.f32 %v8848, %v9000
      %v9002 = vpop.f32.mrb[0].mxu0
      %v9003 = vpop.f32.mrb[0].mxu0
      %v9004 = vadd.f32 %v8851, %v9003
      %v9005 = vpop.f32.mrb[0].mxu0
      %9006 = vmatprep.mubr.bf16.mxu0 0
      %9007 = vmatmul.mubr.bf16.gmra.mrb[0].mxu0 %v8583
      %v9008 = vpop.f32.mrb[0].mxu0
      %v9009 = vadd.f32 %v8856, %v9008
      %v9010 = vpop.f32.mrb[0].mxu0
      %v9011 = vpop.f32.mrb[0].mxu0
      %v9012 = vadd.f32 %v8859, %v9011
      %v9013 = vpop.f32.mrb[0].mxu0
      %9014 = vmatprep.mubr.bf16.mxu0 0
      %9015 = vmatmul.mubr.bf16.gmra.mrb[0].mxu0 %v8585
      %v9016 = vpop.f32.mrb[0].mxu0
      %v9017 = vadd.f32 %v8864, %v9016
      %v9018 = vpop.f32.mrb[0].mxu0
      %v9019 = vpop.f32.mrb[0].mxu0
      %v9020 = vadd.f32 %v8867, %v9019
      %v9021 = vpop.f32.mrb[0].mxu0
      %9022 = vmatprep.mubr.bf16.mxu0 0
      %9023 = vmatmul.mubr.bf16.gmra.mrb[0].mxu0 %v8588
      %v9024 = vpop.f32.mrb[0].mxu0
      %v9025 = vadd.f32 %v8872, %v9024
      %v9026 = vpop.f32.mrb[0].mxu0
      %v9027 = vpop.f32.mrb[0].mxu0
      %v9028 = vadd.f32 %v8875, %v9027
      %v9029 = vpop.f32.mrb[0].mxu0
      %9030 = vmatprep.mubr.bf16.mxu0 0
      %9031 = vmatmul.mubr.bf16.gmra.mrb[0].mxu0 %v8591
      %v9032 = vpop.f32.mrb[0].mxu0
      %v9033 = vadd.f32 %v8880, %v9032
      %v9034 = vpop.f32.mrb[0].mxu0
      %v9035 = vpop.f32.mrb[0].mxu0
      %v9036 = vadd.f32 %v8883, %v9035
      %v9037 = vpop.f32.mrb[0].mxu0
      %9038 = vmatprep.mubr.bf16.mxu0 0
      %9039 = vmatmul.mubr.bf16.gmra.mrb[0].mxu0 %v8593
      %v9040 = vpop.f32.mrb[0].mxu0
      %v9041 = vadd.f32 %v8888, %v9040
      %v9042 = vpop.f32.mrb[0].mxu0
      %v9043 = vpop.f32.mrb[0].mxu0
      %v9044 = vadd.f32 %v8891, %v9043
      %v9045 = vpop.f32.mrb[0].mxu0
      %9046 = vmatprep.mubr.bf16.mxu0 0
      %9047 = vmatmul.mubr.bf16.gmra.mrb[0].mxu0 %v8596
      %v9048 = vpop.f32.mrb[0].mxu0
      %v9049 = vadd.f32 %v8896, %v9048
      %v9050 = vpop.f32.mrb[0].mxu0
      %v9051 = vpop.f32.mrb[0].mxu0
      %v9052 = vadd.f32 %v8899, %v9051
      %v9053 = vpop.f32.mrb[0].mxu0
      %9054 = vmatprep.mubr.bf16.mxu0 0
      %9055 = vmatmul.mubr.bf16.gmra.mrb[0].mxu0 %v8599
      %v9056 = vpop.f32.mrb[0].mxu0
      %v9057 = vadd.f32 %v8904, %v9056
      %v9058 = vpop.f32.mrb[0].mxu0
      %v9059 = vpop.f32.mrb[0].mxu0
      %v9060 = vadd.f32 %v8907, %v9059
      %v9061 = vpop.f32.mrb[0].mxu0
      %9062 = vmatprep.mubr.bf16.mxu0 0
      %9063 = vmatmul.mubr.bf16.gmra.mrb[0].mxu0 %v8601
      %v9064 = vpop.f32.mrb[0].mxu0
      %v9065 = vadd.f32 %v8912, %v9064
      %v9066 = vpop.f32.mrb[0].mxu0
      %v9067 = vpop.f32.mrb[0].mxu0
      %v9068 = vadd.f32 %v8915, %v9067
      %v9069 = vpop.f32.mrb[0].mxu0
      %9070 = vmatprep.mubr.bf16.mxu0 0
      %9071 = vmatmul.mubr.bf16.gmra.mrb[0].mxu0 %v8604
      %v9072 = vpop.f32.mrb[0].mxu0
      %v9073 = vadd.f32 %v8920, %v9072
      %v9074 = vpop.f32.mrb[0].mxu0
      %v9075 = vpop.f32.mrb[0].mxu0
      %v9076 = vadd.f32 %v8923, %v9075
      %v9077 = vpop.f32.mrb[0].mxu0
      %9078 = vmatprep.mubr.bf16.mxu0 0
      %9079 = vmatmul.mubr.bf16.gmra.mrb[0].mxu0 %v8607
      %v9080 = vpop.f32.mrb[0].mxu0
      %v9081 = vadd.f32 %v8928, %v9080
      %v9082 = vpop.f32.mrb[0].mxu0
      %v9083 = vpop.f32.mrb[0].mxu0
      %v9084 = vadd.f32 %v8931, %v9083
      %v9085 = vpop.f32.mrb[0].mxu0
      %9086 = vmatprep.mubr.bf16.mxu0 0
      %9087 = vmatmul.mubr.bf16.gmra.mrb[0].mxu0 %v8609
      %v9088 = vpop.f32.mrb[0].mxu0
      %v9089 = vadd.f32 %v8936, %v9088
      %v9090 = vpop.f32.mrb[0].mxu0
      %v9091 = vpop.f32.mrb[0].mxu0
      %v9092 = vadd.f32 %v8939, %v9091
      %v9093 = vpop.f32.mrb[0].mxu0
      %9094 = vmatprep.mubr.bf16.mxu0 0
      %9095 = vmatmul.mubr.bf16.gmra.mrb[0].mxu0 %v8612
      %v9096 = vpop.f32.mrb[0].mxu0
      %v9097 = vadd.f32 %v8944, %v9096
      %v9098 = vpop.f32.mrb[0].mxu0
      %v9099 = vpop.f32.mrb[0].mxu0
      %v9100 = vadd.f32 %v8947, %v9099
      %v9101 = vpop.f32.mrb[0].mxu0
      %9102 = vmatprep.mubr.bf16.mxu0 0
      %9103 = vmatmul.mubr.bf16.gmra.mrb[0].mxu0 %v8615
      %v9104 = vpop.f32.mrb[0].mxu0
      %v9105 = vadd.f32 %v8952, %v9104
      %v9106 = vpop.f32.mrb[0].mxu0
      %v9107 = vpop.f32.mrb[0].mxu0
      %v9108 = vadd.f32 %v8955, %v9107
      %v9109 = vpop.f32.mrb[0].mxu0
      %9110 = vdwg.mxu0
      %v9111 = vadd.f32 %v8029, %v8993
      %v9112 = vadd.f32 %v8032, %v8996
      %v9113 = vadd.f32 %v8037, %v9001
      %v9114 = vadd.f32 %v8040, %v9004
      %v9115 = vadd.f32 %v8045, %v9009
      %v9116 = vadd.f32 %v8048, %v9012
      %v9117 = vadd.f32 %v8053, %v9017
      %v9118 = vadd.f32 %v8056, %v9020
      %v9119 = vadd.f32 %v8061, %v9025
      %v9120 = vadd.f32 %v8064, %v9028
      %v9121 = vadd.f32 %v8069, %v9033
      %v9122 = vadd.f32 %v8072, %v9036
      %v9123 = vadd.f32 %v8077, %v9041
      %v9124 = vadd.f32 %v8080, %v9044
      %v9125 = vadd.f32 %v8085, %v9049
      %v9126 = vadd.f32 %v8088, %v9052
      %v9127 = vadd.f32 %v8093, %v9057
      %v9128 = vadd.f32 %v8096, %v9060
      %v9129 = vadd.f32 %v8101, %v9065
      %v9130 = vadd.f32 %v8104, %v9068
      %v9131 = vadd.f32 %v8109, %v9073
      %v9132 = vadd.f32 %v8112, %v9076
      %v9133 = vadd.f32 %v8117, %v9081
      %v9134 = vadd.f32 %v8120, %v9084
      %v9135 = vadd.f32 %v8125, %v9089
      %v9136 = vadd.f32 %v8128, %v9092
      %v9137 = vadd.f32 %v8133, %v9097
      %v9138 = vadd.f32 %v8136, %v9100
      %v9139 = vadd.f32 %v8141, %v9105
      %v9140 = vadd.f32 %v8144, %v9108
      %v9141 = vld [vmem:[%s5] sm:$0x1]
      %v9143 = vlaneseq
      %v9144 = vshrl.u32 %v9143, 7
      %v9145 = vsub.s32 0, %v9144
      %v9146 = vrot.slane %v9141, %v9145
      %v9148 = vadd.f32 %v9111, %v9146
      %v9149 = vadd.f32 %v9112, %v9146
      %v9150 = vadd.f32 %v9113, %v9146
      %v9151 = vadd.f32 %v9114, %v9146
      %v9152 = vadd.f32 %v9115, %v9146
      %v9153 = vadd.f32 %v9116, %v9146
      %v9154 = vadd.f32 %v9117, %v9146
      %v9155 = vadd.f32 %v9118, %v9146
      %v9156 = vadd.f32 %v9119, %v9146
      %v9157 = vadd.f32 %v9120, %v9146
      %v9158 = vadd.f32 %v9121, %v9146
      %v9159 = vadd.f32 %v9122, %v9146
      %v9160 = vadd.f32 %v9123, %v9146
      %v9161 = vadd.f32 %v9124, %v9146
      %v9162 = vadd.f32 %v9125, %v9146
      %v9163 = vadd.f32 %v9126, %v9146
      %v9164 = vadd.f32 %v9127, %v9146
      %v9165 = vadd.f32 %v9128, %v9146
      %v9166 = vadd.f32 %v9129, %v9146
      %v9167 = vadd.f32 %v9130, %v9146
      %v9168 = vadd.f32 %v9131, %v9146
      %v9169 = vadd.f32 %v9132, %v9146
      %v9170 = vadd.f32 %v9133, %v9146
      %v9171 = vadd.f32 %v9134, %v9146
      %v9172 = vadd.f32 %v9135, %v9146
      %v9173 = vadd.f32 %v9136, %v9146
      %v9174 = vadd.f32 %v9137, %v9146
      %v9175 = vadd.f32 %v9138, %v9146
      %v9176 = vadd.f32 %v9139, %v9146
      %v9177 = vadd.f32 %v9140, %v9146
      %v9178 = vadd.f32 %v964, %v9148
      %v9179 = vadd.f32 %v965, %v9149
      %v9180 = vadd.f32 %v966, %v9150
      %v9181 = vadd.f32 %v700, %v9151
      %v9182 = vadd.f32 %v701, %v9152
      %v9183 = vadd.f32 %v702, %v9153
      %v9184 = vadd.f32 %v703, %v9154
      %v9185 = vadd.f32 %v704, %v9155
      %v9186 = vadd.f32 %v705, %v9156
      %v9187 = vadd.f32 %v706, %v9157
      %v9188 = vadd.f32 %v707, %v9158
      %v9189 = vadd.f32 %v708, %v9159
      %v9190 = vadd.f32 %v709, %v9160
      %v9191 = vadd.f32 %v710, %v9161
      %v9192 = vadd.f32 %v711, %v9162
      %v9193 = vadd.f32 %v712, %v9163
      %v9194 = vadd.f32 %v713, %v9164
      %v9195 = vadd.f32 %v714, %v9165
      %v9196 = vadd.f32 %v715, %v9166
      %v9197 = vadd.f32 %v716, %v9167
      %v9198 = vadd.f32 %v717, %v9168
      %v9199 = vadd.f32 %v718, %v9169
      %v9200 = vadd.f32 %v719, %v9170
      %v9201 = vadd.f32 %v720, %v9171
      %v9202 = vadd.f32 %v721, %v9172
      %v9203 = vadd.f32 %v722, %v9173
      %v9204 = vadd.f32 %v723, %v9174
      %v9205 = vadd.f32 %v967, %v9175
      %v9206 = vadd.f32 %v968, %v9176
      %v9207 = vadd.f32 %v969, %v9177
      %vm9208 = vcmp.ge.f32.partialorder %v9178, 0.0
      %vm9209 = vcmp.ge.f32.partialorder %v9179, 0.0
      %vm9210 = vcmp.ge.f32.partialorder %v9180, 0.0
      %vm9211 = vcmp.ge.f32.partialorder %v9181, 0.0
      %vm9212 = vcmp.ge.f32.partialorder %v9182, 0.0
      %vm9213 = vcmp.ge.f32.partialorder %v9183, 0.0
      %vm9214 = vcmp.ge.f32.partialorder %v9184, 0.0
      %vm9215 = vcmp.ge.f32.partialorder %v9185, 0.0
      %vm9216 = vcmp.ge.f32.partialorder %v9186, 0.0
      %vm9217 = vcmp.ge.f32.partialorder %v9187, 0.0
      %vm9218 = vcmp.ge.f32.partialorder %v9188, 0.0
      %vm9219 = vcmp.ge.f32.partialorder %v9189, 0.0
      %vm9220 = vcmp.ge.f32.partialorder %v9190, 0.0
      %vm9221 = vcmp.ge.f32.partialorder %v9191, 0.0
      %vm9222 = vcmp.ge.f32.partialorder %v9192, 0.0
      %vm9223 = vcmp.ge.f32.partialorder %v9193, 0.0
      %vm9224 = vcmp.ge.f32.partialorder %v9194, 0.0
      %vm9225 = vcmp.ge.f32.partialorder %v9195, 0.0
      %vm9226 = vcmp.ge.f32.partialorder %v9196, 0.0
      %vm9227 = vcmp.ge.f32.partialorder %v9197, 0.0
      %vm9228 = vcmp.ge.f32.partialorder %v9198, 0.0
      %vm9229 = vcmp.ge.f32.partialorder %v9199, 0.0
      %vm9230 = vcmp.ge.f32.partialorder %v9200, 0.0
      %vm9231 = vcmp.ge.f32.partialorder %v9201, 0.0
      %vm9232 = vcmp.ge.f32.partialorder %v9202, 0.0
      %vm9233 = vcmp.ge.f32.partialorder %v9203, 0.0
      %vm9234 = vcmp.ge.f32.partialorder %v9204, 0.0
      %vm9235 = vcmp.ge.f32.partialorder %v9205, 0.0
      %vm9236 = vcmp.ge.f32.partialorder %v9206, 0.0
      %vm9237 = vcmp.ge.f32.partialorder %v9207, 0.0
      %v9238 = vmul.f32 %v9178, 0.01
      %v9239 = vmul.f32 %v9179, 0.01
      %v9240 = vmul.f32 %v9180, 0.01
      %v9241 = vmul.f32 %v9181, 0.01
      %v9242 = vmul.f32 %v9182, 0.01
      %v9243 = vmul.f32 %v9183, 0.01
      %v9244 = vmul.f32 %v9184, 0.01
      %v9245 = vmul.f32 %v9185, 0.01
      %v9246 = vmul.f32 %v9186, 0.01
      %v9247 = vmul.f32 %v9187, 0.01
      %v9248 = vmul.f32 %v9188, 0.01
      %v9249 = vmul.f32 %v9189, 0.01
      %v9250 = vmul.f32 %v9190, 0.01
      %v9251 = vmul.f32 %v9191, 0.01
      %v9252 = vmul.f32 %v9192, 0.01
      %v9253 = vmul.f32 %v9193, 0.01
      %v9254 = vmul.f32 %v9194, 0.01
      %v9255 = vmul.f32 %v9195, 0.01
      %v9256 = vmul.f32 %v9196, 0.01
      %v9257 = vmul.f32 %v9197, 0.01
      %v9258 = vmul.f32 %v9198, 0.01
      %v9259 = vmul.f32 %v9199, 0.01
      %v9260 = vmul.f32 %v9200, 0.01
      %v9261 = vmul.f32 %v9201, 0.01
      %v9262 = vmul.f32 %v9202, 0.01
      %v9263 = vmul.f32 %v9203, 0.01
      %v9264 = vmul.f32 %v9204, 0.01
      %v9265 = vmul.f32 %v9205, 0.01
      %v9266 = vmul.f32 %v9206, 0.01
      %v9267 = vmul.f32 %v9207, 0.01
      %v9268 = vsel %vm9208, %v9178, %v9238
      %v9269 = vsel %vm9209, %v9179, %v9239
      %v9270 = vsel %vm9210, %v9180, %v9240
      %v9271 = vsel %vm9211, %v9181, %v9241
      %v9272 = vsel %vm9212, %v9182, %v9242
      %v9273 = vsel %vm9213, %v9183, %v9243
      %v9274 = vsel %vm9214, %v9184, %v9244
      %v9275 = vsel %vm9215, %v9185, %v9245
      %v9276 = vsel %vm9216, %v9186, %v9246
      %v9277 = vsel %vm9217, %v9187, %v9247
      %v9278 = vsel %vm9218, %v9188, %v9248
      %v9279 = vsel %vm9219, %v9189, %v9249
      %v9280 = vsel %vm9220, %v9190, %v9250
      %v9281 = vsel %vm9221, %v9191, %v9251
      %v9282 = vsel %vm9222, %v9192, %v9252
      %v9283 = vsel %vm9223, %v9193, %v9253
      %v9284 = vsel %vm9224, %v9194, %v9254
      %v9285 = vsel %vm9225, %v9195, %v9255
      %v9286 = vsel %vm9226, %v9196, %v9256
      %v9287 = vsel %vm9227, %v9197, %v9257
      %v9288 = vsel %vm9228, %v9198, %v9258
      %v9289 = vsel %vm9229, %v9199, %v9259
      %v9290 = vsel %vm9230, %v9200, %v9260
      %v9291 = vsel %vm9231, %v9201, %v9261
      %v9292 = vsel %vm9232, %v9202, %v9262
      %v9293 = vsel %vm9233, %v9203, %v9263
      %v9294 = vsel %vm9234, %v9204, %v9264
      %v9295 = vsel %vm9235, %v9205, %v9265
      %v9296 = vsel %vm9236, %v9206, %v9266
      %v9297 = vsel %vm9237, %v9207, %v9267
      %v9298 = vpack.c.bf16 %v9269, %v9268
      %v9299 = vpack.c.bf16 %v9270, %v9270
      %v9300 = vpack.c.bf16 %v9272, %v9271
      %v9301 = vpack.c.bf16 %v9273, %v9273
      %v9302 = vpack.c.bf16 %v9275, %v9274
      %v9303 = vpack.c.bf16 %v9276, %v9276
      %v9304 = vpack.c.bf16 %v9278, %v9277
      %v9305 = vpack.c.bf16 %v9279, %v9279
      %v9306 = vpack.c.bf16 %v9281, %v9280
      %v9307 = vpack.c.bf16 %v9282, %v9282
      %v9308 = vpack.c.bf16 %v9284, %v9283
      %v9309 = vpack.c.bf16 %v9285, %v9285
      %v9310 = vpack.c.bf16 %v9287, %v9286
      %v9311 = vpack.c.bf16 %v9288, %v9288
      %v9312 = vpack.c.bf16 %v9290, %v9289
      %v9313 = vpack.c.bf16 %v9291, %v9291
      %v9314 = vpack.c.bf16 %v9293, %v9292
      %v9315 = vpack.c.bf16 %v9294, %v9294
      %v9316 = vpack.c.bf16 %v9296, %v9295
      %v9317 = vpack.c.bf16 %v9297, %v9297
      %v9338 = vunpack.c.l.b16 %v9298
      %v9339 = vunpack.c.h.b16 %v9298
      %v9340 = vunpack.c.l.b16 %v9299
      %v9341 = vunpack.c.l.b16 %v9300
      %v9342 = vunpack.c.h.b16 %v9300
      %v9343 = vunpack.c.l.b16 %v9301
      %v9344 = vunpack.c.l.b16 %v9302
      %v9345 = vunpack.c.h.b16 %v9302
      %v9346 = vunpack.c.l.b16 %v9303
      %v9347 = vunpack.c.l.b16 %v9304
      %v9348 = vunpack.c.h.b16 %v9304
      %v9349 = vunpack.c.l.b16 %v9305
      %v9350 = vunpack.c.l.b16 %v9306
      %v9351 = vunpack.c.h.b16 %v9306
      %v9352 = vunpack.c.l.b16 %v9307
      %v9353 = vunpack.c.l.b16 %v9308
      %v9354 = vunpack.c.h.b16 %v9308
      %v9355 = vunpack.c.l.b16 %v9309
      %v9356 = vunpack.c.l.b16 %v9310
      %v9357 = vunpack.c.h.b16 %v9310
      %v9358 = vunpack.c.l.b16 %v9311
      %v9359 = vunpack.c.l.b16 %v9312
      %v9360 = vunpack.c.h.b16 %v9312
      %v9361 = vunpack.c.l.b16 %v9313
      %v9362 = vunpack.c.l.b16 %v9314
      %v9363 = vunpack.c.h.b16 %v9314
      %v9364 = vunpack.c.l.b16 %v9315
      %v9365 = vunpack.c.l.b16 %v9316
      %v9366 = vunpack.c.h.b16 %v9316
      %v9367 = vunpack.c.l.b16 %v9317
      %v9368 = vpack.c.b16 %v9338, %v9338
      %v9369 = vpack.c.b16 %v9339, %v9339
      %v9370 = vpack.c.b16 %v9340, %v9340
      %v9371 = vpack.c.b16 %v9341, %v9341
      %v9372 = vpack.c.b16 %v9342, %v9342
      %v9373 = vpack.c.b16 %v9343, %v9343
      %v9374 = vpack.c.b16 %v9344, %v9344
      %v9375 = vpack.c.b16 %v9345, %v9345
      %v9376 = vpack.c.b16 %v9346, %v9346
      %v9377 = vpack.c.b16 %v9347, %v9347
      %v9378 = vpack.c.b16 %v9348, %v9348
      %v9379 = vpack.c.b16 %v9349, %v9349
      %v9380 = vpack.c.b16 %v9350, %v9350
      %v9381 = vpack.c.b16 %v9351, %v9351
      %v9382 = vpack.c.b16 %v9352, %v9352
      %v9383 = vpack.c.b16 %v9353, %v9353
      %v9384 = vpack.c.b16 %v9354, %v9354
      %v9385 = vpack.c.b16 %v9355, %v9355
      %v9386 = vpack.c.b16 %v9356, %v9356
      %v9387 = vpack.c.b16 %v9357, %v9357
      %v9388 = vpack.c.b16 %v9358, %v9358
      %v9389 = vpack.c.b16 %v9359, %v9359
      %v9390 = vpack.c.b16 %v9360, %v9360
      %v9391 = vpack.c.b16 %v9361, %v9361
      %v9392 = vpack.c.b16 %v9362, %v9362
      %v9393 = vpack.c.b16 %v9363, %v9363
      %v9394 = vpack.c.b16 %v9364, %v9364
      %v9395 = vpack.c.b16 %v9365, %v9365
      %v9396 = vpack.c.b16 %v9366, %v9366
      %v9397 = vpack.c.b16 %v9367, %v9367
      %v9399 = vshrl.u32 %v9368, 16
      %v9401 = vrot.slane %v9399, 7
      %v9402 = vshll.u32 %v9368, 16
      %v9404 = vor.u32 %v9401, %v9402
      %v9405 = vrot.slane %v9401, 4
      %v9407 = vshrl.u32 %v9369, 16
      %v9409 = vrot.slane %v9407, 7
      %v9410 = vshll.u32 %v9369, 16
      %v9412 = vor.u32 %v9409, %v9410
      %v9413 = vsel %vm1008, %v9405, %v9412
      %v9414 = vrot.slane %v9409, 4
      %v9416 = vshrl.u32 %v9370, 16
      %v9418 = vrot.slane %v9416, 7
      %v9419 = vshll.u32 %v9370, 16
      %v9421 = vor.u32 %v9418, %v9419
      %v9422 = vsel %vm1008, %v9414, %v9421
      %v9423 = vrot.slane %v9418, 4
      %v9425 = vshrl.u32 %v9371, 16
      %v9427 = vrot.slane %v9425, 7
      %v9428 = vshll.u32 %v9371, 16
      %v9430 = vor.u32 %v9427, %v9428
      %v9431 = vrot.slane %v9427, 4
      %v9433 = vshrl.u32 %v9372, 16
      %v9435 = vrot.slane %v9433, 7
      %v9436 = vshll.u32 %v9372, 16
      %v9438 = vor.u32 %v9435, %v9436
      %v9439 = vsel %vm1008, %v9431, %v9438
      %v9440 = vrot.slane %v9435, 4
      %v9442 = vshrl.u32 %v9373, 16
      %v9444 = vrot.slane %v9442, 7
      %v9445 = vshll.u32 %v9373, 16
      %v9447 = vor.u32 %v9444, %v9445
      %v9448 = vsel %vm1008, %v9440, %v9447
      %v9449 = vrot.slane %v9444, 4
      %v9451 = vshrl.u32 %v9374, 16
      %v9453 = vrot.slane %v9451, 7
      %v9454 = vshll.u32 %v9374, 16
      %v9456 = vor.u32 %v9453, %v9454
      %v9457 = vrot.slane %v9453, 4
      %v9459 = vshrl.u32 %v9375, 16
      %v9461 = vrot.slane %v9459, 7
      %v9462 = vshll.u32 %v9375, 16
      %v9464 = vor.u32 %v9461, %v9462
      %v9465 = vsel %vm1008, %v9457, %v9464
      %v9466 = vrot.slane %v9461, 4
      %v9468 = vshrl.u32 %v9376, 16
      %v9470 = vrot.slane %v9468, 7
      %v9471 = vshll.u32 %v9376, 16
      %v9473 = vor.u32 %v9470, %v9471
      %v9474 = vsel %vm1008, %v9466, %v9473
      %v9475 = vrot.slane %v9470, 4
      %v9477 = vshrl.u32 %v9377, 16
      %v9479 = vrot.slane %v9477, 7
      %v9480 = vshll.u32 %v9377, 16
      %v9482 = vor.u32 %v9479, %v9480
      %v9483 = vrot.slane %v9479, 4
      %v9485 = vshrl.u32 %v9378, 16
      %v9487 = vrot.slane %v9485, 7
      %v9488 = vshll.u32 %v9378, 16
      %v9490 = vor.u32 %v9487, %v9488
      %v9491 = vsel %vm1008, %v9483, %v9490
      %v9492 = vrot.slane %v9487, 4
      %v9494 = vshrl.u32 %v9379, 16
      %v9496 = vrot.slane %v9494, 7
      %v9497 = vshll.u32 %v9379, 16
      %v9499 = vor.u32 %v9496, %v9497
      %v9500 = vsel %vm1008, %v9492, %v9499
      %v9501 = vrot.slane %v9496, 4
      %v9503 = vshrl.u32 %v9380, 16
      %v9505 = vrot.slane %v9503, 7
      %v9506 = vshll.u32 %v9380, 16
      %v9508 = vor.u32 %v9505, %v9506
      %v9509 = vrot.slane %v9505, 4
      %v9511 = vshrl.u32 %v9381, 16
      %v9513 = vrot.slane %v9511, 7
      %v9514 = vshll.u32 %v9381, 16
      %v9516 = vor.u32 %v9513, %v9514
      %v9517 = vsel %vm1008, %v9509, %v9516
      %v9518 = vrot.slane %v9513, 4
      %v9520 = vshrl.u32 %v9382, 16
      %v9522 = vrot.slane %v9520, 7
      %v9523 = vshll.u32 %v9382, 16
      %v9525 = vor.u32 %v9522, %v9523
      %v9526 = vsel %vm1008, %v9518, %v9525
      %v9527 = vrot.slane %v9522, 4
      %v9529 = vshrl.u32 %v9383, 16
      %v9531 = vrot.slane %v9529, 7
      %v9532 = vshll.u32 %v9383, 16
      %v9534 = vor.u32 %v9531, %v9532
      %v9535 = vrot.slane %v9531, 4
      %v9537 = vshrl.u32 %v9384, 16
      %v9539 = vrot.slane %v9537, 7
      %v9540 = vshll.u32 %v9384, 16
      %v9542 = vor.u32 %v9539, %v9540
      %v9543 = vsel %vm1008, %v9535, %v9542
      %v9544 = vrot.slane %v9539, 4
      %v9546 = vshrl.u32 %v9385, 16
      %v9548 = vrot.slane %v9546, 7
      %v9549 = vshll.u32 %v9385, 16
      %v9551 = vor.u32 %v9548, %v9549
      %v9552 = vsel %vm1008, %v9544, %v9551
      %v9553 = vrot.slane %v9548, 4
      %v9555 = vshrl.u32 %v9386, 16
      %v9557 = vrot.slane %v9555, 7
      %v9558 = vshll.u32 %v9386, 16
      %v9560 = vor.u32 %v9557, %v9558
      %v9561 = vrot.slane %v9557, 4
      %v9563 = vshrl.u32 %v9387, 16
      %v9565 = vrot.slane %v9563, 7
      %v9566 = vshll.u32 %v9387, 16
      %v9568 = vor.u32 %v9565, %v9566
      %v9569 = vsel %vm1008, %v9561, %v9568
      %v9570 = vrot.slane %v9565, 4
      %v9572 = vshrl.u32 %v9388, 16
      %v9574 = vrot.slane %v9572, 7
      %v9575 = vshll.u32 %v9388, 16
      %v9577 = vor.u32 %v9574, %v9575
      %v9578 = vsel %vm1008, %v9570, %v9577
      %v9579 = vrot.slane %v9574, 4
      %v9581 = vshrl.u32 %v9389, 16
      %v9583 = vrot.slane %v9581, 7
      %v9584 = vshll.u32 %v9389, 16
      %v9586 = vor.u32 %v9583, %v9584
      %v9587 = vrot.slane %v9583, 4
      %v9589 = vshrl.u32 %v9390, 16
      %v9591 = vrot.slane %v9589, 7
      %v9592 = vshll.u32 %v9390, 16
      %v9594 = vor.u32 %v9591, %v9592
      %v9595 = vsel %vm1008, %v9587, %v9594
      %v9596 = vrot.slane %v9591, 4
      %v9598 = vshrl.u32 %v9391, 16
      %v9600 = vrot.slane %v9598, 7
      %v9601 = vshll.u32 %v9391, 16
      %v9603 = vor.u32 %v9600, %v9601
      %v9604 = vsel %vm1008, %v9596, %v9603
      %v9605 = vrot.slane %v9600, 4
      %v9607 = vshrl.u32 %v9392, 16
      %v9609 = vrot.slane %v9607, 7
      %v9610 = vshll.u32 %v9392, 16
      %v9612 = vor.u32 %v9609, %v9610
      %v9613 = vrot.slane %v9609, 4
      %v9615 = vshrl.u32 %v9393, 16
      %v9617 = vrot.slane %v9615, 7
      %v9618 = vshll.u32 %v9393, 16
      %v9620 = vor.u32 %v9617, %v9618
      %v9621 = vsel %vm1008, %v9613, %v9620
      %v9622 = vrot.slane %v9617, 4
      %v9624 = vshrl.u32 %v9394, 16
      %v9626 = vrot.slane %v9624, 7
      %v9627 = vshll.u32 %v9394, 16
      %v9629 = vor.u32 %v9626, %v9627
      %v9630 = vsel %vm1008, %v9622, %v9629
      %v9631 = vrot.slane %v9626, 4
      %v9633 = vshrl.u32 %v9395, 16
      %v9635 = vrot.slane %v9633, 7
      %v9636 = vshll.u32 %v9395, 16
      %v9638 = vor.u32 %v9635, %v9636
      %v9639 = vrot.slane %v9635, 4
      %v9641 = vshrl.u32 %v9396, 16
      %v9643 = vrot.slane %v9641, 7
      %v9644 = vshll.u32 %v9396, 16
      %v9646 = vor.u32 %v9643, %v9644
      %v9647 = vsel %vm1008, %v9639, %v9646
      %v9648 = vrot.slane %v9643, 4
      %v9650 = vshrl.u32 %v9397, 16
      %v9652 = vrot.slane %v9650, 7
      %v9653 = vshll.u32 %v9397, 16
      %v9655 = vor.u32 %v9652, %v9653
      %v9656 = vsel %vm1008, %v9648, %v9655
      %v9657 = vrot.slane %v9652, 4
      %v9698 = vsel %vm1101, %v9404, %v6220
      %9699 = vst [vmem:[#allocation2] sm:$0xf] %v9698
      %9700 = vst [vmem:[#allocation2 + $0x4] sm:$0xf] %v9413
      %9701 = vst [vmem:[#allocation2 + $0x8] sm:$0xf] %v9422
      %v9702 = vld [vmem:[#allocation2 + $0xc] sm:$0x1]
      %v9703 = vsel %vm1108, %v9423, %v9702
      %9704 = vst [vmem:[#allocation2 + $0xc] sm:$0x1] %v9703
      %v9705 = vld [vmem:[#allocation2 + $0x10] sm:$0xf]
      %v9706 = vsel %vm1101, %v9430, %v9705
      %9707 = vst [vmem:[#allocation2 + $0x10] sm:$0xf] %v9706
      %9708 = vst [vmem:[#allocation2 + $0x14] sm:$0xf] %v9439
      %9709 = vst [vmem:[#allocation2 + $0x18] sm:$0xf] %v9448
      %v9710 = vld [vmem:[#allocation2 + $0x1c] sm:$0x1]
      %v9711 = vsel %vm1108, %v9449, %v9710
      %9712 = vst [vmem:[#allocation2 + $0x1c] sm:$0x1] %v9711
      %v9713 = vld [vmem:[#allocation2 + $0x20] sm:$0xf]
      %v9714 = vsel %vm1101, %v9456, %v9713
      %9715 = vst [vmem:[#allocation2 + $0x20] sm:$0xf] %v9714
      %9716 = vst [vmem:[#allocation2 + $0x24] sm:$0xf] %v9465
      %9717 = vst [vmem:[#allocation2 + $0x28] sm:$0xf] %v9474
      %v9718 = vld [vmem:[#allocation2 + $0x2c] sm:$0x1]
      %v9719 = vsel %vm1108, %v9475, %v9718
      %9720 = vst [vmem:[#allocation2 + $0x2c] sm:$0x1] %v9719
      %v9721 = vld [vmem:[#allocation2 + $0x30] sm:$0xf]
      %v9722 = vsel %vm1101, %v9482, %v9721
      %9723 = vst [vmem:[#allocation2 + $0x30] sm:$0xf] %v9722
      %9724 = vst [vmem:[#allocation2 + $0x34] sm:$0xf] %v9491
      %9725 = vst [vmem:[#allocation2 + $0x38] sm:$0xf] %v9500
      %v9726 = vld [vmem:[#allocation2 + $0x3c] sm:$0x1]
      %v9727 = vsel %vm1108, %v9501, %v9726
      %9728 = vst [vmem:[#allocation2 + $0x3c] sm:$0x1] %v9727
      %v9729 = vld [vmem:[#allocation2 + $0x40] sm:$0xf]
      %v9730 = vsel %vm1101, %v9508, %v9729
      %9731 = vst [vmem:[#allocation2 + $0x40] sm:$0xf] %v9730
      %9732 = vst [vmem:[#allocation2 + $0x44] sm:$0xf] %v9517
      %9733 = vst [vmem:[#allocation2 + $0x48] sm:$0xf] %v9526
      %v9734 = vld [vmem:[#allocation2 + $0x4c] sm:$0x1]
      %v9735 = vsel %vm1108, %v9527, %v9734
      %9736 = vst [vmem:[#allocation2 + $0x4c] sm:$0x1] %v9735
      %v9737 = vld [vmem:[#allocation2 + $0x50] sm:$0xf]
      %v9738 = vsel %vm1101, %v9534, %v9737
      %9739 = vst [vmem:[#allocation2 + $0x50] sm:$0xf] %v9738
      %9740 = vst [vmem:[#allocation2 + $0x54] sm:$0xf] %v9543
      %9741 = vst [vmem:[#allocation2 + $0x58] sm:$0xf] %v9552
      %v9742 = vld [vmem:[#allocation2 + $0x5c] sm:$0x1]
      %v9743 = vsel %vm1108, %v9553, %v9742
      %9744 = vst [vmem:[#allocation2 + $0x5c] sm:$0x1] %v9743
      %v9745 = vld [vmem:[#allocation2 + $0x60] sm:$0xf]
      %v9746 = vsel %vm1101, %v9560, %v9745
      %9747 = vst [vmem:[#allocation2 + $0x60] sm:$0xf] %v9746
      %9748 = vst [vmem:[#allocation2 + $0x64] sm:$0xf] %v9569
      %9749 = vst [vmem:[#allocation2 + $0x68] sm:$0xf] %v9578
      %v9750 = vld [vmem:[#allocation2 + $0x6c] sm:$0x1]
      %v9751 = vsel %vm1108, %v9579, %v9750
      %9752 = vst [vmem:[#allocation2 + $0x6c] sm:$0x1] %v9751
      %v9753 = vld [vmem:[#allocation2 + $0x70] sm:$0xf]
      %v9754 = vsel %vm1101, %v9586, %v9753
      %9755 = vst [vmem:[#allocation2 + $0x70] sm:$0xf] %v9754
      %9756 = vst [vmem:[#allocation2 + $0x74] sm:$0xf] %v9595
      %9757 = vst [vmem:[#allocation2 + $0x78] sm:$0xf] %v9604
      %v9758 = vld [vmem:[#allocation2 + $0x7c] sm:$0x1]
      %v9759 = vsel %vm1108, %v9605, %v9758
      %9760 = vst [vmem:[#allocation2 + $0x7c] sm:$0x1] %v9759
      %v9761 = vld [vmem:[#allocation2 + $0x80] sm:$0xf]
      %v9762 = vsel %vm1101, %v9612, %v9761
      %9763 = vst [vmem:[#allocation2 + $0x80] sm:$0xf] %v9762
      %9764 = vst [vmem:[#allocation2 + $0x84] sm:$0xf] %v9621
      %9765 = vst [vmem:[#allocation2 + $0x88] sm:$0xf] %v9630
      %v9766 = vld [vmem:[#allocation2 + $0x8c] sm:$0x1]
      %v9767 = vsel %vm1108, %v9631, %v9766
      %9768 = vst [vmem:[#allocation2 + $0x8c] sm:$0x1] %v9767
      %v9769 = vld [vmem:[#allocation2 + $0x90] sm:$0xf]
      %v9770 = vsel %vm1101, %v9638, %v9769
      %9771 = vst [vmem:[#allocation2 + $0x90] sm:$0xf] %v9770
      %9772 = vst [vmem:[#allocation2 + $0x94] sm:$0xf] %v9647
      %9773 = vst [vmem:[#allocation2 + $0x98] sm:$0xf] %v9656
      %v9774 = vld [vmem:[#allocation2 + $0x9c] sm:$0x1]
      %v9775 = vsel %vm1108, %v9657, %v9774
      %9776 = vst [vmem:[#allocation2 + $0x9c] sm:$0x1] %v9775
      // Predicated region
      $region69: #{down_forward.1} parent=51 // pred_check
        %p9777 = pneg %p385
      $region70: #{down_forward.1} parent=51 // pred_check_branch
        %9779 = sbr.rel (%p9777) target = $region72
      $region71: #{down_forward.1} parent=51 // pred_region
        %v9780 = vld [vmem:[%s4128] sm:$0xf]
        %v9781 = vld [vmem:[%s4128 + $0x4] sm:$0xf]
        %v9782 = vld [vmem:[%s4128 + $0x8] sm:$0xf]
        %v9783 = vld [vmem:[%s4128 + $0xc] sm:$0x1]
        %v9784 = vld [vmem:[#allocation2] sm:$0xf]
        %v9785 = vsel %vm1101, %v9780, %v9784
        %9786 = vst [vmem:[#allocation2] sm:$0xf] %v9785
        %9787 = vst [vmem:[#allocation2 + $0x4] sm:$0xf] %v9781
        %9788 = vst [vmem:[#allocation2 + $0x8] sm:$0xf] %v9782
        %v9789 = vld [vmem:[#allocation2 + $0xc] sm:$0x1]
        %v9790 = vsel %vm1108, %v9783, %v9789
        %9791 = vst [vmem:[#allocation2 + $0xc] sm:$0x1] %v9790
      $region72: #{down_forward.1} parent=51 // pred_fallthru
        _
      // Predicated region
      $region73: #{down_forward.1} parent=51 // pred_check
        %p9792 = pneg %p386
      $region74: #{down_forward.1} parent=51 // pred_check_branch
        %9794 = sbr.rel (%p9792) target = $region76
      $region75: #{down_forward.1} parent=51 // pred_region
        %s9795 = scalar_lea.vmem [#allocation2], 112
        %v9796 = vld [vmem:[%s9795] sm:$0xf]
        %v9797 = vld [vmem:[%s9795 + $0x4] sm:$0xf]
        %v9798 = vld [vmem:[%s9795 + $0x8] sm:$0xf]
        %v9799 = vld [vmem:[%s9795 + $0xc] sm:$0x1]
        %s9800 = scalar_lea.vmem [#allocation2], 144
        %v9801 = vld [vmem:[%s9800] sm:$0xf]
        %v9802 = vsel %vm1101, %v9796, %v9801
        %9803 = vst [vmem:[%s9800] sm:$0xf] %v9802
        %9804 = vst [vmem:[%s9800 + $0x4] sm:$0xf] %v9797
        %9805 = vst [vmem:[%s9800 + $0x8] sm:$0xf] %v9798
        %v9806 = vld [vmem:[%s9800 + $0xc] sm:$0x1]
        %v9807 = vsel %vm1108, %v9799, %v9806
        %9808 = vst [vmem:[%s9800 + $0xc] sm:$0x1] %v9807
      $region76: #{down_forward.1} parent=51 // pred_fallthru
        _
      %v9809 = vld [vmem:[#allocation2] sm:$0x2]
      %v9810 = vld [vmem:[#allocation2 + $0x10] sm:$0x2]
      %v9811 = vld [vmem:[#allocation2 + $0x20] sm:$0x2]
      %v9812 = vld [vmem:[#allocation2 + $0x30] sm:$0x2]
      %v9813 = vld [vmem:[#allocation2 + $0x40] sm:$0x2]
      %v9814 = vld [vmem:[#allocation2 + $0x50] sm:$0x2]
      %v9815 = vld [vmem:[#allocation2 + $0x60] sm:$0x2]
      %v9816 = vld [vmem:[#allocation2 + $0x70] sm:$0x2]
      %v9817 = vld [vmem:[#allocation2 + $0x80] sm:$0x2]
      %v9818 = vld [vmem:[#allocation2 + $0x90] sm:$0x2]
      %v9829 = vrot.slane %v9809, 5
      %v9830 = vrot.slane %v9829, 4
      %v9831 = vrot.slane %v9810, 5
      %v9832 = vrot.slane %v9831, 4
      %v9833 = vrot.slane %v9811, 5
      %v9834 = vrot.slane %v9833, 4
      %v9835 = vrot.slane %v9812, 5
      %v9836 = vrot.slane %v9835, 4
      %v9837 = vrot.slane %v9813, 5
      %v9838 = vrot.slane %v9837, 4
      %v9839 = vrot.slane %v9814, 5
      %v9840 = vrot.slane %v9839, 4
      %v9841 = vrot.slane %v9815, 5
      %v9842 = vrot.slane %v9841, 4
      %v9843 = vrot.slane %v9816, 5
      %v9844 = vrot.slane %v9843, 4
      %v9845 = vrot.slane %v9817, 5
      %v9846 = vrot.slane %v9845, 4
      %v9847 = vrot.slane %v9818, 5
      %v9848 = vrot.slane %v9847, 4
      %v9859 = vld [vmem:[#allocation2] sm:$0x1]
      %v9860 = vsel %vm1108, %v9830, %v9859
      %9861 = vst [vmem:[#allocation2] sm:$0x1] %v9860
      %v9862 = vld [vmem:[#allocation2 + $0x10] sm:$0x1]
      %v9863 = vsel %vm1108, %v9832, %v9862
      %9864 = vst [vmem:[#allocation2 + $0x10] sm:$0x1] %v9863
      %v9865 = vld [vmem:[#allocation2 + $0x20] sm:$0x1]
      %v9866 = vsel %vm1108, %v9834, %v9865
      %9867 = vst [vmem:[#allocation2 + $0x20] sm:$0x1] %v9866
      %v9868 = vld [vmem:[#allocation2 + $0x30] sm:$0x1]
      %v9869 = vsel %vm1108, %v9836, %v9868
      %9870 = vst [vmem:[#allocation2 + $0x30] sm:$0x1] %v9869
      %v9871 = vld [vmem:[#allocation2 + $0x40] sm:$0x1]
      %v9872 = vsel %vm1108, %v9838, %v9871
      %9873 = vst [vmem:[#allocation2 + $0x40] sm:$0x1] %v9872
      %v9874 = vld [vmem:[#allocation2 + $0x50] sm:$0x1]
      %v9875 = vsel %vm1108, %v9840, %v9874
      %9876 = vst [vmem:[#allocation2 + $0x50] sm:$0x1] %v9875
      %v9877 = vld [vmem:[#allocation2 + $0x60] sm:$0x1]
      %v9878 = vsel %vm1108, %v9842, %v9877
      %9879 = vst [vmem:[#allocation2 + $0x60] sm:$0x1] %v9878
      %v9880 = vld [vmem:[#allocation2 + $0x70] sm:$0x1]
      %v9881 = vsel %vm1108, %v9844, %v9880
      %9882 = vst [vmem:[#allocation2 + $0x70] sm:$0x1] %v9881
      %v9883 = vld [vmem:[#allocation2 + $0x80] sm:$0x1]
      %v9884 = vsel %vm1108, %v9846, %v9883
      %9885 = vst [vmem:[#allocation2 + $0x80] sm:$0x1] %v9884
      %v9886 = vld [vmem:[#allocation2 + $0x90] sm:$0x1]
      %v9887 = vsel %vm1108, %v9848, %v9886
      %9888 = vst [vmem:[#allocation2 + $0x90] sm:$0x1] %v9887
      %v9889 = vld [vmem:[#allocation2 + $0x8] sm:$0x8]
      %v9890 = vld [vmem:[#allocation2 + $0x18] sm:$0x8]
      %v9891 = vld [vmem:[#allocation2 + $0x28] sm:$0x8]
      %v9892 = vld [vmem:[#allocation2 + $0x38] sm:$0x8]
      %v9893 = vld [vmem:[#allocation2 + $0x48] sm:$0x8]
      %v9894 = vld [vmem:[#allocation2 + $0x58] sm:$0x8]
      %v9895 = vld [vmem:[#allocation2 + $0x68] sm:$0x8]
      %v9896 = vld [vmem:[#allocation2 + $0x78] sm:$0x8]
      %v9897 = vld [vmem:[#allocation2 + $0x88] sm:$0x8]
      %v9898 = vld [vmem:[#allocation2 + $0x98] sm:$0x8]
      %v9909 = vrot.slane %v9889, 7
      %v9910 = vrot.slane %v9909, 4
      %v9911 = vrot.slane %v9890, 7
      %v9912 = vrot.slane %v9911, 4
      %v9913 = vrot.slane %v9891, 7
      %v9914 = vrot.slane %v9913, 4
      %v9915 = vrot.slane %v9892, 7
      %v9916 = vrot.slane %v9915, 4
      %v9917 = vrot.slane %v9893, 7
      %v9918 = vrot.slane %v9917, 4
      %v9919 = vrot.slane %v9894, 7
      %v9920 = vrot.slane %v9919, 4
      %v9921 = vrot.slane %v9895, 7
      %v9922 = vrot.slane %v9921, 4
      %v9923 = vrot.slane %v9896, 7
      %v9924 = vrot.slane %v9923, 4
      %v9925 = vrot.slane %v9897, 7
      %v9926 = vrot.slane %v9925, 4
      %v9927 = vrot.slane %v9898, 7
      %v9928 = vrot.slane %v9927, 4
      %v9939 = vld [vmem:[#allocation2 + $0xc] sm:$0x1]
      %v9940 = vsel %vm1873, %v9910, %v9939
      %9941 = vst [vmem:[#allocation2 + $0xc] sm:$0x1] %v9940
      %v9942 = vld [vmem:[#allocation2 + $0x1c] sm:$0x1]
      %v9943 = vsel %vm1873, %v9912, %v9942
      %9944 = vst [vmem:[#allocation2 + $0x1c] sm:$0x1] %v9943
      %v9945 = vld [vmem:[#allocation2 + $0x2c] sm:$0x1]
      %v9946 = vsel %vm1873, %v9914, %v9945
      %9947 = vst [vmem:[#allocation2 + $0x2c] sm:$0x1] %v9946
      %v9948 = vld [vmem:[#allocation2 + $0x3c] sm:$0x1]
      %v9949 = vsel %vm1873, %v9916, %v9948
      %9950 = vst [vmem:[#allocation2 + $0x3c] sm:$0x1] %v9949
      %v9951 = vld [vmem:[#allocation2 + $0x4c] sm:$0x1]
      %v9952 = vsel %vm1873, %v9918, %v9951
      %9953 = vst [vmem:[#allocation2 + $0x4c] sm:$0x1] %v9952
      %v9954 = vld [vmem:[#allocation2 + $0x5c] sm:$0x1]
      %v9955 = vsel %vm1873, %v9920, %v9954
      %9956 = vst [vmem:[#allocation2 + $0x5c] sm:$0x1] %v9955
      %v9957 = vld [vmem:[#allocation2 + $0x6c] sm:$0x1]
      %v9958 = vsel %vm1873, %v9922, %v9957
      %9959 = vst [vmem:[#allocation2 + $0x6c] sm:$0x1] %v9958
      %v9960 = vld [vmem:[#allocation2 + $0x7c] sm:$0x1]
      %v9961 = vsel %vm1873, %v9924, %v9960
      %9962 = vst [vmem:[#allocation2 + $0x7c] sm:$0x1] %v9961
      %v9963 = vld [vmem:[#allocation2 + $0x8c] sm:$0x1]
      %v9964 = vsel %vm1873, %v9926, %v9963
      %9965 = vst [vmem:[#allocation2 + $0x8c] sm:$0x1] %v9964
      %v9966 = vld [vmem:[#allocation2 + $0x9c] sm:$0x1]
      %v9967 = vsel %vm1873, %v9928, %v9966
      %9968 = vst [vmem:[#allocation2 + $0x9c] sm:$0x1] %v9967
      %v9969 = vld [vmem:[#allocation2] sm:$0xf]
      %v9970 = vld [vmem:[#allocation2 + $0x4] sm:$0xf]
      %v9971 = vld [vmem:[#allocation2 + $0x8] sm:$0xf]
      %v9972 = vld [vmem:[#allocation2 + $0xc] sm:$0x1]
      %v9973 = vld [vmem:[#allocation2 + $0x10] sm:$0xf]
      %v9974 = vld [vmem:[#allocation2 + $0x14] sm:$0xf]
      %v9975 = vld [vmem:[#allocation2 + $0x18] sm:$0xf]
      %v9976 = vld [vmem:[#allocation2 + $0x1c] sm:$0x1]
      %v9977 = vld [vmem:[#allocation2 + $0x20] sm:$0xf]
      %v9978 = vld [vmem:[#allocation2 + $0x24] sm:$0xf]
      %v9979 = vld [vmem:[#allocation2 + $0x28] sm:$0xf]
      %v9980 = vld [vmem:[#allocation2 + $0x2c] sm:$0x1]
      %v9981 = vld [vmem:[#allocation2 + $0x30] sm:$0xf]
      %v9982 = vld [vmem:[#allocation2 + $0x34] sm:$0xf]
      %v9983 = vld [vmem:[#allocation2 + $0x38] sm:$0xf]
      %v9984 = vld [vmem:[#allocation2 + $0x3c] sm:$0x1]
      %v9985 = vld [vmem:[#allocation2 + $0x40] sm:$0xf]
      %v9986 = vld [vmem:[#allocation2 + $0x44] sm:$0xf]
      %v9987 = vld [vmem:[#allocation2 + $0x48] sm:$0xf]
      %v9988 = vld [vmem:[#allocation2 + $0x4c] sm:$0x1]
      %v9989 = vld [vmem:[#allocation2 + $0x50] sm:$0xf]
      %v9990 = vld [vmem:[#allocation2 + $0x54] sm:$0xf]
      %v9991 = vld [vmem:[#allocation2 + $0x58] sm:$0xf]
      %v9992 = vld [vmem:[#allocation2 + $0x5c] sm:$0x1]
      %v9993 = vld [vmem:[#allocation2 + $0x60] sm:$0xf]
      %v9994 = vld [vmem:[#allocation2 + $0x64] sm:$0xf]
      %v9995 = vld [vmem:[#allocation2 + $0x68] sm:$0xf]
      %v9996 = vld [vmem:[#allocation2 + $0x6c] sm:$0x1]
      %v9997 = vld [vmem:[#allocation2 + $0x70] sm:$0xf]
      %v9998 = vld [vmem:[#allocation2 + $0x74] sm:$0xf]
      %v9999 = vld [vmem:[#allocation2 + $0x78] sm:$0xf]
      %v10000 = vld [vmem:[#allocation2 + $0x7c] sm:$0x1]
      %v10025 = vunpack.c.l.b16 %v9969
      %v10026 = vunpack.c.l.b16 %v9970
      %v10027 = vunpack.c.l.b16 %v9971
      %v10028 = vunpack.c.l.b16 %v9973
      %v10029 = vunpack.c.l.b16 %v9974
      %v10030 = vunpack.c.l.b16 %v9975
      %v10031 = vunpack.c.l.b16 %v9977
      %v10032 = vunpack.c.l.b16 %v9978
      %v10033 = vunpack.c.l.b16 %v9979
      %v10034 = vunpack.c.l.b16 %v9981
      %v10035 = vunpack.c.l.b16 %v9982
      %v10036 = vunpack.c.l.b16 %v9983
      %v10037 = vunpack.c.l.b16 %v9985
      %v10038 = vunpack.c.l.b16 %v9986
      %v10039 = vunpack.c.l.b16 %v9987
      %v10040 = vunpack.c.l.b16 %v9989
      %v10041 = vunpack.c.l.b16 %v9990
      %v10042 = vunpack.c.l.b16 %v9991
      %v10043 = vunpack.c.l.b16 %v9993
      %v10044 = vunpack.c.l.b16 %v9994
      %v10045 = vunpack.c.l.b16 %v9995
      %v10046 = vunpack.c.l.b16 %v9997
      %v10047 = vunpack.c.l.b16 %v9998
      %v10048 = vunpack.c.l.b16 %v9999
      %v10057 = vunpack.c.l.b16 %v9972
      %v10058 = vunpack.c.l.b16 %v9976
      %v10059 = vunpack.c.l.b16 %v9980
      %v10060 = vunpack.c.l.b16 %v9984
      %v10061 = vunpack.c.l.b16 %v9988
      %v10062 = vunpack.c.l.b16 %v9992
      %v10063 = vunpack.c.l.b16 %v9996
      %v10064 = vunpack.c.l.b16 %v10000
      %v10065 = vpack.c.b16 %v10026, %v10025
      %v10066 = vpack.c.b16 %v10057, %v10027
      %v10067 = vpack.c.b16 %v10029, %v10028
      %v10068 = vpack.c.b16 %v10058, %v10030
      %v10069 = vpack.c.b16 %v10032, %v10031
      %v10070 = vpack.c.b16 %v10059, %v10033
      %v10071 = vpack.c.b16 %v10035, %v10034
      %v10072 = vpack.c.b16 %v10060, %v10036
      %v10073 = vpack.c.b16 %v10038, %v10037
      %v10074 = vpack.c.b16 %v10061, %v10039
      %v10075 = vpack.c.b16 %v10041, %v10040
      %v10076 = vpack.c.b16 %v10062, %v10042
      %v10077 = vpack.c.b16 %v10044, %v10043
      %v10078 = vpack.c.b16 %v10063, %v10045
      %v10079 = vpack.c.b16 %v10047, %v10046
      %v10080 = vpack.c.b16 %v10064, %v10048
      %v10082 = vshrl.u32 %v10065, 16
      %v10084 = vshll.u32 %v10065, 16
      %v10086 = vrot.slane %v10084, 1
      %v10087 = vor.u32 %v10082, %v10086
      %v10089 = vshll.u32 %v10066, 16
      %v10091 = vrot.slane %v10089, 1
      %v10092 = vsel %vm2084, %v10087, %v10091
      %v10093 = vshrl.u32 %v10066, 16
      %v10095 = vor.u32 %v10093, %v10091
      %v10097 = vshrl.u32 %v10067, 16
      %v10099 = vshll.u32 %v10067, 16
      %v10101 = vrot.slane %v10099, 1
      %v10102 = vor.u32 %v10097, %v10101
      %v10104 = vshll.u32 %v10068, 16
      %v10106 = vrot.slane %v10104, 1
      %v10107 = vsel %vm2084, %v10102, %v10106
      %v10108 = vshrl.u32 %v10068, 16
      %v10110 = vor.u32 %v10108, %v10106
      %v10112 = vshrl.u32 %v10069, 16
      %v10114 = vshll.u32 %v10069, 16
      %v10116 = vrot.slane %v10114, 1
      %v10117 = vor.u32 %v10112, %v10116
      %v10119 = vshll.u32 %v10070, 16
      %v10121 = vrot.slane %v10119, 1
      %v10122 = vsel %vm2084, %v10117, %v10121
      %v10123 = vshrl.u32 %v10070, 16
      %v10125 = vor.u32 %v10123, %v10121
      %v10127 = vshrl.u32 %v10071, 16
      %v10129 = vshll.u32 %v10071, 16
      %v10131 = vrot.slane %v10129, 1
      %v10132 = vor.u32 %v10127, %v10131
      %v10134 = vshll.u32 %v10072, 16
      %v10136 = vrot.slane %v10134, 1
      %v10137 = vsel %vm2084, %v10132, %v10136
      %v10138 = vshrl.u32 %v10072, 16
      %v10140 = vor.u32 %v10138, %v10136
      %v10142 = vshrl.u32 %v10073, 16
      %v10144 = vshll.u32 %v10073, 16
      %v10146 = vrot.slane %v10144, 1
      %v10147 = vor.u32 %v10142, %v10146
      %v10149 = vshll.u32 %v10074, 16
      %v10151 = vrot.slane %v10149, 1
      %v10152 = vsel %vm2084, %v10147, %v10151
      %v10153 = vshrl.u32 %v10074, 16
      %v10155 = vor.u32 %v10153, %v10151
      %v10157 = vshrl.u32 %v10075, 16
      %v10159 = vshll.u32 %v10075, 16
      %v10161 = vrot.slane %v10159, 1
      %v10162 = vor.u32 %v10157, %v10161
      %v10164 = vshll.u32 %v10076, 16
      %v10166 = vrot.slane %v10164, 1
      %v10167 = vsel %vm2084, %v10162, %v10166
      %v10168 = vshrl.u32 %v10076, 16
      %v10170 = vor.u32 %v10168, %v10166
      %v10172 = vshrl.u32 %v10077, 16
      %v10174 = vshll.u32 %v10077, 16
      %v10176 = vrot.slane %v10174, 1
      %v10177 = vor.u32 %v10172, %v10176
      %v10179 = vshll.u32 %v10078, 16
      %v10181 = vrot.slane %v10179, 1
      %v10182 = vsel %vm2084, %v10177, %v10181
      %v10183 = vshrl.u32 %v10078, 16
      %v10185 = vor.u32 %v10183, %v10181
      %v10187 = vshrl.u32 %v10079, 16
      %v10189 = vshll.u32 %v10079, 16
      %v10191 = vrot.slane %v10189, 1
      %v10192 = vor.u32 %v10187, %v10191
      %v10194 = vshll.u32 %v10080, 16
      %v10196 = vrot.slane %v10194, 1
      %v10197 = vsel %vm2084, %v10192, %v10196
      %v10198 = vshrl.u32 %v10080, 16
      %v10200 = vor.u32 %v10198, %v10196
      %v10201 = vrot.slane %v10065, 1
      %v10202 = vrot.slane %v10066, 1
      %v10203 = vsel %vm2265, %v10201, %v10202
      %v10204 = vrot.slane %v10067, 1
      %v10205 = vrot.slane %v10068, 1
      %v10206 = vsel %vm2265, %v10204, %v10205
      %v10207 = vrot.slane %v10069, 1
      %v10208 = vrot.slane %v10070, 1
      %v10209 = vsel %vm2265, %v10207, %v10208
      %v10210 = vrot.slane %v10071, 1
      %v10211 = vrot.slane %v10072, 1
      %v10212 = vsel %vm2265, %v10210, %v10211
      %v10213 = vrot.slane %v10073, 1
      %v10214 = vrot.slane %v10074, 1
      %v10215 = vsel %vm2265, %v10213, %v10214
      %v10216 = vrot.slane %v10075, 1
      %v10217 = vrot.slane %v10076, 1
      %v10218 = vsel %vm2265, %v10216, %v10217
      %v10219 = vrot.slane %v10077, 1
      %v10220 = vrot.slane %v10078, 1
      %v10221 = vsel %vm2265, %v10219, %v10220
      %v10222 = vrot.slane %v10079, 1
      %v10223 = vrot.slane %v10080, 1
      %v10224 = vsel %vm2265, %v10222, %v10223
      %v10225 = vunpack.c.l.b16 %v10092
      %v10226 = vunpack.c.l.b16 %v10203
      %v10227 = vunpack.c.h.b16 %v10092
      %v10228 = vunpack.c.h.b16 %v10203
      %v10229 = vunpack.c.l.b16 %v10095
      %v10230 = vunpack.c.l.b16 %v10202
      %v10231 = vunpack.c.l.b16 %v10107
      %v10232 = vunpack.c.l.b16 %v10206
      %v10233 = vunpack.c.h.b16 %v10107
      %v10234 = vunpack.c.h.b16 %v10206
      %v10235 = vunpack.c.l.b16 %v10110
      %v10236 = vunpack.c.l.b16 %v10205
      %v10237 = vunpack.c.l.b16 %v10122
      %v10238 = vunpack.c.l.b16 %v10209
      %v10239 = vunpack.c.h.b16 %v10122
      %v10240 = vunpack.c.h.b16 %v10209
      %v10241 = vunpack.c.l.b16 %v10125
      %v10242 = vunpack.c.l.b16 %v10208
      %v10243 = vunpack.c.l.b16 %v10137
      %v10244 = vunpack.c.l.b16 %v10212
      %v10245 = vunpack.c.h.b16 %v10137
      %v10246 = vunpack.c.h.b16 %v10212
      %v10247 = vunpack.c.l.b16 %v10140
      %v10248 = vunpack.c.l.b16 %v10211
      %v10249 = vunpack.c.l.b16 %v10152
      %v10250 = vunpack.c.l.b16 %v10215
      %v10251 = vunpack.c.h.b16 %v10152
      %v10252 = vunpack.c.h.b16 %v10215
      %v10253 = vunpack.c.l.b16 %v10155
      %v10254 = vunpack.c.l.b16 %v10214
      %v10255 = vunpack.c.l.b16 %v10167
      %v10256 = vunpack.c.l.b16 %v10218
      %v10257 = vunpack.c.h.b16 %v10167
      %v10258 = vunpack.c.h.b16 %v10218
      %v10259 = vunpack.c.l.b16 %v10170
      %v10260 = vunpack.c.l.b16 %v10217
      %v10261 = vunpack.c.l.b16 %v10182
      %v10262 = vunpack.c.l.b16 %v10221
      %v10263 = vunpack.c.h.b16 %v10182
      %v10264 = vunpack.c.h.b16 %v10221
      %v10265 = vunpack.c.l.b16 %v10185
      %v10266 = vunpack.c.l.b16 %v10220
      %v10267 = vunpack.c.l.b16 %v10197
      %v10268 = vunpack.c.l.b16 %v10224
      %v10269 = vunpack.c.h.b16 %v10197
      %v10270 = vunpack.c.h.b16 %v10224
      %v10271 = vunpack.c.l.b16 %v10200
      %v10272 = vunpack.c.l.b16 %v10223
      %v10273 = vld [vmem:[%s6] sm:$0xf]
      %v10274 = vld [vmem:[%s6 + $0x4] sm:$0xf]
      %v10275 = vld [vmem:[%s6 + $0x8] sm:$0xf]
      %v10276 = vld [vmem:[%s6 + $0xc] sm:$0xf]
      %v10277 = vld [vmem:[%s6 + $0x10] sm:$0xf]
      %v10278 = vld [vmem:[%s6 + $0x14] sm:$0xf]
      %v10279 = vld [vmem:[%s6 + $0x18] sm:$0xf]
      %v10280 = vld [vmem:[%s6 + $0x1c] sm:$0xf]
      %v10281 = vld [vmem:[%s6 + $0x20] sm:$0xf]
      %v10282 = vld [vmem:[%s6 + $0x24] sm:$0xf]
      %v10283 = vld [vmem:[%s6 + $0x28] sm:$0xf]
      %v10284 = vld [vmem:[%s6 + $0x2c] sm:$0xf]
      %v10285 = vld [vmem:[%s6 + $0x30] sm:$0xf]
      %v10286 = vld [vmem:[%s6 + $0x34] sm:$0xf]
      %v10287 = vld [vmem:[%s6 + $0x38] sm:$0xf]
      %v10288 = vld [vmem:[%s6 + $0x3c] sm:$0xf]
      %v10289 = vld [vmem:[%s6 + $0x40] sm:$0xf]
      %v10290 = vld [vmem:[%s6 + $0x44] sm:$0xf]
      %v10291 = vld [vmem:[%s6 + $0x48] sm:$0xf]
      %v10292 = vld [vmem:[%s6 + $0x4c] sm:$0xf]
      %v10293 = vld [vmem:[%s6 + $0x50] sm:$0xf]
      %v10294 = vld [vmem:[%s6 + $0x54] sm:$0xf]
      %v10295 = vld [vmem:[%s6 + $0x58] sm:$0xf]
      %v10296 = vld [vmem:[%s6 + $0x5c] sm:$0xf]
      %v10297 = vld [vmem:[%s6 + $0x60] sm:$0xf]
      %v10298 = vld [vmem:[%s6 + $0x64] sm:$0xf]
      %v10299 = vld [vmem:[%s6 + $0x68] sm:$0xf]
      %v10300 = vld [vmem:[%s6 + $0x6c] sm:$0xf]
      %v10301 = vld [vmem:[%s6 + $0x70] sm:$0xf]
      %v10302 = vld [vmem:[%s6 + $0x74] sm:$0xf]
      %v10303 = vld [vmem:[%s6 + $0x78] sm:$0xf]
      %v10304 = vld [vmem:[%s6 + $0x7c] sm:$0xf]
      %v10305 = vld [vmem:[%s6 + $0x80] sm:$0xf]
      %v10306 = vld [vmem:[%s6 + $0x84] sm:$0xf]
      %v10307 = vld [vmem:[%s6 + $0x88] sm:$0xf]
      %v10308 = vld [vmem:[%s6 + $0x8c] sm:$0xf]
      %v10309 = vld [vmem:[%s6 + $0x90] sm:$0xf]
      %v10310 = vld [vmem:[%s6 + $0x94] sm:$0xf]
      %v10311 = vld [vmem:[%s6 + $0x98] sm:$0xf]
      %v10312 = vld [vmem:[%s6 + $0x9c] sm:$0xf]
      %v10313 = vld [vmem:[%s6 + $0xa0] sm:$0xf]
      %v10314 = vld [vmem:[%s6 + $0xa4] sm:$0xf]
      %v10315 = vld [vmem:[%s6 + $0xa8] sm:$0xf]
      %v10316 = vld [vmem:[%s6 + $0xac] sm:$0xf]
      %v10317 = vld [vmem:[%s6 + $0xb0] sm:$0xf]
      %v10318 = vld [vmem:[%s6 + $0xb4] sm:$0xf]
      %v10319 = vld [vmem:[%s6 + $0xb8] sm:$0xf]
      %v10320 = vld [vmem:[%s6 + $0xbc] sm:$0xf]
      %v10321 = vld [vmem:[%s2422] sm:$0xf]
      %v10322 = vld [vmem:[%s2422 + $0x4] sm:$0xf]
      %v10323 = vld [vmem:[%s2422 + $0x8] sm:$0xf]
      %v10324 = vld [vmem:[%s2422 + $0xc] sm:$0x1]
      %v10325 = vld [vmem:[%s2422 + $0x10] sm:$0xf]
      %v10326 = vld [vmem:[%s2422 + $0x14] sm:$0xf]
      %v10327 = vld [vmem:[%s2422 + $0x18] sm:$0xf]
      %v10328 = vld [vmem:[%s2422 + $0x1c] sm:$0x1]
      %v10329 = vld [vmem:[%s2422 + $0x20] sm:$0xf]
      %v10330 = vld [vmem:[%s2422 + $0x24] sm:$0xf]
      %v10331 = vld [vmem:[%s2422 + $0x28] sm:$0xf]
      %v10332 = vld [vmem:[%s2422 + $0x2c] sm:$0x1]
      %v10333 = vld [vmem:[%s2422 + $0x30] sm:$0xf]
      %v10334 = vld [vmem:[%s2422 + $0x34] sm:$0xf]
      %v10335 = vld [vmem:[%s2422 + $0x38] sm:$0xf]
      %v10336 = vld [vmem:[%s2422 + $0x3c] sm:$0x1]
      %v10337 = vld [vmem:[%s2422 + $0x40] sm:$0xf]
      %v10338 = vld [vmem:[%s2422 + $0x44] sm:$0xf]
      %v10339 = vld [vmem:[%s2422 + $0x48] sm:$0xf]
      %v10340 = vld [vmem:[%s2422 + $0x4c] sm:$0x1]
      %v10341 = vld [vmem:[%s2422 + $0x50] sm:$0xf]
      %v10342 = vld [vmem:[%s2422 + $0x54] sm:$0xf]
      %v10343 = vld [vmem:[%s2422 + $0x58] sm:$0xf]
      %v10344 = vld [vmem:[%s2422 + $0x5c] sm:$0x1]
      %v10345 = vld [vmem:[%s2422 + $0x60] sm:$0xf]
      %v10346 = vld [vmem:[%s2422 + $0x64] sm:$0xf]
      %v10347 = vld [vmem:[%s2422 + $0x68] sm:$0xf]
      %v10348 = vld [vmem:[%s2422 + $0x6c] sm:$0x1]
      %v10349 = vld [vmem:[%s2422 + $0x70] sm:$0xf]
      %v10350 = vld [vmem:[%s2422 + $0x74] sm:$0xf]
      %v10351 = vld [vmem:[%s2422 + $0x78] sm:$0xf]
      %v10352 = vld [vmem:[%s2422 + $0x7c] sm:$0x1]
      %v10377 = vunpack.c.l.b16 %v10321
      %v10378 = vunpack.c.l.b16 %v10322
      %v10379 = vunpack.c.l.b16 %v10323
      %v10380 = vunpack.c.l.b16 %v10325
      %v10381 = vunpack.c.l.b16 %v10326
      %v10382 = vunpack.c.l.b16 %v10327
      %v10383 = vunpack.c.l.b16 %v10329
      %v10384 = vunpack.c.l.b16 %v10330
      %v10385 = vunpack.c.l.b16 %v10331
      %v10386 = vunpack.c.l.b16 %v10333
      %v10387 = vunpack.c.l.b16 %v10334
      %v10388 = vunpack.c.l.b16 %v10335
      %v10389 = vunpack.c.l.b16 %v10337
      %v10390 = vunpack.c.l.b16 %v10338
      %v10391 = vunpack.c.l.b16 %v10339
      %v10392 = vunpack.c.l.b16 %v10341
      %v10393 = vunpack.c.l.b16 %v10342
      %v10394 = vunpack.c.l.b16 %v10343
      %v10395 = vunpack.c.l.b16 %v10345
      %v10396 = vunpack.c.l.b16 %v10346
      %v10397 = vunpack.c.l.b16 %v10347
      %v10398 = vunpack.c.l.b16 %v10349
      %v10399 = vunpack.c.l.b16 %v10350
      %v10400 = vunpack.c.l.b16 %v10351
      %v10409 = vunpack.c.l.b16 %v10324
      %v10410 = vunpack.c.l.b16 %v10328
      %v10411 = vunpack.c.l.b16 %v10332
      %v10412 = vunpack.c.l.b16 %v10336
      %v10413 = vunpack.c.l.b16 %v10340
      %v10414 = vunpack.c.l.b16 %v10344
      %v10415 = vunpack.c.l.b16 %v10348
      %v10416 = vunpack.c.l.b16 %v10352
      %v10417 = vpack.c.b16 %v10378, %v10377
      %v10418 = vpack.c.b16 %v10409, %v10379
      %v10419 = vpack.c.b16 %v10381, %v10380
      %v10420 = vpack.c.b16 %v10410, %v10382
      %v10421 = vpack.c.b16 %v10384, %v10383
      %v10422 = vpack.c.b16 %v10411, %v10385
      %v10423 = vpack.c.b16 %v10387, %v10386
      %v10424 = vpack.c.b16 %v10412, %v10388
      %v10425 = vpack.c.b16 %v10390, %v10389
      %v10426 = vpack.c.b16 %v10413, %v10391
      %v10427 = vpack.c.b16 %v10393, %v10392
      %v10428 = vpack.c.b16 %v10414, %v10394
      %v10429 = vpack.c.b16 %v10396, %v10395
      %v10430 = vpack.c.b16 %v10415, %v10397
      %v10431 = vpack.c.b16 %v10399, %v10398
      %v10432 = vpack.c.b16 %v10416, %v10400
      %v10434 = vshrl.u32 %v10417, 16
      %v10436 = vshll.u32 %v10417, 16
      %v10438 = vrot.slane %v10436, 1
      %v10439 = vor.u32 %v10434, %v10438
      %v10441 = vshll.u32 %v10418, 16
      %v10443 = vrot.slane %v10441, 1
      %v10444 = vsel %vm2084, %v10439, %v10443
      %v10445 = vshrl.u32 %v10418, 16
      %v10447 = vor.u32 %v10445, %v10443
      %v10449 = vshrl.u32 %v10419, 16
      %v10451 = vshll.u32 %v10419, 16
      %v10453 = vrot.slane %v10451, 1
      %v10454 = vor.u32 %v10449, %v10453
      %v10456 = vshll.u32 %v10420, 16
      %v10458 = vrot.slane %v10456, 1
      %v10459 = vsel %vm2084, %v10454, %v10458
      %v10460 = vshrl.u32 %v10420, 16
      %v10462 = vor.u32 %v10460, %v10458
      %v10464 = vshrl.u32 %v10421, 16
      %v10466 = vshll.u32 %v10421, 16
      %v10468 = vrot.slane %v10466, 1
      %v10469 = vor.u32 %v10464, %v10468
      %v10471 = vshll.u32 %v10422, 16
      %v10473 = vrot.slane %v10471, 1
      %v10474 = vsel %vm2084, %v10469, %v10473
      %v10475 = vshrl.u32 %v10422, 16
      %v10477 = vor.u32 %v10475, %v10473
      %v10479 = vshrl.u32 %v10423, 16
      %v10481 = vshll.u32 %v10423, 16
      %v10483 = vrot.slane %v10481, 1
      %v10484 = vor.u32 %v10479, %v10483
      %v10486 = vshll.u32 %v10424, 16
      %v10488 = vrot.slane %v10486, 1
      %v10489 = vsel %vm2084, %v10484, %v10488
      %v10490 = vshrl.u32 %v10424, 16
      %v10492 = vor.u32 %v10490, %v10488
      %v10494 = vshrl.u32 %v10425, 16
      %v10496 = vshll.u32 %v10425, 16
      %v10498 = vrot.slane %v10496, 1
      %v10499 = vor.u32 %v10494, %v10498
      %v10501 = vshll.u32 %v10426, 16
      %v10503 = vrot.slane %v10501, 1
      %v10504 = vsel %vm2084, %v10499, %v10503
      %v10505 = vshrl.u32 %v10426, 16
      %v10507 = vor.u32 %v10505, %v10503
      %v10509 = vshrl.u32 %v10427, 16
      %v10511 = vshll.u32 %v10427, 16
      %v10513 = vrot.slane %v10511, 1
      %v10514 = vor.u32 %v10509, %v10513
      %v10516 = vshll.u32 %v10428, 16
      %v10518 = vrot.slane %v10516, 1
      %v10519 = vsel %vm2084, %v10514, %v10518
      %v10520 = vshrl.u32 %v10428, 16
      %v10522 = vor.u32 %v10520, %v10518
      %v10524 = vshrl.u32 %v10429, 16
      %v10526 = vshll.u32 %v10429, 16
      %v10528 = vrot.slane %v10526, 1
      %v10529 = vor.u32 %v10524, %v10528
      %v10531 = vshll.u32 %v10430, 16
      %v10533 = vrot.slane %v10531, 1
      %v10534 = vsel %vm2084, %v10529, %v10533
      %v10535 = vshrl.u32 %v10430, 16
      %v10537 = vor.u32 %v10535, %v10533
      %v10539 = vshrl.u32 %v10431, 16
      %v10541 = vshll.u32 %v10431, 16
      %v10543 = vrot.slane %v10541, 1
      %v10544 = vor.u32 %v10539, %v10543
      %v10546 = vshll.u32 %v10432, 16
      %v10548 = vrot.slane %v10546, 1
      %v10549 = vsel %vm2084, %v10544, %v10548
      %v10550 = vshrl.u32 %v10432, 16
      %v10552 = vor.u32 %v10550, %v10548
      %v10553 = vrot.slane %v10417, 1
      %v10554 = vrot.slane %v10418, 1
      %v10555 = vsel %vm2265, %v10553, %v10554
      %v10556 = vrot.slane %v10419, 1
      %v10557 = vrot.slane %v10420, 1
      %v10558 = vsel %vm2265, %v10556, %v10557
      %v10559 = vrot.slane %v10421, 1
      %v10560 = vrot.slane %v10422, 1
      %v10561 = vsel %vm2265, %v10559, %v10560
      %v10562 = vrot.slane %v10423, 1
      %v10563 = vrot.slane %v10424, 1
      %v10564 = vsel %vm2265, %v10562, %v10563
      %v10565 = vrot.slane %v10425, 1
      %v10566 = vrot.slane %v10426, 1
      %v10567 = vsel %vm2265, %v10565, %v10566
      %v10568 = vrot.slane %v10427, 1
      %v10569 = vrot.slane %v10428, 1
      %v10570 = vsel %vm2265, %v10568, %v10569
      %v10571 = vrot.slane %v10429, 1
      %v10572 = vrot.slane %v10430, 1
      %v10573 = vsel %vm2265, %v10571, %v10572
      %v10574 = vrot.slane %v10431, 1
      %v10575 = vrot.slane %v10432, 1
      %v10576 = vsel %vm2265, %v10574, %v10575
      %v10577 = vunpack.c.l.b16 %v10444
      %v10578 = vunpack.c.l.b16 %v10555
      %v10579 = vunpack.c.h.b16 %v10444
      %v10580 = vunpack.c.h.b16 %v10555
      %v10581 = vunpack.c.l.b16 %v10447
      %v10582 = vunpack.c.l.b16 %v10554
      %v10583 = vunpack.c.l.b16 %v10459
      %v10584 = vunpack.c.l.b16 %v10558
      %v10585 = vunpack.c.h.b16 %v10459
      %v10586 = vunpack.c.h.b16 %v10558
      %v10587 = vunpack.c.l.b16 %v10462
      %v10588 = vunpack.c.l.b16 %v10557
      %v10589 = vunpack.c.l.b16 %v10474
      %v10590 = vunpack.c.l.b16 %v10561
      %v10591 = vunpack.c.h.b16 %v10474
      %v10592 = vunpack.c.h.b16 %v10561
      %v10593 = vunpack.c.l.b16 %v10477
      %v10594 = vunpack.c.l.b16 %v10560
      %v10595 = vunpack.c.l.b16 %v10489
      %v10596 = vunpack.c.l.b16 %v10564
      %v10597 = vunpack.c.h.b16 %v10489
      %v10598 = vunpack.c.h.b16 %v10564
      %v10599 = vunpack.c.l.b16 %v10492
      %v10600 = vunpack.c.l.b16 %v10563
      %v10601 = vunpack.c.l.b16 %v10504
      %v10602 = vunpack.c.l.b16 %v10567
      %v10603 = vunpack.c.h.b16 %v10504
      %v10604 = vunpack.c.h.b16 %v10567
      %v10605 = vunpack.c.l.b16 %v10507
      %v10606 = vunpack.c.l.b16 %v10566
      %v10607 = vunpack.c.l.b16 %v10519
      %v10608 = vunpack.c.l.b16 %v10570
      %v10609 = vunpack.c.h.b16 %v10519
      %v10610 = vunpack.c.h.b16 %v10570
      %v10611 = vunpack.c.l.b16 %v10522
      %v10612 = vunpack.c.l.b16 %v10569
      %v10613 = vunpack.c.l.b16 %v10534
      %v10614 = vunpack.c.l.b16 %v10573
      %v10615 = vunpack.c.h.b16 %v10534
      %v10616 = vunpack.c.h.b16 %v10573
      %v10617 = vunpack.c.l.b16 %v10537
      %v10618 = vunpack.c.l.b16 %v10572
      %v10619 = vunpack.c.l.b16 %v10549
      %v10620 = vunpack.c.l.b16 %v10576
      %v10621 = vunpack.c.h.b16 %v10549
      %v10622 = vunpack.c.h.b16 %v10576
      %v10623 = vunpack.c.l.b16 %v10552
      %v10624 = vunpack.c.l.b16 %v10575
      %s10625 = scalar_lea.vmem %s6, 192
      %v10626 = vld [vmem:[%s10625] sm:$0xf]
      %v10627 = vld [vmem:[%s10625 + $0x4] sm:$0xf]
      %v10628 = vld [vmem:[%s10625 + $0x8] sm:$0xf]
      %v10629 = vld [vmem:[%s10625 + $0xc] sm:$0xf]
      %v10630 = vld [vmem:[%s10625 + $0x10] sm:$0xf]
      %v10631 = vld [vmem:[%s10625 + $0x14] sm:$0xf]
      %v10632 = vld [vmem:[%s10625 + $0x18] sm:$0xf]
      %v10633 = vld [vmem:[%s10625 + $0x1c] sm:$0xf]
      %v10634 = vld [vmem:[%s10625 + $0x20] sm:$0xf]
      %v10635 = vld [vmem:[%s10625 + $0x24] sm:$0xf]
      %v10636 = vld [vmem:[%s10625 + $0x28] sm:$0xf]
      %v10637 = vld [vmem:[%s10625 + $0x2c] sm:$0xf]
      %v10638 = vld [vmem:[%s10625 + $0x30] sm:$0xf]
      %v10639 = vld [vmem:[%s10625 + $0x34] sm:$0xf]
      %v10640 = vld [vmem:[%s10625 + $0x38] sm:$0xf]
      %v10641 = vld [vmem:[%s10625 + $0x3c] sm:$0xf]
      %v10642 = vld [vmem:[%s10625 + $0x40] sm:$0xf]
      %v10643 = vld [vmem:[%s10625 + $0x44] sm:$0xf]
      %v10644 = vld [vmem:[%s10625 + $0x48] sm:$0xf]
      %v10645 = vld [vmem:[%s10625 + $0x4c] sm:$0xf]
      %v10646 = vld [vmem:[%s10625 + $0x50] sm:$0xf]
      %v10647 = vld [vmem:[%s10625 + $0x54] sm:$0xf]
      %v10648 = vld [vmem:[%s10625 + $0x58] sm:$0xf]
      %v10649 = vld [vmem:[%s10625 + $0x5c] sm:$0xf]
      %v10650 = vld [vmem:[%s10625 + $0x60] sm:$0xf]
      %v10651 = vld [vmem:[%s10625 + $0x64] sm:$0xf]
      %v10652 = vld [vmem:[%s10625 + $0x68] sm:$0xf]
      %v10653 = vld [vmem:[%s10625 + $0x6c] sm:$0xf]
      %v10654 = vld [vmem:[%s10625 + $0x70] sm:$0xf]
      %v10655 = vld [vmem:[%s10625 + $0x74] sm:$0xf]
      %v10656 = vld [vmem:[%s10625 + $0x78] sm:$0xf]
      %v10657 = vld [vmem:[%s10625 + $0x7c] sm:$0xf]
      %v10658 = vld [vmem:[%s10625 + $0x80] sm:$0xf]
      %v10659 = vld [vmem:[%s10625 + $0x84] sm:$0xf]
      %v10660 = vld [vmem:[%s10625 + $0x88] sm:$0xf]
      %v10661 = vld [vmem:[%s10625 + $0x8c] sm:$0xf]
      %v10662 = vld [vmem:[%s10625 + $0x90] sm:$0xf]
      %v10663 = vld [vmem:[%s10625 + $0x94] sm:$0xf]
      %v10664 = vld [vmem:[%s10625 + $0x98] sm:$0xf]
      %v10665 = vld [vmem:[%s10625 + $0x9c] sm:$0xf]
      %v10666 = vld [vmem:[%s10625 + $0xa0] sm:$0xf]
      %v10667 = vld [vmem:[%s10625 + $0xa4] sm:$0xf]
      %v10668 = vld [vmem:[%s10625 + $0xa8] sm:$0xf]
      %v10669 = vld [vmem:[%s10625 + $0xac] sm:$0xf]
      %v10670 = vld [vmem:[%s10625 + $0xb0] sm:$0xf]
      %v10671 = vld [vmem:[%s10625 + $0xb4] sm:$0xf]
      %v10672 = vld [vmem:[%s10625 + $0xb8] sm:$0xf]
      %v10673 = vld [vmem:[%s10625 + $0xbc] sm:$0xf]
      %v10674 = vpack.c.b16 %v10579, %v10577
      %v10675 = vpack.c.b16 %v10580, %v10578
      %v10676 = vpack.c.b16 %v10380, %v10379
      %v10677 = vpack.c.b16 %v10583, %v10581
      %v10678 = vpack.c.b16 %v10584, %v10582
      %v10679 = vpack.c.b16 %v10382, %v10381
      %v10680 = vpack.c.b16 %v10587, %v10585
      %v10681 = vpack.c.b16 %v10588, %v10586
      %v10682 = vpack.c.b16 %v10591, %v10589
      %v10683 = vpack.c.b16 %v10592, %v10590
      %v10684 = vpack.c.b16 %v10386, %v10385
      %v10685 = vpack.c.b16 %v10595, %v10593
      %v10686 = vpack.c.b16 %v10596, %v10594
      %v10687 = vpack.c.b16 %v10388, %v10387
      %v10688 = vpack.c.b16 %v10599, %v10597
      %v10689 = vpack.c.b16 %v10600, %v10598
      %v10690 = vpack.c.b16 %v10603, %v10601
      %v10691 = vpack.c.b16 %v10604, %v10602
      %v10692 = vpack.c.b16 %v10392, %v10391
      %v10693 = vpack.c.b16 %v10607, %v10605
      %v10694 = vpack.c.b16 %v10608, %v10606
      %v10695 = vpack.c.b16 %v10394, %v10393
      %v10696 = vpack.c.b16 %v10611, %v10609
      %v10697 = vpack.c.b16 %v10612, %v10610
      %v10698 = vpack.c.b16 %v10615, %v10613
      %v10699 = vpack.c.b16 %v10616, %v10614
      %v10700 = vpack.c.b16 %v10398, %v10397
      %v10701 = vpack.c.b16 %v10619, %v10617
      %v10702 = vpack.c.b16 %v10620, %v10618
      %v10703 = vpack.c.b16 %v10400, %v10399
      %v10704 = vpack.c.b16 %v10623, %v10621
      %v10705 = vpack.c.b16 %v10624, %v10622
      %v10790 = vunpack.c.l.b16 %v10626
      %v10791 = vunpack.c.l.b16 %v10627
      %v10792 = vunpack.c.l.b16 %v10628
      %v10793 = vunpack.c.l.b16 %v10629
      %v10794 = vunpack.c.l.b16 %v10630
      %v10795 = vunpack.c.l.b16 %v10631
      %v10796 = vunpack.c.l.b16 %v10632
      %v10797 = vunpack.c.l.b16 %v10633
      %v10798 = vunpack.c.l.b16 %v10634
      %v10799 = vunpack.c.l.b16 %v10635
      %v10800 = vunpack.c.l.b16 %v10636
      %v10801 = vunpack.c.l.b16 %v10637
      %v10802 = vunpack.c.l.b16 %v10638
      %v10803 = vunpack.c.l.b16 %v10639
      %v10804 = vunpack.c.l.b16 %v10640
      %v10805 = vunpack.c.l.b16 %v10641
      %v10806 = vunpack.c.l.b16 %v10642
      %v10807 = vunpack.c.l.b16 %v10643
      %v10808 = vunpack.c.l.b16 %v10644
      %v10809 = vunpack.c.l.b16 %v10645
      %v10810 = vunpack.c.l.b16 %v10646
      %v10811 = vunpack.c.l.b16 %v10647
      %v10812 = vunpack.c.l.b16 %v10648
      %v10813 = vunpack.c.l.b16 %v10649
      %v10814 = vunpack.c.l.b16 %v10650
      %v10815 = vunpack.c.l.b16 %v10651
      %v10816 = vunpack.c.l.b16 %v10652
      %v10817 = vunpack.c.l.b16 %v10653
      %v10818 = vunpack.c.l.b16 %v10654
      %v10819 = vunpack.c.l.b16 %v10655
      %v10820 = vunpack.c.l.b16 %v10656
      %v10821 = vunpack.c.l.b16 %v10657
      %v10822 = vunpack.c.l.b16 %v10658
      %v10823 = vunpack.c.l.b16 %v10659
      %v10824 = vunpack.c.l.b16 %v10660
      %v10825 = vunpack.c.l.b16 %v10661
      %v10826 = vunpack.c.l.b16 %v10662
      %v10827 = vunpack.c.l.b16 %v10663
      %v10828 = vunpack.c.l.b16 %v10664
      %v10829 = vunpack.c.l.b16 %v10665
      %v10830 = vunpack.c.l.b16 %v10666
      %v10831 = vunpack.c.l.b16 %v10667
      %v10832 = vunpack.c.l.b16 %v10668
      %v10833 = vunpack.c.l.b16 %v10669
      %v10834 = vunpack.c.l.b16 %v10670
      %v10835 = vunpack.c.l.b16 %v10671
      %v10836 = vunpack.c.l.b16 %v10672
      %v10837 = vunpack.c.l.b16 %v10673
      %v10838 = vpack.c.b16 %v10791, %v10790
      %v10839 = vpack.c.b16 %v10793, %v10792
      %v10840 = vpack.c.b16 %v10795, %v10794
      %v10841 = vpack.c.b16 %v10797, %v10796
      %v10842 = vpack.c.b16 %v10799, %v10798
      %v10843 = vpack.c.b16 %v10801, %v10800
      %v10844 = vpack.c.b16 %v10803, %v10802
      %v10845 = vpack.c.b16 %v10805, %v10804
      %v10846 = vpack.c.b16 %v10807, %v10806
      %v10847 = vpack.c.b16 %v10809, %v10808
      %v10848 = vpack.c.b16 %v10811, %v10810
      %v10849 = vpack.c.b16 %v10813, %v10812
      %v10850 = vpack.c.b16 %v10815, %v10814
      %v10851 = vpack.c.b16 %v10817, %v10816
      %v10852 = vpack.c.b16 %v10819, %v10818
      %v10853 = vpack.c.b16 %v10821, %v10820
      %v10854 = vpack.c.b16 %v10823, %v10822
      %v10855 = vpack.c.b16 %v10825, %v10824
      %v10856 = vpack.c.b16 %v10827, %v10826
      %v10857 = vpack.c.b16 %v10829, %v10828
      %v10858 = vpack.c.b16 %v10831, %v10830
      %v10859 = vpack.c.b16 %v10833, %v10832
      %v10860 = vpack.c.b16 %v10835, %v10834
      %v10861 = vpack.c.b16 %v10837, %v10836
      %10886 = vmatprep.subr.bf16.mxu0 0
      %10887 = vmatpush1.bf16.msra.mxu0 %v10838
      %10888 = vmatprep.subr.bf16.mxu0 0
      %10889 = vmatpush1.bf16.msra.mxu0 %v10839
      %10890 = vmatprep.subr.bf16.mxu0 0
      %10891 = vmatpush1.bf16.msra.mxu0 %v10840
      %10892 = vmatprep.subr.bf16.mxu0 0
      %10893 = vmatpush1.bf16.msra.mxu0 %v10841
      %10894 = vmatprep.subr.bf16.mxu0 0
      %10895 = vmatpush1.bf16.msra.mxu0 %v10842
      %10896 = vmatprep.subr.bf16.mxu0 0
      %10897 = vmatpush1.bf16.msra.mxu0 %v10843
      %10898 = vmatprep.subr.bf16.mxu0 0
      %10899 = vmatpush1.bf16.msra.mxu0 %v10844
      %10900 = vmatprep.subr.bf16.mxu0 0
      %10901 = vmatpush1.bf16.msra.mxu0 %v10845
      %10902 = vmatprep.subr.bf16.mxu0 0
      %10903 = vmatpush1.bf16.msra.mxu0 %v10846
      %10904 = vmatprep.subr.bf16.mxu0 0
      %10905 = vmatpush1.bf16.msra.mxu0 %v10847
      %10906 = vmatprep.subr.bf16.mxu0 0
      %10907 = vmatpush1.bf16.msra.mxu0 %v10848
      %10908 = vmatprep.subr.bf16.mxu0 0
      %10909 = vmatpush1.bf16.msra.mxu0 %v10849
      %10910 = vmatprep.subr.bf16.mxu0 0
      %10911 = vmatpush1.bf16.msra.mxu0 %v10850
      %10912 = vmatprep.subr.bf16.mxu0 0
      %10913 = vmatpush1.bf16.msra.mxu0 %v10851
      %10914 = vmatprep.subr.bf16.mxu0 0
      %10915 = vmatpush1.bf16.msra.mxu0 %v10852
      %10916 = vmatprep.subr.bf16.mxu0 0
      %10917 = vmatpush1.bf16.msra.mxu0 %v10853
      %10918 = vmatprep.mubr.bf16.mxu0 %v10674
      %10919 = vmatmul.mubr.bf16.gmra.mrb[0].mxu0 %v10417
      %v10920 = vpop.f32.mrb[0].mxu0
      %v10921 = vadd.f32 0.0, %v10920
      %v10922 = vpop.f32.mrb[0].mxu0
      %v10923 = vpop.f32.mrb[0].mxu0
      %v10924 = vadd.f32 0.0, %v10923
      %v10925 = vpop.f32.mrb[0].mxu0
      %10926 = vmatprep.mubr.bf16.mxu0 %v10677
      %10927 = vmatmul.mubr.bf16.gmra.mrb[0].mxu0 %v10676
      %v10928 = vpop.f32.mrb[0].mxu0
      %v10929 = vadd.f32 0.0, %v10928
      %v10930 = vpop.f32.mrb[0].mxu0
      %v10931 = vpop.f32.mrb[0].mxu0
      %v10932 = vadd.f32 0.0, %v10931
      %v10933 = vpop.f32.mrb[0].mxu0
      %10934 = vmatprep.mubr.bf16.mxu0 %v10680
      %10935 = vmatmul.mubr.bf16.gmra.mrb[0].mxu0 %v10679
      %v10936 = vpop.f32.mrb[0].mxu0
      %v10937 = vadd.f32 0.0, %v10936
      %v10938 = vpop.f32.mrb[0].mxu0
      %v10939 = vpop.f32.mrb[0].mxu0
      %v10940 = vadd.f32 0.0, %v10939
      %v10941 = vpop.f32.mrb[0].mxu0
      %10942 = vmatprep.mubr.bf16.mxu0 %v10682
      %10943 = vmatmul.mubr.bf16.gmra.mrb[0].mxu0 %v10421
      %v10944 = vpop.f32.mrb[0].mxu0
      %v10945 = vadd.f32 0.0, %v10944
      %v10946 = vpop.f32.mrb[0].mxu0
      %v10947 = vpop.f32.mrb[0].mxu0
      %v10948 = vadd.f32 0.0, %v10947
      %v10949 = vpop.f32.mrb[0].mxu0
      %10950 = vmatprep.mubr.bf16.mxu0 %v10685
      %10951 = vmatmul.mubr.bf16.gmra.mrb[0].mxu0 %v10684
      %v10952 = vpop.f32.mrb[0].mxu0
      %v10953 = vadd.f32 0.0, %v10952
      %v10954 = vpop.f32.mrb[0].mxu0
      %v10955 = vpop.f32.mrb[0].mxu0
      %v10956 = vadd.f32 0.0, %v10955
      %v10957 = vpop.f32.mrb[0].mxu0
      %10958 = vmatprep.mubr.bf16.mxu0 %v10688
      %10959 = vmatmul.mubr.bf16.gmra.mrb[0].mxu0 %v10687
      %v10960 = vpop.f32.mrb[0].mxu0
      %v10961 = vadd.f32 0.0, %v10960
      %v10962 = vpop.f32.mrb[0].mxu0
      %v10963 = vpop.f32.mrb[0].mxu0
      %v10964 = vadd.f32 0.0, %v10963
      %v10965 = vpop.f32.mrb[0].mxu0
      %10966 = vmatprep.mubr.bf16.mxu0 %v10690
      %10967 = vmatmul.mubr.bf16.gmra.mrb[0].mxu0 %v10425
      %v10968 = vpop.f32.mrb[0].mxu0
      %v10969 = vadd.f32 0.0, %v10968
      %v10970 = vpop.f32.mrb[0].mxu0
      %v10971 = vpop.f32.mrb[0].mxu0
      %v10972 = vadd.f32 0.0, %v10971
      %v10973 = vpop.f32.mrb[0].mxu0
      %10974 = vmatprep.mubr.bf16.mxu0 %v10693
      %10975 = vmatmul.mubr.bf16.gmra.mrb[0].mxu0 %v10692
      %v10976 = vpop.f32.mrb[0].mxu0
      %v10977 = vadd.f32 0.0, %v10976
      %v10978 = vpop.f32.mrb[0].mxu0
      %v10979 = vpop.f32.mrb[0].mxu0
      %v10980 = vadd.f32 0.0, %v10979
      %v10981 = vpop.f32.mrb[0].mxu0
      %10982 = vmatprep.mubr.bf16.mxu0 %v10696
      %10983 = vmatmul.mubr.bf16.gmra.mrb[0].mxu0 %v10695
      %v10984 = vpop.f32.mrb[0].mxu0
      %v10985 = vadd.f32 0.0, %v10984
      %v10986 = vpop.f32.mrb[0].mxu0
      %v10987 = vpop.f32.mrb[0].mxu0
      %v10988 = vadd.f32 0.0, %v10987
      %v10989 = vpop.f32.mrb[0].mxu0
      %10990 = vmatprep.mubr.bf16.mxu0 %v10698
      %10991 = vmatmul.mubr.bf16.gmra.mrb[0].mxu0 %v10429
      %v10992 = vpop.f32.mrb[0].mxu0
      %v10993 = vadd.f32 0.0, %v10992
      %v10994 = vpop.f32.mrb[0].mxu0
      %v10995 = vpop.f32.mrb[0].mxu0
      %v10996 = vadd.f32 0.0, %v10995
      %v10997 = vpop.f32.mrb[0].mxu0
      %10998 = vmatprep.mubr.bf16.mxu0 %v10701
      %10999 = vmatmul.mubr.bf16.gmra.mrb[0].mxu0 %v10700
      %v11000 = vpop.f32.mrb[0].mxu0
      %v11001 = vadd.f32 0.0, %v11000
      %v11002 = vpop.f32.mrb[0].mxu0
      %v11003 = vpop.f32.mrb[0].mxu0
      %v11004 = vadd.f32 0.0, %v11003
      %v11005 = vpop.f32.mrb[0].mxu0
      %11006 = vmatprep.mubr.bf16.mxu0 %v10704
      %11007 = vmatmul.mubr.bf16.gmra.mrb[0].mxu0 %v10703
      %v11008 = vpop.f32.mrb[0].mxu0
      %v11009 = vadd.f32 0.0, %v11008
      %v11010 = vpop.f32.mrb[0].mxu0
      %v11011 = vpop.f32.mrb[0].mxu0
      %v11012 = vadd.f32 0.0, %v11011
      %v11013 = vpop.f32.mrb[0].mxu0
      %11014 = vdwg.mxu0
      %11015 = vmatprep.subr.bf16.mxu0 0
      %11016 = vmatpush1.bf16.msra.mxu0 %v10854
      %11017 = vmatprep.subr.bf16.mxu0 0
      %11018 = vmatpush1.bf16.msra.mxu0 %v10855
      %11019 = vmatprep.subr.bf16.mxu0 0
      %11020 = vmatpush1.bf16.msra.mxu0 %v10856
      %11021 = vmatprep.subr.bf16.mxu0 0
      %11022 = vmatpush1.bf16.msra.mxu0 %v10857
      %11023 = vmatprep.subr.bf16.mxu0 0
      %11024 = vmatpush1.bf16.msra.mxu0 %v10858
      %11025 = vmatprep.subr.bf16.mxu0 0
      %11026 = vmatpush1.bf16.msra.mxu0 %v10859
      %11027 = vmatprep.subr.bf16.mxu0 0
      %11028 = vmatpush1.bf16.msra.mxu0 %v10860
      %11029 = vmatprep.subr.bf16.mxu0 0
      %11030 = vmatpush1.bf16.msra.mxu0 %v10861
      %11031 = vmatprep.subr.bf16.mxu0 0
      %11032 = vmatpush1.bf16.msra.mxu0 0
      %11033 = vmatprep.subr.bf16.mxu0 0
      %11034 = vmatpush1.bf16.msra.mxu0 0
      %11035 = vmatprep.subr.bf16.mxu0 0
      %11036 = vmatpush1.bf16.msra.mxu0 0
      %11037 = vmatprep.subr.bf16.mxu0 0
      %11038 = vmatpush1.bf16.msra.mxu0 0
      %11039 = vmatprep.subr.bf16.mxu0 0
      %11040 = vmatpush1.bf16.msra.mxu0 0
      %11041 = vmatprep.subr.bf16.mxu0 0
      %11042 = vmatpush1.bf16.msra.mxu0 0
      %11043 = vmatprep.subr.bf16.mxu0 0
      %11044 = vmatpush1.bf16.msra.mxu0 0
      %11045 = vmatprep.subr.bf16.mxu0 0
      %11046 = vmatpush1.bf16.msra.mxu0 0
      %11047 = vmatprep.mubr.bf16.mxu0 0
      %11048 = vmatmul.mubr.bf16.gmra.mrb[0].mxu0 %v10675
      %v11049 = vpop.f32.mrb[0].mxu0
      %v11050 = vadd.f32 %v10921, %v11049
      %v11051 = vpop.f32.mrb[0].mxu0
      %v11052 = vpop.f32.mrb[0].mxu0
      %v11053 = vadd.f32 %v10924, %v11052
      %v11054 = vpop.f32.mrb[0].mxu0
      %11055 = vmatprep.mubr.bf16.mxu0 0
      %11056 = vmatmul.mubr.bf16.gmra.mrb[0].mxu0 %v10678
      %v11057 = vpop.f32.mrb[0].mxu0
      %v11058 = vadd.f32 %v10929, %v11057
      %v11059 = vpop.f32.mrb[0].mxu0
      %v11060 = vpop.f32.mrb[0].mxu0
      %v11061 = vadd.f32 %v10932, %v11060
      %v11062 = vpop.f32.mrb[0].mxu0
      %11063 = vmatprep.mubr.bf16.mxu0 0
      %11064 = vmatmul.mubr.bf16.gmra.mrb[0].mxu0 %v10681
      %v11065 = vpop.f32.mrb[0].mxu0
      %v11066 = vadd.f32 %v10937, %v11065
      %v11067 = vpop.f32.mrb[0].mxu0
      %v11068 = vpop.f32.mrb[0].mxu0
      %v11069 = vadd.f32 %v10940, %v11068
      %v11070 = vpop.f32.mrb[0].mxu0
      %11071 = vmatprep.mubr.bf16.mxu0 0
      %11072 = vmatmul.mubr.bf16.gmra.mrb[0].mxu0 %v10683
      %v11073 = vpop.f32.mrb[0].mxu0
      %v11074 = vadd.f32 %v10945, %v11073
      %v11075 = vpop.f32.mrb[0].mxu0
      %v11076 = vpop.f32.mrb[0].mxu0
      %v11077 = vadd.f32 %v10948, %v11076
      %v11078 = vpop.f32.mrb[0].mxu0
      %11079 = vmatprep.mubr.bf16.mxu0 0
      %11080 = vmatmul.mubr.bf16.gmra.mrb[0].mxu0 %v10686
      %v11081 = vpop.f32.mrb[0].mxu0
      %v11082 = vadd.f32 %v10953, %v11081
      %v11083 = vpop.f32.mrb[0].mxu0
      %v11084 = vpop.f32.mrb[0].mxu0
      %v11085 = vadd.f32 %v10956, %v11084
      %v11086 = vpop.f32.mrb[0].mxu0
      %11087 = vmatprep.mubr.bf16.mxu0 0
      %11088 = vmatmul.mubr.bf16.gmra.mrb[0].mxu0 %v10689
      %v11089 = vpop.f32.mrb[0].mxu0
      %v11090 = vadd.f32 %v10961, %v11089
      %v11091 = vpop.f32.mrb[0].mxu0
      %v11092 = vpop.f32.mrb[0].mxu0
      %v11093 = vadd.f32 %v10964, %v11092
      %v11094 = vpop.f32.mrb[0].mxu0
      %11095 = vmatprep.mubr.bf16.mxu0 0
      %11096 = vmatmul.mubr.bf16.gmra.mrb[0].mxu0 %v10691
      %v11097 = vpop.f32.mrb[0].mxu0
      %v11098 = vadd.f32 %v10969, %v11097
      %v11099 = vpop.f32.mrb[0].mxu0
      %v11100 = vpop.f32.mrb[0].mxu0
      %v11101 = vadd.f32 %v10972, %v11100
      %v11102 = vpop.f32.mrb[0].mxu0
      %11103 = vmatprep.mubr.bf16.mxu0 0
      %11104 = vmatmul.mubr.bf16.gmra.mrb[0].mxu0 %v10694
      %v11105 = vpop.f32.mrb[0].mxu0
      %v11106 = vadd.f32 %v10977, %v11105
      %v11107 = vpop.f32.mrb[0].mxu0
      %v11108 = vpop.f32.mrb[0].mxu0
      %v11109 = vadd.f32 %v10980, %v11108
      %v11110 = vpop.f32.mrb[0].mxu0
      %11111 = vmatprep.mubr.bf16.mxu0 0
      %11112 = vmatmul.mubr.bf16.gmra.mrb[0].mxu0 %v10697
      %v11113 = vpop.f32.mrb[0].mxu0
      %v11114 = vadd.f32 %v10985, %v11113
      %v11115 = vpop.f32.mrb[0].mxu0
      %v11116 = vpop.f32.mrb[0].mxu0
      %v11117 = vadd.f32 %v10988, %v11116
      %v11118 = vpop.f32.mrb[0].mxu0
      %11119 = vmatprep.mubr.bf16.mxu0 0
      %11120 = vmatmul.mubr.bf16.gmra.mrb[0].mxu0 %v10699
      %v11121 = vpop.f32.mrb[0].mxu0
      %v11122 = vadd.f32 %v10993, %v11121
      %v11123 = vpop.f32.mrb[0].mxu0
      %v11124 = vpop.f32.mrb[0].mxu0
      %v11125 = vadd.f32 %v10996, %v11124
      %v11126 = vpop.f32.mrb[0].mxu0
      %11127 = vmatprep.mubr.bf16.mxu0 0
      %11128 = vmatmul.mubr.bf16.gmra.mrb[0].mxu0 %v10702
      %v11129 = vpop.f32.mrb[0].mxu0
      %v11130 = vadd.f32 %v11001, %v11129
      %v11131 = vpop.f32.mrb[0].mxu0
      %v11132 = vpop.f32.mrb[0].mxu0
      %v11133 = vadd.f32 %v11004, %v11132
      %v11134 = vpop.f32.mrb[0].mxu0
      %11135 = vmatprep.mubr.bf16.mxu0 0
      %11136 = vmatmul.mubr.bf16.gmra.mrb[0].mxu0 %v10705
      %v11137 = vpop.f32.mrb[0].mxu0
      %v11138 = vadd.f32 %v11009, %v11137
      %v11139 = vpop.f32.mrb[0].mxu0
      %v11140 = vpop.f32.mrb[0].mxu0
      %v11141 = vadd.f32 %v11012, %v11140
      %v11142 = vpop.f32.mrb[0].mxu0
      %11143 = vdwg.mxu0
      %v11144 = vpack.c.b16 %v10227, %v10225
      %v11145 = vpack.c.b16 %v10228, %v10226
      %v11146 = vpack.c.b16 %v10028, %v10027
      %v11147 = vpack.c.b16 %v10231, %v10229
      %v11148 = vpack.c.b16 %v10232, %v10230
      %v11149 = vpack.c.b16 %v10030, %v10029
      %v11150 = vpack.c.b16 %v10235, %v10233
      %v11151 = vpack.c.b16 %v10236, %v10234
      %v11152 = vpack.c.b16 %v10239, %v10237
      %v11153 = vpack.c.b16 %v10240, %v10238
      %v11154 = vpack.c.b16 %v10034, %v10033
      %v11155 = vpack.c.b16 %v10243, %v10241
      %v11156 = vpack.c.b16 %v10244, %v10242
      %v11157 = vpack.c.b16 %v10036, %v10035
      %v11158 = vpack.c.b16 %v10247, %v10245
      %v11159 = vpack.c.b16 %v10248, %v10246
      %v11160 = vpack.c.b16 %v10251, %v10249
      %v11161 = vpack.c.b16 %v10252, %v10250
      %v11162 = vpack.c.b16 %v10040, %v10039
      %v11163 = vpack.c.b16 %v10255, %v10253
      %v11164 = vpack.c.b16 %v10256, %v10254
      %v11165 = vpack.c.b16 %v10042, %v10041
      %v11166 = vpack.c.b16 %v10259, %v10257
      %v11167 = vpack.c.b16 %v10260, %v10258
      %v11168 = vpack.c.b16 %v10263, %v10261
      %v11169 = vpack.c.b16 %v10264, %v10262
      %v11170 = vpack.c.b16 %v10046, %v10045
      %v11171 = vpack.c.b16 %v10267, %v10265
      %v11172 = vpack.c.b16 %v10268, %v10266
      %v11173 = vpack.c.b16 %v10048, %v10047
      %v11174 = vpack.c.b16 %v10271, %v10269
      %v11175 = vpack.c.b16 %v10272, %v10270
      %v11260 = vunpack.c.l.b16 %v10273
      %v11261 = vunpack.c.l.b16 %v10274
      %v11262 = vunpack.c.l.b16 %v10275
      %v11263 = vunpack.c.l.b16 %v10276
      %v11264 = vunpack.c.l.b16 %v10277
      %v11265 = vunpack.c.l.b16 %v10278
      %v11266 = vunpack.c.l.b16 %v10279
      %v11267 = vunpack.c.l.b16 %v10280
      %v11268 = vunpack.c.l.b16 %v10281
      %v11269 = vunpack.c.l.b16 %v10282
      %v11270 = vunpack.c.l.b16 %v10283
      %v11271 = vunpack.c.l.b16 %v10284
      %v11272 = vunpack.c.l.b16 %v10285
      %v11273 = vunpack.c.l.b16 %v10286
      %v11274 = vunpack.c.l.b16 %v10287
      %v11275 = vunpack.c.l.b16 %v10288
      %v11276 = vunpack.c.l.b16 %v10289
      %v11277 = vunpack.c.l.b16 %v10290
      %v11278 = vunpack.c.l.b16 %v10291
      %v11279 = vunpack.c.l.b16 %v10292
      %v11280 = vunpack.c.l.b16 %v10293
      %v11281 = vunpack.c.l.b16 %v10294
      %v11282 = vunpack.c.l.b16 %v10295
      %v11283 = vunpack.c.l.b16 %v10296
      %v11284 = vunpack.c.l.b16 %v10297
      %v11285 = vunpack.c.l.b16 %v10298
      %v11286 = vunpack.c.l.b16 %v10299
      %v11287 = vunpack.c.l.b16 %v10300
      %v11288 = vunpack.c.l.b16 %v10301
      %v11289 = vunpack.c.l.b16 %v10302
      %v11290 = vunpack.c.l.b16 %v10303
      %v11291 = vunpack.c.l.b16 %v10304
      %v11292 = vunpack.c.l.b16 %v10305
      %v11293 = vunpack.c.l.b16 %v10306
      %v11294 = vunpack.c.l.b16 %v10307
      %v11295 = vunpack.c.l.b16 %v10308
      %v11296 = vunpack.c.l.b16 %v10309
      %v11297 = vunpack.c.l.b16 %v10310
      %v11298 = vunpack.c.l.b16 %v10311
      %v11299 = vunpack.c.l.b16 %v10312
      %v11300 = vunpack.c.l.b16 %v10313
      %v11301 = vunpack.c.l.b16 %v10314
      %v11302 = vunpack.c.l.b16 %v10315
      %v11303 = vunpack.c.l.b16 %v10316
      %v11304 = vunpack.c.l.b16 %v10317
      %v11305 = vunpack.c.l.b16 %v10318
      %v11306 = vunpack.c.l.b16 %v10319
      %v11307 = vunpack.c.l.b16 %v10320
      %v11308 = vpack.c.b16 %v11261, %v11260
      %v11309 = vpack.c.b16 %v11263, %v11262
      %v11310 = vpack.c.b16 %v11265, %v11264
      %v11311 = vpack.c.b16 %v11267, %v11266
      %v11312 = vpack.c.b16 %v11269, %v11268
      %v11313 = vpack.c.b16 %v11271, %v11270
      %v11314 = vpack.c.b16 %v11273, %v11272
      %v11315 = vpack.c.b16 %v11275, %v11274
      %v11316 = vpack.c.b16 %v11277, %v11276
      %v11317 = vpack.c.b16 %v11279, %v11278
      %v11318 = vpack.c.b16 %v11281, %v11280
      %v11319 = vpack.c.b16 %v11283, %v11282
      %v11320 = vpack.c.b16 %v11285, %v11284
      %v11321 = vpack.c.b16 %v11287, %v11286
      %v11322 = vpack.c.b16 %v11289, %v11288
      %v11323 = vpack.c.b16 %v11291, %v11290
      %v11324 = vpack.c.b16 %v11293, %v11292
      %v11325 = vpack.c.b16 %v11295, %v11294
      %v11326 = vpack.c.b16 %v11297, %v11296
      %v11327 = vpack.c.b16 %v11299, %v11298
      %v11328 = vpack.c.b16 %v11301, %v11300
      %v11329 = vpack.c.b16 %v11303, %v11302
      %v11330 = vpack.c.b16 %v11305, %v11304
      %v11331 = vpack.c.b16 %v11307, %v11306
      %11356 = vmatprep.subr.bf16.mxu0 0
      %11357 = vmatpush1.bf16.msra.mxu0 %v11308
      %11358 = vmatprep.subr.bf16.mxu0 0
      %11359 = vmatpush1.bf16.msra.mxu0 %v11309
      %11360 = vmatprep.subr.bf16.mxu0 0
      %11361 = vmatpush1.bf16.msra.mxu0 %v11310
      %11362 = vmatprep.subr.bf16.mxu0 0
      %11363 = vmatpush1.bf16.msra.mxu0 %v11311
      %11364 = vmatprep.subr.bf16.mxu0 0
      %11365 = vmatpush1.bf16.msra.mxu0 %v11312
      %11366 = vmatprep.subr.bf16.mxu0 0
      %11367 = vmatpush1.bf16.msra.mxu0 %v11313
      %11368 = vmatprep.subr.bf16.mxu0 0
      %11369 = vmatpush1.bf16.msra.mxu0 %v11314
      %11370 = vmatprep.subr.bf16.mxu0 0
      %11371 = vmatpush1.bf16.msra.mxu0 %v11315
      %11372 = vmatprep.subr.bf16.mxu0 0
      %11373 = vmatpush1.bf16.msra.mxu0 %v11316
      %11374 = vmatprep.subr.bf16.mxu0 0
      %11375 = vmatpush1.bf16.msra.mxu0 %v11317
      %11376 = vmatprep.subr.bf16.mxu0 0
      %11377 = vmatpush1.bf16.msra.mxu0 %v11318
      %11378 = vmatprep.subr.bf16.mxu0 0
      %11379 = vmatpush1.bf16.msra.mxu0 %v11319
      %11380 = vmatprep.subr.bf16.mxu0 0
      %11381 = vmatpush1.bf16.msra.mxu0 %v11320
      %11382 = vmatprep.subr.bf16.mxu0 0
      %11383 = vmatpush1.bf16.msra.mxu0 %v11321
      %11384 = vmatprep.subr.bf16.mxu0 0
      %11385 = vmatpush1.bf16.msra.mxu0 %v11322
      %11386 = vmatprep.subr.bf16.mxu0 0
      %11387 = vmatpush1.bf16.msra.mxu0 %v11323
      %11388 = vmatprep.mubr.bf16.mxu0 %v11144
      %11389 = vmatmul.mubr.bf16.gmra.mrb[0].mxu0 %v10065
      %v11390 = vpop.f32.mrb[0].mxu0
      %v11391 = vadd.f32 %v11050, %v11390
      %v11392 = vpop.f32.mrb[0].mxu0
      %v11393 = vpop.f32.mrb[0].mxu0
      %v11394 = vadd.f32 %v11053, %v11393
      %v11395 = vpop.f32.mrb[0].mxu0
      %11396 = vmatprep.mubr.bf16.mxu0 %v11147
      %11397 = vmatmul.mubr.bf16.gmra.mrb[0].mxu0 %v11146
      %v11398 = vpop.f32.mrb[0].mxu0
      %v11399 = vadd.f32 %v11058, %v11398
      %v11400 = vpop.f32.mrb[0].mxu0
      %v11401 = vpop.f32.mrb[0].mxu0
      %v11402 = vadd.f32 %v11061, %v11401
      %v11403 = vpop.f32.mrb[0].mxu0
      %11404 = vmatprep.mubr.bf16.mxu0 %v11150
      %11405 = vmatmul.mubr.bf16.gmra.mrb[0].mxu0 %v11149
      %v11406 = vpop.f32.mrb[0].mxu0
      %v11407 = vadd.f32 %v11066, %v11406
      %v11408 = vpop.f32.mrb[0].mxu0
      %v11409 = vpop.f32.mrb[0].mxu0
      %v11410 = vadd.f32 %v11069, %v11409
      %v11411 = vpop.f32.mrb[0].mxu0
      %11412 = vmatprep.mubr.bf16.mxu0 %v11152
      %11413 = vmatmul.mubr.bf16.gmra.mrb[0].mxu0 %v10069
      %v11414 = vpop.f32.mrb[0].mxu0
      %v11415 = vadd.f32 %v11074, %v11414
      %v11416 = vpop.f32.mrb[0].mxu0
      %v11417 = vpop.f32.mrb[0].mxu0
      %v11418 = vadd.f32 %v11077, %v11417
      %v11419 = vpop.f32.mrb[0].mxu0
      %11420 = vmatprep.mubr.bf16.mxu0 %v11155
      %11421 = vmatmul.mubr.bf16.gmra.mrb[0].mxu0 %v11154
      %v11422 = vpop.f32.mrb[0].mxu0
      %v11423 = vadd.f32 %v11082, %v11422
      %v11424 = vpop.f32.mrb[0].mxu0
      %v11425 = vpop.f32.mrb[0].mxu0
      %v11426 = vadd.f32 %v11085, %v11425
      %v11427 = vpop.f32.mrb[0].mxu0
      %11428 = vmatprep.mubr.bf16.mxu0 %v11158
      %11429 = vmatmul.mubr.bf16.gmra.mrb[0].mxu0 %v11157
      %v11430 = vpop.f32.mrb[0].mxu0
      %v11431 = vadd.f32 %v11090, %v11430
      %v11432 = vpop.f32.mrb[0].mxu0
      %v11433 = vpop.f32.mrb[0].mxu0
      %v11434 = vadd.f32 %v11093, %v11433
      %v11435 = vpop.f32.mrb[0].mxu0
      %11436 = vmatprep.mubr.bf16.mxu0 %v11160
      %11437 = vmatmul.mubr.bf16.gmra.mrb[0].mxu0 %v10073
      %v11438 = vpop.f32.mrb[0].mxu0
      %v11439 = vadd.f32 %v11098, %v11438
      %v11440 = vpop.f32.mrb[0].mxu0
      %v11441 = vpop.f32.mrb[0].mxu0
      %v11442 = vadd.f32 %v11101, %v11441
      %v11443 = vpop.f32.mrb[0].mxu0
      %11444 = vmatprep.mubr.bf16.mxu0 %v11163
      %11445 = vmatmul.mubr.bf16.gmra.mrb[0].mxu0 %v11162
      %v11446 = vpop.f32.mrb[0].mxu0
      %v11447 = vadd.f32 %v11106, %v11446
      %v11448 = vpop.f32.mrb[0].mxu0
      %v11449 = vpop.f32.mrb[0].mxu0
      %v11450 = vadd.f32 %v11109, %v11449
      %v11451 = vpop.f32.mrb[0].mxu0
      %11452 = vmatprep.mubr.bf16.mxu0 %v11166
      %11453 = vmatmul.mubr.bf16.gmra.mrb[0].mxu0 %v11165
      %v11454 = vpop.f32.mrb[0].mxu0
      %v11455 = vadd.f32 %v11114, %v11454
      %v11456 = vpop.f32.mrb[0].mxu0
      %v11457 = vpop.f32.mrb[0].mxu0
      %v11458 = vadd.f32 %v11117, %v11457
      %v11459 = vpop.f32.mrb[0].mxu0
      %11460 = vmatprep.mubr.bf16.mxu0 %v11168
      %11461 = vmatmul.mubr.bf16.gmra.mrb[0].mxu0 %v10077
      %v11462 = vpop.f32.mrb[0].mxu0
      %v11463 = vadd.f32 %v11122, %v11462
      %v11464 = vpop.f32.mrb[0].mxu0
      %v11465 = vpop.f32.mrb[0].mxu0
      %v11466 = vadd.f32 %v11125, %v11465
      %v11467 = vpop.f32.mrb[0].mxu0
      %11468 = vmatprep.mubr.bf16.mxu0 %v11171
      %11469 = vmatmul.mubr.bf16.gmra.mrb[0].mxu0 %v11170
      %v11470 = vpop.f32.mrb[0].mxu0
      %v11471 = vadd.f32 %v11130, %v11470
      %v11472 = vpop.f32.mrb[0].mxu0
      %v11473 = vpop.f32.mrb[0].mxu0
      %v11474 = vadd.f32 %v11133, %v11473
      %v11475 = vpop.f32.mrb[0].mxu0
      %11476 = vmatprep.mubr.bf16.mxu0 %v11174
      %11477 = vmatmul.mubr.bf16.gmra.mrb[0].mxu0 %v11173
      %v11478 = vpop.f32.mrb[0].mxu0
      %v11479 = vadd.f32 %v11138, %v11478
      %v11480 = vpop.f32.mrb[0].mxu0
      %v11481 = vpop.f32.mrb[0].mxu0
      %v11482 = vadd.f32 %v11141, %v11481
      %v11483 = vpop.f32.mrb[0].mxu0
      %11484 = vdwg.mxu0
      %11485 = vmatprep.subr.bf16.mxu0 0
      %11486 = vmatpush1.bf16.msra.mxu0 %v11324
      %11487 = vmatprep.subr.bf16.mxu0 0
      %11488 = vmatpush1.bf16.msra.mxu0 %v11325
      %11489 = vmatprep.subr.bf16.mxu0 0
      %11490 = vmatpush1.bf16.msra.mxu0 %v11326
      %11491 = vmatprep.subr.bf16.mxu0 0
      %11492 = vmatpush1.bf16.msra.mxu0 %v11327
      %11493 = vmatprep.subr.bf16.mxu0 0
      %11494 = vmatpush1.bf16.msra.mxu0 %v11328
      %11495 = vmatprep.subr.bf16.mxu0 0
      %11496 = vmatpush1.bf16.msra.mxu0 %v11329
      %11497 = vmatprep.subr.bf16.mxu0 0
      %11498 = vmatpush1.bf16.msra.mxu0 %v11330
      %11499 = vmatprep.subr.bf16.mxu0 0
      %11500 = vmatpush1.bf16.msra.mxu0 %v11331
      %11501 = vmatprep.subr.bf16.mxu0 0
      %11502 = vmatpush1.bf16.msra.mxu0 0
      %11503 = vmatprep.subr.bf16.mxu0 0
      %11504 = vmatpush1.bf16.msra.mxu0 0
      %11505 = vmatprep.subr.bf16.mxu0 0
      %11506 = vmatpush1.bf16.msra.mxu0 0
      %11507 = vmatprep.subr.bf16.mxu0 0
      %11508 = vmatpush1.bf16.msra.mxu0 0
      %11509 = vmatprep.subr.bf16.mxu0 0
      %11510 = vmatpush1.bf16.msra.mxu0 0
      %11511 = vmatprep.subr.bf16.mxu0 0
      %11512 = vmatpush1.bf16.msra.mxu0 0
      %11513 = vmatprep.subr.bf16.mxu0 0
      %11514 = vmatpush1.bf16.msra.mxu0 0
      %11515 = vmatprep.subr.bf16.mxu0 0
      %11516 = vmatpush1.bf16.msra.mxu0 0
      %11517 = vmatprep.mubr.bf16.mxu0 0
      %11518 = vmatmul.mubr.bf16.gmra.mrb[0].mxu0 %v11145
      %v11519 = vpop.f32.mrb[0].mxu0
      %v11520 = vadd.f32 %v11391, %v11519
      %v11521 = vpop.f32.mrb[0].mxu0
      %v11522 = vpop.f32.mrb[0].mxu0
      %v11523 = vadd.f32 %v11394, %v11522
      %v11524 = vpop.f32.mrb[0].mxu0
      %11525 = vmatprep.mubr.bf16.mxu0 0
      %11526 = vmatmul.mubr.bf16.gmra.mrb[0].mxu0 %v11148
      %v11527 = vpop.f32.mrb[0].mxu0
      %v11528 = vadd.f32 %v11399, %v11527
      %v11529 = vpop.f32.mrb[0].mxu0
      %v11530 = vpop.f32.mrb[0].mxu0
      %v11531 = vadd.f32 %v11402, %v11530
      %v11532 = vpop.f32.mrb[0].mxu0
      %11533 = vmatprep.mubr.bf16.mxu0 0
      %11534 = vmatmul.mubr.bf16.gmra.mrb[0].mxu0 %v11151
      %v11535 = vpop.f32.mrb[0].mxu0
      %v11536 = vadd.f32 %v11407, %v11535
      %v11537 = vpop.f32.mrb[0].mxu0
      %v11538 = vpop.f32.mrb[0].mxu0
      %v11539 = vadd.f32 %v11410, %v11538
      %v11540 = vpop.f32.mrb[0].mxu0
      %11541 = vmatprep.mubr.bf16.mxu0 0
      %11542 = vmatmul.mubr.bf16.gmra.mrb[0].mxu0 %v11153
      %v11543 = vpop.f32.mrb[0].mxu0
      %v11544 = vadd.f32 %v11415, %v11543
      %v11545 = vpop.f32.mrb[0].mxu0
      %v11546 = vpop.f32.mrb[0].mxu0
      %v11547 = vadd.f32 %v11418, %v11546
      %v11548 = vpop.f32.mrb[0].mxu0
      %11549 = vmatprep.mubr.bf16.mxu0 0
      %11550 = vmatmul.mubr.bf16.gmra.mrb[0].mxu0 %v11156
      %v11551 = vpop.f32.mrb[0].mxu0
      %v11552 = vadd.f32 %v11423, %v11551
      %v11553 = vpop.f32.mrb[0].mxu0
      %v11554 = vpop.f32.mrb[0].mxu0
      %v11555 = vadd.f32 %v11426, %v11554
      %v11556 = vpop.f32.mrb[0].mxu0
      %11557 = vmatprep.mubr.bf16.mxu0 0
      %11558 = vmatmul.mubr.bf16.gmra.mrb[0].mxu0 %v11159
      %v11559 = vpop.f32.mrb[0].mxu0
      %v11560 = vadd.f32 %v11431, %v11559
      %v11561 = vpop.f32.mrb[0].mxu0
      %v11562 = vpop.f32.mrb[0].mxu0
      %v11563 = vadd.f32 %v11434, %v11562
      %v11564 = vpop.f32.mrb[0].mxu0
      %11565 = vmatprep.mubr.bf16.mxu0 0
      %11566 = vmatmul.mubr.bf16.gmra.mrb[0].mxu0 %v11161
      %v11567 = vpop.f32.mrb[0].mxu0
      %v11568 = vadd.f32 %v11439, %v11567
      %v11569 = vpop.f32.mrb[0].mxu0
      %v11570 = vpop.f32.mrb[0].mxu0
      %v11571 = vadd.f32 %v11442, %v11570
      %v11572 = vpop.f32.mrb[0].mxu0
      %11573 = vmatprep.mubr.bf16.mxu0 0
      %11574 = vmatmul.mubr.bf16.gmra.mrb[0].mxu0 %v11164
      %v11575 = vpop.f32.mrb[0].mxu0
      %v11576 = vadd.f32 %v11447, %v11575
      %v11577 = vpop.f32.mrb[0].mxu0
      %v11578 = vpop.f32.mrb[0].mxu0
      %v11579 = vadd.f32 %v11450, %v11578
      %v11580 = vpop.f32.mrb[0].mxu0
      %11581 = vmatprep.mubr.bf16.mxu0 0
      %11582 = vmatmul.mubr.bf16.gmra.mrb[0].mxu0 %v11167
      %v11583 = vpop.f32.mrb[0].mxu0
      %v11584 = vadd.f32 %v11455, %v11583
      %v11585 = vpop.f32.mrb[0].mxu0
      %v11586 = vpop.f32.mrb[0].mxu0
      %v11587 = vadd.f32 %v11458, %v11586
      %v11588 = vpop.f32.mrb[0].mxu0
      %11589 = vmatprep.mubr.bf16.mxu0 0
      %11590 = vmatmul.mubr.bf16.gmra.mrb[0].mxu0 %v11169
      %v11591 = vpop.f32.mrb[0].mxu0
      %v11592 = vadd.f32 %v11463, %v11591
      %v11593 = vpop.f32.mrb[0].mxu0
      %v11594 = vpop.f32.mrb[0].mxu0
      %v11595 = vadd.f32 %v11466, %v11594
      %v11596 = vpop.f32.mrb[0].mxu0
      %11597 = vmatprep.mubr.bf16.mxu0 0
      %11598 = vmatmul.mubr.bf16.gmra.mrb[0].mxu0 %v11172
      %v11599 = vpop.f32.mrb[0].mxu0
      %v11600 = vadd.f32 %v11471, %v11599
      %v11601 = vpop.f32.mrb[0].mxu0
      %v11602 = vpop.f32.mrb[0].mxu0
      %v11603 = vadd.f32 %v11474, %v11602
      %v11604 = vpop.f32.mrb[0].mxu0
      %11605 = vmatprep.mubr.bf16.mxu0 0
      %11606 = vmatmul.mubr.bf16.gmra.mrb[0].mxu0 %v11175
      %v11607 = vpop.f32.mrb[0].mxu0
      %v11608 = vadd.f32 %v11479, %v11607
      %v11609 = vpop.f32.mrb[0].mxu0
      %v11610 = vpop.f32.mrb[0].mxu0
      %v11611 = vadd.f32 %v11482, %v11610
      %v11612 = vpop.f32.mrb[0].mxu0
      %11613 = vdwg.mxu0
      %v11614 = vld [vmem:[%s4128] sm:$0xf]
      %v11615 = vld [vmem:[%s4128 + $0x4] sm:$0xf]
      %v11616 = vld [vmem:[%s4128 + $0x8] sm:$0xf]
      %v11617 = vld [vmem:[%s4128 + $0xc] sm:$0x1]
      %v11618 = vld [vmem:[%s4128 + $0x10] sm:$0xf]
      %v11619 = vld [vmem:[%s4128 + $0x14] sm:$0xf]
      %v11620 = vld [vmem:[%s4128 + $0x18] sm:$0xf]
      %v11621 = vld [vmem:[%s4128 + $0x1c] sm:$0x1]
      %v11622 = vld [vmem:[%s4128 + $0x20] sm:$0xf]
      %v11623 = vld [vmem:[%s4128 + $0x24] sm:$0xf]
      %v11624 = vld [vmem:[%s4128 + $0x28] sm:$0xf]
      %v11625 = vld [vmem:[%s4128 + $0x2c] sm:$0x1]
      %v11626 = vld [vmem:[%s4128 + $0x30] sm:$0xf]
      %v11627 = vld [vmem:[%s4128 + $0x34] sm:$0xf]
      %v11628 = vld [vmem:[%s4128 + $0x38] sm:$0xf]
      %v11629 = vld [vmem:[%s4128 + $0x3c] sm:$0x1]
      %v11630 = vld [vmem:[%s4128 + $0x40] sm:$0xf]
      %v11631 = vld [vmem:[%s4128 + $0x44] sm:$0xf]
      %v11632 = vld [vmem:[%s4128 + $0x48] sm:$0xf]
      %v11633 = vld [vmem:[%s4128 + $0x4c] sm:$0x1]
      %v11634 = vld [vmem:[%s4128 + $0x50] sm:$0xf]
      %v11635 = vld [vmem:[%s4128 + $0x54] sm:$0xf]
      %v11636 = vld [vmem:[%s4128 + $0x58] sm:$0xf]
      %v11637 = vld [vmem:[%s4128 + $0x5c] sm:$0x1]
      %v11638 = vld [vmem:[%s4128 + $0x60] sm:$0xf]
      %v11639 = vld [vmem:[%s4128 + $0x64] sm:$0xf]
      %v11640 = vld [vmem:[%s4128 + $0x68] sm:$0xf]
      %v11641 = vld [vmem:[%s4128 + $0x6c] sm:$0x1]
      %v11642 = vld [vmem:[%s4128 + $0x70] sm:$0xf]
      %v11643 = vld [vmem:[%s4128 + $0x74] sm:$0xf]
      %v11644 = vld [vmem:[%s4128 + $0x78] sm:$0xf]
      %v11645 = vld [vmem:[%s4128 + $0x7c] sm:$0x1]
      %v11670 = vunpack.c.l.b16 %v11614
      %v11671 = vunpack.c.l.b16 %v11615
      %v11672 = vunpack.c.l.b16 %v11616
      %v11673 = vunpack.c.l.b16 %v11618
      %v11674 = vunpack.c.l.b16 %v11619
      %v11675 = vunpack.c.l.b16 %v11620
      %v11676 = vunpack.c.l.b16 %v11622
      %v11677 = vunpack.c.l.b16 %v11623
      %v11678 = vunpack.c.l.b16 %v11624
      %v11679 = vunpack.c.l.b16 %v11626
      %v11680 = vunpack.c.l.b16 %v11627
      %v11681 = vunpack.c.l.b16 %v11628
      %v11682 = vunpack.c.l.b16 %v11630
      %v11683 = vunpack.c.l.b16 %v11631
      %v11684 = vunpack.c.l.b16 %v11632
      %v11685 = vunpack.c.l.b16 %v11634
      %v11686 = vunpack.c.l.b16 %v11635
      %v11687 = vunpack.c.l.b16 %v11636
      %v11688 = vunpack.c.l.b16 %v11638
      %v11689 = vunpack.c.l.b16 %v11639
      %v11690 = vunpack.c.l.b16 %v11640
      %v11691 = vunpack.c.l.b16 %v11642
      %v11692 = vunpack.c.l.b16 %v11643
      %v11693 = vunpack.c.l.b16 %v11644
      %v11702 = vunpack.c.l.b16 %v11617
      %v11703 = vunpack.c.l.b16 %v11621
      %v11704 = vunpack.c.l.b16 %v11625
      %v11705 = vunpack.c.l.b16 %v11629
      %v11706 = vunpack.c.l.b16 %v11633
      %v11707 = vunpack.c.l.b16 %v11637
      %v11708 = vunpack.c.l.b16 %v11641
      %v11709 = vunpack.c.l.b16 %v11645
      %v11710 = vpack.c.b16 %v11671, %v11670
      %v11711 = vpack.c.b16 %v11702, %v11672
      %v11712 = vpack.c.b16 %v11674, %v11673
      %v11713 = vpack.c.b16 %v11703, %v11675
      %v11714 = vpack.c.b16 %v11677, %v11676
      %v11715 = vpack.c.b16 %v11704, %v11678
      %v11716 = vpack.c.b16 %v11680, %v11679
      %v11717 = vpack.c.b16 %v11705, %v11681
      %v11718 = vpack.c.b16 %v11683, %v11682
      %v11719 = vpack.c.b16 %v11706, %v11684
      %v11720 = vpack.c.b16 %v11686, %v11685
      %v11721 = vpack.c.b16 %v11707, %v11687
      %v11722 = vpack.c.b16 %v11689, %v11688
      %v11723 = vpack.c.b16 %v11708, %v11690
      %v11724 = vpack.c.b16 %v11692, %v11691
      %v11725 = vpack.c.b16 %v11709, %v11693
      %v11727 = vshrl.u32 %v11710, 16
      %v11729 = vshll.u32 %v11710, 16
      %v11731 = vrot.slane %v11729, 1
      %v11732 = vor.u32 %v11727, %v11731
      %v11734 = vshll.u32 %v11711, 16
      %v11736 = vrot.slane %v11734, 1
      %v11737 = vsel %vm2084, %v11732, %v11736
      %v11738 = vshrl.u32 %v11711, 16
      %v11740 = vor.u32 %v11738, %v11736
      %v11742 = vshrl.u32 %v11712, 16
      %v11744 = vshll.u32 %v11712, 16
      %v11746 = vrot.slane %v11744, 1
      %v11747 = vor.u32 %v11742, %v11746
      %v11749 = vshll.u32 %v11713, 16
      %v11751 = vrot.slane %v11749, 1
      %v11752 = vsel %vm2084, %v11747, %v11751
      %v11753 = vshrl.u32 %v11713, 16
      %v11755 = vor.u32 %v11753, %v11751
      %v11757 = vshrl.u32 %v11714, 16
      %v11759 = vshll.u32 %v11714, 16
      %v11761 = vrot.slane %v11759, 1
      %v11762 = vor.u32 %v11757, %v11761
      %v11764 = vshll.u32 %v11715, 16
      %v11766 = vrot.slane %v11764, 1
      %v11767 = vsel %vm2084, %v11762, %v11766
      %v11768 = vshrl.u32 %v11715, 16
      %v11770 = vor.u32 %v11768, %v11766
      %v11772 = vshrl.u32 %v11716, 16
      %v11774 = vshll.u32 %v11716, 16
      %v11776 = vrot.slane %v11774, 1
      %v11777 = vor.u32 %v11772, %v11776
      %v11779 = vshll.u32 %v11717, 16
      %v11781 = vrot.slane %v11779, 1
      %v11782 = vsel %vm2084, %v11777, %v11781
      %v11783 = vshrl.u32 %v11717, 16
      %v11785 = vor.u32 %v11783, %v11781
      %v11787 = vshrl.u32 %v11718, 16
      %v11789 = vshll.u32 %v11718, 16
      %v11791 = vrot.slane %v11789, 1
      %v11792 = vor.u32 %v11787, %v11791
      %v11794 = vshll.u32 %v11719, 16
      %v11796 = vrot.slane %v11794, 1
      %v11797 = vsel %vm2084, %v11792, %v11796
      %v11798 = vshrl.u32 %v11719, 16
      %v11800 = vor.u32 %v11798, %v11796
      %v11802 = vshrl.u32 %v11720, 16
      %v11804 = vshll.u32 %v11720, 16
      %v11806 = vrot.slane %v11804, 1
      %v11807 = vor.u32 %v11802, %v11806
      %v11809 = vshll.u32 %v11721, 16
      %v11811 = vrot.slane %v11809, 1
      %v11812 = vsel %vm2084, %v11807, %v11811
      %v11813 = vshrl.u32 %v11721, 16
      %v11815 = vor.u32 %v11813, %v11811
      %v11817 = vshrl.u32 %v11722, 16
      %v11819 = vshll.u32 %v11722, 16
      %v11821 = vrot.slane %v11819, 1
      %v11822 = vor.u32 %v11817, %v11821
      %v11824 = vshll.u32 %v11723, 16
      %v11826 = vrot.slane %v11824, 1
      %v11827 = vsel %vm2084, %v11822, %v11826
      %v11828 = vshrl.u32 %v11723, 16
      %v11830 = vor.u32 %v11828, %v11826
      %v11832 = vshrl.u32 %v11724, 16
      %v11834 = vshll.u32 %v11724, 16
      %v11836 = vrot.slane %v11834, 1
      %v11837 = vor.u32 %v11832, %v11836
      %v11839 = vshll.u32 %v11725, 16
      %v11841 = vrot.slane %v11839, 1
      %v11842 = vsel %vm2084, %v11837, %v11841
      %v11843 = vshrl.u32 %v11725, 16
      %v11845 = vor.u32 %v11843, %v11841
      %v11846 = vrot.slane %v11710, 1
      %v11847 = vrot.slane %v11711, 1
      %v11848 = vsel %vm2265, %v11846, %v11847
      %v11849 = vrot.slane %v11712, 1
      %v11850 = vrot.slane %v11713, 1
      %v11851 = vsel %vm2265, %v11849, %v11850
      %v11852 = vrot.slane %v11714, 1
      %v11853 = vrot.slane %v11715, 1
      %v11854 = vsel %vm2265, %v11852, %v11853
      %v11855 = vrot.slane %v11716, 1
      %v11856 = vrot.slane %v11717, 1
      %v11857 = vsel %vm2265, %v11855, %v11856
      %v11858 = vrot.slane %v11718, 1
      %v11859 = vrot.slane %v11719, 1
      %v11860 = vsel %vm2265, %v11858, %v11859
      %v11861 = vrot.slane %v11720, 1
      %v11862 = vrot.slane %v11721, 1
      %v11863 = vsel %vm2265, %v11861, %v11862
      %v11864 = vrot.slane %v11722, 1
      %v11865 = vrot.slane %v11723, 1
      %v11866 = vsel %vm2265, %v11864, %v11865
      %v11867 = vrot.slane %v11724, 1
      %v11868 = vrot.slane %v11725, 1
      %v11869 = vsel %vm2265, %v11867, %v11868
      %v11870 = vunpack.c.l.b16 %v11737
      %v11871 = vunpack.c.l.b16 %v11848
      %v11872 = vunpack.c.h.b16 %v11737
      %v11873 = vunpack.c.h.b16 %v11848
      %v11874 = vunpack.c.l.b16 %v11740
      %v11875 = vunpack.c.l.b16 %v11847
      %v11876 = vunpack.c.l.b16 %v11752
      %v11877 = vunpack.c.l.b16 %v11851
      %v11878 = vunpack.c.h.b16 %v11752
      %v11879 = vunpack.c.h.b16 %v11851
      %v11880 = vunpack.c.l.b16 %v11755
      %v11881 = vunpack.c.l.b16 %v11850
      %v11882 = vunpack.c.l.b16 %v11767
      %v11883 = vunpack.c.l.b16 %v11854
      %v11884 = vunpack.c.h.b16 %v11767
      %v11885 = vunpack.c.h.b16 %v11854
      %v11886 = vunpack.c.l.b16 %v11770
      %v11887 = vunpack.c.l.b16 %v11853
      %v11888 = vunpack.c.l.b16 %v11782
      %v11889 = vunpack.c.l.b16 %v11857
      %v11890 = vunpack.c.h.b16 %v11782
      %v11891 = vunpack.c.h.b16 %v11857
      %v11892 = vunpack.c.l.b16 %v11785
      %v11893 = vunpack.c.l.b16 %v11856
      %v11894 = vunpack.c.l.b16 %v11797
      %v11895 = vunpack.c.l.b16 %v11860
      %v11896 = vunpack.c.h.b16 %v11797
      %v11897 = vunpack.c.h.b16 %v11860
      %v11898 = vunpack.c.l.b16 %v11800
      %v11899 = vunpack.c.l.b16 %v11859
      %v11900 = vunpack.c.l.b16 %v11812
      %v11901 = vunpack.c.l.b16 %v11863
      %v11902 = vunpack.c.h.b16 %v11812
      %v11903 = vunpack.c.h.b16 %v11863
      %v11904 = vunpack.c.l.b16 %v11815
      %v11905 = vunpack.c.l.b16 %v11862
      %v11906 = vunpack.c.l.b16 %v11827
      %v11907 = vunpack.c.l.b16 %v11866
      %v11908 = vunpack.c.h.b16 %v11827
      %v11909 = vunpack.c.h.b16 %v11866
      %v11910 = vunpack.c.l.b16 %v11830
      %v11911 = vunpack.c.l.b16 %v11865
      %v11912 = vunpack.c.l.b16 %v11842
      %v11913 = vunpack.c.l.b16 %v11869
      %v11914 = vunpack.c.h.b16 %v11842
      %v11915 = vunpack.c.h.b16 %v11869
      %v11916 = vunpack.c.l.b16 %v11845
      %v11917 = vunpack.c.l.b16 %v11868
      %s11918 = scalar_lea.vmem %s6, 384
      %v11919 = vld [vmem:[%s11918] sm:$0xf]
      %v11920 = vld [vmem:[%s11918 + $0x4] sm:$0xf]
      %v11921 = vld [vmem:[%s11918 + $0x8] sm:$0xf]
      %v11922 = vld [vmem:[%s11918 + $0xc] sm:$0xf]
      %v11923 = vld [vmem:[%s11918 + $0x10] sm:$0xf]
      %v11924 = vld [vmem:[%s11918 + $0x14] sm:$0xf]
      %v11925 = vld [vmem:[%s11918 + $0x18] sm:$0xf]
      %v11926 = vld [vmem:[%s11918 + $0x1c] sm:$0xf]
      %v11927 = vld [vmem:[%s11918 + $0x20] sm:$0xf]
      %v11928 = vld [vmem:[%s11918 + $0x24] sm:$0xf]
      %v11929 = vld [vmem:[%s11918 + $0x28] sm:$0xf]
      %v11930 = vld [vmem:[%s11918 + $0x2c] sm:$0xf]
      %v11931 = vld [vmem:[%s11918 + $0x30] sm:$0xf]
      %v11932 = vld [vmem:[%s11918 + $0x34] sm:$0xf]
      %v11933 = vld [vmem:[%s11918 + $0x38] sm:$0xf]
      %v11934 = vld [vmem:[%s11918 + $0x3c] sm:$0xf]
      %v11935 = vld [vmem:[%s11918 + $0x40] sm:$0xf]
      %v11936 = vld [vmem:[%s11918 + $0x44] sm:$0xf]
      %v11937 = vld [vmem:[%s11918 + $0x48] sm:$0xf]
      %v11938 = vld [vmem:[%s11918 + $0x4c] sm:$0xf]
      %v11939 = vld [vmem:[%s11918 + $0x50] sm:$0xf]
      %v11940 = vld [vmem:[%s11918 + $0x54] sm:$0xf]
      %v11941 = vld [vmem:[%s11918 + $0x58] sm:$0xf]
      %v11942 = vld [vmem:[%s11918 + $0x5c] sm:$0xf]
      %v11943 = vld [vmem:[%s11918 + $0x60] sm:$0xf]
      %v11944 = vld [vmem:[%s11918 + $0x64] sm:$0xf]
      %v11945 = vld [vmem:[%s11918 + $0x68] sm:$0xf]
      %v11946 = vld [vmem:[%s11918 + $0x6c] sm:$0xf]
      %v11947 = vld [vmem:[%s11918 + $0x70] sm:$0xf]
      %v11948 = vld [vmem:[%s11918 + $0x74] sm:$0xf]
      %v11949 = vld [vmem:[%s11918 + $0x78] sm:$0xf]
      %v11950 = vld [vmem:[%s11918 + $0x7c] sm:$0xf]
      %v11951 = vld [vmem:[%s11918 + $0x80] sm:$0xf]
      %v11952 = vld [vmem:[%s11918 + $0x84] sm:$0xf]
      %v11953 = vld [vmem:[%s11918 + $0x88] sm:$0xf]
      %v11954 = vld [vmem:[%s11918 + $0x8c] sm:$0xf]
      %v11955 = vld [vmem:[%s11918 + $0x90] sm:$0xf]
      %v11956 = vld [vmem:[%s11918 + $0x94] sm:$0xf]
      %v11957 = vld [vmem:[%s11918 + $0x98] sm:$0xf]
      %v11958 = vld [vmem:[%s11918 + $0x9c] sm:$0xf]
      %v11959 = vld [vmem:[%s11918 + $0xa0] sm:$0xf]
      %v11960 = vld [vmem:[%s11918 + $0xa4] sm:$0xf]
      %v11961 = vld [vmem:[%s11918 + $0xa8] sm:$0xf]
      %v11962 = vld [vmem:[%s11918 + $0xac] sm:$0xf]
      %v11963 = vld [vmem:[%s11918 + $0xb0] sm:$0xf]
      %v11964 = vld [vmem:[%s11918 + $0xb4] sm:$0xf]
      %v11965 = vld [vmem:[%s11918 + $0xb8] sm:$0xf]
      %v11966 = vld [vmem:[%s11918 + $0xbc] sm:$0xf]
      %v11967 = vpack.c.b16 %v11872, %v11870
      %v11968 = vpack.c.b16 %v11873, %v11871
      %v11969 = vpack.c.b16 %v11673, %v11672
      %v11970 = vpack.c.b16 %v11876, %v11874
      %v11971 = vpack.c.b16 %v11877, %v11875
      %v11972 = vpack.c.b16 %v11675, %v11674
      %v11973 = vpack.c.b16 %v11880, %v11878
      %v11974 = vpack.c.b16 %v11881, %v11879
      %v11975 = vpack.c.b16 %v11884, %v11882
      %v11976 = vpack.c.b16 %v11885, %v11883
      %v11977 = vpack.c.b16 %v11679, %v11678
      %v11978 = vpack.c.b16 %v11888, %v11886
      %v11979 = vpack.c.b16 %v11889, %v11887
      %v11980 = vpack.c.b16 %v11681, %v11680
      %v11981 = vpack.c.b16 %v11892, %v11890
      %v11982 = vpack.c.b16 %v11893, %v11891
      %v11983 = vpack.c.b16 %v11896, %v11894
      %v11984 = vpack.c.b16 %v11897, %v11895
      %v11985 = vpack.c.b16 %v11685, %v11684
      %v11986 = vpack.c.b16 %v11900, %v11898
      %v11987 = vpack.c.b16 %v11901, %v11899
      %v11988 = vpack.c.b16 %v11687, %v11686
      %v11989 = vpack.c.b16 %v11904, %v11902
      %v11990 = vpack.c.b16 %v11905, %v11903
      %v11991 = vpack.c.b16 %v11908, %v11906
      %v11992 = vpack.c.b16 %v11909, %v11907
      %v11993 = vpack.c.b16 %v11691, %v11690
      %v11994 = vpack.c.b16 %v11912, %v11910
      %v11995 = vpack.c.b16 %v11913, %v11911
      %v11996 = vpack.c.b16 %v11693, %v11692
      %v11997 = vpack.c.b16 %v11916, %v11914
      %v11998 = vpack.c.b16 %v11917, %v11915
      %v12083 = vunpack.c.l.b16 %v11919
      %v12084 = vunpack.c.l.b16 %v11920
      %v12085 = vunpack.c.l.b16 %v11921
      %v12086 = vunpack.c.l.b16 %v11922
      %v12087 = vunpack.c.l.b16 %v11923
      %v12088 = vunpack.c.l.b16 %v11924
      %v12089 = vunpack.c.l.b16 %v11925
      %v12090 = vunpack.c.l.b16 %v11926
      %v12091 = vunpack.c.l.b16 %v11927
      %v12092 = vunpack.c.l.b16 %v11928
      %v12093 = vunpack.c.l.b16 %v11929
      %v12094 = vunpack.c.l.b16 %v11930
      %v12095 = vunpack.c.l.b16 %v11931
      %v12096 = vunpack.c.l.b16 %v11932
      %v12097 = vunpack.c.l.b16 %v11933
      %v12098 = vunpack.c.l.b16 %v11934
      %v12099 = vunpack.c.l.b16 %v11935
      %v12100 = vunpack.c.l.b16 %v11936
      %v12101 = vunpack.c.l.b16 %v11937
      %v12102 = vunpack.c.l.b16 %v11938
      %v12103 = vunpack.c.l.b16 %v11939
      %v12104 = vunpack.c.l.b16 %v11940
      %v12105 = vunpack.c.l.b16 %v11941
      %v12106 = vunpack.c.l.b16 %v11942
      %v12107 = vunpack.c.l.b16 %v11943
      %v12108 = vunpack.c.l.b16 %v11944
      %v12109 = vunpack.c.l.b16 %v11945
      %v12110 = vunpack.c.l.b16 %v11946
      %v12111 = vunpack.c.l.b16 %v11947
      %v12112 = vunpack.c.l.b16 %v11948
      %v12113 = vunpack.c.l.b16 %v11949
      %v12114 = vunpack.c.l.b16 %v11950
      %v12115 = vunpack.c.l.b16 %v11951
      %v12116 = vunpack.c.l.b16 %v11952
      %v12117 = vunpack.c.l.b16 %v11953
      %v12118 = vunpack.c.l.b16 %v11954
      %v12119 = vunpack.c.l.b16 %v11955
      %v12120 = vunpack.c.l.b16 %v11956
      %v12121 = vunpack.c.l.b16 %v11957
      %v12122 = vunpack.c.l.b16 %v11958
      %v12123 = vunpack.c.l.b16 %v11959
      %v12124 = vunpack.c.l.b16 %v11960
      %v12125 = vunpack.c.l.b16 %v11961
      %v12126 = vunpack.c.l.b16 %v11962
      %v12127 = vunpack.c.l.b16 %v11963
      %v12128 = vunpack.c.l.b16 %v11964
      %v12129 = vunpack.c.l.b16 %v11965
      %v12130 = vunpack.c.l.b16 %v11966
      %v12131 = vpack.c.b16 %v12084, %v12083
      %v12132 = vpack.c.b16 %v12086, %v12085
      %v12133 = vpack.c.b16 %v12088, %v12087
      %v12134 = vpack.c.b16 %v12090, %v12089
      %v12135 = vpack.c.b16 %v12092, %v12091
      %v12136 = vpack.c.b16 %v12094, %v12093
      %v12137 = vpack.c.b16 %v12096, %v12095
      %v12138 = vpack.c.b16 %v12098, %v12097
      %v12139 = vpack.c.b16 %v12100, %v12099
      %v12140 = vpack.c.b16 %v12102, %v12101
      %v12141 = vpack.c.b16 %v12104, %v12103
      %v12142 = vpack.c.b16 %v12106, %v12105
      %v12143 = vpack.c.b16 %v12108, %v12107
      %v12144 = vpack.c.b16 %v12110, %v12109
      %v12145 = vpack.c.b16 %v12112, %v12111
      %v12146 = vpack.c.b16 %v12114, %v12113
      %v12147 = vpack.c.b16 %v12116, %v12115
      %v12148 = vpack.c.b16 %v12118, %v12117
      %v12149 = vpack.c.b16 %v12120, %v12119
      %v12150 = vpack.c.b16 %v12122, %v12121
      %v12151 = vpack.c.b16 %v12124, %v12123
      %v12152 = vpack.c.b16 %v12126, %v12125
      %v12153 = vpack.c.b16 %v12128, %v12127
      %v12154 = vpack.c.b16 %v12130, %v12129
      %12179 = vmatprep.subr.bf16.mxu0 0
      %12180 = vmatpush1.bf16.msra.mxu0 %v12131
      %12181 = vmatprep.subr.bf16.mxu0 0
      %12182 = vmatpush1.bf16.msra.mxu0 %v12132
      %12183 = vmatprep.subr.bf16.mxu0 0
      %12184 = vmatpush1.bf16.msra.mxu0 %v12133
      %12185 = vmatprep.subr.bf16.mxu0 0
      %12186 = vmatpush1.bf16.msra.mxu0 %v12134
      %12187 = vmatprep.subr.bf16.mxu0 0
      %12188 = vmatpush1.bf16.msra.mxu0 %v12135
      %12189 = vmatprep.subr.bf16.mxu0 0
      %12190 = vmatpush1.bf16.msra.mxu0 %v12136
      %12191 = vmatprep.subr.bf16.mxu0 0
      %12192 = vmatpush1.bf16.msra.mxu0 %v12137
      %12193 = vmatprep.subr.bf16.mxu0 0
      %12194 = vmatpush1.bf16.msra.mxu0 %v12138
      %12195 = vmatprep.subr.bf16.mxu0 0
      %12196 = vmatpush1.bf16.msra.mxu0 %v12139
      %12197 = vmatprep.subr.bf16.mxu0 0
      %12198 = vmatpush1.bf16.msra.mxu0 %v12140
      %12199 = vmatprep.subr.bf16.mxu0 0
      %12200 = vmatpush1.bf16.msra.mxu0 %v12141
      %12201 = vmatprep.subr.bf16.mxu0 0
      %12202 = vmatpush1.bf16.msra.mxu0 %v12142
      %12203 = vmatprep.subr.bf16.mxu0 0
      %12204 = vmatpush1.bf16.msra.mxu0 %v12143
      %12205 = vmatprep.subr.bf16.mxu0 0
      %12206 = vmatpush1.bf16.msra.mxu0 %v12144
      %12207 = vmatprep.subr.bf16.mxu0 0
      %12208 = vmatpush1.bf16.msra.mxu0 %v12145
      %12209 = vmatprep.subr.bf16.mxu0 0
      %12210 = vmatpush1.bf16.msra.mxu0 %v12146
      %12211 = vmatprep.mubr.bf16.mxu0 %v11967
      %12212 = vmatmul.mubr.bf16.gmra.mrb[0].mxu0 %v11710
      %v12213 = vpop.f32.mrb[0].mxu0
      %v12214 = vadd.f32 0.0, %v12213
      %v12215 = vpop.f32.mrb[0].mxu0
      %v12216 = vpop.f32.mrb[0].mxu0
      %v12217 = vadd.f32 0.0, %v12216
      %v12218 = vpop.f32.mrb[0].mxu0
      %12219 = vmatprep.mubr.bf16.mxu0 %v11970
      %12220 = vmatmul.mubr.bf16.gmra.mrb[0].mxu0 %v11969
      %v12221 = vpop.f32.mrb[0].mxu0
      %v12222 = vadd.f32 0.0, %v12221
      %v12223 = vpop.f32.mrb[0].mxu0
      %v12224 = vpop.f32.mrb[0].mxu0
      %v12225 = vadd.f32 0.0, %v12224
      %v12226 = vpop.f32.mrb[0].mxu0
      %12227 = vmatprep.mubr.bf16.mxu0 %v11973
      %12228 = vmatmul.mubr.bf16.gmra.mrb[0].mxu0 %v11972
      %v12229 = vpop.f32.mrb[0].mxu0
      %v12230 = vadd.f32 0.0, %v12229
      %v12231 = vpop.f32.mrb[0].mxu0
      %v12232 = vpop.f32.mrb[0].mxu0
      %v12233 = vadd.f32 0.0, %v12232
      %v12234 = vpop.f32.mrb[0].mxu0
      %12235 = vmatprep.mubr.bf16.mxu0 %v11975
      %12236 = vmatmul.mubr.bf16.gmra.mrb[0].mxu0 %v11714
      %v12237 = vpop.f32.mrb[0].mxu0
      %v12238 = vadd.f32 0.0, %v12237
      %v12239 = vpop.f32.mrb[0].mxu0
      %v12240 = vpop.f32.mrb[0].mxu0
      %v12241 = vadd.f32 0.0, %v12240
      %v12242 = vpop.f32.mrb[0].mxu0
      %12243 = vmatprep.mubr.bf16.mxu0 %v11978
      %12244 = vmatmul.mubr.bf16.gmra.mrb[0].mxu0 %v11977
      %v12245 = vpop.f32.mrb[0].mxu0
      %v12246 = vadd.f32 0.0, %v12245
      %v12247 = vpop.f32.mrb[0].mxu0
      %v12248 = vpop.f32.mrb[0].mxu0
      %v12249 = vadd.f32 0.0, %v12248
      %v12250 = vpop.f32.mrb[0].mxu0
      %12251 = vmatprep.mubr.bf16.mxu0 %v11981
      %12252 = vmatmul.mubr.bf16.gmra.mrb[0].mxu0 %v11980
      %v12253 = vpop.f32.mrb[0].mxu0
      %v12254 = vadd.f32 0.0, %v12253
      %v12255 = vpop.f32.mrb[0].mxu0
      %v12256 = vpop.f32.mrb[0].mxu0
      %v12257 = vadd.f32 0.0, %v12256
      %v12258 = vpop.f32.mrb[0].mxu0
      %12259 = vmatprep.mubr.bf16.mxu0 %v11983
      %12260 = vmatmul.mubr.bf16.gmra.mrb[0].mxu0 %v11718
      %v12261 = vpop.f32.mrb[0].mxu0
      %v12262 = vadd.f32 0.0, %v12261
      %v12263 = vpop.f32.mrb[0].mxu0
      %v12264 = vpop.f32.mrb[0].mxu0
      %v12265 = vadd.f32 0.0, %v12264
      %v12266 = vpop.f32.mrb[0].mxu0
      %12267 = vmatprep.mubr.bf16.mxu0 %v11986
      %12268 = vmatmul.mubr.bf16.gmra.mrb[0].mxu0 %v11985
      %v12269 = vpop.f32.mrb[0].mxu0
      %v12270 = vadd.f32 0.0, %v12269
      %v12271 = vpop.f32.mrb[0].mxu0
      %v12272 = vpop.f32.mrb[0].mxu0
      %v12273 = vadd.f32 0.0, %v12272
      %v12274 = vpop.f32.mrb[0].mxu0
      %12275 = vmatprep.mubr.bf16.mxu0 %v11989
      %12276 = vmatmul.mubr.bf16.gmra.mrb[0].mxu0 %v11988
      %v12277 = vpop.f32.mrb[0].mxu0
      %v12278 = vadd.f32 0.0, %v12277
      %v12279 = vpop.f32.mrb[0].mxu0
      %v12280 = vpop.f32.mrb[0].mxu0
      %v12281 = vadd.f32 0.0, %v12280
      %v12282 = vpop.f32.mrb[0].mxu0
      %12283 = vmatprep.mubr.bf16.mxu0 %v11991
      %12284 = vmatmul.mubr.bf16.gmra.mrb[0].mxu0 %v11722
      %v12285 = vpop.f32.mrb[0].mxu0
      %v12286 = vadd.f32 0.0, %v12285
      %v12287 = vpop.f32.mrb[0].mxu0
      %v12288 = vpop.f32.mrb[0].mxu0
      %v12289 = vadd.f32 0.0, %v12288
      %v12290 = vpop.f32.mrb[0].mxu0
      %12291 = vmatprep.mubr.bf16.mxu0 %v11994
      %12292 = vmatmul.mubr.bf16.gmra.mrb[0].mxu0 %v11993
      %v12293 = vpop.f32.mrb[0].mxu0
      %v12294 = vadd.f32 0.0, %v12293
      %v12295 = vpop.f32.mrb[0].mxu0
      %v12296 = vpop.f32.mrb[0].mxu0
      %v12297 = vadd.f32 0.0, %v12296
      %v12298 = vpop.f32.mrb[0].mxu0
      %12299 = vmatprep.mubr.bf16.mxu0 %v11997
      %12300 = vmatmul.mubr.bf16.gmra.mrb[0].mxu0 %v11996
      %v12301 = vpop.f32.mrb[0].mxu0
      %v12302 = vadd.f32 0.0, %v12301
      %v12303 = vpop.f32.mrb[0].mxu0
      %v12304 = vpop.f32.mrb[0].mxu0
      %v12305 = vadd.f32 0.0, %v12304
      %v12306 = vpop.f32.mrb[0].mxu0
      %12307 = vdwg.mxu0
      %12308 = vmatprep.subr.bf16.mxu0 0
      %12309 = vmatpush1.bf16.msra.mxu0 %v12147
      %12310 = vmatprep.subr.bf16.mxu0 0
      %12311 = vmatpush1.bf16.msra.mxu0 %v12148
      %12312 = vmatprep.subr.bf16.mxu0 0
      %12313 = vmatpush1.bf16.msra.mxu0 %v12149
      %12314 = vmatprep.subr.bf16.mxu0 0
      %12315 = vmatpush1.bf16.msra.mxu0 %v12150
      %12316 = vmatprep.subr.bf16.mxu0 0
      %12317 = vmatpush1.bf16.msra.mxu0 %v12151
      %12318 = vmatprep.subr.bf16.mxu0 0
      %12319 = vmatpush1.bf16.msra.mxu0 %v12152
      %12320 = vmatprep.subr.bf16.mxu0 0
      %12321 = vmatpush1.bf16.msra.mxu0 %v12153
      %12322 = vmatprep.subr.bf16.mxu0 0
      %12323 = vmatpush1.bf16.msra.mxu0 %v12154
      %12324 = vmatprep.subr.bf16.mxu0 0
      %12325 = vmatpush1.bf16.msra.mxu0 0
      %12326 = vmatprep.subr.bf16.mxu0 0
      %12327 = vmatpush1.bf16.msra.mxu0 0
      %12328 = vmatprep.subr.bf16.mxu0 0
      %12329 = vmatpush1.bf16.msra.mxu0 0
      %12330 = vmatprep.subr.bf16.mxu0 0
      %12331 = vmatpush1.bf16.msra.mxu0 0
      %12332 = vmatprep.subr.bf16.mxu0 0
      %12333 = vmatpush1.bf16.msra.mxu0 0
      %12334 = vmatprep.subr.bf16.mxu0 0
      %12335 = vmatpush1.bf16.msra.mxu0 0
      %12336 = vmatprep.subr.bf16.mxu0 0
      %12337 = vmatpush1.bf16.msra.mxu0 0
      %12338 = vmatprep.subr.bf16.mxu0 0
      %12339 = vmatpush1.bf16.msra.mxu0 0
      %12340 = vmatprep.mubr.bf16.mxu0 0
      %12341 = vmatmul.mubr.bf16.gmra.mrb[0].mxu0 %v11968
      %v12342 = vpop.f32.mrb[0].mxu0
      %v12343 = vadd.f32 %v12214, %v12342
      %v12344 = vpop.f32.mrb[0].mxu0
      %v12345 = vpop.f32.mrb[0].mxu0
      %v12346 = vadd.f32 %v12217, %v12345
      %v12347 = vpop.f32.mrb[0].mxu0
      %12348 = vmatprep.mubr.bf16.mxu0 0
      %12349 = vmatmul.mubr.bf16.gmra.mrb[0].mxu0 %v11971
      %v12350 = vpop.f32.mrb[0].mxu0
      %v12351 = vadd.f32 %v12222, %v12350
      %v12352 = vpop.f32.mrb[0].mxu0
      %v12353 = vpop.f32.mrb[0].mxu0
      %v12354 = vadd.f32 %v12225, %v12353
      %v12355 = vpop.f32.mrb[0].mxu0
      %12356 = vmatprep.mubr.bf16.mxu0 0
      %12357 = vmatmul.mubr.bf16.gmra.mrb[0].mxu0 %v11974
      %v12358 = vpop.f32.mrb[0].mxu0
      %v12359 = vadd.f32 %v12230, %v12358
      %v12360 = vpop.f32.mrb[0].mxu0
      %v12361 = vpop.f32.mrb[0].mxu0
      %v12362 = vadd.f32 %v12233, %v12361
      %v12363 = vpop.f32.mrb[0].mxu0
      %12364 = vmatprep.mubr.bf16.mxu0 0
      %12365 = vmatmul.mubr.bf16.gmra.mrb[0].mxu0 %v11976
      %v12366 = vpop.f32.mrb[0].mxu0
      %v12367 = vadd.f32 %v12238, %v12366
      %v12368 = vpop.f32.mrb[0].mxu0
      %v12369 = vpop.f32.mrb[0].mxu0
      %v12370 = vadd.f32 %v12241, %v12369
      %v12371 = vpop.f32.mrb[0].mxu0
      %12372 = vmatprep.mubr.bf16.mxu0 0
      %12373 = vmatmul.mubr.bf16.gmra.mrb[0].mxu0 %v11979
      %v12374 = vpop.f32.mrb[0].mxu0
      %v12375 = vadd.f32 %v12246, %v12374
      %v12376 = vpop.f32.mrb[0].mxu0
      %v12377 = vpop.f32.mrb[0].mxu0
      %v12378 = vadd.f32 %v12249, %v12377
      %v12379 = vpop.f32.mrb[0].mxu0
      %12380 = vmatprep.mubr.bf16.mxu0 0
      %12381 = vmatmul.mubr.bf16.gmra.mrb[0].mxu0 %v11982
      %v12382 = vpop.f32.mrb[0].mxu0
      %v12383 = vadd.f32 %v12254, %v12382
      %v12384 = vpop.f32.mrb[0].mxu0
      %v12385 = vpop.f32.mrb[0].mxu0
      %v12386 = vadd.f32 %v12257, %v12385
      %v12387 = vpop.f32.mrb[0].mxu0
      %12388 = vmatprep.mubr.bf16.mxu0 0
      %12389 = vmatmul.mubr.bf16.gmra.mrb[0].mxu0 %v11984
      %v12390 = vpop.f32.mrb[0].mxu0
      %v12391 = vadd.f32 %v12262, %v12390
      %v12392 = vpop.f32.mrb[0].mxu0
      %v12393 = vpop.f32.mrb[0].mxu0
      %v12394 = vadd.f32 %v12265, %v12393
      %v12395 = vpop.f32.mrb[0].mxu0
      %12396 = vmatprep.mubr.bf16.mxu0 0
      %12397 = vmatmul.mubr.bf16.gmra.mrb[0].mxu0 %v11987
      %v12398 = vpop.f32.mrb[0].mxu0
      %v12399 = vadd.f32 %v12270, %v12398
      %v12400 = vpop.f32.mrb[0].mxu0
      %v12401 = vpop.f32.mrb[0].mxu0
      %v12402 = vadd.f32 %v12273, %v12401
      %v12403 = vpop.f32.mrb[0].mxu0
      %12404 = vmatprep.mubr.bf16.mxu0 0
      %12405 = vmatmul.mubr.bf16.gmra.mrb[0].mxu0 %v11990
      %v12406 = vpop.f32.mrb[0].mxu0
      %v12407 = vadd.f32 %v12278, %v12406
      %v12408 = vpop.f32.mrb[0].mxu0
      %v12409 = vpop.f32.mrb[0].mxu0
      %v12410 = vadd.f32 %v12281, %v12409
      %v12411 = vpop.f32.mrb[0].mxu0
      %12412 = vmatprep.mubr.bf16.mxu0 0
      %12413 = vmatmul.mubr.bf16.gmra.mrb[0].mxu0 %v11992
      %v12414 = vpop.f32.mrb[0].mxu0
      %v12415 = vadd.f32 %v12286, %v12414
      %v12416 = vpop.f32.mrb[0].mxu0
      %v12417 = vpop.f32.mrb[0].mxu0
      %v12418 = vadd.f32 %v12289, %v12417
      %v12419 = vpop.f32.mrb[0].mxu0
      %12420 = vmatprep.mubr.bf16.mxu0 0
      %12421 = vmatmul.mubr.bf16.gmra.mrb[0].mxu0 %v11995
      %v12422 = vpop.f32.mrb[0].mxu0
      %v12423 = vadd.f32 %v12294, %v12422
      %v12424 = vpop.f32.mrb[0].mxu0
      %v12425 = vpop.f32.mrb[0].mxu0
      %v12426 = vadd.f32 %v12297, %v12425
      %v12427 = vpop.f32.mrb[0].mxu0
      %12428 = vmatprep.mubr.bf16.mxu0 0
      %12429 = vmatmul.mubr.bf16.gmra.mrb[0].mxu0 %v11998
      %v12430 = vpop.f32.mrb[0].mxu0
      %v12431 = vadd.f32 %v12302, %v12430
      %v12432 = vpop.f32.mrb[0].mxu0
      %v12433 = vpop.f32.mrb[0].mxu0
      %v12434 = vadd.f32 %v12305, %v12433
      %v12435 = vpop.f32.mrb[0].mxu0
      %12436 = vdwg.mxu0
      %v12437 = vadd.f32 %v11520, %v12343
      %v12438 = vadd.f32 %v11523, %v12346
      %v12439 = vadd.f32 %v11528, %v12351
      %v12440 = vadd.f32 %v11531, %v12354
      %v12441 = vadd.f32 %v11536, %v12359
      %v12442 = vadd.f32 %v11539, %v12362
      %v12443 = vadd.f32 %v11544, %v12367
      %v12444 = vadd.f32 %v11547, %v12370
      %v12445 = vadd.f32 %v11552, %v12375
      %v12446 = vadd.f32 %v11555, %v12378
      %v12447 = vadd.f32 %v11560, %v12383
      %v12448 = vadd.f32 %v11563, %v12386
      %v12449 = vadd.f32 %v11568, %v12391
      %v12450 = vadd.f32 %v11571, %v12394
      %v12451 = vadd.f32 %v11576, %v12399
      %v12452 = vadd.f32 %v11579, %v12402
      %v12453 = vadd.f32 %v11584, %v12407
      %v12454 = vadd.f32 %v11587, %v12410
      %v12455 = vadd.f32 %v11592, %v12415
      %v12456 = vadd.f32 %v11595, %v12418
      %v12457 = vadd.f32 %v11600, %v12423
      %v12458 = vadd.f32 %v11603, %v12426
      %v12459 = vadd.f32 %v11608, %v12431
      %v12460 = vadd.f32 %v11611, %v12434
      %v12461 = vld [vmem:[%s7] sm:$0x1]
      %v12463 = vlaneseq
      %v12464 = vshrl.u32 %v12463, 7
      %v12465 = vsub.s32 0, %v12464
      %v12466 = vrot.slane %v12461, %v12465
      %v12468 = vadd.f32 %v12437, %v12466
      %v12469 = vadd.f32 %v12438, %v12466
      %v12470 = vadd.f32 %v12439, %v12466
      %v12471 = vadd.f32 %v12440, %v12466
      %v12472 = vadd.f32 %v12441, %v12466
      %v12473 = vadd.f32 %v12442, %v12466
      %v12474 = vadd.f32 %v12443, %v12466
      %v12475 = vadd.f32 %v12444, %v12466
      %v12476 = vadd.f32 %v12445, %v12466
      %v12477 = vadd.f32 %v12446, %v12466
      %v12478 = vadd.f32 %v12447, %v12466
      %v12479 = vadd.f32 %v12448, %v12466
      %v12480 = vadd.f32 %v12449, %v12466
      %v12481 = vadd.f32 %v12450, %v12466
      %v12482 = vadd.f32 %v12451, %v12466
      %v12483 = vadd.f32 %v12452, %v12466
      %v12484 = vadd.f32 %v12453, %v12466
      %v12485 = vadd.f32 %v12454, %v12466
      %v12486 = vadd.f32 %v12455, %v12466
      %v12487 = vadd.f32 %v12456, %v12466
      %v12488 = vadd.f32 %v12457, %v12466
      %v12489 = vadd.f32 %v12458, %v12466
      %v12490 = vadd.f32 %v12459, %v12466
      %v12491 = vadd.f32 %v12460, %v12466
      %vm12492 = vcmp.ge.f32.partialorder %v12468, 0.0
      %vm12493 = vcmp.ge.f32.partialorder %v12469, 0.0
      %vm12494 = vcmp.ge.f32.partialorder %v12470, 0.0
      %vm12495 = vcmp.ge.f32.partialorder %v12471, 0.0
      %vm12496 = vcmp.ge.f32.partialorder %v12472, 0.0
      %vm12497 = vcmp.ge.f32.partialorder %v12473, 0.0
      %vm12498 = vcmp.ge.f32.partialorder %v12474, 0.0
      %vm12499 = vcmp.ge.f32.partialorder %v12475, 0.0
      %vm12500 = vcmp.ge.f32.partialorder %v12476, 0.0
      %vm12501 = vcmp.ge.f32.partialorder %v12477, 0.0
      %vm12502 = vcmp.ge.f32.partialorder %v12478, 0.0
      %vm12503 = vcmp.ge.f32.partialorder %v12479, 0.0
      %vm12504 = vcmp.ge.f32.partialorder %v12480, 0.0
      %vm12505 = vcmp.ge.f32.partialorder %v12481, 0.0
      %vm12506 = vcmp.ge.f32.partialorder %v12482, 0.0
      %vm12507 = vcmp.ge.f32.partialorder %v12483, 0.0
      %vm12508 = vcmp.ge.f32.partialorder %v12484, 0.0
      %vm12509 = vcmp.ge.f32.partialorder %v12485, 0.0
      %vm12510 = vcmp.ge.f32.partialorder %v12486, 0.0
      %vm12511 = vcmp.ge.f32.partialorder %v12487, 0.0
      %vm12512 = vcmp.ge.f32.partialorder %v12488, 0.0
      %vm12513 = vcmp.ge.f32.partialorder %v12489, 0.0
      %vm12514 = vcmp.ge.f32.partialorder %v12490, 0.0
      %vm12515 = vcmp.ge.f32.partialorder %v12491, 0.0
      %v12516 = vmul.f32 %v12468, 0.01
      %v12517 = vmul.f32 %v12469, 0.01
      %v12518 = vmul.f32 %v12470, 0.01
      %v12519 = vmul.f32 %v12471, 0.01
      %v12520 = vmul.f32 %v12472, 0.01
      %v12521 = vmul.f32 %v12473, 0.01
      %v12522 = vmul.f32 %v12474, 0.01
      %v12523 = vmul.f32 %v12475, 0.01
      %v12524 = vmul.f32 %v12476, 0.01
      %v12525 = vmul.f32 %v12477, 0.01
      %v12526 = vmul.f32 %v12478, 0.01
      %v12527 = vmul.f32 %v12479, 0.01
      %v12528 = vmul.f32 %v12480, 0.01
      %v12529 = vmul.f32 %v12481, 0.01
      %v12530 = vmul.f32 %v12482, 0.01
      %v12531 = vmul.f32 %v12483, 0.01
      %v12532 = vmul.f32 %v12484, 0.01
      %v12533 = vmul.f32 %v12485, 0.01
      %v12534 = vmul.f32 %v12486, 0.01
      %v12535 = vmul.f32 %v12487, 0.01
      %v12536 = vmul.f32 %v12488, 0.01
      %v12537 = vmul.f32 %v12489, 0.01
      %v12538 = vmul.f32 %v12490, 0.01
      %v12539 = vmul.f32 %v12491, 0.01
      %v12540 = vsel %vm12492, %v12468, %v12516
      %v12541 = vsel %vm12493, %v12469, %v12517
      %v12542 = vsel %vm12494, %v12470, %v12518
      %v12543 = vsel %vm12495, %v12471, %v12519
      %v12544 = vsel %vm12496, %v12472, %v12520
      %v12545 = vsel %vm12497, %v12473, %v12521
      %v12546 = vsel %vm12498, %v12474, %v12522
      %v12547 = vsel %vm12499, %v12475, %v12523
      %v12548 = vsel %vm12500, %v12476, %v12524
      %v12549 = vsel %vm12501, %v12477, %v12525
      %v12550 = vsel %vm12502, %v12478, %v12526
      %v12551 = vsel %vm12503, %v12479, %v12527
      %v12552 = vsel %vm12504, %v12480, %v12528
      %v12553 = vsel %vm12505, %v12481, %v12529
      %v12554 = vsel %vm12506, %v12482, %v12530
      %v12555 = vsel %vm12507, %v12483, %v12531
      %v12556 = vsel %vm12508, %v12484, %v12532
      %v12557 = vsel %vm12509, %v12485, %v12533
      %v12558 = vsel %vm12510, %v12486, %v12534
      %v12559 = vsel %vm12511, %v12487, %v12535
      %v12560 = vsel %vm12512, %v12488, %v12536
      %v12561 = vsel %vm12513, %v12489, %v12537
      %v12562 = vsel %vm12514, %v12490, %v12538
      %v12563 = vsel %vm12515, %v12491, %v12539
      %vm12564 = vcmask 64512
      %12565 = vst.msk [vmem:[%s382] sm:$0xff] %vm12564, %v12540
      %12566 = vst.msk [vmem:[%s382 + $0x8] sm:$0xff] %vm12564, %v12541
      %12567 = vst.msk [vmem:[%s382 + $0x10] sm:$0xff] %vm12564, %v12542
      %12568 = vst.msk [vmem:[%s382 + $0x18] sm:$0xff] %vm12564, %v12543
      %12569 = vst.msk [vmem:[%s382 + $0x20] sm:$0xff] %vm12564, %v12544
      %12570 = vst.msk [vmem:[%s382 + $0x28] sm:$0xff] %vm12564, %v12545
      %12571 = vst.msk [vmem:[%s382 + $0x30] sm:$0xff] %vm12564, %v12546
      %12572 = vst.msk [vmem:[%s382 + $0x38] sm:$0xff] %vm12564, %v12547
      %12573 = vst.msk [vmem:[%s382 + $0x40] sm:$0xff] %vm12564, %v12548
      %12574 = vst.msk [vmem:[%s382 + $0x48] sm:$0xff] %vm12564, %v12549
      %12575 = vst.msk [vmem:[%s382 + $0x50] sm:$0xff] %vm12564, %v12550
      %12576 = vst.msk [vmem:[%s382 + $0x58] sm:$0xff] %vm12564, %v12551
      %12577 = vst.msk [vmem:[%s382 + $0x60] sm:$0xff] %vm12564, %v12552
      %12578 = vst.msk [vmem:[%s382 + $0x68] sm:$0xff] %vm12564, %v12553
      %12579 = vst.msk [vmem:[%s382 + $0x70] sm:$0xff] %vm12564, %v12554
      %12580 = vst.msk [vmem:[%s382 + $0x78] sm:$0xff] %vm12564, %v12555
      %12581 = vst.msk [vmem:[%s382 + $0x80] sm:$0xff] %vm12564, %v12556
      %12582 = vst.msk [vmem:[%s382 + $0x88] sm:$0xff] %vm12564, %v12557
      %12583 = vst.msk [vmem:[%s382 + $0x90] sm:$0xff] %vm12564, %v12558
      %12584 = vst.msk [vmem:[%s382 + $0x98] sm:$0xff] %vm12564, %v12559
      %12585 = vst.msk [vmem:[%s382 + $0xa0] sm:$0xff] %vm12564, %v12560
      %12586 = vst.msk [vmem:[%s382 + $0xa8] sm:$0xff] %vm12564, %v12561
      %12587 = vst.msk [vmem:[%s382 + $0xb0] sm:$0xff] %vm12564, %v12562
      %12588 = vst.msk [vmem:[%s382 + $0xb8] sm:$0xff] %vm12564, %v12563
      %s12589 = smul.u32 8, %s24
      %p12590 = scmp.lt.s32.totalorder %s23, 1
      %s12591 = scalar_select %p12590, %s23, 1
      %p12592 = scmp.lt.s32.totalorder %s12589, 23
      %s12593 = scalar_select %p12592, %s12589, 23
      %s12594 = smul.addr %s12593, 3
      %s12595 = smul.addr %s12591, 72
      %s12596 = sadd.s32 %s12594, %s12595
      %s12597 = smul.addr %s12596, 8
      %s12598 = scalar_lea.vmem %s8, %s12597
      // Predicated region
      $region77: #{down_forward.1} parent=51 // pred_check
        %p12599 = pneg %p233
      $region78: #{down_forward.1} parent=51 // pred_check_branch
        %12601 = sbr.rel (%p12599) target = $region80
      $region79: #{down_forward.1} parent=51 // pred_region
        %s12602 = smul.u32 8, %s24
      $region80: #{down_forward.1} parent=51 // pred_fallthru
        _
    $region52: #{down_forward.1} parent=5 // pred_fallthru
      _
    %p12603 = scmp.le.s32.totalorder 2, %s14
    // Predicated region
    $region81: #{down_forward.1} parent=5 // pred_check
      %p12604 = pneg %p12603
    $region82: #{down_forward.1} parent=5 // pred_check_branch
      %12606 = sbr.rel (%p12604) target = $region84
    $region83: #{down_forward.1} parent=5 // pred_region
      %s12607 = ssub.s32 %s14, 2
      // Predicated region
      $region85: #{down_forward.1} parent=83 // pred_check
        %p12608 = pneg %p239
      $region86: #{down_forward.1} parent=83 // pred_check_branch
        %12610 = sbr.rel (%p12608) target = $region88
      $region87: #{down_forward.1} parent=83 // pred_region
        %s12611 = smul.u32 8, %s26
        %p12612 = scmp.lt.s32.totalorder %s25, 1
        %s12613 = scalar_select %p12612, %s25, 1
        %p12614 = scmp.lt.s32.totalorder %s12611, 23
        %s12615 = scalar_select %p12614, %s12611, 23
        %s12616 = smul.addr %s12615, 3
        %s12617 = smul.addr %s12613, 72
        %s12618 = sadd.s32 %s12616, %s12617
        %s12619 = smul.addr %s12618, 8
        %s12620 = scalar_lea.vmem %s8, %s12619
      $region88: #{down_forward.1} parent=83 // pred_fallthru
        _
    $region84: #{down_forward.1} parent=5 // pred_fallthru
      _
  $region6: #{down_forward.1} parent=0 // loop_footer
    %s18 = sadd.s32 1, %s14
  $region7: #{down_forward.1} parent=0 // loop_footer_branch
    %13 = sbr.rel target = $region3
  $region8: #{down_forward.1} parent=0 // loop_exit
    _

</llo_original>
